<compile_context>
chip_gen: v6e
topology: v6e:2x2x1
jax: 0.10.0
libtpu: 0.0.40
codegen_flags: <defaults>
</compile_context>

<pallas_src>
import functools

import jax
import jax.numpy as jnp
from jax.experimental import pallas as pl
from jax.experimental.pallas import tpu as pltpu

EPS = 1e-5
NEG_SLOPE = 0.2
# MXU-native dtype for the conv matmul inputs (f32 accumulation is kept).
# Set to jnp.float32 for bit-closer parity with the PyTorch f32 Conv2d.
MATMUL_DTYPE = jnp.bfloat16


def _row_tile(n, target, step=8):
    """Largest tile dividing n that is a multiple of `step` and <= target.

    Falls back to the full *per-batch* extent n (always a legal block and
    bounded by the point count, not B*N, so it cannot blow VMEM the way the
    old P-level fallback could).
    TODO(synk): pad N + mask instead for very large prime-ish point counts."""
    if n <= target:
        return n
    best = 0
    for t in range(step, target + 1, step):
        if n % t == 0:
            best = t
    return best if best else n


# ----------------------------------------------------------------------------
# Kernel 1: conv matmul  z = x @ W1^T,  c = x @ (W2-W1)^T   (bf16 in, f32 acc)
# ----------------------------------------------------------------------------
def _conv_kernel(x_ref, w1_ref, wd_ref, z_ref, c_ref):
    x = x_ref[0]                                                   # (tn, C) bf16
    z_ref[0] = jnp.dot(x, w1_ref[...], preferred_element_type=jnp.float32)
    c_ref[0] = jnp.dot(x, wd_ref[...], preferred_element_type=jnp.float32)


def conv_matmul(x, w1t, wdt, *, row_target=512):
    # x: (B, N, C) bf16, w1t/wdt: (C, Cout) bf16 -> z, c: (B, N, Cout) f32
    B, N, C = x.shape
    Cout = w1t.shape[1]
    tn = _row_tile(N, row_target, step=16)          # bf16 sublane packing
    return pl.pallas_call(
        _conv_kernel,
        out_shape=(jax.ShapeDtypeStruct((B, N, Cout), jnp.float32),
                   jax.ShapeDtypeStruct((B, N, Cout), jnp.float32)),
        grid=(B, N // tn),
        in_specs=[
            pl.BlockSpec((1, tn, C), lambda b, i: (b, i, 0)),
            pl.BlockSpec((C, Cout), lambda b, i: (0, 0)),
            pl.BlockSpec((C, Cout), lambda b, i: (0, 0)),
        ],
        out_specs=(pl.BlockSpec((1, tn, Cout), lambda b, i: (b, i, 0)),
                   pl.BlockSpec((1, tn, Cout), lambda b, i: (b, i, 0))),
        compiler_params=pltpu.CompilerParams(
            dimension_semantics=("parallel", "parallel")),
    )(x, w1t, wdt)


# ----------------------------------------------------------------------------
# Kernel 2: fused KNN + in-kernel neighbour gather + K-max/min + BN statistics
# ----------------------------------------------------------------------------
def _edge_kernel(q_ref, k_ref, xx_ref, z_ref, c_ref, mm_ref, st_ref, *,
                 k, nonneg_gamma):
    @pl.when(pl.program_id(1) == 0)
    def _init():
        st_ref[...] = jnp.zeros_like(st_ref)

    q = q_ref[0] * 2.0                       # (tn, C)   queries (x2 folded in)
    keys = k_ref[0]                          # (C, N)    per-batch, VMEM-resident
    xx = xx_ref[0]                           # (1, N)    ||x_j||^2
    zb = z_ref[0]                            # (N, Cout) per-batch, VMEM-resident
    cc = c_ref[0]                            # (tn, Cout)

    # Ranking scores 2*x_i.x_j - ||x_j||^2 (the per-row constant -||x_i||^2 of
    # the torch pairwise distance does not change the per-row top-k).  Kept in
    # f32 so the neighbour ranking matches the reference.
    scores = jax.lax.dot_general(
        q, keys, (((1,), (0,)), ((), ())),
        preferred_element_type=jnp.float32) - xx                   # (tn, N)
    tn, n = scores.shape
    colf = jax.lax.broadcasted_iota(jnp.int32, (tn, n), 1).astype(jnp.float32)
    big = jnp.float32(n)

    z_max = z_min = z_sum = z_sq = None
    for t in range(k):                       # static unroll over the K picks
        # Pick = argmax with lowest-index tie-break.  jnp.argmax lowering on
        # the lane axis is not guaranteed in Mosaic, so the max + masked-min
        # idiom is kept; the pick's one-hot mask doubles as the gather operand.
        m = jnp.max(scores, axis=-1, keepdims=True)
        sel = jnp.min(jnp.where(scores == m, colf, big),
                      axis=-1, keepdims=True)
        onehot = colf == sel                                       # (tn, N)
        scores = jnp.where(onehot, -jnp.inf, scores)
        # In-kernel row gather of z via one-hot @ z on the VMEM-resident slab:
        # no (K, P, Cout) HBM intermediate, no (B, N, K) index array.
        zt = jax.lax.dot_general(
            onehot.astype(jnp.float32), zb, (((1,), (0,)), ((), ())),
            preferred_element_type=jnp.float32)                    # (tn, Cout)
        if t == 0:
            z_max, z_min, z_sum, z_sq = zt, zt, zt, zt * zt
        else:
            z_max = jnp.maximum(z_max, zt)
            z_sum = z_sum + zt
            z_sq = z_sq + zt * zt
            if not nonneg_gamma:
                z_min = jnp.minimum(z_min, zt)

    if nonneg_gamma:
        mm_ref[0] = z_max
    else:
        mm_ref[0] = jnp.concatenate([z_max, z_min], axis=-1)

    # BatchNorm2d batch statistics of y = z_gathered + c, accumulated per batch.
    kf = jnp.float32(k)
    s_y = jnp.sum(z_sum + kf * cc, axis=0, keepdims=True)
    # TODO(synk): E[y^2]-mean^2 can cancel for huge activations; a per-channel
    # shift subtracted before accumulation would be numerically safer.
    s_y2 = jnp.sum(z_sq + 2.0 * cc * z_sum + kf * cc * cc,
                   axis=0, keepdims=True)
    st_ref[0] += jnp.concatenate([s_y, s_y2], axis=-1)


def edge_knn_stats(xt, xk, xx, z, c, k, *, nonneg_gamma, row_target=128):
    # xt: (B,N,C), xk: (B,C,N), xx: (B,1,N), z/c: (B,N,Cout)
    B, N, C = xt.shape
    Cout = z.shape[-1]
    mout = Cout if nonneg_gamma else 2 * Cout
    tn = _row_tile(N, row_target)
    maxmin, stats = pl.pallas_call(
        functools.partial(_edge_kernel, k=k, nonneg_gamma=nonneg_gamma),
        out_shape=(jax.ShapeDtypeStruct((B, N, mout), jnp.float32),
                   jax.ShapeDtypeStruct((B, 1, 2 * Cout), jnp.float32)),
        grid=(B, N // tn),
        in_specs=[
            pl.BlockSpec((1, tn, C), lambda b, i: (b, i, 0)),     # queries
            pl.BlockSpec((1, C, N), lambda b, i: (b, 0, 0)),      # keys (resident/batch)
            pl.BlockSpec((1, 1, N), lambda b, i: (b, 0, 0)),      # ||x_j||^2
            pl.BlockSpec((1, N, Cout), lambda b, i: (b, 0, 0)),   # z slab (resident/batch)
            pl.BlockSpec((1, tn, Cout), lambda b, i: (b, i, 0)),  # centre term
        ],
        out_specs=(pl.BlockSpec((1, tn, mout), lambda b, i: (b, i, 0)),
                   pl.BlockSpec((1, 1, 2 * Cout), lambda b, i: (b, 0, 0))),
        compiler_params=pltpu.CompilerParams(
            dimension_semantics=("parallel", "arbitrary"),
            vmem_limit_bytes=48 * 1024 * 1024),
    )(xt, xk, xx, z, c)
    return maxmin, stats[:, 0, :]


# ----------------------------------------------------------------------------
# Kernel 3: BN affine + LeakyReLU applied after the K-max (exact reordering)
# ----------------------------------------------------------------------------
def _finalize_kernel(mm_ref, c_ref, a_ref, b_ref, o_ref, *, nonneg_gamma):
    a = a_ref[...]                          # (1, Cout)
    bb = b_ref[...]
    cout = c_ref.shape[-1]
    mm = mm_ref[0]
    if nonneg_gamma:
        m_sel = mm
    else:
        # max_k LeakyReLU(a*y_k+b) == LeakyReLU(a*max_k y_k + b) for a >= 0,
        # and uses min_k when a < 0, so arbitrary trained gammas stay exact.
        m_sel = jnp.where(a >= 0.0, mm[:, :cout], mm[:, cout:])
    y = a * (m_sel + c_ref[0]) + bb
    o_ref[0] = jnp.where(y >= 0.0, y, NEG_SLOPE * y)


def edge_finalize(maxmin, c, a, b, *, nonneg_gamma, row_target=512):
    B, N, Cout = c.shape
    mout = maxmin.shape[-1]
    tn = _row_tile(N, row_target)
    return pl.pallas_call(
        functools.partial(_finalize_kernel, nonneg_gamma=nonneg_gamma),
        out_shape=jax.ShapeDtypeStruct((B, N, Cout), jnp.float32),
        grid=(B, N // tn),
        in_specs=[
            pl.BlockSpec((1, tn, mout), lambda b, i: (b, i, 0)),
            pl.BlockSpec((1, tn, Cout), lambda b, i: (b, i, 0)),
            pl.BlockSpec((1, Cout), lambda b, i: (0, 0)),
            pl.BlockSpec((1, Cout), lambda b, i: (0, 0)),
        ],
        out_specs=pl.BlockSpec((1, tn, Cout), lambda b, i: (b, i, 0)),
        compiler_params=pltpu.CompilerParams(
            dimension_semantics=("parallel", "parallel")),
    )(maxmin, c, a, b)


# ----------------------------------------------------------------------------
# One DGCNNLayer (mlp=[Cout]) and the full DGCNN_origin forward
# ----------------------------------------------------------------------------
def dgcnn_layer(xt, xk, xx, w, gamma, beta, knn_k, *, nonneg_gamma):
    # xt: (B,N,C), xk: (B,C,N), xx: (B,1,N), w: (Cout, 2C) Conv2d weight.
    B, N, C = xt.shape
    Cout = w.shape[0]
    w1, w2 = w[:, :C], w[:, C:]
    w1t = w1.T.astype(MATMUL_DTYPE)                     # (C, Cout)
    wdt = (w2 - w1).T.astype(MATMUL_DTYPE)
    z, c = conv_matmul(xt.astype(MATMUL_DTYPE), w1t, wdt)

    maxmin, stats = edge_knn_stats(xt, xk, xx, z, c, knn_k,
                                   nonneg_gamma=nonneg_gamma)

    # BatchNorm2d, training mode: biased batch statistics over B*N*K.
    count = float(B * N * knn_k)
    s = jnp.sum(stats[:, :Cout], axis=0)
    q = jnp.sum(stats[:, Cout:], axis=0)
    mean = s / count
    var = jnp.maximum(q / count - mean * mean, 0.0)
    a = gamma * jax.lax.rsqrt(var + EPS)
    b = beta - mean * a

    return edge_finalize(maxmin, c, a[None, :], b[None, :],
                         nonneg_gamma=nonneg_gamma)              # (B, N, Cout)


@functools.partial(jax.jit, static_argnames=("knn_k", "nonneg_gamma"))
def dgcnn_origin_forward(x, params, *, knn_k, nonneg_gamma=False):
    # x: (B, Cin, N) -> (B, Cin + sum(layer widths), N)
    # Matches DGCNN_origin.forward with transform=False (no TransformNet).
    outs = [x]
    xk = x                                              # (B, C, N) channel-first
    xt = jnp.transpose(x, (0, 2, 1))                    # (B, N, C) point-major
    for layer in params:
        xx = jnp.sum(xt * xt, axis=-1)[:, None, :]      # (B, 1, N)
        xt = dgcnn_layer(xt, xk, xx, layer["w"], layer["gamma"], layer["beta"],
                         knn_k, nonneg_gamma=nonneg_gamma)
        xk = jnp.transpose(xt, (0, 2, 1))               # next keys + output layout
        outs.append(xk)
    return jnp.concatenate(outs, axis=1)


# ----------------------------------------------------------------------------
# Deterministic parameter init + smoke test
# ----------------------------------------------------------------------------
def init_params(key, in_channel, layer_widths):
    params = []
    cin = in_channel
    for width in layer_widths:
        key, sub = jax.random.split(key)
        bound = 1.0 / (2.0 * cin) ** 0.5
        params.append({
            # PyTorch Conv2d(2*cin, width, kernel_size=1, bias=False) weight,
            # stored with the trailing 1x1 kernel dims squeezed: (width, 2*cin).
            "w": jax.random.uniform(sub, (width, 2 * cin), jnp.float32,
                                    -bound, bound),
            "gamma": jnp.ones((width,), jnp.float32),   # fresh BatchNorm2d
            "beta": jnp.zeros((width,), jnp.float32),
        })
        cin = width
    return params


if __name__ == "__main__":
    B, C_IN, N = 2, 3, 16            # batch, input channels, num points
    KNN_K = 4                        # knnNum (must be <= N)
    LAYERS = [8, 16, 32]             # DGCNN_origin(layers=[64,128,256]) scaled down

    key = jax.random.PRNGKey(0)
    kx, kp = jax.random.split(key)
    x = jax.random.normal(kx, (B, C_IN, N), jnp.float32)
    params = init_params(kp, C_IN, LAYERS)

    # Fresh BatchNorm2d has gamma == 1 > 0, so the min-branch can be skipped
    # exactly (nonneg_gamma=True); pass False for arbitrary trained gammas.
    out = dgcnn_origin_forward(x, params, knn_k=KNN_K, nonneg_gamma=True)
    out = jax.block_until_ready(out)

    assert out.shape == (B, C_IN + sum(LAYERS), N), out.shape
    assert bool(jnp.all(jnp.isfinite(out)))
    print("KERNEL_OK")
</pallas_src>

<mosaic_0001>
module attributes {stable_mosaic.version = 11 : i64} {
  func.func @_edge_kernel(%arg0: i32, %arg1: i32, %arg2: memref<1x16x3xf32, #tpu.memory_space<vmem>>, %arg3: memref<1x3x16xf32, #tpu.memory_space<vmem>>, %arg4: memref<1x1x16xf32, #tpu.memory_space<vmem>>, %arg5: memref<1x16x8xf32, #tpu.memory_space<vmem>>, %arg6: memref<1x16x8xf32, #tpu.memory_space<vmem>>, %arg7: memref<1x16x8xf32, #tpu.memory_space<vmem>>, %arg8: memref<1x1x16xf32, #tpu.memory_space<vmem>>) attributes {dimension_semantics = [#tpu.dimension_semantics<parallel>, #tpu.dimension_semantics<arbitrary>], iteration_bounds = array<i64: 2, 1>, scalar_prefetch = 0 : i64, scratch_operands = 0 : i64, tpu.core_type = #tpu.core_type<tc>, window_params = [{transform_indices = @transform_0, window_bounds = array<i64: 1, 16, 3>}, {transform_indices = @transform_1, window_bounds = array<i64: 1, 3, 16>}, {transform_indices = @transform_2, window_bounds = array<i64: 1, 1, 16>}, {transform_indices = @transform_3, window_bounds = array<i64: 1, 16, 8>}, {transform_indices = @transform_4, window_bounds = array<i64: 1, 16, 8>}, {transform_indices = @transform_5, window_bounds = array<i64: 1, 16, 8>}, {transform_indices = @transform_6, window_bounds = array<i64: 1, 1, 16>}]} {
    %c0_i32 = arith.constant 0 : i32
    %0 = arith.cmpi eq, %arg1, %c0_i32 : i32
    %1 = arith.extui %0 : i1 to i32
    %c0_i32_0 = arith.constant 0 : i32
    %2 = arith.cmpi ne, %1, %c0_i32_0 : i32
    scf.if %2 {
      %cst_49 = arith.constant 0.000000e+00 : f32
      %116 = vector.broadcast %cst_49 : f32 to vector<1x1x16xf32>
      %c0_50 = arith.constant 0 : index
      %c0_51 = arith.constant 0 : index
      %c0_52 = arith.constant 0 : index
      %117 = vector.load %arg8[%c0_50, %c0_51, %c0_52] : memref<1x1x16xf32, #tpu.memory_space<vmem>>, vector<1x1x16xf32>
      tpu.vector_store %arg8[%c0_50, %c0_51, %c0_52], %116 {strides = array<i32>} : memref<1x1x16xf32, #tpu.memory_space<vmem>>, vector<1x1x16xf32>,
    } else {
    }
    %c0 = arith.constant 0 : index
    %c0_1 = arith.constant 0 : index
    %c0_2 = arith.constant 0 : index
    %3 = vector.load %arg2[%c0, %c0_1, %c0_2] : memref<1x16x3xf32, #tpu.memory_space<vmem>>, vector<1x16x3xf32>
    %4 = vector.shape_cast %3 : vector<1x16x3xf32> to vector<16x3xf32>
    %cst = arith.constant 2.000000e+00 : f32
    %5 = vector.broadcast %cst : f32 to vector<16x3xf32>
    %6 = arith.mulf %4, %5 : vector<16x3xf32>
    %c0_3 = arith.constant 0 : index
    %c0_4 = arith.constant 0 : index
    %c0_5 = arith.constant 0 : index
    %7 = vector.load %arg3[%c0_3, %c0_4, %c0_5] : memref<1x3x16xf32, #tpu.memory_space<vmem>>, vector<1x3x16xf32>
    %8 = vector.shape_cast %7 : vector<1x3x16xf32> to vector<3x16xf32>
    %c0_6 = arith.constant 0 : index
    %c0_7 = arith.constant 0 : index
    %c0_8 = arith.constant 0 : index
    %9 = vector.load %arg4[%c0_6, %c0_7, %c0_8] : memref<1x1x16xf32, #tpu.memory_space<vmem>>, vector<1x1x16xf32>
    %10 = vector.shape_cast %9 : vector<1x1x16xf32> to vector<1x16xf32>
    %c0_9 = arith.constant 0 : index
    %c0_10 = arith.constant 0 : index
    %c0_11 = arith.constant 0 : index
    %11 = vector.load %arg5[%c0_9, %c0_10, %c0_11] : memref<1x16x8xf32, #tpu.memory_space<vmem>>, vector<1x16x8xf32>
    %12 = vector.shape_cast %11 : vector<1x16x8xf32> to vector<16x8xf32>
    %c0_12 = arith.constant 0 : index
    %c0_13 = arith.constant 0 : index
    %c0_14 = arith.constant 0 : index
    %13 = vector.load %arg6[%c0_12, %c0_13, %c0_14] : memref<1x16x8xf32, #tpu.memory_space<vmem>>, vector<1x16x8xf32>
    %14 = vector.shape_cast %13 : vector<1x16x8xf32> to vector<16x8xf32>
    %cst_15 = arith.constant dense<0.000000e+00> : vector<16x16xf32>
    %15 = tpu.matmul %6, %8, %cst_15 {dimension_numbers = #tpu.dot_dimension_numbers<[1], [0], [0], [1], [0, 0, 1, 1], [], []>} : vector<16x3xf32>, vector<3x16xf32>, vector<16x16xf32> -> vector<16x16xf32>
    %16 = vector.broadcast %10 : vector<1x16xf32> to vector<16x16xf32>
    %17 = arith.subf %15, %16 : vector<16x16xf32>
    %18 = tpu.iota {dimensions = array<i32: 1>} : vector<16x16xi32>
    %19 = arith.sitofp %18 : vector<16x16xi32> to vector<16x16xf32>
    %cst_16 = arith.constant dense<0xFF800000> : vector<16xf32>
    %20 = vector.multi_reduction <maximumf>, %17, %cst_16 [1] : vector<16x16xf32> to vector<16xf32>
    %21 = vector.shape_cast %20 : vector<16xf32> to vector<16x1xf32>
    %22 = vector.broadcast %21 : vector<16x1xf32> to vector<16x16xf32>
    %23 = arith.cmpf oeq, %17, %22 : vector<16x16xf32>
    %cst_17 = arith.constant 1.600000e+01 : f32
    %24 = vector.broadcast %cst_17 : f32 to vector<16x16xf32>
    %25 = arith.select %23, %19, %24 : vector<16x16xi1>, vector<16x16xf32>
    %cst_18 = arith.constant dense<0x7F800000> : vector<16xf32>
    %26 = vector.multi_reduction <minimumf>, %25, %cst_18 [1] : vector<16x16xf32> to vector<16xf32>
    %27 = vector.shape_cast %26 : vector<16xf32> to vector<16x1xf32>
    %28 = vector.broadcast %27 : vector<16x1xf32> to vector<16x16xf32>
    %29 = arith.cmpf oeq, %19, %28 : vector<16x16xf32>
    %cst_19 = arith.constant 0xFF800000 : f32
    %30 = vector.broadcast %cst_19 : f32 to vector<16x16xf32>
    %31 = arith.select %29, %30, %17 : vector<16x16xi1>, vector<16x16xf32>
    %32 = arith.extui %29 : vector<16x16xi1> to vector<16x16xi32>
    %33 = arith.sitofp %32 : vector<16x16xi32> to vector<16x16xf32>
    %cst_20 = arith.constant dense<0.000000e+00> : vector<16x8xf32>
    %34 = tpu.matmul %33, %12, %cst_20 {dimension_numbers = #tpu.dot_dimension_numbers<[1], [0], [0], [1], [0, 0, 1, 1], [], []>} : vector<16x16xf32>, vector<16x8xf32>, vector<16x8xf32> -> vector<16x8xf32>
    %35 = arith.mulf %34, %34 : vector<16x8xf32>
    %cst_21 = arith.constant dense<0xFF800000> : vector<16xf32>
    %36 = vector.multi_reduction <maximumf>, %31, %cst_21 [1] : vector<16x16xf32> to vector<16xf32>
    %37 = vector.shape_cast %36 : vector<16xf32> to vector<16x1xf32>
    %38 = vector.broadcast %37 : vector<16x1xf32> to vector<16x16xf32>
    %39 = arith.cmpf oeq, %31, %38 : vector<16x16xf32>
    %cst_22 = arith.constant 1.600000e+01 : f32
    %40 = vector.broadcast %cst_22 : f32 to vector<16x16xf32>
    %41 = arith.select %39, %19, %40 : vector<16x16xi1>, vector<16x16xf32>
    %cst_23 = arith.constant dense<0x7F800000> : vector<16xf32>
    %42 = vector.multi_reduction <minimumf>, %41, %cst_23 [1] : vector<16x16xf32> to vector<16xf32>
    %43 = vector.shape_cast %42 : vector<16xf32> to vector<16x1xf32>
    %44 = vector.broadcast %43 : vector<16x1xf32> to vector<16x16xf32>
    %45 = arith.cmpf oeq, %19, %44 : vector<16x16xf32>
    %cst_24 = arith.constant 0xFF800000 : f32
    %46 = vector.broadcast %cst_24 : f32 to vector<16x16xf32>
    %47 = arith.select %45, %46, %31 : vector<16x16xi1>, vector<16x16xf32>
    %48 = arith.extui %45 : vector<16x16xi1> to vector<16x16xi32>
    %49 = arith.sitofp %48 : vector<16x16xi32> to vector<16x16xf32>
    %cst_25 = arith.constant dense<0.000000e+00> : vector<16x8xf32>
    %50 = tpu.matmul %49, %12, %cst_25 {dimension_numbers = #tpu.dot_dimension_numbers<[1], [0], [0], [1], [0, 0, 1, 1], [], []>} : vector<16x16xf32>, vector<16x8xf32>, vector<16x8xf32> -> vector<16x8xf32>
    %51 = arith.maximumf %34, %50 : vector<16x8xf32>
    %52 = arith.addf %34, %50 : vector<16x8xf32>
    %53 = arith.mulf %50, %50 : vector<16x8xf32>
    %54 = arith.addf %35, %53 : vector<16x8xf32>
    %cst_26 = arith.constant dense<0xFF800000> : vector<16xf32>
    %55 = vector.multi_reduction <maximumf>, %47, %cst_26 [1] : vector<16x16xf32> to vector<16xf32>
    %56 = vector.shape_cast %55 : vector<16xf32> to vector<16x1xf32>
    %57 = vector.broadcast %56 : vector<16x1xf32> to vector<16x16xf32>
    %58 = arith.cmpf oeq, %47, %57 : vector<16x16xf32>
    %cst_27 = arith.constant 1.600000e+01 : f32
    %59 = vector.broadcast %cst_27 : f32 to vector<16x16xf32>
    %60 = arith.select %58, %19, %59 : vector<16x16xi1>, vector<16x16xf32>
    %cst_28 = arith.constant dense<0x7F800000> : vector<16xf32>
    %61 = vector.multi_reduction <minimumf>, %60, %cst_28 [1] : vector<16x16xf32> to vector<16xf32>
    %62 = vector.shape_cast %61 : vector<16xf32> to vector<16x1xf32>
    %63 = vector.broadcast %62 : vector<16x1xf32> to vector<16x16xf32>
    %64 = arith.cmpf oeq, %19, %63 : vector<16x16xf32>
    %cst_29 = arith.constant 0xFF800000 : f32
    %65 = vector.broadcast %cst_29 : f32 to vector<16x16xf32>
    %66 = arith.select %64, %65, %47 : vector<16x16xi1>, vector<16x16xf32>
    %67 = arith.extui %64 : vector<16x16xi1> to vector<16x16xi32>
    %68 = arith.sitofp %67 : vector<16x16xi32> to vector<16x16xf32>
    %cst_30 = arith.constant dense<0.000000e+00> : vector<16x8xf32>
    %69 = tpu.matmul %68, %12, %cst_30 {dimension_numbers = #tpu.dot_dimension_numbers<[1], [0], [0], [1], [0, 0, 1, 1], [], []>} : vector<16x16xf32>, vector<16x8xf32>, vector<16x8xf32> -> vector<16x8xf32>
    %70 = arith.maximumf %51, %69 : vector<16x8xf32>
    %71 = arith.addf %52, %69 : vector<16x8xf32>
    %72 = arith.mulf %69, %69 : vector<16x8xf32>
    %73 = arith.addf %54, %72 : vector<16x8xf32>
    %cst_31 = arith.constant dense<0xFF800000> : vector<16xf32>
    %74 = vector.multi_reduction <maximumf>, %66, %cst_31 [1] : vector<16x16xf32> to vector<16xf32>
    %75 = vector.shape_cast %74 : vector<16xf32> to vector<16x1xf32>
    %76 = vector.broadcast %75 : vector<16x1xf32> to vector<16x16xf32>
    %77 = arith.cmpf oeq, %66, %76 : vector<16x16xf32>
    %cst_32 = arith.constant 1.600000e+01 : f32
    %78 = vector.broadcast %cst_32 : f32 to vector<16x16xf32>
    %79 = arith.select %77, %19, %78 : vector<16x16xi1>, vector<16x16xf32>
    %cst_33 = arith.constant dense<0x7F800000> : vector<16xf32>
    %80 = vector.multi_reduction <minimumf>, %79, %cst_33 [1] : vector<16x16xf32> to vector<16xf32>
    %81 = vector.shape_cast %80 : vector<16xf32> to vector<16x1xf32>
    %82 = vector.broadcast %81 : vector<16x1xf32> to vector<16x16xf32>
    %83 = arith.cmpf oeq, %19, %82 : vector<16x16xf32>
    %84 = arith.extui %83 : vector<16x16xi1> to vector<16x16xi32>
    %85 = arith.sitofp %84 : vector<16x16xi32> to vector<16x16xf32>
    %cst_34 = arith.constant dense<0.000000e+00> : vector<16x8xf32>
    %86 = tpu.matmul %85, %12, %cst_34 {dimension_numbers = #tpu.dot_dimension_numbers<[1], [0], [0], [1], [0, 0, 1, 1], [], []>} : vector<16x16xf32>, vector<16x8xf32>, vector<16x8xf32> -> vector<16x8xf32>
    %87 = arith.maximumf %70, %86 : vector<16x8xf32>
    %88 = arith.addf %71, %86 : vector<16x8xf32>
    %89 = arith.mulf %86, %86 : vector<16x8xf32>
    %90 = arith.addf %73, %89 : vector<16x8xf32>
    %c0_35 = arith.constant 0 : index
    %c0_36 = arith.constant 0 : index
    %c0_37 = arith.constant 0 : index
    %91 = vector.load %arg7[%c0_35, %c0_36, %c0_37] : memref<1x16x8xf32, #tpu.memory_space<vmem>>, vector<1x16x8xf32>
    %92 = vector.shape_cast %91 : vector<1x16x8xf32> to vector<16x8xf32>
    %93 = vector.shape_cast %87 : vector<16x8xf32> to vector<1x16x8xf32>
    tpu.vector_store %arg7[%c0_35, %c0_36, %c0_37], %93 {strides = array<i32>} : memref<1x16x8xf32, #tpu.memory_space<vmem>>, vector<1x16x8xf32>,
    %cst_38 = arith.constant 4.000000e+00 : f32
    %94 = vector.broadcast %cst_38 : f32 to vector<16x8xf32>
    %95 = arith.mulf %94, %14 : vector<16x8xf32>
    %96 = arith.addf %88, %95 : vector<16x8xf32>
    %cst_39 = arith.constant dense<0.000000e+00> : vector<8xf32>
    %97 = vector.multi_reduction <add>, %96, %cst_39 [0] : vector<16x8xf32> to vector<8xf32>
    %98 = vector.shape_cast %97 : vector<8xf32> to vector<1x8xf32>
    %cst_40 = arith.constant 2.000000e+00 : f32
    %99 = vector.broadcast %cst_40 : f32 to vector<16x8xf32>
    %100 = arith.mulf %99, %14 : vector<16x8xf32>
    %101 = arith.mulf %100, %88 : vector<16x8xf32>
    %102 = arith.addf %90, %101 : vector<16x8xf32>
    %cst_41 = arith.constant 4.000000e+00 : f32
    %103 = vector.broadcast %cst_41 : f32 to vector<16x8xf32>
    %104 = arith.mulf %103, %14 : vector<16x8xf32>
    %105 = arith.mulf %104, %14 : vector<16x8xf32>
    %106 = arith.addf %102, %105 : vector<16x8xf32>
    %cst_42 = arith.constant dense<0.000000e+00> : vector<8xf32>
    %107 = vector.multi_reduction <add>, %106, %cst_42 [0] : vector<16x8xf32> to vector<8xf32>
    %108 = vector.shape_cast %107 : vector<8xf32> to vector<1x8xf32>
    %c0_43 = arith.constant 0 : index
    %c0_44 = arith.constant 0 : index
    %c0_45 = arith.constant 0 : index
    %109 = vector.load %arg8[%c0_43, %c0_44, %c0_45] : memref<1x1x16xf32, #tpu.memory_space<vmem>>, vector<1x1x16xf32>
    %110 = vector.shape_cast %109 : vector<1x1x16xf32> to vector<1x16xf32>
    %111 = tpu.concatenate %98, %108 in 1 : vector<1x8xf32>, vector<1x8xf32> -> vector<1x16xf32>
    %112 = arith.addf %110, %111 : vector<1x16xf32>
    %c0_46 = arith.constant 0 : index
    %c0_47 = arith.constant 0 : index
    %c0_48 = arith.constant 0 : index
    %113 = vector.load %arg8[%c0_46, %c0_47, %c0_48] : memref<1x1x16xf32, #tpu.memory_space<vmem>>, vector<1x1x16xf32>
    %114 = vector.shape_cast %113 : vector<1x1x16xf32> to vector<1x16xf32>
    %115 = vector.shape_cast %112 : vector<1x16xf32> to vector<1x1x16xf32>
    tpu.vector_store %arg8[%c0_46, %c0_47, %c0_48], %115 {strides = array<i32>} : memref<1x1x16xf32, #tpu.memory_space<vmem>>, vector<1x1x16xf32>,
    return
  }
  func.func @transform_0(%arg0: i32, %arg1: i32) -> (i32, i32, i32) {
    %c0_i32 = arith.constant 0 : i32
    %c0_i32_0 = arith.constant 0 : i32
    return %arg0, %arg1, %c0_i32 : i32, i32, i32
  }
  func.func @transform_1(%arg0: i32, %arg1: i32) -> (i32, i32, i32) {
    %c0_i32 = arith.constant 0 : i32
    %c0_i32_0 = arith.constant 0 : i32
    %c0_i32_1 = arith.constant 0 : i32
    return %arg0, %c0_i32, %c0_i32_0 : i32, i32, i32
  }
  func.func @transform_2(%arg0: i32, %arg1: i32) -> (i32, i32, i32) {
    %c0_i32 = arith.constant 0 : i32
    %c0_i32_0 = arith.constant 0 : i32
    %c0_i32_1 = arith.constant 0 : i32
    return %arg0, %c0_i32, %c0_i32_0 : i32, i32, i32
  }
  func.func @transform_3(%arg0: i32, %arg1: i32) -> (i32, i32, i32) {
    %c0_i32 = arith.constant 0 : i32
    %c0_i32_0 = arith.constant 0 : i32
    %c0_i32_1 = arith.constant 0 : i32
    return %arg0, %c0_i32, %c0_i32_0 : i32, i32, i32
  }
  func.func @transform_4(%arg0: i32, %arg1: i32) -> (i32, i32, i32) {
    %c0_i32 = arith.constant 0 : i32
    %c0_i32_0 = arith.constant 0 : i32
    return %arg0, %arg1, %c0_i32 : i32, i32, i32
  }
  func.func @transform_5(%arg0: i32, %arg1: i32) -> (i32, i32, i32) {
    %c0_i32 = arith.constant 0 : i32
    %c0_i32_0 = arith.constant 0 : i32
    return %arg0, %arg1, %c0_i32 : i32, i32, i32
  }
  func.func @transform_6(%arg0: i32, %arg1: i32) -> (i32, i32, i32) {
    %c0_i32 = arith.constant 0 : i32
    %c0_i32_0 = arith.constant 0 : i32
    %c0_i32_1 = arith.constant 0 : i32
    return %arg0, %c0_i32, %c0_i32_0 : i32, i32, i32
  }
}

module attributes {stable_mosaic.version = 11 : i64} {
  func.func @_conv_kernel(%arg0: i32, %arg1: i32, %arg2: memref<1x16x3xbf16, #tpu.memory_space<vmem>>, %arg3: memref<3x8xbf16, #tpu.memory_space<vmem>>, %arg4: memref<3x8xbf16, #tpu.memory_space<vmem>>, %arg5: memref<1x16x8xf32, #tpu.memory_space<vmem>>, %arg6: memref<1x16x8xf32, #tpu.memory_space<vmem>>) attributes {dimension_semantics = [#tpu.dimension_semantics<parallel>, #tpu.dimension_semantics<parallel>], iteration_bounds = array<i64: 2, 1>, scalar_prefetch = 0 : i64, scratch_operands = 0 : i64, tpu.core_type = #tpu.core_type<tc>, window_params = [{transform_indices = @transform_0, window_bounds = array<i64: 1, 16, 3>}, {pipeline_mode = #tpu.pipeline_mode<synchronous>, transform_indices = @transform_1, window_bounds = array<i64: 3, 8>}, {pipeline_mode = #tpu.pipeline_mode<synchronous>, transform_indices = @transform_2, window_bounds = array<i64: 3, 8>}, {transform_indices = @transform_3, window_bounds = array<i64: 1, 16, 8>}, {transform_indices = @transform_4, window_bounds = array<i64: 1, 16, 8>}]} {
    %c0 = arith.constant 0 : index
    %c0_0 = arith.constant 0 : index
    %c0_1 = arith.constant 0 : index
    %0 = vector.load %arg2[%c0, %c0_0, %c0_1] : memref<1x16x3xbf16, #tpu.memory_space<vmem>>, vector<1x16x3xbf16>
    %1 = vector.shape_cast %0 : vector<1x16x3xbf16> to vector<16x3xbf16>
    %c0_2 = arith.constant 0 : index
    %c0_3 = arith.constant 0 : index
    %2 = vector.load %arg3[%c0_2, %c0_3] : memref<3x8xbf16, #tpu.memory_space<vmem>>, vector<3x8xbf16>
    %cst = arith.constant dense<0.000000e+00> : vector<16x8xf32>
    %3 = tpu.matmul %1, %2, %cst {dimension_numbers = #tpu.dot_dimension_numbers<[1], [0], [0], [1], [0, 0, 1, 1], [], []>} : vector<16x3xbf16>, vector<3x8xbf16>, vector<16x8xf32> -> vector<16x8xf32>
    %c0_4 = arith.constant 0 : index
    %c0_5 = arith.constant 0 : index
    %c0_6 = arith.constant 0 : index
    %4 = vector.load %arg5[%c0_4, %c0_5, %c0_6] : memref<1x16x8xf32, #tpu.memory_space<vmem>>, vector<1x16x8xf32>
    %5 = vector.shape_cast %4 : vector<1x16x8xf32> to vector<16x8xf32>
    %6 = vector.shape_cast %3 : vector<16x8xf32> to vector<1x16x8xf32>
    tpu.vector_store %arg5[%c0_4, %c0_5, %c0_6], %6 {strides = array<i32>} : memref<1x16x8xf32, #tpu.memory_space<vmem>>, vector<1x16x8xf32>,
    %c0_7 = arith.constant 0 : index
    %c0_8 = arith.constant 0 : index
    %7 = vector.load %arg4[%c0_7, %c0_8] : memref<3x8xbf16, #tpu.memory_space<vmem>>, vector<3x8xbf16>
    %cst_9 = arith.constant dense<0.000000e+00> : vector<16x8xf32>
    %8 = tpu.matmul %1, %7, %cst_9 {dimension_numbers = #tpu.dot_dimension_numbers<[1], [0], [0], [1], [0, 0, 1, 1], [], []>} : vector<16x3xbf16>, vector<3x8xbf16>, vector<16x8xf32> -> vector<16x8xf32>
    %c0_10 = arith.constant 0 : index
    %c0_11 = arith.constant 0 : index
    %c0_12 = arith.constant 0 : index
    %9 = vector.load %arg6[%c0_10, %c0_11, %c0_12] : memref<1x16x8xf32, #tpu.memory_space<vmem>>, vector<1x16x8xf32>
    %10 = vector.shape_cast %9 : vector<1x16x8xf32> to vector<16x8xf32>
    %11 = vector.shape_cast %8 : vector<16x8xf32> to vector<1x16x8xf32>
    tpu.vector_store %arg6[%c0_10, %c0_11, %c0_12], %11 {strides = array<i32>} : memref<1x16x8xf32, #tpu.memory_space<vmem>>, vector<1x16x8xf32>,
    return
  }
  func.func @transform_0(%arg0: i32, %arg1: i32) -> (i32, i32, i32) {
    %c0_i32 = arith.constant 0 : i32
    %c0_i32_0 = arith.constant 0 : i32
    return %arg0, %arg1, %c0_i32 : i32, i32, i32
  }
  func.func @transform_1(%arg0: i32, %arg1: i32) -> (i32, i32) {
    %c0_i32 = arith.constant 0 : i32
    %c0_i32_0 = arith.constant 0 : i32
    %c0_i32_1 = arith.constant 0 : i32
    return %c0_i32, %c0_i32_0 : i32, i32
  }
  func.func @transform_2(%arg0: i32, %arg1: i32) -> (i32, i32) {
    %c0_i32 = arith.constant 0 : i32
    %c0_i32_0 = arith.constant 0 : i32
    %c0_i32_1 = arith.constant 0 : i32
    return %c0_i32, %c0_i32_0 : i32, i32
  }
  func.func @transform_3(%arg0: i32, %arg1: i32) -> (i32, i32, i32) {
    %c0_i32 = arith.constant 0 : i32
    %c0_i32_0 = arith.constant 0 : i32
    return %arg0, %arg1, %c0_i32 : i32, i32, i32
  }
  func.func @transform_4(%arg0: i32, %arg1: i32) -> (i32, i32, i32) {
    %c0_i32 = arith.constant 0 : i32
    %c0_i32_0 = arith.constant 0 : i32
    return %arg0, %arg1, %c0_i32 : i32, i32, i32
  }
}

module attributes {stable_mosaic.version = 11 : i64} {
  func.func @_finalize_kernel(%arg0: i32, %arg1: i32, %arg2: memref<1x16x8xf32, #tpu.memory_space<vmem>>, %arg3: memref<1x16x8xf32, #tpu.memory_space<vmem>>, %arg4: memref<1x8xf32, #tpu.memory_space<vmem>>, %arg5: memref<1x8xf32, #tpu.memory_space<vmem>>, %arg6: memref<1x16x8xf32, #tpu.memory_space<vmem>>) attributes {dimension_semantics = [#tpu.dimension_semantics<parallel>, #tpu.dimension_semantics<parallel>], iteration_bounds = array<i64: 2, 1>, scalar_prefetch = 0 : i64, scratch_operands = 0 : i64, tpu.core_type = #tpu.core_type<tc>, window_params = [{transform_indices = @transform_0, window_bounds = array<i64: 1, 16, 8>}, {transform_indices = @transform_1, window_bounds = array<i64: 1, 16, 8>}, {pipeline_mode = #tpu.pipeline_mode<synchronous>, transform_indices = @transform_2, window_bounds = array<i64: 1, 8>}, {pipeline_mode = #tpu.pipeline_mode<synchronous>, transform_indices = @transform_3, window_bounds = array<i64: 1, 8>}, {transform_indices = @transform_4, window_bounds = array<i64: 1, 16, 8>}]} {
    %c0 = arith.constant 0 : index
    %c0_0 = arith.constant 0 : index
    %0 = vector.load %arg4[%c0, %c0_0] : memref<1x8xf32, #tpu.memory_space<vmem>>, vector<1x8xf32>
    %c0_1 = arith.constant 0 : index
    %c0_2 = arith.constant 0 : index
    %1 = vector.load %arg5[%c0_1, %c0_2] : memref<1x8xf32, #tpu.memory_space<vmem>>, vector<1x8xf32>
    %c0_3 = arith.constant 0 : index
    %c0_4 = arith.constant 0 : index
    %c0_5 = arith.constant 0 : index
    %2 = vector.load %arg2[%c0_3, %c0_4, %c0_5] : memref<1x16x8xf32, #tpu.memory_space<vmem>>, vector<1x16x8xf32>
    %3 = vector.shape_cast %2 : vector<1x16x8xf32> to vector<16x8xf32>
    %c0_6 = arith.constant 0 : index
    %c0_7 = arith.constant 0 : index
    %c0_8 = arith.constant 0 : index
    %4 = vector.load %arg3[%c0_6, %c0_7, %c0_8] : memref<1x16x8xf32, #tpu.memory_space<vmem>>, vector<1x16x8xf32>
    %5 = vector.shape_cast %4 : vector<1x16x8xf32> to vector<16x8xf32>
    %6 = arith.addf %3, %5 : vector<16x8xf32>
    %7 = vector.broadcast %0 : vector<1x8xf32> to vector<16x8xf32>
    %8 = arith.mulf %7, %6 : vector<16x8xf32>
    %9 = vector.broadcast %1 : vector<1x8xf32> to vector<16x8xf32>
    %10 = arith.addf %8, %9 : vector<16x8xf32>
    %cst = arith.constant 0.000000e+00 : f32
    %11 = vector.broadcast %cst : f32 to vector<16x8xf32>
    %12 = arith.cmpf oge, %10, %11 : vector<16x8xf32>
    %cst_9 = arith.constant 2.000000e-01 : f32
    %13 = vector.broadcast %cst_9 : f32 to vector<16x8xf32>
    %14 = arith.mulf %13, %10 : vector<16x8xf32>
    %15 = arith.select %12, %10, %14 : vector<16x8xi1>, vector<16x8xf32>
    %c0_10 = arith.constant 0 : index
    %c0_11 = arith.constant 0 : index
    %c0_12 = arith.constant 0 : index
    %16 = vector.load %arg6[%c0_10, %c0_11, %c0_12] : memref<1x16x8xf32, #tpu.memory_space<vmem>>, vector<1x16x8xf32>
    %17 = vector.shape_cast %16 : vector<1x16x8xf32> to vector<16x8xf32>
    %18 = vector.shape_cast %15 : vector<16x8xf32> to vector<1x16x8xf32>
    tpu.vector_store %arg6[%c0_10, %c0_11, %c0_12], %18 {strides = array<i32>} : memref<1x16x8xf32, #tpu.memory_space<vmem>>, vector<1x16x8xf32>,
    return
  }
  func.func @transform_0(%arg0: i32, %arg1: i32) -> (i32, i32, i32) {
    %c0_i32 = arith.constant 0 : i32
    %c0_i32_0 = arith.constant 0 : i32
    return %arg0, %arg1, %c0_i32 : i32, i32, i32
  }
  func.func @transform_1(%arg0: i32, %arg1: i32) -> (i32, i32, i32) {
    %c0_i32 = arith.constant 0 : i32
    %c0_i32_0 = arith.constant 0 : i32
    return %arg0, %arg1, %c0_i32 : i32, i32, i32
  }
  func.func @transform_2(%arg0: i32, %arg1: i32) -> (i32, i32) {
    %c0_i32 = arith.constant 0 : i32
    %c0_i32_0 = arith.constant 0 : i32
    %c0_i32_1 = arith.constant 0 : i32
    return %c0_i32, %c0_i32_0 : i32, i32
  }
  func.func @transform_3(%arg0: i32, %arg1: i32) -> (i32, i32) {
    %c0_i32 = arith.constant 0 : i32
    %c0_i32_0 = arith.constant 0 : i32
    %c0_i32_1 = arith.constant 0 : i32
    return %c0_i32, %c0_i32_0 : i32, i32
  }
  func.func @transform_4(%arg0: i32, %arg1: i32) -> (i32, i32, i32) {
    %c0_i32 = arith.constant 0 : i32
    %c0_i32_0 = arith.constant 0 : i32
    return %arg0, %arg1, %c0_i32 : i32, i32, i32
  }
}

module attributes {stable_mosaic.version = 11 : i64} {
  func.func @_conv_kernel(%arg0: i32, %arg1: i32, %arg2: memref<1x16x8xbf16, #tpu.memory_space<vmem>>, %arg3: memref<8x16xbf16, #tpu.memory_space<vmem>>, %arg4: memref<8x16xbf16, #tpu.memory_space<vmem>>, %arg5: memref<1x16x16xf32, #tpu.memory_space<vmem>>, %arg6: memref<1x16x16xf32, #tpu.memory_space<vmem>>) attributes {dimension_semantics = [#tpu.dimension_semantics<parallel>, #tpu.dimension_semantics<parallel>], iteration_bounds = array<i64: 2, 1>, scalar_prefetch = 0 : i64, scratch_operands = 0 : i64, tpu.core_type = #tpu.core_type<tc>, window_params = [{transform_indices = @transform_0, window_bounds = array<i64: 1, 16, 8>}, {pipeline_mode = #tpu.pipeline_mode<synchronous>, transform_indices = @transform_1, window_bounds = array<i64: 8, 16>}, {pipeline_mode = #tpu.pipeline_mode<synchronous>, transform_indices = @transform_2, window_bounds = array<i64: 8, 16>}, {transform_indices = @transform_3, window_bounds = array<i64: 1, 16, 16>}, {transform_indices = @transform_4, window_bounds = array<i64: 1, 16, 16>}]} {
    %c0 = arith.constant 0 : index
    %c0_0 = arith.constant 0 : index
    %c0_1 = arith.constant 0 : index
    %0 = vector.load %arg2[%c0, %c0_0, %c0_1] : memref<1x16x8xbf16, #tpu.memory_space<vmem>>, vector<1x16x8xbf16>
    %1 = vector.shape_cast %0 : vector<1x16x8xbf16> to vector<16x8xbf16>
    %c0_2 = arith.constant 0 : index
    %c0_3 = arith.constant 0 : index
    %2 = vector.load %arg3[%c0_2, %c0_3] : memref<8x16xbf16, #tpu.memory_space<vmem>>, vector<8x16xbf16>
    %cst = arith.constant dense<0.000000e+00> : vector<16x16xf32>
    %3 = tpu.matmul %1, %2, %cst {dimension_numbers = #tpu.dot_dimension_numbers<[1], [0], [0], [1], [0, 0, 1, 1], [], []>} : vector<16x8xbf16>, vector<8x16xbf16>, vector<16x16xf32> -> vector<16x16xf32>
    %c0_4 = arith.constant 0 : index
    %c0_5 = arith.constant 0 : index
    %c0_6 = arith.constant 0 : index
    %4 = vector.load %arg5[%c0_4, %c0_5, %c0_6] : memref<1x16x16xf32, #tpu.memory_space<vmem>>, vector<1x16x16xf32>
    %5 = vector.shape_cast %4 : vector<1x16x16xf32> to vector<16x16xf32>
    %6 = vector.shape_cast %3 : vector<16x16xf32> to vector<1x16x16xf32>
    tpu.vector_store %arg5[%c0_4, %c0_5, %c0_6], %6 {strides = array<i32>} : memref<1x16x16xf32, #tpu.memory_space<vmem>>, vector<1x16x16xf32>,
    %c0_7 = arith.constant 0 : index
    %c0_8 = arith.constant 0 : index
    %7 = vector.load %arg4[%c0_7, %c0_8] : memref<8x16xbf16, #tpu.memory_space<vmem>>, vector<8x16xbf16>
    %cst_9 = arith.constant dense<0.000000e+00> : vector<16x16xf32>
    %8 = tpu.matmul %1, %7, %cst_9 {dimension_numbers = #tpu.dot_dimension_numbers<[1], [0], [0], [1], [0, 0, 1, 1], [], []>} : vector<16x8xbf16>, vector<8x16xbf16>, vector<16x16xf32> -> vector<16x16xf32>
    %c0_10 = arith.constant 0 : index
    %c0_11 = arith.constant 0 : index
    %c0_12 = arith.constant 0 : index
    %9 = vector.load %arg6[%c0_10, %c0_11, %c0_12] : memref<1x16x16xf32, #tpu.memory_space<vmem>>, vector<1x16x16xf32>
    %10 = vector.shape_cast %9 : vector<1x16x16xf32> to vector<16x16xf32>
    %11 = vector.shape_cast %8 : vector<16x16xf32> to vector<1x16x16xf32>
    tpu.vector_store %arg6[%c0_10, %c0_11, %c0_12], %11 {strides = array<i32>} : memref<1x16x16xf32, #tpu.memory_space<vmem>>, vector<1x16x16xf32>,
    return
  }
  func.func @transform_0(%arg0: i32, %arg1: i32) -> (i32, i32, i32) {
    %c0_i32 = arith.constant 0 : i32
    %c0_i32_0 = arith.constant 0 : i32
    return %arg0, %arg1, %c0_i32 : i32, i32, i32
  }
  func.func @transform_1(%arg0: i32, %arg1: i32) -> (i32, i32) {
    %c0_i32 = arith.constant 0 : i32
    %c0_i32_0 = arith.constant 0 : i32
    %c0_i32_1 = arith.constant 0 : i32
    return %c0_i32, %c0_i32_0 : i32, i32
  }
  func.func @transform_2(%arg0: i32, %arg1: i32) -> (i32, i32) {
    %c0_i32 = arith.constant 0 : i32
    %c0_i32_0 = arith.constant 0 : i32
    %c0_i32_1 = arith.constant 0 : i32
    return %c0_i32, %c0_i32_0 : i32, i32
  }
  func.func @transform_3(%arg0: i32, %arg1: i32) -> (i32, i32, i32) {
    %c0_i32 = arith.constant 0 : i32
    %c0_i32_0 = arith.constant 0 : i32
    return %arg0, %arg1, %c0_i32 : i32, i32, i32
  }
  func.func @transform_4(%arg0: i32, %arg1: i32) -> (i32, i32, i32) {
    %c0_i32 = arith.constant 0 : i32
    %c0_i32_0 = arith.constant 0 : i32
    return %arg0, %arg1, %c0_i32 : i32, i32, i32
  }
}

module attributes {stable_mosaic.version = 11 : i64} {
  func.func @_edge_kernel(%arg0: i32, %arg1: i32, %arg2: memref<1x16x8xf32, #tpu.memory_space<vmem>>, %arg3: memref<1x8x16xf32, #tpu.memory_space<vmem>>, %arg4: memref<1x1x16xf32, #tpu.memory_space<vmem>>, %arg5: memref<1x16x16xf32, #tpu.memory_space<vmem>>, %arg6: memref<1x16x16xf32, #tpu.memory_space<vmem>>, %arg7: memref<1x16x16xf32, #tpu.memory_space<vmem>>, %arg8: memref<1x1x32xf32, #tpu.memory_space<vmem>>) attributes {dimension_semantics = [#tpu.dimension_semantics<parallel>, #tpu.dimension_semantics<arbitrary>], iteration_bounds = array<i64: 2, 1>, scalar_prefetch = 0 : i64, scratch_operands = 0 : i64, tpu.core_type = #tpu.core_type<tc>, window_params = [{transform_indices = @transform_0, window_bounds = array<i64: 1, 16, 8>}, {transform_indices = @transform_1, window_bounds = array<i64: 1, 8, 16>}, {transform_indices = @transform_2, window_bounds = array<i64: 1, 1, 16>}, {transform_indices = @transform_3, window_bounds = array<i64: 1, 16, 16>}, {transform_indices = @transform_4, window_bounds = array<i64: 1, 16, 16>}, {transform_indices = @transform_5, window_bounds = array<i64: 1, 16, 16>}, {transform_indices = @transform_6, window_bounds = array<i64: 1, 1, 32>}]} {
    %c0_i32 = arith.constant 0 : i32
    %0 = arith.cmpi eq, %arg1, %c0_i32 : i32
    %1 = arith.extui %0 : i1 to i32
    %c0_i32_0 = arith.constant 0 : i32
    %2 = arith.cmpi ne, %1, %c0_i32_0 : i32
    scf.if %2 {
      %cst_49 = arith.constant 0.000000e+00 : f32
      %116 = vector.broadcast %cst_49 : f32 to vector<1x1x32xf32>
      %c0_50 = arith.constant 0 : index
      %c0_51 = arith.constant 0 : index
      %c0_52 = arith.constant 0 : index
      %117 = vector.load %arg8[%c0_50, %c0_51, %c0_52] : memref<1x1x32xf32, #tpu.memory_space<vmem>>, vector<1x1x32xf32>
      tpu.vector_store %arg8[%c0_50, %c0_51, %c0_52], %116 {strides = array<i32>} : memref<1x1x32xf32, #tpu.memory_space<vmem>>, vector<1x1x32xf32>,
    } else {
    }
    %c0 = arith.constant 0 : index
    %c0_1 = arith.constant 0 : index
    %c0_2 = arith.constant 0 : index
    %3 = vector.load %arg2[%c0, %c0_1, %c0_2] : memref<1x16x8xf32, #tpu.memory_space<vmem>>, vector<1x16x8xf32>
    %4 = vector.shape_cast %3 : vector<1x16x8xf32> to vector<16x8xf32>
    %cst = arith.constant 2.000000e+00 : f32
    %5 = vector.broadcast %cst : f32 to vector<16x8xf32>
    %6 = arith.mulf %4, %5 : vector<16x8xf32>
    %c0_3 = arith.constant 0 : index
    %c0_4 = arith.constant 0 : index
    %c0_5 = arith.constant 0 : index
    %7 = vector.load %arg3[%c0_3, %c0_4, %c0_5] : memref<1x8x16xf32, #tpu.memory_space<vmem>>, vector<1x8x16xf32>
    %8 = vector.shape_cast %7 : vector<1x8x16xf32> to vector<8x16xf32>
    %c0_6 = arith.constant 0 : index
    %c0_7 = arith.constant 0 : index
    %c0_8 = arith.constant 0 : index
    %9 = vector.load %arg4[%c0_6, %c0_7, %c0_8] : memref<1x1x16xf32, #tpu.memory_space<vmem>>, vector<1x1x16xf32>
    %10 = vector.shape_cast %9 : vector<1x1x16xf32> to vector<1x16xf32>
    %c0_9 = arith.constant 0 : index
    %c0_10 = arith.constant 0 : index
    %c0_11 = arith.constant 0 : index
    %11 = vector.load %arg5[%c0_9, %c0_10, %c0_11] : memref<1x16x16xf32, #tpu.memory_space<vmem>>, vector<1x16x16xf32>
    %12 = vector.shape_cast %11 : vector<1x16x16xf32> to vector<16x16xf32>
    %c0_12 = arith.constant 0 : index
    %c0_13 = arith.constant 0 : index
    %c0_14 = arith.constant 0 : index
    %13 = vector.load %arg6[%c0_12, %c0_13, %c0_14] : memref<1x16x16xf32, #tpu.memory_space<vmem>>, vector<1x16x16xf32>
    %14 = vector.shape_cast %13 : vector<1x16x16xf32> to vector<16x16xf32>
    %cst_15 = arith.constant dense<0.000000e+00> : vector<16x16xf32>
    %15 = tpu.matmul %6, %8, %cst_15 {dimension_numbers = #tpu.dot_dimension_numbers<[1], [0], [0], [1], [0, 0, 1, 1], [], []>} : vector<16x8xf32>, vector<8x16xf32>, vector<16x16xf32> -> vector<16x16xf32>
    %16 = vector.broadcast %10 : vector<1x16xf32> to vector<16x16xf32>
    %17 = arith.subf %15, %16 : vector<16x16xf32>
    %18 = tpu.iota {dimensions = array<i32: 1>} : vector<16x16xi32>
    %19 = arith.sitofp %18 : vector<16x16xi32> to vector<16x16xf32>
    %cst_16 = arith.constant dense<0xFF800000> : vector<16xf32>
    %20 = vector.multi_reduction <maximumf>, %17, %cst_16 [1] : vector<16x16xf32> to vector<16xf32>
    %21 = vector.shape_cast %20 : vector<16xf32> to vector<16x1xf32>
    %22 = vector.broadcast %21 : vector<16x1xf32> to vector<16x16xf32>
    %23 = arith.cmpf oeq, %17, %22 : vector<16x16xf32>
    %cst_17 = arith.constant 1.600000e+01 : f32
    %24 = vector.broadcast %cst_17 : f32 to vector<16x16xf32>
    %25 = arith.select %23, %19, %24 : vector<16x16xi1>, vector<16x16xf32>
    %cst_18 = arith.constant dense<0x7F800000> : vector<16xf32>
    %26 = vector.multi_reduction <minimumf>, %25, %cst_18 [1] : vector<16x16xf32> to vector<16xf32>
    %27 = vector.shape_cast %26 : vector<16xf32> to vector<16x1xf32>
    %28 = vector.broadcast %27 : vector<16x1xf32> to vector<16x16xf32>
    %29 = arith.cmpf oeq, %19, %28 : vector<16x16xf32>
    %cst_19 = arith.constant 0xFF800000 : f32
    %30 = vector.broadcast %cst_19 : f32 to vector<16x16xf32>
    %31 = arith.select %29, %30, %17 : vector<16x16xi1>, vector<16x16xf32>
    %32 = arith.extui %29 : vector<16x16xi1> to vector<16x16xi32>
    %33 = arith.sitofp %32 : vector<16x16xi32> to vector<16x16xf32>
    %cst_20 = arith.constant dense<0.000000e+00> : vector<16x16xf32>
    %34 = tpu.matmul %33, %12, %cst_20 {dimension_numbers = #tpu.dot_dimension_numbers<[1], [0], [0], [1], [0, 0, 1, 1], [], []>} : vector<16x16xf32>, vector<16x16xf32>, vector<16x16xf32> -> vector<16x16xf32>
    %35 = arith.mulf %34, %34 : vector<16x16xf32>
    %cst_21 = arith.constant dense<0xFF800000> : vector<16xf32>
    %36 = vector.multi_reduction <maximumf>, %31, %cst_21 [1] : vector<16x16xf32> to vector<16xf32>
    %37 = vector.shape_cast %36 : vector<16xf32> to vector<16x1xf32>
    %38 = vector.broadcast %37 : vector<16x1xf32> to vector<16x16xf32>
    %39 = arith.cmpf oeq, %31, %38 : vector<16x16xf32>
    %cst_22 = arith.constant 1.600000e+01 : f32
    %40 = vector.broadcast %cst_22 : f32 to vector<16x16xf32>
    %41 = arith.select %39, %19, %40 : vector<16x16xi1>, vector<16x16xf32>
    %cst_23 = arith.constant dense<0x7F800000> : vector<16xf32>
    %42 = vector.multi_reduction <minimumf>, %41, %cst_23 [1] : vector<16x16xf32> to vector<16xf32>
    %43 = vector.shape_cast %42 : vector<16xf32> to vector<16x1xf32>
    %44 = vector.broadcast %43 : vector<16x1xf32> to vector<16x16xf32>
    %45 = arith.cmpf oeq, %19, %44 : vector<16x16xf32>
    %cst_24 = arith.constant 0xFF800000 : f32
    %46 = vector.broadcast %cst_24 : f32 to vector<16x16xf32>
    %47 = arith.select %45, %46, %31 : vector<16x16xi1>, vector<16x16xf32>
    %48 = arith.extui %45 : vector<16x16xi1> to vector<16x16xi32>
    %49 = arith.sitofp %48 : vector<16x16xi32> to vector<16x16xf32>
    %cst_25 = arith.constant dense<0.000000e+00> : vector<16x16xf32>
    %50 = tpu.matmul %49, %12, %cst_25 {dimension_numbers = #tpu.dot_dimension_numbers<[1], [0], [0], [1], [0, 0, 1, 1], [], []>} : vector<16x16xf32>, vector<16x16xf32>, vector<16x16xf32> -> vector<16x16xf32>
    %51 = arith.maximumf %34, %50 : vector<16x16xf32>
    %52 = arith.addf %34, %50 : vector<16x16xf32>
    %53 = arith.mulf %50, %50 : vector<16x16xf32>
    %54 = arith.addf %35, %53 : vector<16x16xf32>
    %cst_26 = arith.constant dense<0xFF800000> : vector<16xf32>
    %55 = vector.multi_reduction <maximumf>, %47, %cst_26 [1] : vector<16x16xf32> to vector<16xf32>
    %56 = vector.shape_cast %55 : vector<16xf32> to vector<16x1xf32>
    %57 = vector.broadcast %56 : vector<16x1xf32> to vector<16x16xf32>
    %58 = arith.cmpf oeq, %47, %57 : vector<16x16xf32>
    %cst_27 = arith.constant 1.600000e+01 : f32
    %59 = vector.broadcast %cst_27 : f32 to vector<16x16xf32>
    %60 = arith.select %58, %19, %59 : vector<16x16xi1>, vector<16x16xf32>
    %cst_28 = arith.constant dense<0x7F800000> : vector<16xf32>
    %61 = vector.multi_reduction <minimumf>, %60, %cst_28 [1] : vector<16x16xf32> to vector<16xf32>
    %62 = vector.shape_cast %61 : vector<16xf32> to vector<16x1xf32>
    %63 = vector.broadcast %62 : vector<16x1xf32> to vector<16x16xf32>
    %64 = arith.cmpf oeq, %19, %63 : vector<16x16xf32>
    %cst_29 = arith.constant 0xFF800000 : f32
    %65 = vector.broadcast %cst_29 : f32 to vector<16x16xf32>
    %66 = arith.select %64, %65, %47 : vector<16x16xi1>, vector<16x16xf32>
    %67 = arith.extui %64 : vector<16x16xi1> to vector<16x16xi32>
    %68 = arith.sitofp %67 : vector<16x16xi32> to vector<16x16xf32>
    %cst_30 = arith.constant dense<0.000000e+00> : vector<16x16xf32>
    %69 = tpu.matmul %68, %12, %cst_30 {dimension_numbers = #tpu.dot_dimension_numbers<[1], [0], [0], [1], [0, 0, 1, 1], [], []>} : vector<16x16xf32>, vector<16x16xf32>, vector<16x16xf32> -> vector<16x16xf32>
    %70 = arith.maximumf %51, %69 : vector<16x16xf32>
    %71 = arith.addf %52, %69 : vector<16x16xf32>
    %72 = arith.mulf %69, %69 : vector<16x16xf32>
    %73 = arith.addf %54, %72 : vector<16x16xf32>
    %cst_31 = arith.constant dense<0xFF800000> : vector<16xf32>
    %74 = vector.multi_reduction <maximumf>, %66, %cst_31 [1] : vector<16x16xf32> to vector<16xf32>
    %75 = vector.shape_cast %74 : vector<16xf32> to vector<16x1xf32>
    %76 = vector.broadcast %75 : vector<16x1xf32> to vector<16x16xf32>
    %77 = arith.cmpf oeq, %66, %76 : vector<16x16xf32>
    %cst_32 = arith.constant 1.600000e+01 : f32
    %78 = vector.broadcast %cst_32 : f32 to vector<16x16xf32>
    %79 = arith.select %77, %19, %78 : vector<16x16xi1>, vector<16x16xf32>
    %cst_33 = arith.constant dense<0x7F800000> : vector<16xf32>
    %80 = vector.multi_reduction <minimumf>, %79, %cst_33 [1] : vector<16x16xf32> to vector<16xf32>
    %81 = vector.shape_cast %80 : vector<16xf32> to vector<16x1xf32>
    %82 = vector.broadcast %81 : vector<16x1xf32> to vector<16x16xf32>
    %83 = arith.cmpf oeq, %19, %82 : vector<16x16xf32>
    %84 = arith.extui %83 : vector<16x16xi1> to vector<16x16xi32>
    %85 = arith.sitofp %84 : vector<16x16xi32> to vector<16x16xf32>
    %cst_34 = arith.constant dense<0.000000e+00> : vector<16x16xf32>
    %86 = tpu.matmul %85, %12, %cst_34 {dimension_numbers = #tpu.dot_dimension_numbers<[1], [0], [0], [1], [0, 0, 1, 1], [], []>} : vector<16x16xf32>, vector<16x16xf32>, vector<16x16xf32> -> vector<16x16xf32>
    %87 = arith.maximumf %70, %86 : vector<16x16xf32>
    %88 = arith.addf %71, %86 : vector<16x16xf32>
    %89 = arith.mulf %86, %86 : vector<16x16xf32>
    %90 = arith.addf %73, %89 : vector<16x16xf32>
    %c0_35 = arith.constant 0 : index
    %c0_36 = arith.constant 0 : index
    %c0_37 = arith.constant 0 : index
    %91 = vector.load %arg7[%c0_35, %c0_36, %c0_37] : memref<1x16x16xf32, #tpu.memory_space<vmem>>, vector<1x16x16xf32>
    %92 = vector.shape_cast %91 : vector<1x16x16xf32> to vector<16x16xf32>
    %93 = vector.shape_cast %87 : vector<16x16xf32> to vector<1x16x16xf32>
    tpu.vector_store %arg7[%c0_35, %c0_36, %c0_37], %93 {strides = array<i32>} : memref<1x16x16xf32, #tpu.memory_space<vmem>>, vector<1x16x16xf32>,
    %cst_38 = arith.constant 4.000000e+00 : f32
    %94 = vector.broadcast %cst_38 : f32 to vector<16x16xf32>
    %95 = arith.mulf %94, %14 : vector<16x16xf32>
    %96 = arith.addf %88, %95 : vector<16x16xf32>
    %cst_39 = arith.constant dense<0.000000e+00> : vector<16xf32>
    %97 = vector.multi_reduction <add>, %96, %cst_39 [0] : vector<16x16xf32> to vector<16xf32>
    %98 = vector.shape_cast %97 : vector<16xf32> to vector<1x16xf32>
    %cst_40 = arith.constant 2.000000e+00 : f32
    %99 = vector.broadcast %cst_40 : f32 to vector<16x16xf32>
    %100 = arith.mulf %99, %14 : vector<16x16xf32>
    %101 = arith.mulf %100, %88 : vector<16x16xf32>
    %102 = arith.addf %90, %101 : vector<16x16xf32>
    %cst_41 = arith.constant 4.000000e+00 : f32
    %103 = vector.broadcast %cst_41 : f32 to vector<16x16xf32>
    %104 = arith.mulf %103, %14 : vector<16x16xf32>
    %105 = arith.mulf %104, %14 : vector<16x16xf32>
    %106 = arith.addf %102, %105 : vector<16x16xf32>
    %cst_42 = arith.constant dense<0.000000e+00> : vector<16xf32>
    %107 = vector.multi_reduction <add>, %106, %cst_42 [0] : vector<16x16xf32> to vector<16xf32>
    %108 = vector.shape_cast %107 : vector<16xf32> to vector<1x16xf32>
    %c0_43 = arith.constant 0 : index
    %c0_44 = arith.constant 0 : index
    %c0_45 = arith.constant 0 : index
    %109 = vector.load %arg8[%c0_43, %c0_44, %c0_45] : memref<1x1x32xf32, #tpu.memory_space<vmem>>, vector<1x1x32xf32>
    %110 = vector.shape_cast %109 : vector<1x1x32xf32> to vector<1x32xf32>
    %111 = tpu.concatenate %98, %108 in 1 : vector<1x16xf32>, vector<1x16xf32> -> vector<1x32xf32>
    %112 = arith.addf %110, %111 : vector<1x32xf32>
    %c0_46 = arith.constant 0 : index
    %c0_47 = arith.constant 0 : index
    %c0_48 = arith.constant 0 : index
    %113 = vector.load %arg8[%c0_46, %c0_47, %c0_48] : memref<1x1x32xf32, #tpu.memory_space<vmem>>, vector<1x1x32xf32>
    %114 = vector.shape_cast %113 : vector<1x1x32xf32> to vector<1x32xf32>
    %115 = vector.shape_cast %112 : vector<1x32xf32> to vector<1x1x32xf32>
    tpu.vector_store %arg8[%c0_46, %c0_47, %c0_48], %115 {strides = array<i32>} : memref<1x1x32xf32, #tpu.memory_space<vmem>>, vector<1x1x32xf32>,
    return
  }
  func.func @transform_0(%arg0: i32, %arg1: i32) -> (i32, i32, i32) {
    %c0_i32 = arith.constant 0 : i32
    %c0_i32_0 = arith.constant 0 : i32
    return %arg0, %arg1, %c0_i32 : i32, i32, i32
  }
  func.func @transform_1(%arg0: i32, %arg1: i32) -> (i32, i32, i32) {
    %c0_i32 = arith.constant 0 : i32
    %c0_i32_0 = arith.constant 0 : i32
    %c0_i32_1 = arith.constant 0 : i32
    return %arg0, %c0_i32, %c0_i32_0 : i32, i32, i32
  }
  func.func @transform_2(%arg0: i32, %arg1: i32) -> (i32, i32, i32) {
    %c0_i32 = arith.constant 0 : i32
    %c0_i32_0 = arith.constant 0 : i32
    %c0_i32_1 = arith.constant 0 : i32
    return %arg0, %c0_i32, %c0_i32_0 : i32, i32, i32
  }
  func.func @transform_3(%arg0: i32, %arg1: i32) -> (i32, i32, i32) {
    %c0_i32 = arith.constant 0 : i32
    %c0_i32_0 = arith.constant 0 : i32
    %c0_i32_1 = arith.constant 0 : i32
    return %arg0, %c0_i32, %c0_i32_0 : i32, i32, i32
  }
  func.func @transform_4(%arg0: i32, %arg1: i32) -> (i32, i32, i32) {
    %c0_i32 = arith.constant 0 : i32
    %c0_i32_0 = arith.constant 0 : i32
    return %arg0, %arg1, %c0_i32 : i32, i32, i32
  }
  func.func @transform_5(%arg0: i32, %arg1: i32) -> (i32, i32, i32) {
    %c0_i32 = arith.constant 0 : i32
    %c0_i32_0 = arith.constant 0 : i32
    return %arg0, %arg1, %c0_i32 : i32, i32, i32
  }
  func.func @transform_6(%arg0: i32, %arg1: i32) -> (i32, i32, i32) {
    %c0_i32 = arith.constant 0 : i32
    %c0_i32_0 = arith.constant 0 : i32
    %c0_i32_1 = arith.constant 0 : i32
    return %arg0, %c0_i32, %c0_i32_0 : i32, i32, i32
  }
}

module attributes {stable_mosaic.version = 11 : i64} {
  func.func @_finalize_kernel(%arg0: i32, %arg1: i32, %arg2: memref<1x16x16xf32, #tpu.memory_space<vmem>>, %arg3: memref<1x16x16xf32, #tpu.memory_space<vmem>>, %arg4: memref<1x16xf32, #tpu.memory_space<vmem>>, %arg5: memref<1x16xf32, #tpu.memory_space<vmem>>, %arg6: memref<1x16x16xf32, #tpu.memory_space<vmem>>) attributes {dimension_semantics = [#tpu.dimension_semantics<parallel>, #tpu.dimension_semantics<parallel>], iteration_bounds = array<i64: 2, 1>, scalar_prefetch = 0 : i64, scratch_operands = 0 : i64, tpu.core_type = #tpu.core_type<tc>, window_params = [{transform_indices = @transform_0, window_bounds = array<i64: 1, 16, 16>}, {transform_indices = @transform_1, window_bounds = array<i64: 1, 16, 16>}, {pipeline_mode = #tpu.pipeline_mode<synchronous>, transform_indices = @transform_2, window_bounds = array<i64: 1, 16>}, {pipeline_mode = #tpu.pipeline_mode<synchronous>, transform_indices = @transform_3, window_bounds = array<i64: 1, 16>}, {transform_indices = @transform_4, window_bounds = array<i64: 1, 16, 16>}]} {
    %c0 = arith.constant 0 : index
    %c0_0 = arith.constant 0 : index
    %0 = vector.load %arg4[%c0, %c0_0] : memref<1x16xf32, #tpu.memory_space<vmem>>, vector<1x16xf32>
    %c0_1 = arith.constant 0 : index
    %c0_2 = arith.constant 0 : index
    %1 = vector.load %arg5[%c0_1, %c0_2] : memref<1x16xf32, #tpu.memory_space<vmem>>, vector<1x16xf32>
    %c0_3 = arith.constant 0 : index
    %c0_4 = arith.constant 0 : index
    %c0_5 = arith.constant 0 : index
    %2 = vector.load %arg2[%c0_3, %c0_4, %c0_5] : memref<1x16x16xf32, #tpu.memory_space<vmem>>, vector<1x16x16xf32>
    %3 = vector.shape_cast %2 : vector<1x16x16xf32> to vector<16x16xf32>
    %c0_6 = arith.constant 0 : index
    %c0_7 = arith.constant 0 : index
    %c0_8 = arith.constant 0 : index
    %4 = vector.load %arg3[%c0_6, %c0_7, %c0_8] : memref<1x16x16xf32, #tpu.memory_space<vmem>>, vector<1x16x16xf32>
    %5 = vector.shape_cast %4 : vector<1x16x16xf32> to vector<16x16xf32>
    %6 = arith.addf %3, %5 : vector<16x16xf32>
    %7 = vector.broadcast %0 : vector<1x16xf32> to vector<16x16xf32>
    %8 = arith.mulf %7, %6 : vector<16x16xf32>
    %9 = vector.broadcast %1 : vector<1x16xf32> to vector<16x16xf32>
    %10 = arith.addf %8, %9 : vector<16x16xf32>
    %cst = arith.constant 0.000000e+00 : f32
    %11 = vector.broadcast %cst : f32 to vector<16x16xf32>
    %12 = arith.cmpf oge, %10, %11 : vector<16x16xf32>
    %cst_9 = arith.constant 2.000000e-01 : f32
    %13 = vector.broadcast %cst_9 : f32 to vector<16x16xf32>
    %14 = arith.mulf %13, %10 : vector<16x16xf32>
    %15 = arith.select %12, %10, %14 : vector<16x16xi1>, vector<16x16xf32>
    %c0_10 = arith.constant 0 : index
    %c0_11 = arith.constant 0 : index
    %c0_12 = arith.constant 0 : index
    %16 = vector.load %arg6[%c0_10, %c0_11, %c0_12] : memref<1x16x16xf32, #tpu.memory_space<vmem>>, vector<1x16x16xf32>
    %17 = vector.shape_cast %16 : vector<1x16x16xf32> to vector<16x16xf32>
    %18 = vector.shape_cast %15 : vector<16x16xf32> to vector<1x16x16xf32>
    tpu.vector_store %arg6[%c0_10, %c0_11, %c0_12], %18 {strides = array<i32>} : memref<1x16x16xf32, #tpu.memory_space<vmem>>, vector<1x16x16xf32>,
    return
  }
  func.func @transform_0(%arg0: i32, %arg1: i32) -> (i32, i32, i32) {
    %c0_i32 = arith.constant 0 : i32
    %c0_i32_0 = arith.constant 0 : i32
    return %arg0, %arg1, %c0_i32 : i32, i32, i32
  }
  func.func @transform_1(%arg0: i32, %arg1: i32) -> (i32, i32, i32) {
    %c0_i32 = arith.constant 0 : i32
    %c0_i32_0 = arith.constant 0 : i32
    return %arg0, %arg1, %c0_i32 : i32, i32, i32
  }
  func.func @transform_2(%arg0: i32, %arg1: i32) -> (i32, i32) {
    %c0_i32 = arith.constant 0 : i32
    %c0_i32_0 = arith.constant 0 : i32
    %c0_i32_1 = arith.constant 0 : i32
    return %c0_i32, %c0_i32_0 : i32, i32
  }
  func.func @transform_3(%arg0: i32, %arg1: i32) -> (i32, i32) {
    %c0_i32 = arith.constant 0 : i32
    %c0_i32_0 = arith.constant 0 : i32
    %c0_i32_1 = arith.constant 0 : i32
    return %c0_i32, %c0_i32_0 : i32, i32
  }
  func.func @transform_4(%arg0: i32, %arg1: i32) -> (i32, i32, i32) {
    %c0_i32 = arith.constant 0 : i32
    %c0_i32_0 = arith.constant 0 : i32
    return %arg0, %arg1, %c0_i32 : i32, i32, i32
  }
}

module attributes {stable_mosaic.version = 11 : i64} {
  func.func @_conv_kernel(%arg0: i32, %arg1: i32, %arg2: memref<1x16x16xbf16, #tpu.memory_space<vmem>>, %arg3: memref<16x32xbf16, #tpu.memory_space<vmem>>, %arg4: memref<16x32xbf16, #tpu.memory_space<vmem>>, %arg5: memref<1x16x32xf32, #tpu.memory_space<vmem>>, %arg6: memref<1x16x32xf32, #tpu.memory_space<vmem>>) attributes {dimension_semantics = [#tpu.dimension_semantics<parallel>, #tpu.dimension_semantics<parallel>], iteration_bounds = array<i64: 2, 1>, scalar_prefetch = 0 : i64, scratch_operands = 0 : i64, tpu.core_type = #tpu.core_type<tc>, window_params = [{transform_indices = @transform_0, window_bounds = array<i64: 1, 16, 16>}, {pipeline_mode = #tpu.pipeline_mode<synchronous>, transform_indices = @transform_1, window_bounds = array<i64: 16, 32>}, {pipeline_mode = #tpu.pipeline_mode<synchronous>, transform_indices = @transform_2, window_bounds = array<i64: 16, 32>}, {transform_indices = @transform_3, window_bounds = array<i64: 1, 16, 32>}, {transform_indices = @transform_4, window_bounds = array<i64: 1, 16, 32>}]} {
    %c0 = arith.constant 0 : index
    %c0_0 = arith.constant 0 : index
    %c0_1 = arith.constant 0 : index
    %0 = vector.load %arg2[%c0, %c0_0, %c0_1] : memref<1x16x16xbf16, #tpu.memory_space<vmem>>, vector<1x16x16xbf16>
    %1 = vector.shape_cast %0 : vector<1x16x16xbf16> to vector<16x16xbf16>
    %c0_2 = arith.constant 0 : index
    %c0_3 = arith.constant 0 : index
    %2 = vector.load %arg3[%c0_2, %c0_3] : memref<16x32xbf16, #tpu.memory_space<vmem>>, vector<16x32xbf16>
    %cst = arith.constant dense<0.000000e+00> : vector<16x32xf32>
    %3 = tpu.matmul %1, %2, %cst {dimension_numbers = #tpu.dot_dimension_numbers<[1], [0], [0], [1], [0, 0, 1, 1], [], []>} : vector<16x16xbf16>, vector<16x32xbf16>, vector<16x32xf32> -> vector<16x32xf32>
    %c0_4 = arith.constant 0 : index
    %c0_5 = arith.constant 0 : index
    %c0_6 = arith.constant 0 : index
    %4 = vector.load %arg5[%c0_4, %c0_5, %c0_6] : memref<1x16x32xf32, #tpu.memory_space<vmem>>, vector<1x16x32xf32>
    %5 = vector.shape_cast %4 : vector<1x16x32xf32> to vector<16x32xf32>
    %6 = vector.shape_cast %3 : vector<16x32xf32> to vector<1x16x32xf32>
    tpu.vector_store %arg5[%c0_4, %c0_5, %c0_6], %6 {strides = array<i32>} : memref<1x16x32xf32, #tpu.memory_space<vmem>>, vector<1x16x32xf32>,
    %c0_7 = arith.constant 0 : index
    %c0_8 = arith.constant 0 : index
    %7 = vector.load %arg4[%c0_7, %c0_8] : memref<16x32xbf16, #tpu.memory_space<vmem>>, vector<16x32xbf16>
    %cst_9 = arith.constant dense<0.000000e+00> : vector<16x32xf32>
    %8 = tpu.matmul %1, %7, %cst_9 {dimension_numbers = #tpu.dot_dimension_numbers<[1], [0], [0], [1], [0, 0, 1, 1], [], []>} : vector<16x16xbf16>, vector<16x32xbf16>, vector<16x32xf32> -> vector<16x32xf32>
    %c0_10 = arith.constant 0 : index
    %c0_11 = arith.constant 0 : index
    %c0_12 = arith.constant 0 : index
    %9 = vector.load %arg6[%c0_10, %c0_11, %c0_12] : memref<1x16x32xf32, #tpu.memory_space<vmem>>, vector<1x16x32xf32>
    %10 = vector.shape_cast %9 : vector<1x16x32xf32> to vector<16x32xf32>
    %11 = vector.shape_cast %8 : vector<16x32xf32> to vector<1x16x32xf32>
    tpu.vector_store %arg6[%c0_10, %c0_11, %c0_12], %11 {strides = array<i32>} : memref<1x16x32xf32, #tpu.memory_space<vmem>>, vector<1x16x32xf32>,
    return
  }
  func.func @transform_0(%arg0: i32, %arg1: i32) -> (i32, i32, i32) {
    %c0_i32 = arith.constant 0 : i32
    %c0_i32_0 = arith.constant 0 : i32
    return %arg0, %arg1, %c0_i32 : i32, i32, i32
  }
  func.func @transform_1(%arg0: i32, %arg1: i32) -> (i32, i32) {
    %c0_i32 = arith.constant 0 : i32
    %c0_i32_0 = arith.constant 0 : i32
    %c0_i32_1 = arith.constant 0 : i32
    return %c0_i32, %c0_i32_0 : i32, i32
  }
  func.func @transform_2(%arg0: i32, %arg1: i32) -> (i32, i32) {
    %c0_i32 = arith.constant 0 : i32
    %c0_i32_0 = arith.constant 0 : i32
    %c0_i32_1 = arith.constant 0 : i32
    return %c0_i32, %c0_i32_0 : i32, i32
  }
  func.func @transform_3(%arg0: i32, %arg1: i32) -> (i32, i32, i32) {
    %c0_i32 = arith.constant 0 : i32
    %c0_i32_0 = arith.constant 0 : i32
    return %arg0, %arg1, %c0_i32 : i32, i32, i32
  }
  func.func @transform_4(%arg0: i32, %arg1: i32) -> (i32, i32, i32) {
    %c0_i32 = arith.constant 0 : i32
    %c0_i32_0 = arith.constant 0 : i32
    return %arg0, %arg1, %c0_i32 : i32, i32, i32
  }
}

module attributes {stable_mosaic.version = 11 : i64} {
  func.func @_edge_kernel(%arg0: i32, %arg1: i32, %arg2: memref<1x16x16xf32, #tpu.memory_space<vmem>>, %arg3: memref<1x16x16xf32, #tpu.memory_space<vmem>>, %arg4: memref<1x1x16xf32, #tpu.memory_space<vmem>>, %arg5: memref<1x16x32xf32, #tpu.memory_space<vmem>>, %arg6: memref<1x16x32xf32, #tpu.memory_space<vmem>>, %arg7: memref<1x16x32xf32, #tpu.memory_space<vmem>>, %arg8: memref<1x1x64xf32, #tpu.memory_space<vmem>>) attributes {dimension_semantics = [#tpu.dimension_semantics<parallel>, #tpu.dimension_semantics<arbitrary>], iteration_bounds = array<i64: 2, 1>, scalar_prefetch = 0 : i64, scratch_operands = 0 : i64, tpu.core_type = #tpu.core_type<tc>, window_params = [{transform_indices = @transform_0, window_bounds = array<i64: 1, 16, 16>}, {transform_indices = @transform_1, window_bounds = array<i64: 1, 16, 16>}, {transform_indices = @transform_2, window_bounds = array<i64: 1, 1, 16>}, {transform_indices = @transform_3, window_bounds = array<i64: 1, 16, 32>}, {transform_indices = @transform_4, window_bounds = array<i64: 1, 16, 32>}, {transform_indices = @transform_5, window_bounds = array<i64: 1, 16, 32>}, {transform_indices = @transform_6, window_bounds = array<i64: 1, 1, 64>}]} {
    %c0_i32 = arith.constant 0 : i32
    %0 = arith.cmpi eq, %arg1, %c0_i32 : i32
    %1 = arith.extui %0 : i1 to i32
    %c0_i32_0 = arith.constant 0 : i32
    %2 = arith.cmpi ne, %1, %c0_i32_0 : i32
    scf.if %2 {
      %cst_49 = arith.constant 0.000000e+00 : f32
      %116 = vector.broadcast %cst_49 : f32 to vector<1x1x64xf32>
      %c0_50 = arith.constant 0 : index
      %c0_51 = arith.constant 0 : index
      %c0_52 = arith.constant 0 : index
      %117 = vector.load %arg8[%c0_50, %c0_51, %c0_52] : memref<1x1x64xf32, #tpu.memory_space<vmem>>, vector<1x1x64xf32>
      tpu.vector_store %arg8[%c0_50, %c0_51, %c0_52], %116 {strides = array<i32>} : memref<1x1x64xf32, #tpu.memory_space<vmem>>, vector<1x1x64xf32>,
    } else {
    }
    %c0 = arith.constant 0 : index
    %c0_1 = arith.constant 0 : index
    %c0_2 = arith.constant 0 : index
    %3 = vector.load %arg2[%c0, %c0_1, %c0_2] : memref<1x16x16xf32, #tpu.memory_space<vmem>>, vector<1x16x16xf32>
    %4 = vector.shape_cast %3 : vector<1x16x16xf32> to vector<16x16xf32>
    %cst = arith.constant 2.000000e+00 : f32
    %5 = vector.broadcast %cst : f32 to vector<16x16xf32>
    %6 = arith.mulf %4, %5 : vector<16x16xf32>
    %c0_3 = arith.constant 0 : index
    %c0_4 = arith.constant 0 : index
    %c0_5 = arith.constant 0 : index
    %7 = vector.load %arg3[%c0_3, %c0_4, %c0_5] : memref<1x16x16xf32, #tpu.memory_space<vmem>>, vector<1x16x16xf32>
    %8 = vector.shape_cast %7 : vector<1x16x16xf32> to vector<16x16xf32>
    %c0_6 = arith.constant 0 : index
    %c0_7 = arith.constant 0 : index
    %c0_8 = arith.constant 0 : index
    %9 = vector.load %arg4[%c0_6, %c0_7, %c0_8] : memref<1x1x16xf32, #tpu.memory_space<vmem>>, vector<1x1x16xf32>
    %10 = vector.shape_cast %9 : vector<1x1x16xf32> to vector<1x16xf32>
    %c0_9 = arith.constant 0 : index
    %c0_10 = arith.constant 0 : index
    %c0_11 = arith.constant 0 : index
    %11 = vector.load %arg5[%c0_9, %c0_10, %c0_11] : memref<1x16x32xf32, #tpu.memory_space<vmem>>, vector<1x16x32xf32>
    %12 = vector.shape_cast %11 : vector<1x16x32xf32> to vector<16x32xf32>
    %c0_12 = arith.constant 0 : index
    %c0_13 = arith.constant 0 : index
    %c0_14 = arith.constant 0 : index
    %13 = vector.load %arg6[%c0_12, %c0_13, %c0_14] : memref<1x16x32xf32, #tpu.memory_space<vmem>>, vector<1x16x32xf32>
    %14 = vector.shape_cast %13 : vector<1x16x32xf32> to vector<16x32xf32>
    %cst_15 = arith.constant dense<0.000000e+00> : vector<16x16xf32>
    %15 = tpu.matmul %6, %8, %cst_15 {dimension_numbers = #tpu.dot_dimension_numbers<[1], [0], [0], [1], [0, 0, 1, 1], [], []>} : vector<16x16xf32>, vector<16x16xf32>, vector<16x16xf32> -> vector<16x16xf32>
    %16 = vector.broadcast %10 : vector<1x16xf32> to vector<16x16xf32>
    %17 = arith.subf %15, %16 : vector<16x16xf32>
    %18 = tpu.iota {dimensions = array<i32: 1>} : vector<16x16xi32>
    %19 = arith.sitofp %18 : vector<16x16xi32> to vector<16x16xf32>
    %cst_16 = arith.constant dense<0xFF800000> : vector<16xf32>
    %20 = vector.multi_reduction <maximumf>, %17, %cst_16 [1] : vector<16x16xf32> to vector<16xf32>
    %21 = vector.shape_cast %20 : vector<16xf32> to vector<16x1xf32>
    %22 = vector.broadcast %21 : vector<16x1xf32> to vector<16x16xf32>
    %23 = arith.cmpf oeq, %17, %22 : vector<16x16xf32>
    %cst_17 = arith.constant 1.600000e+01 : f32
    %24 = vector.broadcast %cst_17 : f32 to vector<16x16xf32>
    %25 = arith.select %23, %19, %24 : vector<16x16xi1>, vector<16x16xf32>
    %cst_18 = arith.constant dense<0x7F800000> : vector<16xf32>
    %26 = vector.multi_reduction <minimumf>, %25, %cst_18 [1] : vector<16x16xf32> to vector<16xf32>
    %27 = vector.shape_cast %26 : vector<16xf32> to vector<16x1xf32>
    %28 = vector.broadcast %27 : vector<16x1xf32> to vector<16x16xf32>
    %29 = arith.cmpf oeq, %19, %28 : vector<16x16xf32>
    %cst_19 = arith.constant 0xFF800000 : f32
    %30 = vector.broadcast %cst_19 : f32 to vector<16x16xf32>
    %31 = arith.select %29, %30, %17 : vector<16x16xi1>, vector<16x16xf32>
    %32 = arith.extui %29 : vector<16x16xi1> to vector<16x16xi32>
    %33 = arith.sitofp %32 : vector<16x16xi32> to vector<16x16xf32>
    %cst_20 = arith.constant dense<0.000000e+00> : vector<16x32xf32>
    %34 = tpu.matmul %33, %12, %cst_20 {dimension_numbers = #tpu.dot_dimension_numbers<[1], [0], [0], [1], [0, 0, 1, 1], [], []>} : vector<16x16xf32>, vector<16x32xf32>, vector<16x32xf32> -> vector<16x32xf32>
    %35 = arith.mulf %34, %34 : vector<16x32xf32>
    %cst_21 = arith.constant dense<0xFF800000> : vector<16xf32>
    %36 = vector.multi_reduction <maximumf>, %31, %cst_21 [1] : vector<16x16xf32> to vector<16xf32>
    %37 = vector.shape_cast %36 : vector<16xf32> to vector<16x1xf32>
    %38 = vector.broadcast %37 : vector<16x1xf32> to vector<16x16xf32>
    %39 = arith.cmpf oeq, %31, %38 : vector<16x16xf32>
    %cst_22 = arith.constant 1.600000e+01 : f32
    %40 = vector.broadcast %cst_22 : f32 to vector<16x16xf32>
    %41 = arith.select %39, %19, %40 : vector<16x16xi1>, vector<16x16xf32>
    %cst_23 = arith.constant dense<0x7F800000> : vector<16xf32>
    %42 = vector.multi_reduction <minimumf>, %41, %cst_23 [1] : vector<16x16xf32> to vector<16xf32>
    %43 = vector.shape_cast %42 : vector<16xf32> to vector<16x1xf32>
    %44 = vector.broadcast %43 : vector<16x1xf32> to vector<16x16xf32>
    %45 = arith.cmpf oeq, %19, %44 : vector<16x16xf32>
    %cst_24 = arith.constant 0xFF800000 : f32
    %46 = vector.broadcast %cst_24 : f32 to vector<16x16xf32>
    %47 = arith.select %45, %46, %31 : vector<16x16xi1>, vector<16x16xf32>
    %48 = arith.extui %45 : vector<16x16xi1> to vector<16x16xi32>
    %49 = arith.sitofp %48 : vector<16x16xi32> to vector<16x16xf32>
    %cst_25 = arith.constant dense<0.000000e+00> : vector<16x32xf32>
    %50 = tpu.matmul %49, %12, %cst_25 {dimension_numbers = #tpu.dot_dimension_numbers<[1], [0], [0], [1], [0, 0, 1, 1], [], []>} : vector<16x16xf32>, vector<16x32xf32>, vector<16x32xf32> -> vector<16x32xf32>
    %51 = arith.maximumf %34, %50 : vector<16x32xf32>
    %52 = arith.addf %34, %50 : vector<16x32xf32>
    %53 = arith.mulf %50, %50 : vector<16x32xf32>
    %54 = arith.addf %35, %53 : vector<16x32xf32>
    %cst_26 = arith.constant dense<0xFF800000> : vector<16xf32>
    %55 = vector.multi_reduction <maximumf>, %47, %cst_26 [1] : vector<16x16xf32> to vector<16xf32>
    %56 = vector.shape_cast %55 : vector<16xf32> to vector<16x1xf32>
    %57 = vector.broadcast %56 : vector<16x1xf32> to vector<16x16xf32>
    %58 = arith.cmpf oeq, %47, %57 : vector<16x16xf32>
    %cst_27 = arith.constant 1.600000e+01 : f32
    %59 = vector.broadcast %cst_27 : f32 to vector<16x16xf32>
    %60 = arith.select %58, %19, %59 : vector<16x16xi1>, vector<16x16xf32>
    %cst_28 = arith.constant dense<0x7F800000> : vector<16xf32>
    %61 = vector.multi_reduction <minimumf>, %60, %cst_28 [1] : vector<16x16xf32> to vector<16xf32>
    %62 = vector.shape_cast %61 : vector<16xf32> to vector<16x1xf32>
    %63 = vector.broadcast %62 : vector<16x1xf32> to vector<16x16xf32>
    %64 = arith.cmpf oeq, %19, %63 : vector<16x16xf32>
    %cst_29 = arith.constant 0xFF800000 : f32
    %65 = vector.broadcast %cst_29 : f32 to vector<16x16xf32>
    %66 = arith.select %64, %65, %47 : vector<16x16xi1>, vector<16x16xf32>
    %67 = arith.extui %64 : vector<16x16xi1> to vector<16x16xi32>
    %68 = arith.sitofp %67 : vector<16x16xi32> to vector<16x16xf32>
    %cst_30 = arith.constant dense<0.000000e+00> : vector<16x32xf32>
    %69 = tpu.matmul %68, %12, %cst_30 {dimension_numbers = #tpu.dot_dimension_numbers<[1], [0], [0], [1], [0, 0, 1, 1], [], []>} : vector<16x16xf32>, vector<16x32xf32>, vector<16x32xf32> -> vector<16x32xf32>
    %70 = arith.maximumf %51, %69 : vector<16x32xf32>
    %71 = arith.addf %52, %69 : vector<16x32xf32>
    %72 = arith.mulf %69, %69 : vector<16x32xf32>
    %73 = arith.addf %54, %72 : vector<16x32xf32>
    %cst_31 = arith.constant dense<0xFF800000> : vector<16xf32>
    %74 = vector.multi_reduction <maximumf>, %66, %cst_31 [1] : vector<16x16xf32> to vector<16xf32>
    %75 = vector.shape_cast %74 : vector<16xf32> to vector<16x1xf32>
    %76 = vector.broadcast %75 : vector<16x1xf32> to vector<16x16xf32>
    %77 = arith.cmpf oeq, %66, %76 : vector<16x16xf32>
    %cst_32 = arith.constant 1.600000e+01 : f32
    %78 = vector.broadcast %cst_32 : f32 to vector<16x16xf32>
    %79 = arith.select %77, %19, %78 : vector<16x16xi1>, vector<16x16xf32>
    %cst_33 = arith.constant dense<0x7F800000> : vector<16xf32>
    %80 = vector.multi_reduction <minimumf>, %79, %cst_33 [1] : vector<16x16xf32> to vector<16xf32>
    %81 = vector.shape_cast %80 : vector<16xf32> to vector<16x1xf32>
    %82 = vector.broadcast %81 : vector<16x1xf32> to vector<16x16xf32>
    %83 = arith.cmpf oeq, %19, %82 : vector<16x16xf32>
    %84 = arith.extui %83 : vector<16x16xi1> to vector<16x16xi32>
    %85 = arith.sitofp %84 : vector<16x16xi32> to vector<16x16xf32>
    %cst_34 = arith.constant dense<0.000000e+00> : vector<16x32xf32>
    %86 = tpu.matmul %85, %12, %cst_34 {dimension_numbers = #tpu.dot_dimension_numbers<[1], [0], [0], [1], [0, 0, 1, 1], [], []>} : vector<16x16xf32>, vector<16x32xf32>, vector<16x32xf32> -> vector<16x32xf32>
    %87 = arith.maximumf %70, %86 : vector<16x32xf32>
    %88 = arith.addf %71, %86 : vector<16x32xf32>
    %89 = arith.mulf %86, %86 : vector<16x32xf32>
    %90 = arith.addf %73, %89 : vector<16x32xf32>
    %c0_35 = arith.constant 0 : index
    %c0_36 = arith.constant 0 : index
    %c0_37 = arith.constant 0 : index
    %91 = vector.load %arg7[%c0_35, %c0_36, %c0_37] : memref<1x16x32xf32, #tpu.memory_space<vmem>>, vector<1x16x32xf32>
    %92 = vector.shape_cast %91 : vector<1x16x32xf32> to vector<16x32xf32>
    %93 = vector.shape_cast %87 : vector<16x32xf32> to vector<1x16x32xf32>
    tpu.vector_store %arg7[%c0_35, %c0_36, %c0_37], %93 {strides = array<i32>} : memref<1x16x32xf32, #tpu.memory_space<vmem>>, vector<1x16x32xf32>,
    %cst_38 = arith.constant 4.000000e+00 : f32
    %94 = vector.broadcast %cst_38 : f32 to vector<16x32xf32>
    %95 = arith.mulf %94, %14 : vector<16x32xf32>
    %96 = arith.addf %88, %95 : vector<16x32xf32>
    %cst_39 = arith.constant dense<0.000000e+00> : vector<32xf32>
    %97 = vector.multi_reduction <add>, %96, %cst_39 [0] : vector<16x32xf32> to vector<32xf32>
    %98 = vector.shape_cast %97 : vector<32xf32> to vector<1x32xf32>
    %cst_40 = arith.constant 2.000000e+00 : f32
    %99 = vector.broadcast %cst_40 : f32 to vector<16x32xf32>
    %100 = arith.mulf %99, %14 : vector<16x32xf32>
    %101 = arith.mulf %100, %88 : vector<16x32xf32>
    %102 = arith.addf %90, %101 : vector<16x32xf32>
    %cst_41 = arith.constant 4.000000e+00 : f32
    %103 = vector.broadcast %cst_41 : f32 to vector<16x32xf32>
    %104 = arith.mulf %103, %14 : vector<16x32xf32>
    %105 = arith.mulf %104, %14 : vector<16x32xf32>
    %106 = arith.addf %102, %105 : vector<16x32xf32>
    %cst_42 = arith.constant dense<0.000000e+00> : vector<32xf32>
    %107 = vector.multi_reduction <add>, %106, %cst_42 [0] : vector<16x32xf32> to vector<32xf32>
    %108 = vector.shape_cast %107 : vector<32xf32> to vector<1x32xf32>
    %c0_43 = arith.constant 0 : index
    %c0_44 = arith.constant 0 : index
    %c0_45 = arith.constant 0 : index
    %109 = vector.load %arg8[%c0_43, %c0_44, %c0_45] : memref<1x1x64xf32, #tpu.memory_space<vmem>>, vector<1x1x64xf32>
    %110 = vector.shape_cast %109 : vector<1x1x64xf32> to vector<1x64xf32>
    %111 = tpu.concatenate %98, %108 in 1 : vector<1x32xf32>, vector<1x32xf32> -> vector<1x64xf32>
    %112 = arith.addf %110, %111 : vector<1x64xf32>
    %c0_46 = arith.constant 0 : index
    %c0_47 = arith.constant 0 : index
    %c0_48 = arith.constant 0 : index
    %113 = vector.load %arg8[%c0_46, %c0_47, %c0_48] : memref<1x1x64xf32, #tpu.memory_space<vmem>>, vector<1x1x64xf32>
    %114 = vector.shape_cast %113 : vector<1x1x64xf32> to vector<1x64xf32>
    %115 = vector.shape_cast %112 : vector<1x64xf32> to vector<1x1x64xf32>
    tpu.vector_store %arg8[%c0_46, %c0_47, %c0_48], %115 {strides = array<i32>} : memref<1x1x64xf32, #tpu.memory_space<vmem>>, vector<1x1x64xf32>,
    return
  }
  func.func @transform_0(%arg0: i32, %arg1: i32) -> (i32, i32, i32) {
    %c0_i32 = arith.constant 0 : i32
    %c0_i32_0 = arith.constant 0 : i32
    return %arg0, %arg1, %c0_i32 : i32, i32, i32
  }
  func.func @transform_1(%arg0: i32, %arg1: i32) -> (i32, i32, i32) {
    %c0_i32 = arith.constant 0 : i32
    %c0_i32_0 = arith.constant 0 : i32
    %c0_i32_1 = arith.constant 0 : i32
    return %arg0, %c0_i32, %c0_i32_0 : i32, i32, i32
  }
  func.func @transform_2(%arg0: i32, %arg1: i32) -> (i32, i32, i32) {
    %c0_i32 = arith.constant 0 : i32
    %c0_i32_0 = arith.constant 0 : i32
    %c0_i32_1 = arith.constant 0 : i32
    return %arg0, %c0_i32, %c0_i32_0 : i32, i32, i32
  }
  func.func @transform_3(%arg0: i32, %arg1: i32) -> (i32, i32, i32) {
    %c0_i32 = arith.constant 0 : i32
    %c0_i32_0 = arith.constant 0 : i32
    %c0_i32_1 = arith.constant 0 : i32
    return %arg0, %c0_i32, %c0_i32_0 : i32, i32, i32
  }
  func.func @transform_4(%arg0: i32, %arg1: i32) -> (i32, i32, i32) {
    %c0_i32 = arith.constant 0 : i32
    %c0_i32_0 = arith.constant 0 : i32
    return %arg0, %arg1, %c0_i32 : i32, i32, i32
  }
  func.func @transform_5(%arg0: i32, %arg1: i32) -> (i32, i32, i32) {
    %c0_i32 = arith.constant 0 : i32
    %c0_i32_0 = arith.constant 0 : i32
    return %arg0, %arg1, %c0_i32 : i32, i32, i32
  }
  func.func @transform_6(%arg0: i32, %arg1: i32) -> (i32, i32, i32) {
    %c0_i32 = arith.constant 0 : i32
    %c0_i32_0 = arith.constant 0 : i32
    %c0_i32_1 = arith.constant 0 : i32
    return %arg0, %c0_i32, %c0_i32_0 : i32, i32, i32
  }
}

module attributes {stable_mosaic.version = 11 : i64} {
  func.func @_finalize_kernel(%arg0: i32, %arg1: i32, %arg2: memref<1x16x32xf32, #tpu.memory_space<vmem>>, %arg3: memref<1x16x32xf32, #tpu.memory_space<vmem>>, %arg4: memref<1x32xf32, #tpu.memory_space<vmem>>, %arg5: memref<1x32xf32, #tpu.memory_space<vmem>>, %arg6: memref<1x16x32xf32, #tpu.memory_space<vmem>>) attributes {dimension_semantics = [#tpu.dimension_semantics<parallel>, #tpu.dimension_semantics<parallel>], iteration_bounds = array<i64: 2, 1>, scalar_prefetch = 0 : i64, scratch_operands = 0 : i64, tpu.core_type = #tpu.core_type<tc>, window_params = [{transform_indices = @transform_0, window_bounds = array<i64: 1, 16, 32>}, {transform_indices = @transform_1, window_bounds = array<i64: 1, 16, 32>}, {pipeline_mode = #tpu.pipeline_mode<synchronous>, transform_indices = @transform_2, window_bounds = array<i64: 1, 32>}, {pipeline_mode = #tpu.pipeline_mode<synchronous>, transform_indices = @transform_3, window_bounds = array<i64: 1, 32>}, {transform_indices = @transform_4, window_bounds = array<i64: 1, 16, 32>}]} {
    %c0 = arith.constant 0 : index
    %c0_0 = arith.constant 0 : index
    %0 = vector.load %arg4[%c0, %c0_0] : memref<1x32xf32, #tpu.memory_space<vmem>>, vector<1x32xf32>
    %c0_1 = arith.constant 0 : index
    %c0_2 = arith.constant 0 : index
    %1 = vector.load %arg5[%c0_1, %c0_2] : memref<1x32xf32, #tpu.memory_space<vmem>>, vector<1x32xf32>
    %c0_3 = arith.constant 0 : index
    %c0_4 = arith.constant 0 : index
    %c0_5 = arith.constant 0 : index
    %2 = vector.load %arg2[%c0_3, %c0_4, %c0_5] : memref<1x16x32xf32, #tpu.memory_space<vmem>>, vector<1x16x32xf32>
    %3 = vector.shape_cast %2 : vector<1x16x32xf32> to vector<16x32xf32>
    %c0_6 = arith.constant 0 : index
    %c0_7 = arith.constant 0 : index
    %c0_8 = arith.constant 0 : index
    %4 = vector.load %arg3[%c0_6, %c0_7, %c0_8] : memref<1x16x32xf32, #tpu.memory_space<vmem>>, vector<1x16x32xf32>
    %5 = vector.shape_cast %4 : vector<1x16x32xf32> to vector<16x32xf32>
    %6 = arith.addf %3, %5 : vector<16x32xf32>
    %7 = vector.broadcast %0 : vector<1x32xf32> to vector<16x32xf32>
    %8 = arith.mulf %7, %6 : vector<16x32xf32>
    %9 = vector.broadcast %1 : vector<1x32xf32> to vector<16x32xf32>
    %10 = arith.addf %8, %9 : vector<16x32xf32>
    %cst = arith.constant 0.000000e+00 : f32
    %11 = vector.broadcast %cst : f32 to vector<16x32xf32>
    %12 = arith.cmpf oge, %10, %11 : vector<16x32xf32>
    %cst_9 = arith.constant 2.000000e-01 : f32
    %13 = vector.broadcast %cst_9 : f32 to vector<16x32xf32>
    %14 = arith.mulf %13, %10 : vector<16x32xf32>
    %15 = arith.select %12, %10, %14 : vector<16x32xi1>, vector<16x32xf32>
    %c0_10 = arith.constant 0 : index
    %c0_11 = arith.constant 0 : index
    %c0_12 = arith.constant 0 : index
    %16 = vector.load %arg6[%c0_10, %c0_11, %c0_12] : memref<1x16x32xf32, #tpu.memory_space<vmem>>, vector<1x16x32xf32>
    %17 = vector.shape_cast %16 : vector<1x16x32xf32> to vector<16x32xf32>
    %18 = vector.shape_cast %15 : vector<16x32xf32> to vector<1x16x32xf32>
    tpu.vector_store %arg6[%c0_10, %c0_11, %c0_12], %18 {strides = array<i32>} : memref<1x16x32xf32, #tpu.memory_space<vmem>>, vector<1x16x32xf32>,
    return
  }
  func.func @transform_0(%arg0: i32, %arg1: i32) -> (i32, i32, i32) {
    %c0_i32 = arith.constant 0 : i32
    %c0_i32_0 = arith.constant 0 : i32
    return %arg0, %arg1, %c0_i32 : i32, i32, i32
  }
  func.func @transform_1(%arg0: i32, %arg1: i32) -> (i32, i32, i32) {
    %c0_i32 = arith.constant 0 : i32
    %c0_i32_0 = arith.constant 0 : i32
    return %arg0, %arg1, %c0_i32 : i32, i32, i32
  }
  func.func @transform_2(%arg0: i32, %arg1: i32) -> (i32, i32) {
    %c0_i32 = arith.constant 0 : i32
    %c0_i32_0 = arith.constant 0 : i32
    %c0_i32_1 = arith.constant 0 : i32
    return %c0_i32, %c0_i32_0 : i32, i32
  }
  func.func @transform_3(%arg0: i32, %arg1: i32) -> (i32, i32) {
    %c0_i32 = arith.constant 0 : i32
    %c0_i32_0 = arith.constant 0 : i32
    %c0_i32_1 = arith.constant 0 : i32
    return %c0_i32, %c0_i32_0 : i32, i32
  }
  func.func @transform_4(%arg0: i32, %arg1: i32) -> (i32, i32, i32) {
    %c0_i32 = arith.constant 0 : i32
    %c0_i32_0 = arith.constant 0 : i32
    return %arg0, %arg1, %c0_i32 : i32, i32, i32
  }
}

</mosaic_0001>

<llo_original>
// kernel: dgcnn_origin_forward.11
$region0: #{dgcnn_origin_forward.11}
  #allocation0 [shape = 'u32[]', space=smem, size = 0x4, offset = 0x4, fixed_abs, tag = 'smem constant byte address 0x4 - core index']
  #allocation1 [shape = 'u32[144,128]{1,0:T(1,128)}', space=vmem, size = 0x12000, scoped, tag = 'internal scratch']
  %s0 = inlined_call_operand.vmem [shape: f32[2,16,8], index: 0, kind: input, shape index: {}]
  %s1 = inlined_call_operand.vmem [shape: f32[2,16,8], index: 1, kind: input, shape index: {}]
  %s2 = inlined_call_operand.vmem [shape: f32[1,8], index: 2, kind: input, shape index: {}]
  %s3 = inlined_call_operand.vmem [shape: f32[1,8], index: 3, kind: input, shape index: {}]
  %s4 = inlined_call_operand.vmem [shape: f32[2,16,8], index: 4, kind: output, shape index: {}]
  %s5 = sld [smem:[#allocation0]]
  $region49: #{dgcnn_origin_forward.11} parent=0
    _
  %s7 = ssub.s32 1, %s5
  %s8 = scalar_select 0, %s7, %s5
  loop: start=0, step=1, limit=4
  $region2: #{dgcnn_origin_forward.11} parent=0 // loop_pre_header
    _
  $region3: #{dgcnn_origin_forward.11} parent=0 // loop_header
    %s10 = sphi 0, %s14
    %p11 = scmp.ge.s32.totalorder %s10, 4
    %s17 = sphi 0, %s29
    %s18 = sphi 0, %s25
    %s19 = sphi 0, %s17
    %s20 = sphi 0, %s18
    %s21 = sphi 0, %s19
    %s22 = sphi 0, %s20
    %s34 = sphi 0, %s36
    %s37 = sphi 0, %s34
    %s38 = sphi 0, %s37
    %s54 = sphi 0, %s38
    %s62 = sphi 0, %s64
    %s65 = sphi 0, %s62
    %s66 = sphi 0, %s65
    %s82 = sphi 0, %s66
    %s86 = sphi 0, %s86
    %s88 = sphi 0, %s86
    %s89 = sphi 0, %s88
    %s103 = sphi 0, %s89
    %s107 = sphi 0, %s107
    %s109 = sphi 0, %s107
    %s110 = sphi 0, %s109
    %s124 = sphi 0, %s110
    %s132 = sphi 0, %s134
    %s135 = sphi 0, %s132
    %s136 = sphi 0, %s135
    %s152 = sphi 0, %s136
  $region4: #{dgcnn_origin_forward.11} parent=0 // loop_header_branch
    %13 = sbr.rel (%p11) target = $region8
  $region5: #{dgcnn_origin_forward.11} parent=0 // loop_body
    %s15 = ssub.s32 %s10, 1
    %s16 = ssub.s32 %s10, 2
    %s23 = sadd.s32 1, %s18
    %p24 = scmp.ge.s32.totalorder %s23, 1
    %s25 = scalar_select %p24, 0, %s23
    %s26 = sadd.s32 1, %s17
    %s27 = scalar_select %p24, %s26, %s17
    %p28 = scmp.ge.s32.totalorder %s27, 2
    %s29 = scalar_select %p28, 0, %s27
    %s30 = ssub.s32 %s17, %s29
    %s31 = ssub.s32 %s18, %s25
    %s32 = sor.u32 %s30, %s31
    %p33 = scmp.eq.s32.totalorder %s32, 0
    %s35 = sadd.s32 %s34, 1
    %s36 = scalar_select %p33, %s34, %s35
    %p39 = pneg %p33
    %p40 = scmp.eq.s32.totalorder %s10, 1
    %p41 = por %p39, %p40
    %p42 = scmp.ne.s32.totalorder %s34, %s37
    %p43 = scmp.eq.s32.totalorder %s10, 0
    %p44 = por %p42, %p43
    %p45 = scmp.ne.s32.totalorder %s34, %s37
    %p46 = scmp.eq.s32.totalorder %s15, 1
    %p47 = por %p45, %p46
    %p48 = scmp.ne.s32.totalorder %s37, %s38
    %p49 = scmp.eq.s32.totalorder %s15, 0
    %p50 = por %p48, %p49
    %p51 = scmp.ne.s32.totalorder %s37, %s38
    %p52 = scmp.eq.s32.totalorder %s16, 1
    %p53 = por %p51, %p52
    %p55 = scmp.ne.s32.totalorder %s38, %s54
    %p56 = scmp.eq.s32.totalorder %s16, 0
    %p57 = por %p55, %p56
    %s58 = ssub.s32 %s17, %s29
    %s59 = ssub.s32 %s18, %s25
    %s60 = sor.u32 %s58, %s59
    %p61 = scmp.eq.s32.totalorder %s60, 0
    %s63 = sadd.s32 %s62, 1
    %s64 = scalar_select %p61, %s62, %s63
    %p67 = pneg %p61
    %p68 = scmp.eq.s32.totalorder %s10, 1
    %p69 = por %p67, %p68
    %p70 = scmp.ne.s32.totalorder %s62, %s65
    %p71 = scmp.eq.s32.totalorder %s10, 0
    %p72 = por %p70, %p71
    %p73 = scmp.ne.s32.totalorder %s62, %s65
    %p74 = scmp.eq.s32.totalorder %s15, 1
    %p75 = por %p73, %p74
    %p76 = scmp.ne.s32.totalorder %s65, %s66
    %p77 = scmp.eq.s32.totalorder %s15, 0
    %p78 = por %p76, %p77
    %p79 = scmp.ne.s32.totalorder %s65, %s66
    %p80 = scmp.eq.s32.totalorder %s16, 1
    %p81 = por %p79, %p80
    %p83 = scmp.ne.s32.totalorder %s66, %s82
    %p84 = scmp.eq.s32.totalorder %s16, 0
    %p85 = por %p83, %p84
    %s87 = sadd.s32 %s86, 1
    %p90 = scmp.eq.s32.totalorder %s10, 1
    %p91 = scmp.ne.s32.totalorder %s86, %s88
    %p92 = scmp.eq.s32.totalorder %s10, 0
    %p93 = por %p91, %p92
    %p94 = scmp.ne.s32.totalorder %s86, %s88
    %p95 = scmp.eq.s32.totalorder %s15, 1
    %p96 = por %p94, %p95
    %p97 = scmp.ne.s32.totalorder %s88, %s89
    %p98 = scmp.eq.s32.totalorder %s15, 0
    %p99 = por %p97, %p98
    %p100 = scmp.ne.s32.totalorder %s88, %s89
    %p101 = scmp.eq.s32.totalorder %s16, 1
    %p102 = por %p100, %p101
    %p104 = scmp.ne.s32.totalorder %s89, %s103
    %p105 = scmp.eq.s32.totalorder %s16, 0
    %p106 = por %p104, %p105
    %s108 = sadd.s32 %s107, 1
    %p111 = scmp.eq.s32.totalorder %s10, 1
    %p112 = scmp.ne.s32.totalorder %s107, %s109
    %p113 = scmp.eq.s32.totalorder %s10, 0
    %p114 = por %p112, %p113
    %p115 = scmp.ne.s32.totalorder %s107, %s109
    %p116 = scmp.eq.s32.totalorder %s15, 1
    %p117 = por %p115, %p116
    %p118 = scmp.ne.s32.totalorder %s109, %s110
    %p119 = scmp.eq.s32.totalorder %s15, 0
    %p120 = por %p118, %p119
    %p121 = scmp.ne.s32.totalorder %s109, %s110
    %p122 = scmp.eq.s32.totalorder %s16, 1
    %p123 = por %p121, %p122
    %p125 = scmp.ne.s32.totalorder %s110, %s124
    %p126 = scmp.eq.s32.totalorder %s16, 0
    %p127 = por %p125, %p126
    %s128 = ssub.s32 %s17, %s29
    %s129 = ssub.s32 %s18, %s25
    %s130 = sor.u32 %s128, %s129
    %p131 = scmp.eq.s32.totalorder %s130, 0
    %s133 = sadd.s32 %s132, 1
    %s134 = scalar_select %p131, %s132, %s133
    %p137 = pneg %p131
    %p138 = scmp.eq.s32.totalorder %s10, 1
    %p139 = por %p137, %p138
    %p140 = scmp.ne.s32.totalorder %s132, %s135
    %p141 = scmp.eq.s32.totalorder %s10, 0
    %p142 = por %p140, %p141
    %p143 = scmp.ne.s32.totalorder %s132, %s135
    %p144 = scmp.eq.s32.totalorder %s15, 1
    %p145 = por %p143, %p144
    %p146 = scmp.ne.s32.totalorder %s135, %s136
    %p147 = scmp.eq.s32.totalorder %s15, 0
    %p148 = por %p146, %p147
    %p149 = scmp.ne.s32.totalorder %s135, %s136
    %p150 = scmp.eq.s32.totalorder %s16, 1
    %p151 = por %p149, %p150
    %p153 = scmp.ne.s32.totalorder %s136, %s152
    %p154 = scmp.eq.s32.totalorder %s16, 0
    %p155 = por %p153, %p154
    %p156 = scmp.le.s32.totalorder 1, %s10
    %p157 = scmp.lt.s32.totalorder %s10, 3
    %p158 = pnand %p156, %p157
    %p159 = pneg %p158
    // Predicated region
    $region9: #{dgcnn_origin_forward.11} parent=5 // pred_check
      _
    $region10: #{dgcnn_origin_forward.11} parent=5 // pred_check_branch
      %161 = sbr.rel (%p158) target = $region12
    $region11: #{dgcnn_origin_forward.11} parent=5 // pred_region
      %s162 = ssub.s32 %s10, 1
      // Predicated region
      $region13: #{dgcnn_origin_forward.11} parent=11 // pred_check
        %p163 = pneg %p99
      $region14: #{dgcnn_origin_forward.11} parent=11 // pred_check_branch
        %165 = sbr.rel (%p163) target = $region16
      $region15: #{dgcnn_origin_forward.11} parent=11 // pred_region
        _
      $region16: #{dgcnn_origin_forward.11} parent=11 // pred_fallthru
        _
      // Predicated region
      $region17: #{dgcnn_origin_forward.11} parent=11 // pred_check
        %p166 = pneg %p120
      $region18: #{dgcnn_origin_forward.11} parent=11 // pred_check_branch
        %168 = sbr.rel (%p166) target = $region20
      $region19: #{dgcnn_origin_forward.11} parent=11 // pred_region
        _
      $region20: #{dgcnn_origin_forward.11} parent=11 // pred_fallthru
        _
    $region12: #{dgcnn_origin_forward.11} parent=5 // pred_fallthru
      _
    %p169 = scmp.lt.s32.totalorder %s10, 2
    // Predicated region
    $region21: #{dgcnn_origin_forward.11} parent=5 // pred_check
      %p170 = pneg %p169
    $region22: #{dgcnn_origin_forward.11} parent=5 // pred_check_branch
      %172 = sbr.rel (%p170) target = $region24
    $region23: #{dgcnn_origin_forward.11} parent=5 // pred_region
      // Predicated region
      $region25: #{dgcnn_origin_forward.11} parent=23 // pred_check
        %p173 = pneg %p44
      $region26: #{dgcnn_origin_forward.11} parent=23 // pred_check_branch
        %175 = sbr.rel (%p173) target = $region28
      $region27: #{dgcnn_origin_forward.11} parent=23 // pred_region
        %s176 = smul.u32 2, %s18
        %p177 = scmp.lt.s32.totalorder %s17, 1
        %s178 = scalar_select %p177, %s17, 1
        %p179 = scmp.lt.s32.totalorder %s176, 1
        %s180 = scalar_select %p179, %s176, 1
        %s181 = smul.addr %s178, 2
        %s182 = sadd.s32 %s180, %s181
        %s183 = smul.addr %s182, 8
        %s184 = scalar_lea.vmem %s0, %s183
        %s185 = smul.u32 2, %s18
      $region28: #{dgcnn_origin_forward.11} parent=23 // pred_fallthru
        _
      // Predicated region
      $region29: #{dgcnn_origin_forward.11} parent=23 // pred_check
        %p186 = pneg %p72
      $region30: #{dgcnn_origin_forward.11} parent=23 // pred_check_branch
        %188 = sbr.rel (%p186) target = $region32
      $region31: #{dgcnn_origin_forward.11} parent=23 // pred_region
        %s189 = smul.u32 2, %s18
        %p190 = scmp.lt.s32.totalorder %s17, 1
        %s191 = scalar_select %p190, %s17, 1
        %p192 = scmp.lt.s32.totalorder %s189, 1
        %s193 = scalar_select %p192, %s189, 1
        %s194 = smul.addr %s191, 2
        %s195 = sadd.s32 %s193, %s194
        %s196 = smul.addr %s195, 8
        %s197 = scalar_lea.vmem %s1, %s196
        %s198 = smul.u32 2, %s18
      $region32: #{dgcnn_origin_forward.11} parent=23 // pred_fallthru
        _
    $region24: #{dgcnn_origin_forward.11} parent=5 // pred_fallthru
      _
    %p199 = scmp.le.s32.totalorder 1, %s10
    %p200 = scmp.lt.s32.totalorder %s10, 3
    %p201 = pnand %p199, %p200
    %p202 = pneg %p201
    // Predicated region
    $region33: #{dgcnn_origin_forward.11} parent=5 // pred_check
      _
    $region34: #{dgcnn_origin_forward.11} parent=5 // pred_check_branch
      %204 = sbr.rel (%p201) target = $region36
    $region35: #{dgcnn_origin_forward.11} parent=5 // pred_region
      %s205 = ssub.s32 %s10, 1
      %s206 = smul.u32 2, %s20
      %p207 = scmp.lt.s32.totalorder %s19, 1
      %s208 = scalar_select %p207, %s19, 1
      %p209 = scmp.lt.s32.totalorder %s206, 1
      %s210 = scalar_select %p209, %s206, 1
      %s211 = smul.addr %s208, 2
      %s212 = sadd.s32 %s210, %s211
      %s213 = smul.addr %s212, 8
      %s214 = scalar_lea.vmem %s0, %s213
      %p215 = pneg %p50
      %p216 = pneg %p47
      %s217 = smul.u32 2, %s20
      %p218 = scmp.lt.s32.totalorder %s19, 1
      %s219 = scalar_select %p218, %s19, 1
      %p220 = scmp.lt.s32.totalorder %s217, 1
      %s221 = scalar_select %p220, %s217, 1
      %s222 = smul.addr %s219, 2
      %s223 = sadd.s32 %s221, %s222
      %s224 = smul.addr %s223, 8
      %s225 = scalar_lea.vmem %s1, %s224
      %p226 = pneg %p78
      %p227 = pneg %p75
      %p228 = pneg %p99
      %p229 = pneg %p96
      %p230 = pneg %p120
      %p231 = pneg %p117
      %p232 = pneg %p148
      %p233 = pneg %p145
      %s234 = smul.u32 2, %s20
      %p235 = scmp.lt.s32.totalorder %s19, 1
      %s236 = scalar_select %p235, %s19, 1
      %p237 = scmp.lt.s32.totalorder %s234, 1
      %s238 = scalar_select %p237, %s234, 1
      %s239 = smul.addr %s236, 2
      %s240 = sadd.s32 %s238, %s239
      %s241 = smul.addr %s240, 8
      %s242 = scalar_lea.vmem %s4, %s241
      %s243 = smul.u32 2, %s20
      %p244 = scmp.lt.s32.totalorder %s19, 1
      %s245 = scalar_select %p244, %s19, 1
      %p246 = scmp.lt.s32.totalorder %s243, 1
      %s247 = scalar_select %p246, %s243, 1
      %s248 = smul.addr %s245, 2
      %s249 = sadd.s32 %s247, %s248
      %s250 = smul.addr %s249, 8
      %s251 = scalar_lea.vmem %s0, %s250
      %s252 = smul.u32 2, %s20
      %s253 = smul.u32 2, %s20
      %p254 = scmp.lt.s32.totalorder %s19, 1
      %s255 = scalar_select %p254, %s19, 1
      %p256 = scmp.lt.s32.totalorder %s253, 1
      %s257 = scalar_select %p256, %s253, 1
      %s258 = smul.addr %s255, 2
      %s259 = sadd.s32 %s257, %s258
      %s260 = smul.addr %s259, 8
      %s261 = scalar_lea.vmem %s1, %s260
      %s262 = smul.u32 2, %s20
      %s263 = smul.u32 2, %s20
      %p264 = scmp.lt.s32.totalorder %s19, 1
      %s265 = scalar_select %p264, %s19, 1
      %p266 = scmp.lt.s32.totalorder %s263, 1
      %s267 = scalar_select %p266, %s263, 1
      %s268 = smul.addr %s265, 2
      %s269 = sadd.s32 %s267, %s268
      %s270 = smul.addr %s269, 8
      %s271 = scalar_lea.vmem %s4, %s270
      %s272 = smul.u32 2, %s20
      %v273 = vld [vmem:[%s2] sm:$0x1]
      %v274 = vld [vmem:[%s3] sm:$0x1]
      %v275 = vld [vmem:[%s251] sm:$0xff]
      %v276 = vld [vmem:[%s251 + $0x8] sm:$0xff]
      %v277 = vld [vmem:[%s261] sm:$0xff]
      %v278 = vld [vmem:[%s261 + $0x8] sm:$0xff]
      %v279 = vadd.f32 %v275, %v277
      %v280 = vadd.f32 %v276, %v278
      %v282 = vlaneseq
      %v283 = vshrl.u32 %v282, 7
      %v284 = vsub.s32 0, %v283
      %v285 = vrot.slane %v273, %v284
      %v287 = vmul.f32 %v285, %v279
      %v288 = vmul.f32 %v285, %v280
      %v290 = vlaneseq
      %v291 = vshrl.u32 %v290, 7
      %v292 = vsub.s32 0, %v291
      %v293 = vrot.slane %v274, %v292
      %v295 = vadd.f32 %v287, %v293
      %v296 = vadd.f32 %v288, %v293
      %vm297 = vcmp.ge.f32.partialorder %v295, 0.0
      %vm298 = vcmp.ge.f32.partialorder %v296, 0.0
      %v299 = vmul.f32 %v295, 0.2
      %v300 = vmul.f32 %v296, 0.2
      %v301 = vsel %vm297, %v295, %v299
      %v302 = vsel %vm298, %v296, %v300
      %vm303 = vcmask 64512
      %304 = vst.msk [vmem:[%s271] sm:$0xff] %vm303, %v301
      %305 = vst.msk [vmem:[%s271 + $0x8] sm:$0xff] %vm303, %v302
      %s306 = smul.u32 2, %s20
      %p307 = scmp.lt.s32.totalorder %s19, 1
      %s308 = scalar_select %p307, %s19, 1
      %p309 = scmp.lt.s32.totalorder %s306, 1
      %s310 = scalar_select %p309, %s306, 1
      %s311 = smul.addr %s308, 2
      %s312 = sadd.s32 %s310, %s311
      %s313 = smul.addr %s312, 8
      %s314 = scalar_lea.vmem %s4, %s313
      // Predicated region
      $region37: #{dgcnn_origin_forward.11} parent=35 // pred_check
        %p315 = pneg %p145
      $region38: #{dgcnn_origin_forward.11} parent=35 // pred_check_branch
        %317 = sbr.rel (%p315) target = $region40
      $region39: #{dgcnn_origin_forward.11} parent=35 // pred_region
        %s318 = smul.u32 2, %s20
      $region40: #{dgcnn_origin_forward.11} parent=35 // pred_fallthru
        _
    $region36: #{dgcnn_origin_forward.11} parent=5 // pred_fallthru
      _
    %p319 = scmp.le.s32.totalorder 2, %s10
    // Predicated region
    $region41: #{dgcnn_origin_forward.11} parent=5 // pred_check
      %p320 = pneg %p319
    $region42: #{dgcnn_origin_forward.11} parent=5 // pred_check_branch
      %322 = sbr.rel (%p320) target = $region44
    $region43: #{dgcnn_origin_forward.11} parent=5 // pred_region
      %s323 = ssub.s32 %s10, 2
      // Predicated region
      $region45: #{dgcnn_origin_forward.11} parent=43 // pred_check
        %p324 = pneg %p151
      $region46: #{dgcnn_origin_forward.11} parent=43 // pred_check_branch
        %326 = sbr.rel (%p324) target = $region48
      $region47: #{dgcnn_origin_forward.11} parent=43 // pred_region
        %s327 = smul.u32 2, %s22
        %p328 = scmp.lt.s32.totalorder %s21, 1
        %s329 = scalar_select %p328, %s21, 1
        %p330 = scmp.lt.s32.totalorder %s327, 1
        %s331 = scalar_select %p330, %s327, 1
        %s332 = smul.addr %s329, 2
        %s333 = sadd.s32 %s331, %s332
        %s334 = smul.addr %s333, 8
        %s335 = scalar_lea.vmem %s4, %s334
      $region48: #{dgcnn_origin_forward.11} parent=43 // pred_fallthru
        _
    $region44: #{dgcnn_origin_forward.11} parent=5 // pred_fallthru
      _
  $region6: #{dgcnn_origin_forward.11} parent=0 // loop_footer
    %s14 = sadd.s32 1, %s10
  $region7: #{dgcnn_origin_forward.11} parent=0 // loop_footer_branch
    %9 = sbr.rel target = $region3
  $region8: #{dgcnn_origin_forward.11} parent=0 // loop_exit
    _

// kernel: dgcnn_origin_forward.9
$region0: #{dgcnn_origin_forward.9}
  #allocation0 [shape = 'u32[]', space=smem, size = 0x4, offset = 0x4, fixed_abs, tag = 'smem constant byte address 0x4 - core index']
  #allocation1 [shape = 'u32[144,128]{1,0:T(1,128)}', space=vmem, size = 0x12000, scoped, tag = 'internal scratch']
  %s0 = inlined_call_operand.vmem [shape: bf16[2,16,3], index: 0, kind: input, shape index: {}]
  %s1 = inlined_call_operand.vmem [shape: bf16[3,8], index: 1, kind: input, shape index: {}]
  %s2 = inlined_call_operand.vmem [shape: bf16[3,8], index: 2, kind: input, shape index: {}]
  %s3 = inlined_call_operand.vmem [shape: f32[2,16,8], index: 3, kind: output, shape index: {0}]
  %s4 = inlined_call_operand.vmem [shape: f32[2,16,8], index: 4, kind: output, shape index: {1}]
  %5 = xla_tuple %s3, %s4
  %s6 = sld [smem:[#allocation0]]
  $region53: #{dgcnn_origin_forward.9} parent=0
    _
  %s8 = ssub.s32 1, %s6
  %s9 = scalar_select 0, %s8, %s6
  loop: start=0, step=1, limit=4
  $region2: #{dgcnn_origin_forward.9} parent=0 // loop_pre_header
    _
  $region3: #{dgcnn_origin_forward.9} parent=0 // loop_header
    %s11 = sphi 0, %s15
    %p12 = scmp.ge.s32.totalorder %s11, 4
    %s18 = sphi 0, %s30
    %s19 = sphi 0, %s26
    %s20 = sphi 0, %s18
    %s21 = sphi 0, %s19
    %s22 = sphi 0, %s20
    %s23 = sphi 0, %s21
    %s35 = sphi 0, %s37
    %s38 = sphi 0, %s35
    %s39 = sphi 0, %s38
    %s55 = sphi 0, %s39
    %s59 = sphi 0, %s59
    %s61 = sphi 0, %s59
    %s62 = sphi 0, %s61
    %s76 = sphi 0, %s62
    %s80 = sphi 0, %s80
    %s82 = sphi 0, %s80
    %s83 = sphi 0, %s82
    %s97 = sphi 0, %s83
    %s105 = sphi 0, %s107
    %s108 = sphi 0, %s105
    %s109 = sphi 0, %s108
    %s125 = sphi 0, %s109
    %s133 = sphi 0, %s135
    %s136 = sphi 0, %s133
    %s137 = sphi 0, %s136
    %s153 = sphi 0, %s137
  $region4: #{dgcnn_origin_forward.9} parent=0 // loop_header_branch
    %14 = sbr.rel (%p12) target = $region8
  $region5: #{dgcnn_origin_forward.9} parent=0 // loop_body
    %s16 = ssub.s32 %s11, 1
    %s17 = ssub.s32 %s11, 2
    %s24 = sadd.s32 1, %s19
    %p25 = scmp.ge.s32.totalorder %s24, 1
    %s26 = scalar_select %p25, 0, %s24
    %s27 = sadd.s32 1, %s18
    %s28 = scalar_select %p25, %s27, %s18
    %p29 = scmp.ge.s32.totalorder %s28, 2
    %s30 = scalar_select %p29, 0, %s28
    %s31 = ssub.s32 %s18, %s30
    %s32 = ssub.s32 %s19, %s26
    %s33 = sor.u32 %s31, %s32
    %p34 = scmp.eq.s32.totalorder %s33, 0
    %s36 = sadd.s32 %s35, 1
    %s37 = scalar_select %p34, %s35, %s36
    %p40 = pneg %p34
    %p41 = scmp.eq.s32.totalorder %s11, 1
    %p42 = por %p40, %p41
    %p43 = scmp.ne.s32.totalorder %s35, %s38
    %p44 = scmp.eq.s32.totalorder %s11, 0
    %p45 = por %p43, %p44
    %p46 = scmp.ne.s32.totalorder %s35, %s38
    %p47 = scmp.eq.s32.totalorder %s16, 1
    %p48 = por %p46, %p47
    %p49 = scmp.ne.s32.totalorder %s38, %s39
    %p50 = scmp.eq.s32.totalorder %s16, 0
    %p51 = por %p49, %p50
    %p52 = scmp.ne.s32.totalorder %s38, %s39
    %p53 = scmp.eq.s32.totalorder %s17, 1
    %p54 = por %p52, %p53
    %p56 = scmp.ne.s32.totalorder %s39, %s55
    %p57 = scmp.eq.s32.totalorder %s17, 0
    %p58 = por %p56, %p57
    %s60 = sadd.s32 %s59, 1
    %p63 = scmp.eq.s32.totalorder %s11, 1
    %p64 = scmp.ne.s32.totalorder %s59, %s61
    %p65 = scmp.eq.s32.totalorder %s11, 0
    %p66 = por %p64, %p65
    %p67 = scmp.ne.s32.totalorder %s59, %s61
    %p68 = scmp.eq.s32.totalorder %s16, 1
    %p69 = por %p67, %p68
    %p70 = scmp.ne.s32.totalorder %s61, %s62
    %p71 = scmp.eq.s32.totalorder %s16, 0
    %p72 = por %p70, %p71
    %p73 = scmp.ne.s32.totalorder %s61, %s62
    %p74 = scmp.eq.s32.totalorder %s17, 1
    %p75 = por %p73, %p74
    %p77 = scmp.ne.s32.totalorder %s62, %s76
    %p78 = scmp.eq.s32.totalorder %s17, 0
    %p79 = por %p77, %p78
    %s81 = sadd.s32 %s80, 1
    %p84 = scmp.eq.s32.totalorder %s11, 1
    %p85 = scmp.ne.s32.totalorder %s80, %s82
    %p86 = scmp.eq.s32.totalorder %s11, 0
    %p87 = por %p85, %p86
    %p88 = scmp.ne.s32.totalorder %s80, %s82
    %p89 = scmp.eq.s32.totalorder %s16, 1
    %p90 = por %p88, %p89
    %p91 = scmp.ne.s32.totalorder %s82, %s83
    %p92 = scmp.eq.s32.totalorder %s16, 0
    %p93 = por %p91, %p92
    %p94 = scmp.ne.s32.totalorder %s82, %s83
    %p95 = scmp.eq.s32.totalorder %s17, 1
    %p96 = por %p94, %p95
    %p98 = scmp.ne.s32.totalorder %s83, %s97
    %p99 = scmp.eq.s32.totalorder %s17, 0
    %p100 = por %p98, %p99
    %s101 = ssub.s32 %s18, %s30
    %s102 = ssub.s32 %s19, %s26
    %s103 = sor.u32 %s101, %s102
    %p104 = scmp.eq.s32.totalorder %s103, 0
    %s106 = sadd.s32 %s105, 1
    %s107 = scalar_select %p104, %s105, %s106
    %p110 = pneg %p104
    %p111 = scmp.eq.s32.totalorder %s11, 1
    %p112 = por %p110, %p111
    %p113 = scmp.ne.s32.totalorder %s105, %s108
    %p114 = scmp.eq.s32.totalorder %s11, 0
    %p115 = por %p113, %p114
    %p116 = scmp.ne.s32.totalorder %s105, %s108
    %p117 = scmp.eq.s32.totalorder %s16, 1
    %p118 = por %p116, %p117
    %p119 = scmp.ne.s32.totalorder %s108, %s109
    %p120 = scmp.eq.s32.totalorder %s16, 0
    %p121 = por %p119, %p120
    %p122 = scmp.ne.s32.totalorder %s108, %s109
    %p123 = scmp.eq.s32.totalorder %s17, 1
    %p124 = por %p122, %p123
    %p126 = scmp.ne.s32.totalorder %s109, %s125
    %p127 = scmp.eq.s32.totalorder %s17, 0
    %p128 = por %p126, %p127
    %s129 = ssub.s32 %s18, %s30
    %s130 = ssub.s32 %s19, %s26
    %s131 = sor.u32 %s129, %s130
    %p132 = scmp.eq.s32.totalorder %s131, 0
    %s134 = sadd.s32 %s133, 1
    %s135 = scalar_select %p132, %s133, %s134
    %p138 = pneg %p132
    %p139 = scmp.eq.s32.totalorder %s11, 1
    %p140 = por %p138, %p139
    %p141 = scmp.ne.s32.totalorder %s133, %s136
    %p142 = scmp.eq.s32.totalorder %s11, 0
    %p143 = por %p141, %p142
    %p144 = scmp.ne.s32.totalorder %s133, %s136
    %p145 = scmp.eq.s32.totalorder %s16, 1
    %p146 = por %p144, %p145
    %p147 = scmp.ne.s32.totalorder %s136, %s137
    %p148 = scmp.eq.s32.totalorder %s16, 0
    %p149 = por %p147, %p148
    %p150 = scmp.ne.s32.totalorder %s136, %s137
    %p151 = scmp.eq.s32.totalorder %s17, 1
    %p152 = por %p150, %p151
    %p154 = scmp.ne.s32.totalorder %s137, %s153
    %p155 = scmp.eq.s32.totalorder %s17, 0
    %p156 = por %p154, %p155
    %p157 = scmp.le.s32.totalorder 1, %s11
    %p158 = scmp.lt.s32.totalorder %s11, 3
    %p159 = pnand %p157, %p158
    %p160 = pneg %p159
    // Predicated region
    $region9: #{dgcnn_origin_forward.9} parent=5 // pred_check
      _
    $region10: #{dgcnn_origin_forward.9} parent=5 // pred_check_branch
      %162 = sbr.rel (%p159) target = $region12
    $region11: #{dgcnn_origin_forward.9} parent=5 // pred_region
      %s163 = ssub.s32 %s11, 1
      // Predicated region
      $region13: #{dgcnn_origin_forward.9} parent=11 // pred_check
        %p164 = pneg %p72
      $region14: #{dgcnn_origin_forward.9} parent=11 // pred_check_branch
        %166 = sbr.rel (%p164) target = $region16
      $region15: #{dgcnn_origin_forward.9} parent=11 // pred_region
        _
      $region16: #{dgcnn_origin_forward.9} parent=11 // pred_fallthru
        _
      // Predicated region
      $region17: #{dgcnn_origin_forward.9} parent=11 // pred_check
        %p167 = pneg %p93
      $region18: #{dgcnn_origin_forward.9} parent=11 // pred_check_branch
        %169 = sbr.rel (%p167) target = $region20
      $region19: #{dgcnn_origin_forward.9} parent=11 // pred_region
        _
      $region20: #{dgcnn_origin_forward.9} parent=11 // pred_fallthru
        _
    $region12: #{dgcnn_origin_forward.9} parent=5 // pred_fallthru
      _
    %p170 = scmp.lt.s32.totalorder %s11, 2
    // Predicated region
    $region21: #{dgcnn_origin_forward.9} parent=5 // pred_check
      %p171 = pneg %p170
    $region22: #{dgcnn_origin_forward.9} parent=5 // pred_check_branch
      %173 = sbr.rel (%p171) target = $region24
    $region23: #{dgcnn_origin_forward.9} parent=5 // pred_region
      // Predicated region
      $region25: #{dgcnn_origin_forward.9} parent=23 // pred_check
        %p174 = pneg %p45
      $region26: #{dgcnn_origin_forward.9} parent=23 // pred_check_branch
        %176 = sbr.rel (%p174) target = $region28
      $region27: #{dgcnn_origin_forward.9} parent=23 // pred_region
        %s177 = smul.u32 2, %s19
        %p178 = scmp.lt.s32.totalorder %s18, 1
        %s179 = scalar_select %p178, %s18, 1
        %p180 = scmp.lt.s32.totalorder %s177, 1
        %s181 = scalar_select %p180, %s177, 1
        %s182 = smul.addr %s179, 2
        %s183 = sadd.s32 %s181, %s182
        %s184 = smul.addr %s183, 4
        %s185 = scalar_lea.vmem %s0, %s184
        %s186 = smul.u32 2, %s19
      $region28: #{dgcnn_origin_forward.9} parent=23 // pred_fallthru
        _
    $region24: #{dgcnn_origin_forward.9} parent=5 // pred_fallthru
      _
    %p187 = scmp.le.s32.totalorder 1, %s11
    %p188 = scmp.lt.s32.totalorder %s11, 3
    %p189 = pnand %p187, %p188
    %p190 = pneg %p189
    // Predicated region
    $region29: #{dgcnn_origin_forward.9} parent=5 // pred_check
      _
    $region30: #{dgcnn_origin_forward.9} parent=5 // pred_check_branch
      %192 = sbr.rel (%p189) target = $region32
    $region31: #{dgcnn_origin_forward.9} parent=5 // pred_region
      %s193 = ssub.s32 %s11, 1
      %s194 = smul.u32 2, %s21
      %p195 = scmp.lt.s32.totalorder %s20, 1
      %s196 = scalar_select %p195, %s20, 1
      %p197 = scmp.lt.s32.totalorder %s194, 1
      %s198 = scalar_select %p197, %s194, 1
      %s199 = smul.addr %s196, 2
      %s200 = sadd.s32 %s198, %s199
      %s201 = smul.addr %s200, 4
      %s202 = scalar_lea.vmem %s0, %s201
      %p203 = pneg %p51
      %p204 = pneg %p48
      %p205 = pneg %p72
      %p206 = pneg %p69
      %p207 = pneg %p93
      %p208 = pneg %p90
      %p209 = pneg %p121
      %p210 = pneg %p118
      %s211 = smul.u32 2, %s21
      %p212 = scmp.lt.s32.totalorder %s20, 1
      %s213 = scalar_select %p212, %s20, 1
      %p214 = scmp.lt.s32.totalorder %s211, 1
      %s215 = scalar_select %p214, %s211, 1
      %s216 = smul.addr %s213, 2
      %s217 = sadd.s32 %s215, %s216
      %s218 = smul.addr %s217, 8
      %s219 = scalar_lea.vmem %s3, %s218
      %p220 = pneg %p149
      %p221 = pneg %p146
      %s222 = smul.u32 2, %s21
      %p223 = scmp.lt.s32.totalorder %s20, 1
      %s224 = scalar_select %p223, %s20, 1
      %p225 = scmp.lt.s32.totalorder %s222, 1
      %s226 = scalar_select %p225, %s222, 1
      %s227 = smul.addr %s224, 2
      %s228 = sadd.s32 %s226, %s227
      %s229 = smul.addr %s228, 8
      %s230 = scalar_lea.vmem %s4, %s229
      %s231 = smul.u32 2, %s21
      %p232 = scmp.lt.s32.totalorder %s20, 1
      %s233 = scalar_select %p232, %s20, 1
      %p234 = scmp.lt.s32.totalorder %s231, 1
      %s235 = scalar_select %p234, %s231, 1
      %s236 = smul.addr %s233, 2
      %s237 = sadd.s32 %s235, %s236
      %s238 = smul.addr %s237, 4
      %s239 = scalar_lea.vmem %s0, %s238
      %s240 = smul.u32 2, %s21
      %s241 = smul.u32 2, %s21
      %p242 = scmp.lt.s32.totalorder %s20, 1
      %s243 = scalar_select %p242, %s20, 1
      %p244 = scmp.lt.s32.totalorder %s241, 1
      %s245 = scalar_select %p244, %s241, 1
      %s246 = smul.addr %s243, 2
      %s247 = sadd.s32 %s245, %s246
      %s248 = smul.addr %s247, 8
      %s249 = scalar_lea.vmem %s3, %s248
      %s250 = smul.u32 2, %s21
      %s251 = smul.u32 2, %s21
      %p252 = scmp.lt.s32.totalorder %s20, 1
      %s253 = scalar_select %p252, %s20, 1
      %p254 = scmp.lt.s32.totalorder %s251, 1
      %s255 = scalar_select %p254, %s251, 1
      %s256 = smul.addr %s253, 2
      %s257 = sadd.s32 %s255, %s256
      %s258 = smul.addr %s257, 8
      %s259 = scalar_lea.vmem %s4, %s258
      %s260 = smul.u32 2, %s21
      %v262 = vld [vmem:[%s239] sm:$0xf]
      %v263 = vld [vmem:[%s239 + $0x4] sm:$0xf]
      %v264 = vld [vmem:[%s1] sm:$0x3]
      %v267 = vunpack.c.l.b16 %v262
      %v268 = vunpack.c.l.b16 %v263
      %v269 = vpack.c.b16 %v268, %v267
      %vm270 = vcmask 23552
      %v272 = vsel %vm270, %v269, 0
      %vm274 = vcmask 1040384
      %vm275 = vcmask 1041408
      %v276 = vsel %vm274, 4294967295, 65535
      %v277 = vsel %vm275, %v276, 0
      %v279 = vand.u32 %v264, %v277
      %281 = vmatprep.subr.bf16.mxu0 0
      %282 = vmatpush1.bf16.msra.mxu0 0
      %283 = vmatprep.subr.bf16.mxu0 0
      %284 = vmatpush1.bf16.msra.mxu0 0
      %285 = vmatprep.subr.bf16.mxu0 0
      %286 = vmatpush1.bf16.msra.mxu0 0
      %287 = vmatprep.subr.bf16.mxu0 0
      %288 = vmatpush1.bf16.msra.mxu0 0
      %289 = vmatprep.subr.bf16.mxu0 0
      %290 = vmatpush1.bf16.msra.mxu0 0
      %291 = vmatprep.subr.bf16.mxu0 0
      %292 = vmatpush1.bf16.msra.mxu0 0
      %293 = vmatprep.subr.bf16.mxu0 0
      %294 = vmatpush1.bf16.msra.mxu0 0
      %295 = vmatprep.subr.bf16.mxu0 0
      %296 = vmatpush1.bf16.msra.mxu0 %v279
      %297 = vmatprep.subr.bf16.mxu0 0
      %298 = vmatpush2.bf16.msra.mxu0 0
      %299 = vmatprep.subr.bf16.mxu0 0
      %300 = vmatpush2.bf16.msra.mxu0 0
      %301 = vmatprep.subr.bf16.mxu0 0
      %302 = vmatpush2.bf16.msra.mxu0 0
      %303 = vmatprep.subr.bf16.mxu0 0
      %304 = vmatpush2.bf16.msra.mxu0 0
      %305 = vmatprep.subr.bf16.mxu0 0
      %306 = vmatpush2.bf16.msra.mxu0 0
      %307 = vmatprep.subr.bf16.mxu0 0
      %308 = vmatpush2.bf16.msra.mxu0 0
      %309 = vmatprep.subr.bf16.mxu0 0
      %310 = vmatpush2.bf16.msra.mxu0 0
      %311 = vmatprep.subr.bf16.mxu0 0
      %312 = vmatpush2.bf16.msra.mxu0 0
      %313 = vmatprep.mubr.bf16.mxu0 0
      %314 = vmatmul.mubr.bf16.gmra.mxu0 %v272
      %v315 = vpop.f32.mrf.mxu0
      %v316 = vadd.f32 0.0, %v315
      %v317 = vpop.f32.mrf.mxu0
      %v318 = vpop.f32.mrf.mxu0
      %v319 = vadd.f32 0.0, %v318
      %v320 = vpop.f32.mrf.mxu0
      %321 = vdwg.mxu0
      %vm322 = vcmask 64512
      %323 = vst.msk [vmem:[%s249] sm:$0xff] %vm322, %v316
      %324 = vst.msk [vmem:[%s249 + $0x8] sm:$0xff] %vm322, %v319
      %v325 = vld [vmem:[%s2] sm:$0x3]
      %v327 = vand.u32 %v325, %v277
      %329 = vmatprep.subr.bf16.mxu0 0
      %330 = vmatpush1.bf16.msra.mxu0 0
      %331 = vmatprep.subr.bf16.mxu0 0
      %332 = vmatpush1.bf16.msra.mxu0 0
      %333 = vmatprep.subr.bf16.mxu0 0
      %334 = vmatpush1.bf16.msra.mxu0 0
      %335 = vmatprep.subr.bf16.mxu0 0
      %336 = vmatpush1.bf16.msra.mxu0 0
      %337 = vmatprep.subr.bf16.mxu0 0
      %338 = vmatpush1.bf16.msra.mxu0 0
      %339 = vmatprep.subr.bf16.mxu0 0
      %340 = vmatpush1.bf16.msra.mxu0 0
      %341 = vmatprep.subr.bf16.mxu0 0
      %342 = vmatpush1.bf16.msra.mxu0 0
      %343 = vmatprep.subr.bf16.mxu0 0
      %344 = vmatpush1.bf16.msra.mxu0 %v327
      %345 = vmatprep.subr.bf16.mxu0 0
      %346 = vmatpush2.bf16.msra.mxu0 0
      %347 = vmatprep.subr.bf16.mxu0 0
      %348 = vmatpush2.bf16.msra.mxu0 0
      %349 = vmatprep.subr.bf16.mxu0 0
      %350 = vmatpush2.bf16.msra.mxu0 0
      %351 = vmatprep.subr.bf16.mxu0 0
      %352 = vmatpush2.bf16.msra.mxu0 0
      %353 = vmatprep.subr.bf16.mxu0 0
      %354 = vmatpush2.bf16.msra.mxu0 0
      %355 = vmatprep.subr.bf16.mxu0 0
      %356 = vmatpush2.bf16.msra.mxu0 0
      %357 = vmatprep.subr.bf16.mxu0 0
      %358 = vmatpush2.bf16.msra.mxu0 0
      %359 = vmatprep.subr.bf16.mxu0 0
      %360 = vmatpush2.bf16.msra.mxu0 0
      %361 = vmatprep.mubr.bf16.mxu0 0
      %362 = vmatmul.mubr.bf16.gmra.mxu0 %v272
      %v363 = vpop.f32.mrf.mxu0
      %v364 = vadd.f32 0.0, %v363
      %v365 = vpop.f32.mrf.mxu0
      %v366 = vpop.f32.mrf.mxu0
      %v367 = vadd.f32 0.0, %v366
      %v368 = vpop.f32.mrf.mxu0
      %369 = vdwg.mxu0
      %370 = vst.msk [vmem:[%s259] sm:$0xff] %vm322, %v364
      %371 = vst.msk [vmem:[%s259 + $0x8] sm:$0xff] %vm322, %v367
      %s372 = smul.u32 2, %s21
      %p373 = scmp.lt.s32.totalorder %s20, 1
      %s374 = scalar_select %p373, %s20, 1
      %p375 = scmp.lt.s32.totalorder %s372, 1
      %s376 = scalar_select %p375, %s372, 1
      %s377 = smul.addr %s374, 2
      %s378 = sadd.s32 %s376, %s377
      %s379 = smul.addr %s378, 8
      %s380 = scalar_lea.vmem %s3, %s379
      %s381 = smul.u32 2, %s21
      %p382 = scmp.lt.s32.totalorder %s20, 1
      %s383 = scalar_select %p382, %s20, 1
      %p384 = scmp.lt.s32.totalorder %s381, 1
      %s385 = scalar_select %p384, %s381, 1
      %s386 = smul.addr %s383, 2
      %s387 = sadd.s32 %s385, %s386
      %s388 = smul.addr %s387, 8
      %s389 = scalar_lea.vmem %s4, %s388
      // Predicated region
      $region33: #{dgcnn_origin_forward.9} parent=31 // pred_check
        %p390 = pneg %p118
      $region34: #{dgcnn_origin_forward.9} parent=31 // pred_check_branch
        %392 = sbr.rel (%p390) target = $region36
      $region35: #{dgcnn_origin_forward.9} parent=31 // pred_region
        %s393 = smul.u32 2, %s21
      $region36: #{dgcnn_origin_forward.9} parent=31 // pred_fallthru
        _
      // Predicated region
      $region37: #{dgcnn_origin_forward.9} parent=31 // pred_check
        %p394 = pneg %p146
      $region38: #{dgcnn_origin_forward.9} parent=31 // pred_check_branch
        %396 = sbr.rel (%p394) target = $region40
      $region39: #{dgcnn_origin_forward.9} parent=31 // pred_region
        %s397 = smul.u32 2, %s21
      $region40: #{dgcnn_origin_forward.9} parent=31 // pred_fallthru
        _
    $region32: #{dgcnn_origin_forward.9} parent=5 // pred_fallthru
      _
    %p398 = scmp.le.s32.totalorder 2, %s11
    // Predicated region
    $region41: #{dgcnn_origin_forward.9} parent=5 // pred_check
      %p399 = pneg %p398
    $region42: #{dgcnn_origin_forward.9} parent=5 // pred_check_branch
      %401 = sbr.rel (%p399) target = $region44
    $region43: #{dgcnn_origin_forward.9} parent=5 // pred_region
      %s402 = ssub.s32 %s11, 2
      // Predicated region
      $region45: #{dgcnn_origin_forward.9} parent=43 // pred_check
        %p403 = pneg %p124
      $region46: #{dgcnn_origin_forward.9} parent=43 // pred_check_branch
        %405 = sbr.rel (%p403) target = $region48
      $region47: #{dgcnn_origin_forward.9} parent=43 // pred_region
        %s406 = smul.u32 2, %s23
        %p407 = scmp.lt.s32.totalorder %s22, 1
        %s408 = scalar_select %p407, %s22, 1
        %p409 = scmp.lt.s32.totalorder %s406, 1
        %s410 = scalar_select %p409, %s406, 1
        %s411 = smul.addr %s408, 2
        %s412 = sadd.s32 %s410, %s411
        %s413 = smul.addr %s412, 8
        %s414 = scalar_lea.vmem %s3, %s413
      $region48: #{dgcnn_origin_forward.9} parent=43 // pred_fallthru
        _
      // Predicated region
      $region49: #{dgcnn_origin_forward.9} parent=43 // pred_check
        %p415 = pneg %p152
      $region50: #{dgcnn_origin_forward.9} parent=43 // pred_check_branch
        %417 = sbr.rel (%p415) target = $region52
      $region51: #{dgcnn_origin_forward.9} parent=43 // pred_region
        %s418 = smul.u32 2, %s23
        %p419 = scmp.lt.s32.totalorder %s22, 1
        %s420 = scalar_select %p419, %s22, 1
        %p421 = scmp.lt.s32.totalorder %s418, 1
        %s422 = scalar_select %p421, %s418, 1
        %s423 = smul.addr %s420, 2
        %s424 = sadd.s32 %s422, %s423
        %s425 = smul.addr %s424, 8
        %s426 = scalar_lea.vmem %s4, %s425
      $region52: #{dgcnn_origin_forward.9} parent=43 // pred_fallthru
        _
    $region44: #{dgcnn_origin_forward.9} parent=5 // pred_fallthru
      _
  $region6: #{dgcnn_origin_forward.9} parent=0 // loop_footer
    %s15 = sadd.s32 1, %s11
  $region7: #{dgcnn_origin_forward.9} parent=0 // loop_footer_branch
    %10 = sbr.rel target = $region3
  $region8: #{dgcnn_origin_forward.9} parent=0 // loop_exit
    _

// kernel: dgcnn_origin_forward.10
$region0: #{dgcnn_origin_forward.10}
  #allocation0 [shape = 'u32[]', space=smem, size = 0x4, offset = 0x4, fixed_abs, tag = 'smem constant byte address 0x4 - core index']
  #allocation1 [shape = 'u32[144,128]{1,0:T(1,128)}', space=vmem, size = 0x12000, scoped, tag = 'internal scratch']
  %s0 = inlined_call_operand.vmem [shape: f32[2,16,3], index: 0, kind: input, shape index: {}]
  %s1 = inlined_call_operand.vmem [shape: f32[2,3,16], index: 1, kind: input, shape index: {}]
  %s2 = inlined_call_operand.vmem [shape: f32[2,1,16], index: 2, kind: input, shape index: {}]
  %s3 = inlined_call_operand.vmem [shape: f32[2,16,8], index: 3, kind: input, shape index: {}]
  %s4 = inlined_call_operand.vmem [shape: f32[2,16,8], index: 4, kind: input, shape index: {}]
  %s5 = inlined_call_operand.vmem [shape: f32[2,16,8], index: 5, kind: output, shape index: {0}]
  %s6 = inlined_call_operand.vmem [shape: f32[2,1,16], index: 6, kind: output, shape index: {1}]
  %7 = xla_tuple %s5, %s6
  %s8 = sld [smem:[#allocation0]]
  $region65: #{dgcnn_origin_forward.10} parent=0
    _
  %s10 = ssub.s32 1, %s8
  %s11 = scalar_select 0, %s10, %s8
  loop: start=0, step=1, limit=4
  $region2: #{dgcnn_origin_forward.10} parent=0 // loop_pre_header
    _
  $region3: #{dgcnn_origin_forward.10} parent=0 // loop_header
    %s13 = sphi 0, %s17
    %p14 = scmp.ge.s32.totalorder %s13, 4
    %s20 = sphi 0, %s32
    %s21 = sphi 0, %s28
    %s22 = sphi 0, %s20
    %s23 = sphi 0, %s21
    %s24 = sphi 0, %s22
    %s25 = sphi 0, %s23
    %s37 = sphi 0, %s39
    %s40 = sphi 0, %s37
    %s41 = sphi 0, %s40
    %s57 = sphi 0, %s41
    %s63 = sphi 0, %s65
    %s66 = sphi 0, %s63
    %s67 = sphi 0, %s66
    %s83 = sphi 0, %s67
    %s89 = sphi 0, %s91
    %s92 = sphi 0, %s89
    %s93 = sphi 0, %s92
    %s109 = sphi 0, %s93
    %s115 = sphi 0, %s117
    %s118 = sphi 0, %s115
    %s119 = sphi 0, %s118
    %s135 = sphi 0, %s119
    %s143 = sphi 0, %s145
    %s146 = sphi 0, %s143
    %s147 = sphi 0, %s146
    %s163 = sphi 0, %s147
    %s171 = sphi 0, %s173
    %s174 = sphi 0, %s171
    %s175 = sphi 0, %s174
    %s191 = sphi 0, %s175
    %s197 = sphi 0, %s199
    %s200 = sphi 0, %s197
    %s201 = sphi 0, %s200
    %s217 = sphi 0, %s201
  $region4: #{dgcnn_origin_forward.10} parent=0 // loop_header_branch
    %16 = sbr.rel (%p14) target = $region8
  $region5: #{dgcnn_origin_forward.10} parent=0 // loop_body
    %s18 = ssub.s32 %s13, 1
    %s19 = ssub.s32 %s13, 2
    %s26 = sadd.s32 1, %s21
    %p27 = scmp.ge.s32.totalorder %s26, 1
    %s28 = scalar_select %p27, 0, %s26
    %s29 = sadd.s32 1, %s20
    %s30 = scalar_select %p27, %s29, %s20
    %p31 = scmp.ge.s32.totalorder %s30, 2
    %s32 = scalar_select %p31, 0, %s30
    %s33 = ssub.s32 %s20, %s32
    %s34 = ssub.s32 %s21, %s28
    %s35 = sor.u32 %s33, %s34
    %p36 = scmp.eq.s32.totalorder %s35, 0
    %s38 = sadd.s32 %s37, 1
    %s39 = scalar_select %p36, %s37, %s38
    %p42 = pneg %p36
    %p43 = scmp.eq.s32.totalorder %s13, 1
    %p44 = por %p42, %p43
    %p45 = scmp.ne.s32.totalorder %s37, %s40
    %p46 = scmp.eq.s32.totalorder %s13, 0
    %p47 = por %p45, %p46
    %p48 = scmp.ne.s32.totalorder %s37, %s40
    %p49 = scmp.eq.s32.totalorder %s18, 1
    %p50 = por %p48, %p49
    %p51 = scmp.ne.s32.totalorder %s40, %s41
    %p52 = scmp.eq.s32.totalorder %s18, 0
    %p53 = por %p51, %p52
    %p54 = scmp.ne.s32.totalorder %s40, %s41
    %p55 = scmp.eq.s32.totalorder %s19, 1
    %p56 = por %p54, %p55
    %p58 = scmp.ne.s32.totalorder %s41, %s57
    %p59 = scmp.eq.s32.totalorder %s19, 0
    %p60 = por %p58, %p59
    %s61 = ssub.s32 %s20, %s32
    %p62 = scmp.eq.s32.totalorder %s61, 0
    %s64 = sadd.s32 %s63, 1
    %s65 = scalar_select %p62, %s63, %s64
    %p68 = pneg %p62
    %p69 = scmp.eq.s32.totalorder %s13, 1
    %p70 = por %p68, %p69
    %p71 = scmp.ne.s32.totalorder %s63, %s66
    %p72 = scmp.eq.s32.totalorder %s13, 0
    %p73 = por %p71, %p72
    %p74 = scmp.ne.s32.totalorder %s63, %s66
    %p75 = scmp.eq.s32.totalorder %s18, 1
    %p76 = por %p74, %p75
    %p77 = scmp.ne.s32.totalorder %s66, %s67
    %p78 = scmp.eq.s32.totalorder %s18, 0
    %p79 = por %p77, %p78
    %p80 = scmp.ne.s32.totalorder %s66, %s67
    %p81 = scmp.eq.s32.totalorder %s19, 1
    %p82 = por %p80, %p81
    %p84 = scmp.ne.s32.totalorder %s67, %s83
    %p85 = scmp.eq.s32.totalorder %s19, 0
    %p86 = por %p84, %p85
    %s87 = ssub.s32 %s20, %s32
    %p88 = scmp.eq.s32.totalorder %s87, 0
    %s90 = sadd.s32 %s89, 1
    %s91 = scalar_select %p88, %s89, %s90
    %p94 = pneg %p88
    %p95 = scmp.eq.s32.totalorder %s13, 1
    %p96 = por %p94, %p95
    %p97 = scmp.ne.s32.totalorder %s89, %s92
    %p98 = scmp.eq.s32.totalorder %s13, 0
    %p99 = por %p97, %p98
    %p100 = scmp.ne.s32.totalorder %s89, %s92
    %p101 = scmp.eq.s32.totalorder %s18, 1
    %p102 = por %p100, %p101
    %p103 = scmp.ne.s32.totalorder %s92, %s93
    %p104 = scmp.eq.s32.totalorder %s18, 0
    %p105 = por %p103, %p104
    %p106 = scmp.ne.s32.totalorder %s92, %s93
    %p107 = scmp.eq.s32.totalorder %s19, 1
    %p108 = por %p106, %p107
    %p110 = scmp.ne.s32.totalorder %s93, %s109
    %p111 = scmp.eq.s32.totalorder %s19, 0
    %p112 = por %p110, %p111
    %s113 = ssub.s32 %s20, %s32
    %p114 = scmp.eq.s32.totalorder %s113, 0
    %s116 = sadd.s32 %s115, 1
    %s117 = scalar_select %p114, %s115, %s116
    %p120 = pneg %p114
    %p121 = scmp.eq.s32.totalorder %s13, 1
    %p122 = por %p120, %p121
    %p123 = scmp.ne.s32.totalorder %s115, %s118
    %p124 = scmp.eq.s32.totalorder %s13, 0
    %p125 = por %p123, %p124
    %p126 = scmp.ne.s32.totalorder %s115, %s118
    %p127 = scmp.eq.s32.totalorder %s18, 1
    %p128 = por %p126, %p127
    %p129 = scmp.ne.s32.totalorder %s118, %s119
    %p130 = scmp.eq.s32.totalorder %s18, 0
    %p131 = por %p129, %p130
    %p132 = scmp.ne.s32.totalorder %s118, %s119
    %p133 = scmp.eq.s32.totalorder %s19, 1
    %p134 = por %p132, %p133
    %p136 = scmp.ne.s32.totalorder %s119, %s135
    %p137 = scmp.eq.s32.totalorder %s19, 0
    %p138 = por %p136, %p137
    %s139 = ssub.s32 %s20, %s32
    %s140 = ssub.s32 %s21, %s28
    %s141 = sor.u32 %s139, %s140
    %p142 = scmp.eq.s32.totalorder %s141, 0
    %s144 = sadd.s32 %s143, 1
    %s145 = scalar_select %p142, %s143, %s144
    %p148 = pneg %p142
    %p149 = scmp.eq.s32.totalorder %s13, 1
    %p150 = por %p148, %p149
    %p151 = scmp.ne.s32.totalorder %s143, %s146
    %p152 = scmp.eq.s32.totalorder %s13, 0
    %p153 = por %p151, %p152
    %p154 = scmp.ne.s32.totalorder %s143, %s146
    %p155 = scmp.eq.s32.totalorder %s18, 1
    %p156 = por %p154, %p155
    %p157 = scmp.ne.s32.totalorder %s146, %s147
    %p158 = scmp.eq.s32.totalorder %s18, 0
    %p159 = por %p157, %p158
    %p160 = scmp.ne.s32.totalorder %s146, %s147
    %p161 = scmp.eq.s32.totalorder %s19, 1
    %p162 = por %p160, %p161
    %p164 = scmp.ne.s32.totalorder %s147, %s163
    %p165 = scmp.eq.s32.totalorder %s19, 0
    %p166 = por %p164, %p165
    %s167 = ssub.s32 %s20, %s32
    %s168 = ssub.s32 %s21, %s28
    %s169 = sor.u32 %s167, %s168
    %p170 = scmp.eq.s32.totalorder %s169, 0
    %s172 = sadd.s32 %s171, 1
    %s173 = scalar_select %p170, %s171, %s172
    %p176 = pneg %p170
    %p177 = scmp.eq.s32.totalorder %s13, 1
    %p178 = por %p176, %p177
    %p179 = scmp.ne.s32.totalorder %s171, %s174
    %p180 = scmp.eq.s32.totalorder %s13, 0
    %p181 = por %p179, %p180
    %p182 = scmp.ne.s32.totalorder %s171, %s174
    %p183 = scmp.eq.s32.totalorder %s18, 1
    %p184 = por %p182, %p183
    %p185 = scmp.ne.s32.totalorder %s174, %s175
    %p186 = scmp.eq.s32.totalorder %s18, 0
    %p187 = por %p185, %p186
    %p188 = scmp.ne.s32.totalorder %s174, %s175
    %p189 = scmp.eq.s32.totalorder %s19, 1
    %p190 = por %p188, %p189
    %p192 = scmp.ne.s32.totalorder %s175, %s191
    %p193 = scmp.eq.s32.totalorder %s19, 0
    %p194 = por %p192, %p193
    %s195 = ssub.s32 %s20, %s32
    %p196 = scmp.eq.s32.totalorder %s195, 0
    %s198 = sadd.s32 %s197, 1
    %s199 = scalar_select %p196, %s197, %s198
    %p202 = pneg %p196
    %p203 = scmp.eq.s32.totalorder %s13, 1
    %p204 = por %p202, %p203
    %p205 = scmp.ne.s32.totalorder %s197, %s200
    %p206 = scmp.eq.s32.totalorder %s13, 0
    %p207 = por %p205, %p206
    %p208 = scmp.ne.s32.totalorder %s197, %s200
    %p209 = scmp.eq.s32.totalorder %s18, 1
    %p210 = por %p208, %p209
    %p211 = scmp.ne.s32.totalorder %s200, %s201
    %p212 = scmp.eq.s32.totalorder %s18, 0
    %p213 = por %p211, %p212
    %p214 = scmp.ne.s32.totalorder %s200, %s201
    %p215 = scmp.eq.s32.totalorder %s19, 1
    %p216 = por %p214, %p215
    %p218 = scmp.ne.s32.totalorder %s201, %s217
    %p219 = scmp.eq.s32.totalorder %s19, 0
    %p220 = por %p218, %p219
    %p221 = scmp.le.s32.totalorder 1, %s13
    %p222 = scmp.lt.s32.totalorder %s13, 3
    %p223 = pnand %p221, %p222
    %p224 = pneg %p223
    // Predicated region
    $region9: #{dgcnn_origin_forward.10} parent=5 // pred_check
      _
    $region10: #{dgcnn_origin_forward.10} parent=5 // pred_check_branch
      %226 = sbr.rel (%p223) target = $region12
    $region11: #{dgcnn_origin_forward.10} parent=5 // pred_region
      %s227 = ssub.s32 %s13, 1
    $region12: #{dgcnn_origin_forward.10} parent=5 // pred_fallthru
      _
    %p228 = scmp.lt.s32.totalorder %s13, 2
    // Predicated region
    $region13: #{dgcnn_origin_forward.10} parent=5 // pred_check
      %p229 = pneg %p228
    $region14: #{dgcnn_origin_forward.10} parent=5 // pred_check_branch
      %231 = sbr.rel (%p229) target = $region16
    $region15: #{dgcnn_origin_forward.10} parent=5 // pred_region
      // Predicated region
      $region17: #{dgcnn_origin_forward.10} parent=15 // pred_check
        %p232 = pneg %p47
      $region18: #{dgcnn_origin_forward.10} parent=15 // pred_check_branch
        %234 = sbr.rel (%p232) target = $region20
      $region19: #{dgcnn_origin_forward.10} parent=15 // pred_region
        %s235 = smul.u32 2, %s21
        %p236 = scmp.lt.s32.totalorder %s20, 1
        %s237 = scalar_select %p236, %s20, 1
        %p238 = scmp.lt.s32.totalorder %s235, 1
        %s239 = scalar_select %p238, %s235, 1
        %s240 = smul.addr %s237, 2
        %s241 = sadd.s32 %s239, %s240
        %s242 = smul.addr %s241, 8
        %s243 = scalar_lea.vmem %s0, %s242
        %s244 = smul.u32 2, %s21
      $region20: #{dgcnn_origin_forward.10} parent=15 // pred_fallthru
        _
      // Predicated region
      $region21: #{dgcnn_origin_forward.10} parent=15 // pred_check
        %p245 = pneg %p73
      $region22: #{dgcnn_origin_forward.10} parent=15 // pred_check_branch
        %247 = sbr.rel (%p245) target = $region24
      $region23: #{dgcnn_origin_forward.10} parent=15 // pred_region
        %p248 = scmp.lt.s32.totalorder %s20, 1
        %s249 = scalar_select %p248, %s20, 1
        %s250 = smul.addr %s249, 4
        %s251 = scalar_lea.vmem %s1, %s250
      $region24: #{dgcnn_origin_forward.10} parent=15 // pred_fallthru
        _
      // Predicated region
      $region25: #{dgcnn_origin_forward.10} parent=15 // pred_check
        %p252 = pneg %p99
      $region26: #{dgcnn_origin_forward.10} parent=15 // pred_check_branch
        %254 = sbr.rel (%p252) target = $region28
      $region27: #{dgcnn_origin_forward.10} parent=15 // pred_region
        %p255 = scmp.lt.s32.totalorder %s20, 1
        %s256 = scalar_select %p255, %s20, 1
        %s257 = scalar_lea.vmem %s2, %s256
      $region28: #{dgcnn_origin_forward.10} parent=15 // pred_fallthru
        _
      // Predicated region
      $region29: #{dgcnn_origin_forward.10} parent=15 // pred_check
        %p258 = pneg %p125
      $region30: #{dgcnn_origin_forward.10} parent=15 // pred_check_branch
        %260 = sbr.rel (%p258) target = $region32
      $region31: #{dgcnn_origin_forward.10} parent=15 // pred_region
        %p261 = scmp.lt.s32.totalorder %s20, 1
        %s262 = scalar_select %p261, %s20, 1
        %s263 = smul.addr %s262, 2
        %s264 = smul.addr %s263, 8
        %s265 = scalar_lea.vmem %s3, %s264
      $region32: #{dgcnn_origin_forward.10} parent=15 // pred_fallthru
        _
      // Predicated region
      $region33: #{dgcnn_origin_forward.10} parent=15 // pred_check
        %p266 = pneg %p153
      $region34: #{dgcnn_origin_forward.10} parent=15 // pred_check_branch
        %268 = sbr.rel (%p266) target = $region36
      $region35: #{dgcnn_origin_forward.10} parent=15 // pred_region
        %s269 = smul.u32 2, %s21
        %p270 = scmp.lt.s32.totalorder %s20, 1
        %s271 = scalar_select %p270, %s20, 1
        %p272 = scmp.lt.s32.totalorder %s269, 1
        %s273 = scalar_select %p272, %s269, 1
        %s274 = smul.addr %s271, 2
        %s275 = sadd.s32 %s273, %s274
        %s276 = smul.addr %s275, 8
        %s277 = scalar_lea.vmem %s4, %s276
        %s278 = smul.u32 2, %s21
      $region36: #{dgcnn_origin_forward.10} parent=15 // pred_fallthru
        _
    $region16: #{dgcnn_origin_forward.10} parent=5 // pred_fallthru
      _
    %p279 = scmp.le.s32.totalorder 1, %s13
    %p280 = scmp.lt.s32.totalorder %s13, 3
    %p281 = pnand %p279, %p280
    %p282 = pneg %p281
    // Predicated region
    $region37: #{dgcnn_origin_forward.10} parent=5 // pred_check
      _
    $region38: #{dgcnn_origin_forward.10} parent=5 // pred_check_branch
      %284 = sbr.rel (%p281) target = $region40
    $region39: #{dgcnn_origin_forward.10} parent=5 // pred_region
      %s285 = ssub.s32 %s13, 1
      %s286 = smul.u32 2, %s23
      %p287 = scmp.lt.s32.totalorder %s22, 1
      %s288 = scalar_select %p287, %s22, 1
      %p289 = scmp.lt.s32.totalorder %s286, 1
      %s290 = scalar_select %p289, %s286, 1
      %s291 = smul.addr %s288, 2
      %s292 = sadd.s32 %s290, %s291
      %s293 = smul.addr %s292, 8
      %s294 = scalar_lea.vmem %s0, %s293
      %p295 = pneg %p53
      %p296 = pneg %p50
      %p297 = scmp.lt.s32.totalorder %s22, 1
      %s298 = scalar_select %p297, %s22, 1
      %s299 = smul.addr %s298, 4
      %s300 = scalar_lea.vmem %s1, %s299
      %p301 = pneg %p79
      %p302 = pneg %p76
      %p303 = scmp.lt.s32.totalorder %s22, 1
      %s304 = scalar_select %p303, %s22, 1
      %s305 = scalar_lea.vmem %s2, %s304
      %p306 = pneg %p105
      %p307 = pneg %p102
      %p308 = scmp.lt.s32.totalorder %s22, 1
      %s309 = scalar_select %p308, %s22, 1
      %s310 = smul.addr %s309, 2
      %s311 = smul.addr %s310, 8
      %s312 = scalar_lea.vmem %s3, %s311
      %p313 = pneg %p131
      %p314 = pneg %p128
      %s315 = smul.u32 2, %s23
      %p316 = scmp.lt.s32.totalorder %s22, 1
      %s317 = scalar_select %p316, %s22, 1
      %p318 = scmp.lt.s32.totalorder %s315, 1
      %s319 = scalar_select %p318, %s315, 1
      %s320 = smul.addr %s317, 2
      %s321 = sadd.s32 %s319, %s320
      %s322 = smul.addr %s321, 8
      %s323 = scalar_lea.vmem %s4, %s322
      %p324 = pneg %p159
      %p325 = pneg %p156
      %p326 = pneg %p187
      %p327 = pneg %p184
      %s328 = smul.u32 2, %s23
      %p329 = scmp.lt.s32.totalorder %s22, 1
      %s330 = scalar_select %p329, %s22, 1
      %p331 = scmp.lt.s32.totalorder %s328, 1
      %s332 = scalar_select %p331, %s328, 1
      %s333 = smul.addr %s330, 2
      %s334 = sadd.s32 %s332, %s333
      %s335 = smul.addr %s334, 8
      %s336 = scalar_lea.vmem %s5, %s335
      %p337 = pneg %p213
      %p338 = pneg %p210
      %p339 = scmp.lt.s32.totalorder %s22, 1
      %s340 = scalar_select %p339, %s22, 1
      %s341 = scalar_lea.vmem %s6, %s340
      %s342 = smul.u32 2, %s23
      %p343 = scmp.lt.s32.totalorder %s22, 1
      %s344 = scalar_select %p343, %s22, 1
      %p345 = scmp.lt.s32.totalorder %s342, 1
      %s346 = scalar_select %p345, %s342, 1
      %s347 = smul.addr %s344, 2
      %s348 = sadd.s32 %s346, %s347
      %s349 = smul.addr %s348, 8
      %s350 = scalar_lea.vmem %s0, %s349
      %s351 = smul.u32 2, %s23
      %p352 = scmp.lt.s32.totalorder %s22, 1
      %s353 = scalar_select %p352, %s22, 1
      %s354 = smul.addr %s353, 4
      %s355 = scalar_lea.vmem %s1, %s354
      %p356 = scmp.lt.s32.totalorder %s22, 1
      %s357 = scalar_select %p356, %s22, 1
      %s358 = scalar_lea.vmem %s2, %s357
      %p359 = scmp.lt.s32.totalorder %s22, 1
      %s360 = scalar_select %p359, %s22, 1
      %s361 = smul.addr %s360, 2
      %s362 = smul.addr %s361, 8
      %s363 = scalar_lea.vmem %s3, %s362
      %s364 = smul.u32 2, %s23
      %p365 = scmp.lt.s32.totalorder %s22, 1
      %s366 = scalar_select %p365, %s22, 1
      %p367 = scmp.lt.s32.totalorder %s364, 1
      %s368 = scalar_select %p367, %s364, 1
      %s369 = smul.addr %s366, 2
      %s370 = sadd.s32 %s368, %s369
      %s371 = smul.addr %s370, 8
      %s372 = scalar_lea.vmem %s4, %s371
      %s373 = smul.u32 2, %s23
      %s374 = smul.u32 2, %s23
      %p375 = scmp.lt.s32.totalorder %s22, 1
      %s376 = scalar_select %p375, %s22, 1
      %p377 = scmp.lt.s32.totalorder %s374, 1
      %s378 = scalar_select %p377, %s374, 1
      %s379 = smul.addr %s376, 2
      %s380 = sadd.s32 %s378, %s379
      %s381 = smul.addr %s380, 8
      %s382 = scalar_lea.vmem %s5, %s381
      %s383 = smul.u32 2, %s23
      %p384 = scmp.lt.s32.totalorder %s22, 1
      %s385 = scalar_select %p384, %s22, 1
      %s386 = scalar_lea.vmem %s6, %s385
      %p387 = scmp.eq.s32.totalorder %s23, 0
      // Predicated region
      $region41: #{dgcnn_origin_forward.10} parent=39 // pred_check
        %p388 = pneg %p387
      $region42: #{dgcnn_origin_forward.10} parent=39 // pred_check_branch
        %390 = sbr.rel (%p388) target = $region44
      $region43: #{dgcnn_origin_forward.10} parent=39 // pred_region
        %vm391 = vcmask 122880
        %392 = vst.msk [vmem:[%s386] sm:$0x1] %vm391, 0.0
      $region44: #{dgcnn_origin_forward.10} parent=39 // pred_fallthru
        _
      %v393 = vld [vmem:[%s350] sm:$0xff]
      %v394 = vld [vmem:[%s350 + $0x8] sm:$0xff]
      %v395 = vmul.f32 %v393, 2.0
      %v396 = vmul.f32 %v394, 2.0
      %v397 = vld [vmem:[%s355] sm:$0x7]
      %v398 = vld [vmem:[%s358] sm:$0x1]
      %v399 = vld [vmem:[%s363] sm:$0xff]
      %v400 = vld [vmem:[%s363 + $0x8] sm:$0xff]
      %v401 = vld [vmem:[%s372] sm:$0xff]
      %v402 = vld [vmem:[%s372 + $0x8] sm:$0xff]
      %vm403 = vcmask 23552
      %v405 = vsel %vm403, %v395, 0
      %v408 = vsel %vm403, %v396, 0
      %vm410 = vcmask 1042432
      %v412 = vsel %vm410, %v397, 0
      %414 = vmatprep.subr.mxu0 0.0
      %415 = vmatpush1.msra.mxu0 0.0
      %416 = vmatprep.subr.mxu0 0.0
      %417 = vmatpush1.msra.mxu0 0.0
      %418 = vmatprep.subr.mxu0 0.0
      %419 = vmatpush1.msra.mxu0 0.0
      %420 = vmatprep.subr.mxu0 0.0
      %421 = vmatpush1.msra.mxu0 0.0
      %422 = vmatprep.subr.mxu0 0.0
      %423 = vmatpush1.msra.mxu0 0.0
      %424 = vmatprep.subr.mxu0 0.0
      %425 = vmatpush1.msra.mxu0 0.0
      %426 = vmatprep.subr.mxu0 0.0
      %427 = vmatpush1.msra.mxu0 0.0
      %428 = vmatprep.subr.mxu0 0.0
      %429 = vmatpush1.msra.mxu0 0.0
      %430 = vmatprep.subr.mxu0 0.0
      %431 = vmatpush1.msra.mxu0 0.0
      %432 = vmatprep.subr.mxu0 0.0
      %433 = vmatpush1.msra.mxu0 0.0
      %434 = vmatprep.subr.mxu0 0.0
      %435 = vmatpush1.msra.mxu0 0.0
      %436 = vmatprep.subr.mxu0 0.0
      %437 = vmatpush1.msra.mxu0 0.0
      %438 = vmatprep.subr.mxu0 0.0
      %439 = vmatpush1.msra.mxu0 0.0
      %440 = vmatprep.subr.mxu0 0.0
      %441 = vmatpush1.msra.mxu0 0.0
      %442 = vmatprep.subr.mxu0 0.0
      %443 = vmatpush1.msra.mxu0 0.0
      %444 = vmatprep.subr.mxu0 0.0
      %445 = vmatpush1.msra.mxu0 %v412
      %446 = vmatprep.subr.mxu0 0.0
      %447 = vmatpush2.msra.mxu0 0.0
      %448 = vmatprep.subr.mxu0 0.0
      %449 = vmatpush2.msra.mxu0 0.0
      %450 = vmatprep.subr.mxu0 0.0
      %451 = vmatpush2.msra.mxu0 0.0
      %452 = vmatprep.subr.mxu0 0.0
      %453 = vmatpush2.msra.mxu0 0.0
      %454 = vmatprep.subr.mxu0 0.0
      %455 = vmatpush2.msra.mxu0 0.0
      %456 = vmatprep.subr.mxu0 0.0
      %457 = vmatpush2.msra.mxu0 0.0
      %458 = vmatprep.subr.mxu0 0.0
      %459 = vmatpush2.msra.mxu0 0.0
      %460 = vmatprep.subr.mxu0 0.0
      %461 = vmatpush2.msra.mxu0 0.0
      %462 = vmatprep.subr.mxu0 0.0
      %463 = vmatpush2.msra.mxu0 0.0
      %464 = vmatprep.subr.mxu0 0.0
      %465 = vmatpush2.msra.mxu0 0.0
      %466 = vmatprep.subr.mxu0 0.0
      %467 = vmatpush2.msra.mxu0 0.0
      %468 = vmatprep.subr.mxu0 0.0
      %469 = vmatpush2.msra.mxu0 0.0
      %470 = vmatprep.subr.mxu0 0.0
      %471 = vmatpush2.msra.mxu0 0.0
      %472 = vmatprep.subr.mxu0 0.0
      %473 = vmatpush2.msra.mxu0 0.0
      %474 = vmatprep.subr.mxu0 0.0
      %475 = vmatpush2.msra.mxu0 0.0
      %476 = vmatprep.subr.mxu0 0.0
      %477 = vmatpush2.msra.mxu0 0.0
      %478 = vmatprep.mubr.f32.mxu0 0.0
      %479 = vmatmul.mubr.f32.gmra.mxu0 %v405
      %v480 = vpop.f32.mrf.mxu0
      %v481 = vadd.f32 0.0, %v480
      %v482 = vpop.f32.mrf.mxu0
      %483 = vmatprep.mubr.f32.mxu0 0.0
      %484 = vmatmul.mubr.f32.gmra.mxu0 %v408
      %v485 = vpop.f32.mrf.mxu0
      %v486 = vadd.f32 0.0, %v485
      %v487 = vpop.f32.mrf.mxu0
      %488 = vdwg.mxu0
      %v490 = vlaneseq
      %v491 = vshrl.u32 %v490, 7
      %v492 = vsub.s32 0, %v491
      %v493 = vrot.slane %v398, %v492
      %v495 = vsub.f32 %v481, %v493
      %v496 = vsub.f32 %v486, %v493
      %v497 = vlaneseq
      %v498 = vand.u32 %v497, 127
      %v499 = vcvt.s32.f32 %v498
      %vm500 = vcmask 130048
      %v501 = vsel %vm500, %v495, -inf
      %502 = vmax.xlane.f32.xlu0 %v501
      %v503 = vpop.xlane.xlu0 %502
      %v504 = vsel %vm500, %v496, -inf
      %505 = vmax.xlane.f32.xlu0 %v504
      %v506 = vpop.xlane.xlu0 %505
      %vm507 = vcmp.eq.f32.partialorder %v495, %v503
      %vm508 = vcmp.eq.f32.partialorder %v496, %v506
      %v509 = vsel %vm507, %v499, 16.0
      %v510 = vsel %vm508, %v499, 16.0
      %v511 = vsel %vm500, %v509, inf
      %512 = vmin.xlane.f32.xlu0 %v511
      %v513 = vpop.xlane.xlu0 %512
      %v514 = vsel %vm500, %v510, inf
      %515 = vmin.xlane.f32.xlu0 %v514
      %v516 = vpop.xlane.xlu0 %515
      %vm517 = vcmp.eq.f32.partialorder %v499, %v513
      %vm518 = vcmp.eq.f32.partialorder %v499, %v516
      %v519 = vsel %vm517, -inf, %v495
      %v520 = vsel %vm518, -inf, %v496
      %v521 = vsel %vm517, 1, 0
      %v522 = vsel %vm518, 1, 0
      %v523 = vcvt.s32.f32 %v521
      %v524 = vcvt.s32.f32 %v522
      %v526 = vsel %vm500, %v523, 0
      %v529 = vsel %vm500, %v524, 0
      %531 = vmatprep.subr.mxu0 0.0
      %532 = vmatpush1.msra.mxu0 0.0
      %533 = vmatprep.subr.mxu0 0.0
      %534 = vmatpush1.msra.mxu0 0.0
      %535 = vmatprep.subr.mxu0 0.0
      %536 = vmatpush1.msra.mxu0 0.0
      %537 = vmatprep.subr.mxu0 0.0
      %538 = vmatpush1.msra.mxu0 0.0
      %539 = vmatprep.subr.mxu0 0.0
      %540 = vmatpush1.msra.mxu0 0.0
      %541 = vmatprep.subr.mxu0 0.0
      %542 = vmatpush1.msra.mxu0 0.0
      %543 = vmatprep.subr.mxu0 0.0
      %544 = vmatpush1.msra.mxu0 0.0
      %545 = vmatprep.subr.mxu0 0.0
      %546 = vmatpush1.msra.mxu0 0.0
      %547 = vmatprep.subr.mxu0 0.0
      %548 = vmatpush1.msra.mxu0 0.0
      %549 = vmatprep.subr.mxu0 0.0
      %550 = vmatpush1.msra.mxu0 0.0
      %551 = vmatprep.subr.mxu0 0.0
      %552 = vmatpush1.msra.mxu0 0.0
      %553 = vmatprep.subr.mxu0 0.0
      %554 = vmatpush1.msra.mxu0 0.0
      %555 = vmatprep.subr.mxu0 0.0
      %556 = vmatpush1.msra.mxu0 0.0
      %557 = vmatprep.subr.mxu0 0.0
      %558 = vmatpush1.msra.mxu0 0.0
      %559 = vmatprep.subr.mxu0 0.0
      %560 = vmatpush1.msra.mxu0 %v400
      %561 = vmatprep.subr.mxu0 0.0
      %562 = vmatpush1.msra.mxu0 %v399
      %563 = vmatprep.subr.mxu0 0.0
      %564 = vmatpush2.msra.mxu0 0.0
      %565 = vmatprep.subr.mxu0 0.0
      %566 = vmatpush2.msra.mxu0 0.0
      %567 = vmatprep.subr.mxu0 0.0
      %568 = vmatpush2.msra.mxu0 0.0
      %569 = vmatprep.subr.mxu0 0.0
      %570 = vmatpush2.msra.mxu0 0.0
      %571 = vmatprep.subr.mxu0 0.0
      %572 = vmatpush2.msra.mxu0 0.0
      %573 = vmatprep.subr.mxu0 0.0
      %574 = vmatpush2.msra.mxu0 0.0
      %575 = vmatprep.subr.mxu0 0.0
      %576 = vmatpush2.msra.mxu0 0.0
      %577 = vmatprep.subr.mxu0 0.0
      %578 = vmatpush2.msra.mxu0 0.0
      %579 = vmatprep.subr.mxu0 0.0
      %580 = vmatpush2.msra.mxu0 0.0
      %581 = vmatprep.subr.mxu0 0.0
      %582 = vmatpush2.msra.mxu0 0.0
      %583 = vmatprep.subr.mxu0 0.0
      %584 = vmatpush2.msra.mxu0 0.0
      %585 = vmatprep.subr.mxu0 0.0
      %586 = vmatpush2.msra.mxu0 0.0
      %587 = vmatprep.subr.mxu0 0.0
      %588 = vmatpush2.msra.mxu0 0.0
      %589 = vmatprep.subr.mxu0 0.0
      %590 = vmatpush2.msra.mxu0 0.0
      %591 = vmatprep.subr.mxu0 0.0
      %592 = vmatpush2.msra.mxu0 0.0
      %593 = vmatprep.subr.mxu0 0.0
      %594 = vmatpush2.msra.mxu0 0.0
      %595 = vmatprep.mubr.f32.mxu0 0.0
      %596 = vmatmul.mubr.f32.gmra.mxu0 %v526
      %v597 = vpop.f32.mrf.mxu0
      %v598 = vadd.f32 0.0, %v597
      %v599 = vpop.f32.mrf.mxu0
      %600 = vmatprep.mubr.f32.mxu0 0.0
      %601 = vmatmul.mubr.f32.gmra.mxu0 %v529
      %v602 = vpop.f32.mrf.mxu0
      %v603 = vadd.f32 0.0, %v602
      %v604 = vpop.f32.mrf.mxu0
      %605 = vdwg.mxu0
      %v606 = vmul.f32 %v598, %v598
      %v607 = vmul.f32 %v603, %v603
      %v608 = vsel %vm500, %v519, -inf
      %609 = vmax.xlane.f32.xlu0 %v608
      %v610 = vpop.xlane.xlu0 %609
      %v611 = vsel %vm500, %v520, -inf
      %612 = vmax.xlane.f32.xlu0 %v611
      %v613 = vpop.xlane.xlu0 %612
      %vm614 = vcmp.eq.f32.partialorder %v519, %v610
      %vm615 = vcmp.eq.f32.partialorder %v520, %v613
      %v616 = vsel %vm614, %v499, 16.0
      %v617 = vsel %vm615, %v499, 16.0
      %v618 = vsel %vm500, %v616, inf
      %619 = vmin.xlane.f32.xlu0 %v618
      %v620 = vpop.xlane.xlu0 %619
      %v621 = vsel %vm500, %v617, inf
      %622 = vmin.xlane.f32.xlu0 %v621
      %v623 = vpop.xlane.xlu0 %622
      %vm624 = vcmp.eq.f32.partialorder %v499, %v620
      %vm625 = vcmp.eq.f32.partialorder %v499, %v623
      %v626 = vsel %vm624, -inf, %v519
      %v627 = vsel %vm625, -inf, %v520
      %v628 = vsel %vm624, 1, 0
      %v629 = vsel %vm625, 1, 0
      %v630 = vcvt.s32.f32 %v628
      %v631 = vcvt.s32.f32 %v629
      %v633 = vsel %vm500, %v630, 0
      %v636 = vsel %vm500, %v631, 0
      %638 = vmatprep.subr.mxu0 0.0
      %639 = vmatpush1.msra.mxu0 0.0
      %640 = vmatprep.subr.mxu0 0.0
      %641 = vmatpush1.msra.mxu0 0.0
      %642 = vmatprep.subr.mxu0 0.0
      %643 = vmatpush1.msra.mxu0 0.0
      %644 = vmatprep.subr.mxu0 0.0
      %645 = vmatpush1.msra.mxu0 0.0
      %646 = vmatprep.subr.mxu0 0.0
      %647 = vmatpush1.msra.mxu0 0.0
      %648 = vmatprep.subr.mxu0 0.0
      %649 = vmatpush1.msra.mxu0 0.0
      %650 = vmatprep.subr.mxu0 0.0
      %651 = vmatpush1.msra.mxu0 0.0
      %652 = vmatprep.subr.mxu0 0.0
      %653 = vmatpush1.msra.mxu0 0.0
      %654 = vmatprep.subr.mxu0 0.0
      %655 = vmatpush1.msra.mxu0 0.0
      %656 = vmatprep.subr.mxu0 0.0
      %657 = vmatpush1.msra.mxu0 0.0
      %658 = vmatprep.subr.mxu0 0.0
      %659 = vmatpush1.msra.mxu0 0.0
      %660 = vmatprep.subr.mxu0 0.0
      %661 = vmatpush1.msra.mxu0 0.0
      %662 = vmatprep.subr.mxu0 0.0
      %663 = vmatpush1.msra.mxu0 0.0
      %664 = vmatprep.subr.mxu0 0.0
      %665 = vmatpush1.msra.mxu0 0.0
      %666 = vmatprep.subr.mxu0 0.0
      %667 = vmatpush1.msra.mxu0 %v400
      %668 = vmatprep.subr.mxu0 0.0
      %669 = vmatpush1.msra.mxu0 %v399
      %670 = vmatprep.subr.mxu0 0.0
      %671 = vmatpush2.msra.mxu0 0.0
      %672 = vmatprep.subr.mxu0 0.0
      %673 = vmatpush2.msra.mxu0 0.0
      %674 = vmatprep.subr.mxu0 0.0
      %675 = vmatpush2.msra.mxu0 0.0
      %676 = vmatprep.subr.mxu0 0.0
      %677 = vmatpush2.msra.mxu0 0.0
      %678 = vmatprep.subr.mxu0 0.0
      %679 = vmatpush2.msra.mxu0 0.0
      %680 = vmatprep.subr.mxu0 0.0
      %681 = vmatpush2.msra.mxu0 0.0
      %682 = vmatprep.subr.mxu0 0.0
      %683 = vmatpush2.msra.mxu0 0.0
      %684 = vmatprep.subr.mxu0 0.0
      %685 = vmatpush2.msra.mxu0 0.0
      %686 = vmatprep.subr.mxu0 0.0
      %687 = vmatpush2.msra.mxu0 0.0
      %688 = vmatprep.subr.mxu0 0.0
      %689 = vmatpush2.msra.mxu0 0.0
      %690 = vmatprep.subr.mxu0 0.0
      %691 = vmatpush2.msra.mxu0 0.0
      %692 = vmatprep.subr.mxu0 0.0
      %693 = vmatpush2.msra.mxu0 0.0
      %694 = vmatprep.subr.mxu0 0.0
      %695 = vmatpush2.msra.mxu0 0.0
      %696 = vmatprep.subr.mxu0 0.0
      %697 = vmatpush2.msra.mxu0 0.0
      %698 = vmatprep.subr.mxu0 0.0
      %699 = vmatpush2.msra.mxu0 0.0
      %700 = vmatprep.subr.mxu0 0.0
      %701 = vmatpush2.msra.mxu0 0.0
      %702 = vmatprep.mubr.f32.mxu0 0.0
      %703 = vmatmul.mubr.f32.gmra.mxu0 %v633
      %v704 = vpop.f32.mrf.mxu0
      %v705 = vadd.f32 0.0, %v704
      %v706 = vpop.f32.mrf.mxu0
      %707 = vmatprep.mubr.f32.mxu0 0.0
      %708 = vmatmul.mubr.f32.gmra.mxu0 %v636
      %v709 = vpop.f32.mrf.mxu0
      %v710 = vadd.f32 0.0, %v709
      %v711 = vpop.f32.mrf.mxu0
      %712 = vdwg.mxu0
      %v713 = vmax.f32 %v598, %v705
      %v714 = vmax.f32 %v603, %v710
      %v715 = vadd.f32 %v598, %v705
      %v716 = vadd.f32 %v603, %v710
      %v717 = vmul.f32 %v705, %v705
      %v718 = vmul.f32 %v710, %v710
      %v719 = vadd.f32 %v606, %v717
      %v720 = vadd.f32 %v607, %v718
      %v721 = vsel %vm500, %v626, -inf
      %722 = vmax.xlane.f32.xlu0 %v721
      %v723 = vpop.xlane.xlu0 %722
      %v724 = vsel %vm500, %v627, -inf
      %725 = vmax.xlane.f32.xlu0 %v724
      %v726 = vpop.xlane.xlu0 %725
      %vm727 = vcmp.eq.f32.partialorder %v626, %v723
      %vm728 = vcmp.eq.f32.partialorder %v627, %v726
      %v729 = vsel %vm727, %v499, 16.0
      %v730 = vsel %vm728, %v499, 16.0
      %v731 = vsel %vm500, %v729, inf
      %732 = vmin.xlane.f32.xlu0 %v731
      %v733 = vpop.xlane.xlu0 %732
      %v734 = vsel %vm500, %v730, inf
      %735 = vmin.xlane.f32.xlu0 %v734
      %v736 = vpop.xlane.xlu0 %735
      %vm737 = vcmp.eq.f32.partialorder %v499, %v733
      %vm738 = vcmp.eq.f32.partialorder %v499, %v736
      %v739 = vsel %vm737, -inf, %v626
      %v740 = vsel %vm738, -inf, %v627
      %v741 = vsel %vm737, 1, 0
      %v742 = vsel %vm738, 1, 0
      %v743 = vcvt.s32.f32 %v741
      %v744 = vcvt.s32.f32 %v742
      %v746 = vsel %vm500, %v743, 0
      %v749 = vsel %vm500, %v744, 0
      %751 = vmatprep.subr.mxu0 0.0
      %752 = vmatpush1.msra.mxu0 0.0
      %753 = vmatprep.subr.mxu0 0.0
      %754 = vmatpush1.msra.mxu0 0.0
      %755 = vmatprep.subr.mxu0 0.0
      %756 = vmatpush1.msra.mxu0 0.0
      %757 = vmatprep.subr.mxu0 0.0
      %758 = vmatpush1.msra.mxu0 0.0
      %759 = vmatprep.subr.mxu0 0.0
      %760 = vmatpush1.msra.mxu0 0.0
      %761 = vmatprep.subr.mxu0 0.0
      %762 = vmatpush1.msra.mxu0 0.0
      %763 = vmatprep.subr.mxu0 0.0
      %764 = vmatpush1.msra.mxu0 0.0
      %765 = vmatprep.subr.mxu0 0.0
      %766 = vmatpush1.msra.mxu0 0.0
      %767 = vmatprep.subr.mxu0 0.0
      %768 = vmatpush1.msra.mxu0 0.0
      %769 = vmatprep.subr.mxu0 0.0
      %770 = vmatpush1.msra.mxu0 0.0
      %771 = vmatprep.subr.mxu0 0.0
      %772 = vmatpush1.msra.mxu0 0.0
      %773 = vmatprep.subr.mxu0 0.0
      %774 = vmatpush1.msra.mxu0 0.0
      %775 = vmatprep.subr.mxu0 0.0
      %776 = vmatpush1.msra.mxu0 0.0
      %777 = vmatprep.subr.mxu0 0.0
      %778 = vmatpush1.msra.mxu0 0.0
      %779 = vmatprep.subr.mxu0 0.0
      %780 = vmatpush1.msra.mxu0 %v400
      %781 = vmatprep.subr.mxu0 0.0
      %782 = vmatpush1.msra.mxu0 %v399
      %783 = vmatprep.subr.mxu0 0.0
      %784 = vmatpush2.msra.mxu0 0.0
      %785 = vmatprep.subr.mxu0 0.0
      %786 = vmatpush2.msra.mxu0 0.0
      %787 = vmatprep.subr.mxu0 0.0
      %788 = vmatpush2.msra.mxu0 0.0
      %789 = vmatprep.subr.mxu0 0.0
      %790 = vmatpush2.msra.mxu0 0.0
      %791 = vmatprep.subr.mxu0 0.0
      %792 = vmatpush2.msra.mxu0 0.0
      %793 = vmatprep.subr.mxu0 0.0
      %794 = vmatpush2.msra.mxu0 0.0
      %795 = vmatprep.subr.mxu0 0.0
      %796 = vmatpush2.msra.mxu0 0.0
      %797 = vmatprep.subr.mxu0 0.0
      %798 = vmatpush2.msra.mxu0 0.0
      %799 = vmatprep.subr.mxu0 0.0
      %800 = vmatpush2.msra.mxu0 0.0
      %801 = vmatprep.subr.mxu0 0.0
      %802 = vmatpush2.msra.mxu0 0.0
      %803 = vmatprep.subr.mxu0 0.0
      %804 = vmatpush2.msra.mxu0 0.0
      %805 = vmatprep.subr.mxu0 0.0
      %806 = vmatpush2.msra.mxu0 0.0
      %807 = vmatprep.subr.mxu0 0.0
      %808 = vmatpush2.msra.mxu0 0.0
      %809 = vmatprep.subr.mxu0 0.0
      %810 = vmatpush2.msra.mxu0 0.0
      %811 = vmatprep.subr.mxu0 0.0
      %812 = vmatpush2.msra.mxu0 0.0
      %813 = vmatprep.subr.mxu0 0.0
      %814 = vmatpush2.msra.mxu0 0.0
      %815 = vmatprep.mubr.f32.mxu0 0.0
      %816 = vmatmul.mubr.f32.gmra.mxu0 %v746
      %v817 = vpop.f32.mrf.mxu0
      %v818 = vadd.f32 0.0, %v817
      %v819 = vpop.f32.mrf.mxu0
      %820 = vmatprep.mubr.f32.mxu0 0.0
      %821 = vmatmul.mubr.f32.gmra.mxu0 %v749
      %v822 = vpop.f32.mrf.mxu0
      %v823 = vadd.f32 0.0, %v822
      %v824 = vpop.f32.mrf.mxu0
      %825 = vdwg.mxu0
      %v826 = vmax.f32 %v713, %v818
      %v827 = vmax.f32 %v714, %v823
      %v828 = vadd.f32 %v715, %v818
      %v829 = vadd.f32 %v716, %v823
      %v830 = vmul.f32 %v818, %v818
      %v831 = vmul.f32 %v823, %v823
      %v832 = vadd.f32 %v719, %v830
      %v833 = vadd.f32 %v720, %v831
      %v834 = vsel %vm500, %v739, -inf
      %835 = vmax.xlane.f32.xlu0 %v834
      %v836 = vpop.xlane.xlu0 %835
      %v837 = vsel %vm500, %v740, -inf
      %838 = vmax.xlane.f32.xlu0 %v837
      %v839 = vpop.xlane.xlu0 %838
      %vm840 = vcmp.eq.f32.partialorder %v739, %v836
      %vm841 = vcmp.eq.f32.partialorder %v740, %v839
      %v842 = vsel %vm840, %v499, 16.0
      %v843 = vsel %vm841, %v499, 16.0
      %v844 = vsel %vm500, %v842, inf
      %845 = vmin.xlane.f32.xlu0 %v844
      %v846 = vpop.xlane.xlu0 %845
      %v847 = vsel %vm500, %v843, inf
      %848 = vmin.xlane.f32.xlu0 %v847
      %v849 = vpop.xlane.xlu0 %848
      %vm850 = vcmp.eq.f32.partialorder %v499, %v846
      %vm851 = vcmp.eq.f32.partialorder %v499, %v849
      %v852 = vsel %vm850, 1, 0
      %v853 = vsel %vm851, 1, 0
      %v854 = vcvt.s32.f32 %v852
      %v855 = vcvt.s32.f32 %v853
      %v857 = vsel %vm500, %v854, 0
      %v860 = vsel %vm500, %v855, 0
      %862 = vmatprep.subr.mxu0 0.0
      %863 = vmatpush1.msra.mxu0 0.0
      %864 = vmatprep.subr.mxu0 0.0
      %865 = vmatpush1.msra.mxu0 0.0
      %866 = vmatprep.subr.mxu0 0.0
      %867 = vmatpush1.msra.mxu0 0.0
      %868 = vmatprep.subr.mxu0 0.0
      %869 = vmatpush1.msra.mxu0 0.0
      %870 = vmatprep.subr.mxu0 0.0
      %871 = vmatpush1.msra.mxu0 0.0
      %872 = vmatprep.subr.mxu0 0.0
      %873 = vmatpush1.msra.mxu0 0.0
      %874 = vmatprep.subr.mxu0 0.0
      %875 = vmatpush1.msra.mxu0 0.0
      %876 = vmatprep.subr.mxu0 0.0
      %877 = vmatpush1.msra.mxu0 0.0
      %878 = vmatprep.subr.mxu0 0.0
      %879 = vmatpush1.msra.mxu0 0.0
      %880 = vmatprep.subr.mxu0 0.0
      %881 = vmatpush1.msra.mxu0 0.0
      %882 = vmatprep.subr.mxu0 0.0
      %883 = vmatpush1.msra.mxu0 0.0
      %884 = vmatprep.subr.mxu0 0.0
      %885 = vmatpush1.msra.mxu0 0.0
      %886 = vmatprep.subr.mxu0 0.0
      %887 = vmatpush1.msra.mxu0 0.0
      %888 = vmatprep.subr.mxu0 0.0
      %889 = vmatpush1.msra.mxu0 0.0
      %890 = vmatprep.subr.mxu0 0.0
      %891 = vmatpush1.msra.mxu0 %v400
      %892 = vmatprep.subr.mxu0 0.0
      %893 = vmatpush1.msra.mxu0 %v399
      %894 = vmatprep.subr.mxu0 0.0
      %895 = vmatpush2.msra.mxu0 0.0
      %896 = vmatprep.subr.mxu0 0.0
      %897 = vmatpush2.msra.mxu0 0.0
      %898 = vmatprep.subr.mxu0 0.0
      %899 = vmatpush2.msra.mxu0 0.0
      %900 = vmatprep.subr.mxu0 0.0
      %901 = vmatpush2.msra.mxu0 0.0
      %902 = vmatprep.subr.mxu0 0.0
      %903 = vmatpush2.msra.mxu0 0.0
      %904 = vmatprep.subr.mxu0 0.0
      %905 = vmatpush2.msra.mxu0 0.0
      %906 = vmatprep.subr.mxu0 0.0
      %907 = vmatpush2.msra.mxu0 0.0
      %908 = vmatprep.subr.mxu0 0.0
      %909 = vmatpush2.msra.mxu0 0.0
      %910 = vmatprep.subr.mxu0 0.0
      %911 = vmatpush2.msra.mxu0 0.0
      %912 = vmatprep.subr.mxu0 0.0
      %913 = vmatpush2.msra.mxu0 0.0
      %914 = vmatprep.subr.mxu0 0.0
      %915 = vmatpush2.msra.mxu0 0.0
      %916 = vmatprep.subr.mxu0 0.0
      %917 = vmatpush2.msra.mxu0 0.0
      %918 = vmatprep.subr.mxu0 0.0
      %919 = vmatpush2.msra.mxu0 0.0
      %920 = vmatprep.subr.mxu0 0.0
      %921 = vmatpush2.msra.mxu0 0.0
      %922 = vmatprep.subr.mxu0 0.0
      %923 = vmatpush2.msra.mxu0 0.0
      %924 = vmatprep.subr.mxu0 0.0
      %925 = vmatpush2.msra.mxu0 0.0
      %926 = vmatprep.mubr.f32.mxu0 0.0
      %927 = vmatmul.mubr.f32.gmra.mxu0 %v857
      %v928 = vpop.f32.mrf.mxu0
      %v929 = vadd.f32 0.0, %v928
      %v930 = vpop.f32.mrf.mxu0
      %931 = vmatprep.mubr.f32.mxu0 0.0
      %932 = vmatmul.mubr.f32.gmra.mxu0 %v860
      %v933 = vpop.f32.mrf.mxu0
      %v934 = vadd.f32 0.0, %v933
      %v935 = vpop.f32.mrf.mxu0
      %936 = vdwg.mxu0
      %v937 = vmax.f32 %v826, %v929
      %v938 = vmax.f32 %v827, %v934
      %v939 = vadd.f32 %v828, %v929
      %v940 = vadd.f32 %v829, %v934
      %v941 = vmul.f32 %v929, %v929
      %v942 = vmul.f32 %v934, %v934
      %v943 = vadd.f32 %v832, %v941
      %v944 = vadd.f32 %v833, %v942
      %vm945 = vcmask 64512
      %946 = vst.msk [vmem:[%s382] sm:$0xff] %vm945, %v937
      %947 = vst.msk [vmem:[%s382 + $0x8] sm:$0xff] %vm945, %v938
      %v948 = vmul.f32 %v401, 4.0
      %v949 = vmul.f32 %v402, 4.0
      %v950 = vadd.f32 %v939, %v948
      %v951 = vadd.f32 %v940, %v949
      %v952 = vsel %vm945, %v950, 0.0
      %v953 = vsel %vm945, %v951, 0.0
      %v954 = vadd.f32 %v952, %v953
      %v955 = vrot.slane %v954, 4
      %v956 = vadd.f32 %v954, %v955
      %v957 = vrot.slane %v956, 2
      %v958 = vadd.f32 %v956, %v957
      %v959 = vrot.slane %v958, 1
      %v960 = vadd.f32 %v958, %v959
      %v961 = vmul.f32 %v401, 2.0
      %v962 = vmul.f32 %v402, 2.0
      %v963 = vmul.f32 %v961, %v939
      %v964 = vmul.f32 %v962, %v940
      %v965 = vadd.f32 %v943, %v963
      %v966 = vadd.f32 %v944, %v964
      %v967 = vmul.f32 %v948, %v401
      %v968 = vmul.f32 %v949, %v402
      %v969 = vadd.f32 %v965, %v967
      %v970 = vadd.f32 %v966, %v968
      %v971 = vsel %vm945, %v969, 0.0
      %v972 = vsel %vm945, %v970, 0.0
      %v973 = vadd.f32 %v971, %v972
      %v974 = vrot.slane %v973, 4
      %v975 = vadd.f32 %v973, %v974
      %v976 = vrot.slane %v975, 2
      %v977 = vadd.f32 %v975, %v976
      %v978 = vrot.slane %v977, 1
      %v979 = vadd.f32 %v977, %v978
      %v980 = vld [vmem:[%s386] sm:$0x1]
      %982 = vrot.lane.b32.xlu0 %v979, 8
      %v983 = vpop.permute.xlu0 %982
      %v985 = vsel %vm945, %v960, %v983
      %v986 = vadd.f32 %v980, %v985
      %vm987 = vcmask 122880
      %988 = vst.msk [vmem:[%s386] sm:$0x1] %vm987, %v986
      %s989 = smul.u32 2, %s23
      %p990 = scmp.lt.s32.totalorder %s22, 1
      %s991 = scalar_select %p990, %s22, 1
      %p992 = scmp.lt.s32.totalorder %s989, 1
      %s993 = scalar_select %p992, %s989, 1
      %s994 = smul.addr %s991, 2
      %s995 = sadd.s32 %s993, %s994
      %s996 = smul.addr %s995, 8
      %s997 = scalar_lea.vmem %s5, %s996
      %p998 = scmp.lt.s32.totalorder %s22, 1
      %s999 = scalar_select %p998, %s22, 1
      %s1000 = scalar_lea.vmem %s6, %s999
      // Predicated region
      $region45: #{dgcnn_origin_forward.10} parent=39 // pred_check
        %p1001 = pneg %p184
      $region46: #{dgcnn_origin_forward.10} parent=39 // pred_check_branch
        %1003 = sbr.rel (%p1001) target = $region48
      $region47: #{dgcnn_origin_forward.10} parent=39 // pred_region
        %s1004 = smul.u32 2, %s23
      $region48: #{dgcnn_origin_forward.10} parent=39 // pred_fallthru
        _
      // Predicated region
      $region49: #{dgcnn_origin_forward.10} parent=39 // pred_check
        %p1005 = pneg %p210
      $region50: #{dgcnn_origin_forward.10} parent=39 // pred_check_branch
        %1007 = sbr.rel (%p1005) target = $region52
      $region51: #{dgcnn_origin_forward.10} parent=39 // pred_region
        _
      $region52: #{dgcnn_origin_forward.10} parent=39 // pred_fallthru
        _
    $region40: #{dgcnn_origin_forward.10} parent=5 // pred_fallthru
      _
    %p1008 = scmp.le.s32.totalorder 2, %s13
    // Predicated region
    $region53: #{dgcnn_origin_forward.10} parent=5 // pred_check
      %p1009 = pneg %p1008
    $region54: #{dgcnn_origin_forward.10} parent=5 // pred_check_branch
      %1011 = sbr.rel (%p1009) target = $region56
    $region55: #{dgcnn_origin_forward.10} parent=5 // pred_region
      %s1012 = ssub.s32 %s13, 2
      // Predicated region
      $region57: #{dgcnn_origin_forward.10} parent=55 // pred_check
        %p1013 = pneg %p190
      $region58: #{dgcnn_origin_forward.10} parent=55 // pred_check_branch
        %1015 = sbr.rel (%p1013) target = $region60
      $region59: #{dgcnn_origin_forward.10} parent=55 // pred_region
        %s1016 = smul.u32 2, %s25
        %p1017 = scmp.lt.s32.totalorder %s24, 1
        %s1018 = scalar_select %p1017, %s24, 1
        %p1019 = scmp.lt.s32.totalorder %s1016, 1
        %s1020 = scalar_select %p1019, %s1016, 1
        %s1021 = smul.addr %s1018, 2
        %s1022 = sadd.s32 %s1020, %s1021
        %s1023 = smul.addr %s1022, 8
        %s1024 = scalar_lea.vmem %s5, %s1023
      $region60: #{dgcnn_origin_forward.10} parent=55 // pred_fallthru
        _
      // Predicated region
      $region61: #{dgcnn_origin_forward.10} parent=55 // pred_check
        %p1025 = pneg %p216
      $region62: #{dgcnn_origin_forward.10} parent=55 // pred_check_branch
        %1027 = sbr.rel (%p1025) target = $region64
      $region63: #{dgcnn_origin_forward.10} parent=55 // pred_region
        %p1028 = scmp.lt.s32.totalorder %s24, 1
        %s1029 = scalar_select %p1028, %s24, 1
        %s1030 = scalar_lea.vmem %s6, %s1029
      $region64: #{dgcnn_origin_forward.10} parent=55 // pred_fallthru
        _
    $region56: #{dgcnn_origin_forward.10} parent=5 // pred_fallthru
      _
  $region6: #{dgcnn_origin_forward.10} parent=0 // loop_footer
    %s17 = sadd.s32 1, %s13
  $region7: #{dgcnn_origin_forward.10} parent=0 // loop_footer_branch
    %12 = sbr.rel target = $region3
  $region8: #{dgcnn_origin_forward.10} parent=0 // loop_exit
    _

// kernel: dgcnn_origin_forward.12
$region0: #{dgcnn_origin_forward.12}
  #allocation0 [shape = 'u32[]', space=smem, size = 0x4, offset = 0x4, fixed_abs, tag = 'smem constant byte address 0x4 - core index']
  #allocation1 [shape = 'u32[144,128]{1,0:T(1,128)}', space=vmem, size = 0x12000, scoped, tag = 'internal scratch']
  %s0 = inlined_call_operand.vmem [shape: bf16[2,16,8], index: 0, kind: input, shape index: {}]
  %s1 = inlined_call_operand.vmem [shape: bf16[8,16], index: 1, kind: input, shape index: {}]
  %s2 = inlined_call_operand.vmem [shape: bf16[8,16], index: 2, kind: input, shape index: {}]
  %s3 = inlined_call_operand.vmem [shape: f32[2,16,16], index: 3, kind: output, shape index: {0}]
  %s4 = inlined_call_operand.vmem [shape: f32[2,16,16], index: 4, kind: output, shape index: {1}]
  %5 = xla_tuple %s3, %s4
  %s6 = sld [smem:[#allocation0]]
  $region53: #{dgcnn_origin_forward.12} parent=0
    _
  %s8 = ssub.s32 1, %s6
  %s9 = scalar_select 0, %s8, %s6
  loop: start=0, step=1, limit=4
  $region2: #{dgcnn_origin_forward.12} parent=0 // loop_pre_header
    _
  $region3: #{dgcnn_origin_forward.12} parent=0 // loop_header
    %s11 = sphi 0, %s15
    %p12 = scmp.ge.s32.totalorder %s11, 4
    %s18 = sphi 0, %s30
    %s19 = sphi 0, %s26
    %s20 = sphi 0, %s18
    %s21 = sphi 0, %s19
    %s22 = sphi 0, %s20
    %s23 = sphi 0, %s21
    %s35 = sphi 0, %s37
    %s38 = sphi 0, %s35
    %s39 = sphi 0, %s38
    %s55 = sphi 0, %s39
    %s59 = sphi 0, %s59
    %s61 = sphi 0, %s59
    %s62 = sphi 0, %s61
    %s76 = sphi 0, %s62
    %s80 = sphi 0, %s80
    %s82 = sphi 0, %s80
    %s83 = sphi 0, %s82
    %s97 = sphi 0, %s83
    %s105 = sphi 0, %s107
    %s108 = sphi 0, %s105
    %s109 = sphi 0, %s108
    %s125 = sphi 0, %s109
    %s133 = sphi 0, %s135
    %s136 = sphi 0, %s133
    %s137 = sphi 0, %s136
    %s153 = sphi 0, %s137
  $region4: #{dgcnn_origin_forward.12} parent=0 // loop_header_branch
    %14 = sbr.rel (%p12) target = $region8
  $region5: #{dgcnn_origin_forward.12} parent=0 // loop_body
    %s16 = ssub.s32 %s11, 1
    %s17 = ssub.s32 %s11, 2
    %s24 = sadd.s32 1, %s19
    %p25 = scmp.ge.s32.totalorder %s24, 1
    %s26 = scalar_select %p25, 0, %s24
    %s27 = sadd.s32 1, %s18
    %s28 = scalar_select %p25, %s27, %s18
    %p29 = scmp.ge.s32.totalorder %s28, 2
    %s30 = scalar_select %p29, 0, %s28
    %s31 = ssub.s32 %s18, %s30
    %s32 = ssub.s32 %s19, %s26
    %s33 = sor.u32 %s31, %s32
    %p34 = scmp.eq.s32.totalorder %s33, 0
    %s36 = sadd.s32 %s35, 1
    %s37 = scalar_select %p34, %s35, %s36
    %p40 = pneg %p34
    %p41 = scmp.eq.s32.totalorder %s11, 1
    %p42 = por %p40, %p41
    %p43 = scmp.ne.s32.totalorder %s35, %s38
    %p44 = scmp.eq.s32.totalorder %s11, 0
    %p45 = por %p43, %p44
    %p46 = scmp.ne.s32.totalorder %s35, %s38
    %p47 = scmp.eq.s32.totalorder %s16, 1
    %p48 = por %p46, %p47
    %p49 = scmp.ne.s32.totalorder %s38, %s39
    %p50 = scmp.eq.s32.totalorder %s16, 0
    %p51 = por %p49, %p50
    %p52 = scmp.ne.s32.totalorder %s38, %s39
    %p53 = scmp.eq.s32.totalorder %s17, 1
    %p54 = por %p52, %p53
    %p56 = scmp.ne.s32.totalorder %s39, %s55
    %p57 = scmp.eq.s32.totalorder %s17, 0
    %p58 = por %p56, %p57
    %s60 = sadd.s32 %s59, 1
    %p63 = scmp.eq.s32.totalorder %s11, 1
    %p64 = scmp.ne.s32.totalorder %s59, %s61
    %p65 = scmp.eq.s32.totalorder %s11, 0
    %p66 = por %p64, %p65
    %p67 = scmp.ne.s32.totalorder %s59, %s61
    %p68 = scmp.eq.s32.totalorder %s16, 1
    %p69 = por %p67, %p68
    %p70 = scmp.ne.s32.totalorder %s61, %s62
    %p71 = scmp.eq.s32.totalorder %s16, 0
    %p72 = por %p70, %p71
    %p73 = scmp.ne.s32.totalorder %s61, %s62
    %p74 = scmp.eq.s32.totalorder %s17, 1
    %p75 = por %p73, %p74
    %p77 = scmp.ne.s32.totalorder %s62, %s76
    %p78 = scmp.eq.s32.totalorder %s17, 0
    %p79 = por %p77, %p78
    %s81 = sadd.s32 %s80, 1
    %p84 = scmp.eq.s32.totalorder %s11, 1
    %p85 = scmp.ne.s32.totalorder %s80, %s82
    %p86 = scmp.eq.s32.totalorder %s11, 0
    %p87 = por %p85, %p86
    %p88 = scmp.ne.s32.totalorder %s80, %s82
    %p89 = scmp.eq.s32.totalorder %s16, 1
    %p90 = por %p88, %p89
    %p91 = scmp.ne.s32.totalorder %s82, %s83
    %p92 = scmp.eq.s32.totalorder %s16, 0
    %p93 = por %p91, %p92
    %p94 = scmp.ne.s32.totalorder %s82, %s83
    %p95 = scmp.eq.s32.totalorder %s17, 1
    %p96 = por %p94, %p95
    %p98 = scmp.ne.s32.totalorder %s83, %s97
    %p99 = scmp.eq.s32.totalorder %s17, 0
    %p100 = por %p98, %p99
    %s101 = ssub.s32 %s18, %s30
    %s102 = ssub.s32 %s19, %s26
    %s103 = sor.u32 %s101, %s102
    %p104 = scmp.eq.s32.totalorder %s103, 0
    %s106 = sadd.s32 %s105, 1
    %s107 = scalar_select %p104, %s105, %s106
    %p110 = pneg %p104
    %p111 = scmp.eq.s32.totalorder %s11, 1
    %p112 = por %p110, %p111
    %p113 = scmp.ne.s32.totalorder %s105, %s108
    %p114 = scmp.eq.s32.totalorder %s11, 0
    %p115 = por %p113, %p114
    %p116 = scmp.ne.s32.totalorder %s105, %s108
    %p117 = scmp.eq.s32.totalorder %s16, 1
    %p118 = por %p116, %p117
    %p119 = scmp.ne.s32.totalorder %s108, %s109
    %p120 = scmp.eq.s32.totalorder %s16, 0
    %p121 = por %p119, %p120
    %p122 = scmp.ne.s32.totalorder %s108, %s109
    %p123 = scmp.eq.s32.totalorder %s17, 1
    %p124 = por %p122, %p123
    %p126 = scmp.ne.s32.totalorder %s109, %s125
    %p127 = scmp.eq.s32.totalorder %s17, 0
    %p128 = por %p126, %p127
    %s129 = ssub.s32 %s18, %s30
    %s130 = ssub.s32 %s19, %s26
    %s131 = sor.u32 %s129, %s130
    %p132 = scmp.eq.s32.totalorder %s131, 0
    %s134 = sadd.s32 %s133, 1
    %s135 = scalar_select %p132, %s133, %s134
    %p138 = pneg %p132
    %p139 = scmp.eq.s32.totalorder %s11, 1
    %p140 = por %p138, %p139
    %p141 = scmp.ne.s32.totalorder %s133, %s136
    %p142 = scmp.eq.s32.totalorder %s11, 0
    %p143 = por %p141, %p142
    %p144 = scmp.ne.s32.totalorder %s133, %s136
    %p145 = scmp.eq.s32.totalorder %s16, 1
    %p146 = por %p144, %p145
    %p147 = scmp.ne.s32.totalorder %s136, %s137
    %p148 = scmp.eq.s32.totalorder %s16, 0
    %p149 = por %p147, %p148
    %p150 = scmp.ne.s32.totalorder %s136, %s137
    %p151 = scmp.eq.s32.totalorder %s17, 1
    %p152 = por %p150, %p151
    %p154 = scmp.ne.s32.totalorder %s137, %s153
    %p155 = scmp.eq.s32.totalorder %s17, 0
    %p156 = por %p154, %p155
    %p157 = scmp.le.s32.totalorder 1, %s11
    %p158 = scmp.lt.s32.totalorder %s11, 3
    %p159 = pnand %p157, %p158
    %p160 = pneg %p159
    // Predicated region
    $region9: #{dgcnn_origin_forward.12} parent=5 // pred_check
      _
    $region10: #{dgcnn_origin_forward.12} parent=5 // pred_check_branch
      %162 = sbr.rel (%p159) target = $region12
    $region11: #{dgcnn_origin_forward.12} parent=5 // pred_region
      %s163 = ssub.s32 %s11, 1
      // Predicated region
      $region13: #{dgcnn_origin_forward.12} parent=11 // pred_check
        %p164 = pneg %p72
      $region14: #{dgcnn_origin_forward.12} parent=11 // pred_check_branch
        %166 = sbr.rel (%p164) target = $region16
      $region15: #{dgcnn_origin_forward.12} parent=11 // pred_region
        _
      $region16: #{dgcnn_origin_forward.12} parent=11 // pred_fallthru
        _
      // Predicated region
      $region17: #{dgcnn_origin_forward.12} parent=11 // pred_check
        %p167 = pneg %p93
      $region18: #{dgcnn_origin_forward.12} parent=11 // pred_check_branch
        %169 = sbr.rel (%p167) target = $region20
      $region19: #{dgcnn_origin_forward.12} parent=11 // pred_region
        _
      $region20: #{dgcnn_origin_forward.12} parent=11 // pred_fallthru
        _
    $region12: #{dgcnn_origin_forward.12} parent=5 // pred_fallthru
      _
    %p170 = scmp.lt.s32.totalorder %s11, 2
    // Predicated region
    $region21: #{dgcnn_origin_forward.12} parent=5 // pred_check
      %p171 = pneg %p170
    $region22: #{dgcnn_origin_forward.12} parent=5 // pred_check_branch
      %173 = sbr.rel (%p171) target = $region24
    $region23: #{dgcnn_origin_forward.12} parent=5 // pred_region
      // Predicated region
      $region25: #{dgcnn_origin_forward.12} parent=23 // pred_check
        %p174 = pneg %p45
      $region26: #{dgcnn_origin_forward.12} parent=23 // pred_check_branch
        %176 = sbr.rel (%p174) target = $region28
      $region27: #{dgcnn_origin_forward.12} parent=23 // pred_region
        %s177 = smul.u32 2, %s19
        %p178 = scmp.lt.s32.totalorder %s18, 1
        %s179 = scalar_select %p178, %s18, 1
        %p180 = scmp.lt.s32.totalorder %s177, 1
        %s181 = scalar_select %p180, %s177, 1
        %s182 = smul.addr %s179, 2
        %s183 = sadd.s32 %s181, %s182
        %s184 = smul.addr %s183, 4
        %s185 = scalar_lea.vmem %s0, %s184
        %s186 = smul.u32 2, %s19
      $region28: #{dgcnn_origin_forward.12} parent=23 // pred_fallthru
        _
    $region24: #{dgcnn_origin_forward.12} parent=5 // pred_fallthru
      _
    %p187 = scmp.le.s32.totalorder 1, %s11
    %p188 = scmp.lt.s32.totalorder %s11, 3
    %p189 = pnand %p187, %p188
    %p190 = pneg %p189
    // Predicated region
    $region29: #{dgcnn_origin_forward.12} parent=5 // pred_check
      _
    $region30: #{dgcnn_origin_forward.12} parent=5 // pred_check_branch
      %192 = sbr.rel (%p189) target = $region32
    $region31: #{dgcnn_origin_forward.12} parent=5 // pred_region
      %s193 = ssub.s32 %s11, 1
      %s194 = smul.u32 2, %s21
      %p195 = scmp.lt.s32.totalorder %s20, 1
      %s196 = scalar_select %p195, %s20, 1
      %p197 = scmp.lt.s32.totalorder %s194, 1
      %s198 = scalar_select %p197, %s194, 1
      %s199 = smul.addr %s196, 2
      %s200 = sadd.s32 %s198, %s199
      %s201 = smul.addr %s200, 4
      %s202 = scalar_lea.vmem %s0, %s201
      %p203 = pneg %p51
      %p204 = pneg %p48
      %p205 = pneg %p72
      %p206 = pneg %p69
      %p207 = pneg %p93
      %p208 = pneg %p90
      %p209 = pneg %p121
      %p210 = pneg %p118
      %s211 = smul.u32 2, %s21
      %p212 = scmp.lt.s32.totalorder %s20, 1
      %s213 = scalar_select %p212, %s20, 1
      %p214 = scmp.lt.s32.totalorder %s211, 1
      %s215 = scalar_select %p214, %s211, 1
      %s216 = smul.addr %s213, 2
      %s217 = sadd.s32 %s215, %s216
      %s218 = smul.addr %s217, 8
      %s219 = scalar_lea.vmem %s3, %s218
      %p220 = pneg %p149
      %p221 = pneg %p146
      %s222 = smul.u32 2, %s21
      %p223 = scmp.lt.s32.totalorder %s20, 1
      %s224 = scalar_select %p223, %s20, 1
      %p225 = scmp.lt.s32.totalorder %s222, 1
      %s226 = scalar_select %p225, %s222, 1
      %s227 = smul.addr %s224, 2
      %s228 = sadd.s32 %s226, %s227
      %s229 = smul.addr %s228, 8
      %s230 = scalar_lea.vmem %s4, %s229
      %s231 = smul.u32 2, %s21
      %p232 = scmp.lt.s32.totalorder %s20, 1
      %s233 = scalar_select %p232, %s20, 1
      %p234 = scmp.lt.s32.totalorder %s231, 1
      %s235 = scalar_select %p234, %s231, 1
      %s236 = smul.addr %s233, 2
      %s237 = sadd.s32 %s235, %s236
      %s238 = smul.addr %s237, 4
      %s239 = scalar_lea.vmem %s0, %s238
      %s240 = smul.u32 2, %s21
      %s241 = smul.u32 2, %s21
      %p242 = scmp.lt.s32.totalorder %s20, 1
      %s243 = scalar_select %p242, %s20, 1
      %p244 = scmp.lt.s32.totalorder %s241, 1
      %s245 = scalar_select %p244, %s241, 1
      %s246 = smul.addr %s243, 2
      %s247 = sadd.s32 %s245, %s246
      %s248 = smul.addr %s247, 8
      %s249 = scalar_lea.vmem %s3, %s248
      %s250 = smul.u32 2, %s21
      %s251 = smul.u32 2, %s21
      %p252 = scmp.lt.s32.totalorder %s20, 1
      %s253 = scalar_select %p252, %s20, 1
      %p254 = scmp.lt.s32.totalorder %s251, 1
      %s255 = scalar_select %p254, %s251, 1
      %s256 = smul.addr %s253, 2
      %s257 = sadd.s32 %s255, %s256
      %s258 = smul.addr %s257, 8
      %s259 = scalar_lea.vmem %s4, %s258
      %s260 = smul.u32 2, %s21
      %v262 = vld [vmem:[%s239] sm:$0xf]
      %v263 = vld [vmem:[%s239 + $0x4] sm:$0xf]
      %v264 = vld [vmem:[%s1] sm:$0xf]
      %v267 = vunpack.c.l.b16 %v262
      %v268 = vunpack.c.l.b16 %v263
      %v269 = vpack.c.b16 %v268, %v267
      %vm270 = vcmask 64512
      %v272 = vsel %vm270, %v269, 0
      %vm274 = vcmask 1043456
      %v276 = vsel %vm274, %v264, 0
      %278 = vmatprep.subr.bf16.mxu0 0
      %279 = vmatpush1.bf16.msra.mxu0 0
      %280 = vmatprep.subr.bf16.mxu0 0
      %281 = vmatpush1.bf16.msra.mxu0 0
      %282 = vmatprep.subr.bf16.mxu0 0
      %283 = vmatpush1.bf16.msra.mxu0 0
      %284 = vmatprep.subr.bf16.mxu0 0
      %285 = vmatpush1.bf16.msra.mxu0 0
      %286 = vmatprep.subr.bf16.mxu0 0
      %287 = vmatpush1.bf16.msra.mxu0 0
      %288 = vmatprep.subr.bf16.mxu0 0
      %289 = vmatpush1.bf16.msra.mxu0 0
      %290 = vmatprep.subr.bf16.mxu0 0
      %291 = vmatpush1.bf16.msra.mxu0 0
      %292 = vmatprep.subr.bf16.mxu0 0
      %293 = vmatpush1.bf16.msra.mxu0 %v276
      %294 = vmatprep.subr.bf16.mxu0 0
      %295 = vmatpush2.bf16.msra.mxu0 0
      %296 = vmatprep.subr.bf16.mxu0 0
      %297 = vmatpush2.bf16.msra.mxu0 0
      %298 = vmatprep.subr.bf16.mxu0 0
      %299 = vmatpush2.bf16.msra.mxu0 0
      %300 = vmatprep.subr.bf16.mxu0 0
      %301 = vmatpush2.bf16.msra.mxu0 0
      %302 = vmatprep.subr.bf16.mxu0 0
      %303 = vmatpush2.bf16.msra.mxu0 0
      %304 = vmatprep.subr.bf16.mxu0 0
      %305 = vmatpush2.bf16.msra.mxu0 0
      %306 = vmatprep.subr.bf16.mxu0 0
      %307 = vmatpush2.bf16.msra.mxu0 0
      %308 = vmatprep.subr.bf16.mxu0 0
      %309 = vmatpush2.bf16.msra.mxu0 0
      %310 = vmatprep.mubr.bf16.mxu0 0
      %311 = vmatmul.mubr.bf16.gmra.mxu0 %v272
      %v312 = vpop.f32.mrf.mxu0
      %v313 = vadd.f32 0.0, %v312
      %v314 = vpop.f32.mrf.mxu0
      %v315 = vpop.f32.mrf.mxu0
      %v316 = vadd.f32 0.0, %v315
      %v317 = vpop.f32.mrf.mxu0
      %318 = vdwg.mxu0
      %vm319 = vcmask 130048
      %320 = vst.msk [vmem:[%s249] sm:$0xff] %vm319, %v313
      %321 = vst.msk [vmem:[%s249 + $0x8] sm:$0xff] %vm319, %v316
      %v322 = vld [vmem:[%s2] sm:$0xf]
      %v324 = vsel %vm274, %v322, 0
      %326 = vmatprep.subr.bf16.mxu0 0
      %327 = vmatpush1.bf16.msra.mxu0 0
      %328 = vmatprep.subr.bf16.mxu0 0
      %329 = vmatpush1.bf16.msra.mxu0 0
      %330 = vmatprep.subr.bf16.mxu0 0
      %331 = vmatpush1.bf16.msra.mxu0 0
      %332 = vmatprep.subr.bf16.mxu0 0
      %333 = vmatpush1.bf16.msra.mxu0 0
      %334 = vmatprep.subr.bf16.mxu0 0
      %335 = vmatpush1.bf16.msra.mxu0 0
      %336 = vmatprep.subr.bf16.mxu0 0
      %337 = vmatpush1.bf16.msra.mxu0 0
      %338 = vmatprep.subr.bf16.mxu0 0
      %339 = vmatpush1.bf16.msra.mxu0 0
      %340 = vmatprep.subr.bf16.mxu0 0
      %341 = vmatpush1.bf16.msra.mxu0 %v324
      %342 = vmatprep.subr.bf16.mxu0 0
      %343 = vmatpush2.bf16.msra.mxu0 0
      %344 = vmatprep.subr.bf16.mxu0 0
      %345 = vmatpush2.bf16.msra.mxu0 0
      %346 = vmatprep.subr.bf16.mxu0 0
      %347 = vmatpush2.bf16.msra.mxu0 0
      %348 = vmatprep.subr.bf16.mxu0 0
      %349 = vmatpush2.bf16.msra.mxu0 0
      %350 = vmatprep.subr.bf16.mxu0 0
      %351 = vmatpush2.bf16.msra.mxu0 0
      %352 = vmatprep.subr.bf16.mxu0 0
      %353 = vmatpush2.bf16.msra.mxu0 0
      %354 = vmatprep.subr.bf16.mxu0 0
      %355 = vmatpush2.bf16.msra.mxu0 0
      %356 = vmatprep.subr.bf16.mxu0 0
      %357 = vmatpush2.bf16.msra.mxu0 0
      %358 = vmatprep.mubr.bf16.mxu0 0
      %359 = vmatmul.mubr.bf16.gmra.mxu0 %v272
      %v360 = vpop.f32.mrf.mxu0
      %v361 = vadd.f32 0.0, %v360
      %v362 = vpop.f32.mrf.mxu0
      %v363 = vpop.f32.mrf.mxu0
      %v364 = vadd.f32 0.0, %v363
      %v365 = vpop.f32.mrf.mxu0
      %366 = vdwg.mxu0
      %367 = vst.msk [vmem:[%s259] sm:$0xff] %vm319, %v361
      %368 = vst.msk [vmem:[%s259 + $0x8] sm:$0xff] %vm319, %v364
      %s369 = smul.u32 2, %s21
      %p370 = scmp.lt.s32.totalorder %s20, 1
      %s371 = scalar_select %p370, %s20, 1
      %p372 = scmp.lt.s32.totalorder %s369, 1
      %s373 = scalar_select %p372, %s369, 1
      %s374 = smul.addr %s371, 2
      %s375 = sadd.s32 %s373, %s374
      %s376 = smul.addr %s375, 8
      %s377 = scalar_lea.vmem %s3, %s376
      %s378 = smul.u32 2, %s21
      %p379 = scmp.lt.s32.totalorder %s20, 1
      %s380 = scalar_select %p379, %s20, 1
      %p381 = scmp.lt.s32.totalorder %s378, 1
      %s382 = scalar_select %p381, %s378, 1
      %s383 = smul.addr %s380, 2
      %s384 = sadd.s32 %s382, %s383
      %s385 = smul.addr %s384, 8
      %s386 = scalar_lea.vmem %s4, %s385
      // Predicated region
      $region33: #{dgcnn_origin_forward.12} parent=31 // pred_check
        %p387 = pneg %p118
      $region34: #{dgcnn_origin_forward.12} parent=31 // pred_check_branch
        %389 = sbr.rel (%p387) target = $region36
      $region35: #{dgcnn_origin_forward.12} parent=31 // pred_region
        %s390 = smul.u32 2, %s21
      $region36: #{dgcnn_origin_forward.12} parent=31 // pred_fallthru
        _
      // Predicated region
      $region37: #{dgcnn_origin_forward.12} parent=31 // pred_check
        %p391 = pneg %p146
      $region38: #{dgcnn_origin_forward.12} parent=31 // pred_check_branch
        %393 = sbr.rel (%p391) target = $region40
      $region39: #{dgcnn_origin_forward.12} parent=31 // pred_region
        %s394 = smul.u32 2, %s21
      $region40: #{dgcnn_origin_forward.12} parent=31 // pred_fallthru
        _
    $region32: #{dgcnn_origin_forward.12} parent=5 // pred_fallthru
      _
    %p395 = scmp.le.s32.totalorder 2, %s11
    // Predicated region
    $region41: #{dgcnn_origin_forward.12} parent=5 // pred_check
      %p396 = pneg %p395
    $region42: #{dgcnn_origin_forward.12} parent=5 // pred_check_branch
      %398 = sbr.rel (%p396) target = $region44
    $region43: #{dgcnn_origin_forward.12} parent=5 // pred_region
      %s399 = ssub.s32 %s11, 2
      // Predicated region
      $region45: #{dgcnn_origin_forward.12} parent=43 // pred_check
        %p400 = pneg %p124
      $region46: #{dgcnn_origin_forward.12} parent=43 // pred_check_branch
        %402 = sbr.rel (%p400) target = $region48
      $region47: #{dgcnn_origin_forward.12} parent=43 // pred_region
        %s403 = smul.u32 2, %s23
        %p404 = scmp.lt.s32.totalorder %s22, 1
        %s405 = scalar_select %p404, %s22, 1
        %p406 = scmp.lt.s32.totalorder %s403, 1
        %s407 = scalar_select %p406, %s403, 1
        %s408 = smul.addr %s405, 2
        %s409 = sadd.s32 %s407, %s408
        %s410 = smul.addr %s409, 8
        %s411 = scalar_lea.vmem %s3, %s410
      $region48: #{dgcnn_origin_forward.12} parent=43 // pred_fallthru
        _
      // Predicated region
      $region49: #{dgcnn_origin_forward.12} parent=43 // pred_check
        %p412 = pneg %p152
      $region50: #{dgcnn_origin_forward.12} parent=43 // pred_check_branch
        %414 = sbr.rel (%p412) target = $region52
      $region51: #{dgcnn_origin_forward.12} parent=43 // pred_region
        %s415 = smul.u32 2, %s23
        %p416 = scmp.lt.s32.totalorder %s22, 1
        %s417 = scalar_select %p416, %s22, 1
        %p418 = scmp.lt.s32.totalorder %s415, 1
        %s419 = scalar_select %p418, %s415, 1
        %s420 = smul.addr %s417, 2
        %s421 = sadd.s32 %s419, %s420
        %s422 = smul.addr %s421, 8
        %s423 = scalar_lea.vmem %s4, %s422
      $region52: #{dgcnn_origin_forward.12} parent=43 // pred_fallthru
        _
    $region44: #{dgcnn_origin_forward.12} parent=5 // pred_fallthru
      _
  $region6: #{dgcnn_origin_forward.12} parent=0 // loop_footer
    %s15 = sadd.s32 1, %s11
  $region7: #{dgcnn_origin_forward.12} parent=0 // loop_footer_branch
    %10 = sbr.rel target = $region3
  $region8: #{dgcnn_origin_forward.12} parent=0 // loop_exit
    _

// kernel: dgcnn_origin_forward.14
$region0: #{dgcnn_origin_forward.14}
  #allocation0 [shape = 'u32[]', space=smem, size = 0x4, offset = 0x4, fixed_abs, tag = 'smem constant byte address 0x4 - core index']
  #allocation1 [shape = 'u32[144,128]{1,0:T(1,128)}', space=vmem, size = 0x12000, scoped, tag = 'internal scratch']
  %s0 = inlined_call_operand.vmem [shape: f32[2,16,16], index: 0, kind: input, shape index: {}]
  %s1 = inlined_call_operand.vmem [shape: f32[2,16,16], index: 1, kind: input, shape index: {}]
  %s2 = inlined_call_operand.vmem [shape: f32[1,16], index: 2, kind: input, shape index: {}]
  %s3 = inlined_call_operand.vmem [shape: f32[1,16], index: 3, kind: input, shape index: {}]
  %s4 = inlined_call_operand.vmem [shape: f32[2,16,16], index: 4, kind: output, shape index: {}]
  %s5 = sld [smem:[#allocation0]]
  $region49: #{dgcnn_origin_forward.14} parent=0
    _
  %s7 = ssub.s32 1, %s5
  %s8 = scalar_select 0, %s7, %s5
  loop: start=0, step=1, limit=4
  $region2: #{dgcnn_origin_forward.14} parent=0 // loop_pre_header
    _
  $region3: #{dgcnn_origin_forward.14} parent=0 // loop_header
    %s10 = sphi 0, %s14
    %p11 = scmp.ge.s32.totalorder %s10, 4
    %s17 = sphi 0, %s29
    %s18 = sphi 0, %s25
    %s19 = sphi 0, %s17
    %s20 = sphi 0, %s18
    %s21 = sphi 0, %s19
    %s22 = sphi 0, %s20
    %s34 = sphi 0, %s36
    %s37 = sphi 0, %s34
    %s38 = sphi 0, %s37
    %s54 = sphi 0, %s38
    %s62 = sphi 0, %s64
    %s65 = sphi 0, %s62
    %s66 = sphi 0, %s65
    %s82 = sphi 0, %s66
    %s86 = sphi 0, %s86
    %s88 = sphi 0, %s86
    %s89 = sphi 0, %s88
    %s103 = sphi 0, %s89
    %s107 = sphi 0, %s107
    %s109 = sphi 0, %s107
    %s110 = sphi 0, %s109
    %s124 = sphi 0, %s110
    %s132 = sphi 0, %s134
    %s135 = sphi 0, %s132
    %s136 = sphi 0, %s135
    %s152 = sphi 0, %s136
  $region4: #{dgcnn_origin_forward.14} parent=0 // loop_header_branch
    %13 = sbr.rel (%p11) target = $region8
  $region5: #{dgcnn_origin_forward.14} parent=0 // loop_body
    %s15 = ssub.s32 %s10, 1
    %s16 = ssub.s32 %s10, 2
    %s23 = sadd.s32 1, %s18
    %p24 = scmp.ge.s32.totalorder %s23, 1
    %s25 = scalar_select %p24, 0, %s23
    %s26 = sadd.s32 1, %s17
    %s27 = scalar_select %p24, %s26, %s17
    %p28 = scmp.ge.s32.totalorder %s27, 2
    %s29 = scalar_select %p28, 0, %s27
    %s30 = ssub.s32 %s17, %s29
    %s31 = ssub.s32 %s18, %s25
    %s32 = sor.u32 %s30, %s31
    %p33 = scmp.eq.s32.totalorder %s32, 0
    %s35 = sadd.s32 %s34, 1
    %s36 = scalar_select %p33, %s34, %s35
    %p39 = pneg %p33
    %p40 = scmp.eq.s32.totalorder %s10, 1
    %p41 = por %p39, %p40
    %p42 = scmp.ne.s32.totalorder %s34, %s37
    %p43 = scmp.eq.s32.totalorder %s10, 0
    %p44 = por %p42, %p43
    %p45 = scmp.ne.s32.totalorder %s34, %s37
    %p46 = scmp.eq.s32.totalorder %s15, 1
    %p47 = por %p45, %p46
    %p48 = scmp.ne.s32.totalorder %s37, %s38
    %p49 = scmp.eq.s32.totalorder %s15, 0
    %p50 = por %p48, %p49
    %p51 = scmp.ne.s32.totalorder %s37, %s38
    %p52 = scmp.eq.s32.totalorder %s16, 1
    %p53 = por %p51, %p52
    %p55 = scmp.ne.s32.totalorder %s38, %s54
    %p56 = scmp.eq.s32.totalorder %s16, 0
    %p57 = por %p55, %p56
    %s58 = ssub.s32 %s17, %s29
    %s59 = ssub.s32 %s18, %s25
    %s60 = sor.u32 %s58, %s59
    %p61 = scmp.eq.s32.totalorder %s60, 0
    %s63 = sadd.s32 %s62, 1
    %s64 = scalar_select %p61, %s62, %s63
    %p67 = pneg %p61
    %p68 = scmp.eq.s32.totalorder %s10, 1
    %p69 = por %p67, %p68
    %p70 = scmp.ne.s32.totalorder %s62, %s65
    %p71 = scmp.eq.s32.totalorder %s10, 0
    %p72 = por %p70, %p71
    %p73 = scmp.ne.s32.totalorder %s62, %s65
    %p74 = scmp.eq.s32.totalorder %s15, 1
    %p75 = por %p73, %p74
    %p76 = scmp.ne.s32.totalorder %s65, %s66
    %p77 = scmp.eq.s32.totalorder %s15, 0
    %p78 = por %p76, %p77
    %p79 = scmp.ne.s32.totalorder %s65, %s66
    %p80 = scmp.eq.s32.totalorder %s16, 1
    %p81 = por %p79, %p80
    %p83 = scmp.ne.s32.totalorder %s66, %s82
    %p84 = scmp.eq.s32.totalorder %s16, 0
    %p85 = por %p83, %p84
    %s87 = sadd.s32 %s86, 1
    %p90 = scmp.eq.s32.totalorder %s10, 1
    %p91 = scmp.ne.s32.totalorder %s86, %s88
    %p92 = scmp.eq.s32.totalorder %s10, 0
    %p93 = por %p91, %p92
    %p94 = scmp.ne.s32.totalorder %s86, %s88
    %p95 = scmp.eq.s32.totalorder %s15, 1
    %p96 = por %p94, %p95
    %p97 = scmp.ne.s32.totalorder %s88, %s89
    %p98 = scmp.eq.s32.totalorder %s15, 0
    %p99 = por %p97, %p98
    %p100 = scmp.ne.s32.totalorder %s88, %s89
    %p101 = scmp.eq.s32.totalorder %s16, 1
    %p102 = por %p100, %p101
    %p104 = scmp.ne.s32.totalorder %s89, %s103
    %p105 = scmp.eq.s32.totalorder %s16, 0
    %p106 = por %p104, %p105
    %s108 = sadd.s32 %s107, 1
    %p111 = scmp.eq.s32.totalorder %s10, 1
    %p112 = scmp.ne.s32.totalorder %s107, %s109
    %p113 = scmp.eq.s32.totalorder %s10, 0
    %p114 = por %p112, %p113
    %p115 = scmp.ne.s32.totalorder %s107, %s109
    %p116 = scmp.eq.s32.totalorder %s15, 1
    %p117 = por %p115, %p116
    %p118 = scmp.ne.s32.totalorder %s109, %s110
    %p119 = scmp.eq.s32.totalorder %s15, 0
    %p120 = por %p118, %p119
    %p121 = scmp.ne.s32.totalorder %s109, %s110
    %p122 = scmp.eq.s32.totalorder %s16, 1
    %p123 = por %p121, %p122
    %p125 = scmp.ne.s32.totalorder %s110, %s124
    %p126 = scmp.eq.s32.totalorder %s16, 0
    %p127 = por %p125, %p126
    %s128 = ssub.s32 %s17, %s29
    %s129 = ssub.s32 %s18, %s25
    %s130 = sor.u32 %s128, %s129
    %p131 = scmp.eq.s32.totalorder %s130, 0
    %s133 = sadd.s32 %s132, 1
    %s134 = scalar_select %p131, %s132, %s133
    %p137 = pneg %p131
    %p138 = scmp.eq.s32.totalorder %s10, 1
    %p139 = por %p137, %p138
    %p140 = scmp.ne.s32.totalorder %s132, %s135
    %p141 = scmp.eq.s32.totalorder %s10, 0
    %p142 = por %p140, %p141
    %p143 = scmp.ne.s32.totalorder %s132, %s135
    %p144 = scmp.eq.s32.totalorder %s15, 1
    %p145 = por %p143, %p144
    %p146 = scmp.ne.s32.totalorder %s135, %s136
    %p147 = scmp.eq.s32.totalorder %s15, 0
    %p148 = por %p146, %p147
    %p149 = scmp.ne.s32.totalorder %s135, %s136
    %p150 = scmp.eq.s32.totalorder %s16, 1
    %p151 = por %p149, %p150
    %p153 = scmp.ne.s32.totalorder %s136, %s152
    %p154 = scmp.eq.s32.totalorder %s16, 0
    %p155 = por %p153, %p154
    %p156 = scmp.le.s32.totalorder 1, %s10
    %p157 = scmp.lt.s32.totalorder %s10, 3
    %p158 = pnand %p156, %p157
    %p159 = pneg %p158
    // Predicated region
    $region9: #{dgcnn_origin_forward.14} parent=5 // pred_check
      _
    $region10: #{dgcnn_origin_forward.14} parent=5 // pred_check_branch
      %161 = sbr.rel (%p158) target = $region12
    $region11: #{dgcnn_origin_forward.14} parent=5 // pred_region
      %s162 = ssub.s32 %s10, 1
      // Predicated region
      $region13: #{dgcnn_origin_forward.14} parent=11 // pred_check
        %p163 = pneg %p99
      $region14: #{dgcnn_origin_forward.14} parent=11 // pred_check_branch
        %165 = sbr.rel (%p163) target = $region16
      $region15: #{dgcnn_origin_forward.14} parent=11 // pred_region
        _
      $region16: #{dgcnn_origin_forward.14} parent=11 // pred_fallthru
        _
      // Predicated region
      $region17: #{dgcnn_origin_forward.14} parent=11 // pred_check
        %p166 = pneg %p120
      $region18: #{dgcnn_origin_forward.14} parent=11 // pred_check_branch
        %168 = sbr.rel (%p166) target = $region20
      $region19: #{dgcnn_origin_forward.14} parent=11 // pred_region
        _
      $region20: #{dgcnn_origin_forward.14} parent=11 // pred_fallthru
        _
    $region12: #{dgcnn_origin_forward.14} parent=5 // pred_fallthru
      _
    %p169 = scmp.lt.s32.totalorder %s10, 2
    // Predicated region
    $region21: #{dgcnn_origin_forward.14} parent=5 // pred_check
      %p170 = pneg %p169
    $region22: #{dgcnn_origin_forward.14} parent=5 // pred_check_branch
      %172 = sbr.rel (%p170) target = $region24
    $region23: #{dgcnn_origin_forward.14} parent=5 // pred_region
      // Predicated region
      $region25: #{dgcnn_origin_forward.14} parent=23 // pred_check
        %p173 = pneg %p44
      $region26: #{dgcnn_origin_forward.14} parent=23 // pred_check_branch
        %175 = sbr.rel (%p173) target = $region28
      $region27: #{dgcnn_origin_forward.14} parent=23 // pred_region
        %s176 = smul.u32 2, %s18
        %p177 = scmp.lt.s32.totalorder %s17, 1
        %s178 = scalar_select %p177, %s17, 1
        %p179 = scmp.lt.s32.totalorder %s176, 1
        %s180 = scalar_select %p179, %s176, 1
        %s181 = smul.addr %s178, 2
        %s182 = sadd.s32 %s180, %s181
        %s183 = smul.addr %s182, 8
        %s184 = scalar_lea.vmem %s0, %s183
        %s185 = smul.u32 2, %s18
      $region28: #{dgcnn_origin_forward.14} parent=23 // pred_fallthru
        _
      // Predicated region
      $region29: #{dgcnn_origin_forward.14} parent=23 // pred_check
        %p186 = pneg %p72
      $region30: #{dgcnn_origin_forward.14} parent=23 // pred_check_branch
        %188 = sbr.rel (%p186) target = $region32
      $region31: #{dgcnn_origin_forward.14} parent=23 // pred_region
        %s189 = smul.u32 2, %s18
        %p190 = scmp.lt.s32.totalorder %s17, 1
        %s191 = scalar_select %p190, %s17, 1
        %p192 = scmp.lt.s32.totalorder %s189, 1
        %s193 = scalar_select %p192, %s189, 1
        %s194 = smul.addr %s191, 2
        %s195 = sadd.s32 %s193, %s194
        %s196 = smul.addr %s195, 8
        %s197 = scalar_lea.vmem %s1, %s196
        %s198 = smul.u32 2, %s18
      $region32: #{dgcnn_origin_forward.14} parent=23 // pred_fallthru
        _
    $region24: #{dgcnn_origin_forward.14} parent=5 // pred_fallthru
      _
    %p199 = scmp.le.s32.totalorder 1, %s10
    %p200 = scmp.lt.s32.totalorder %s10, 3
    %p201 = pnand %p199, %p200
    %p202 = pneg %p201
    // Predicated region
    $region33: #{dgcnn_origin_forward.14} parent=5 // pred_check
      _
    $region34: #{dgcnn_origin_forward.14} parent=5 // pred_check_branch
      %204 = sbr.rel (%p201) target = $region36
    $region35: #{dgcnn_origin_forward.14} parent=5 // pred_region
      %s205 = ssub.s32 %s10, 1
      %s206 = smul.u32 2, %s20
      %p207 = scmp.lt.s32.totalorder %s19, 1
      %s208 = scalar_select %p207, %s19, 1
      %p209 = scmp.lt.s32.totalorder %s206, 1
      %s210 = scalar_select %p209, %s206, 1
      %s211 = smul.addr %s208, 2
      %s212 = sadd.s32 %s210, %s211
      %s213 = smul.addr %s212, 8
      %s214 = scalar_lea.vmem %s0, %s213
      %p215 = pneg %p50
      %p216 = pneg %p47
      %s217 = smul.u32 2, %s20
      %p218 = scmp.lt.s32.totalorder %s19, 1
      %s219 = scalar_select %p218, %s19, 1
      %p220 = scmp.lt.s32.totalorder %s217, 1
      %s221 = scalar_select %p220, %s217, 1
      %s222 = smul.addr %s219, 2
      %s223 = sadd.s32 %s221, %s222
      %s224 = smul.addr %s223, 8
      %s225 = scalar_lea.vmem %s1, %s224
      %p226 = pneg %p78
      %p227 = pneg %p75
      %p228 = pneg %p99
      %p229 = pneg %p96
      %p230 = pneg %p120
      %p231 = pneg %p117
      %p232 = pneg %p148
      %p233 = pneg %p145
      %s234 = smul.u32 2, %s20
      %p235 = scmp.lt.s32.totalorder %s19, 1
      %s236 = scalar_select %p235, %s19, 1
      %p237 = scmp.lt.s32.totalorder %s234, 1
      %s238 = scalar_select %p237, %s234, 1
      %s239 = smul.addr %s236, 2
      %s240 = sadd.s32 %s238, %s239
      %s241 = smul.addr %s240, 8
      %s242 = scalar_lea.vmem %s4, %s241
      %s243 = smul.u32 2, %s20
      %p244 = scmp.lt.s32.totalorder %s19, 1
      %s245 = scalar_select %p244, %s19, 1
      %p246 = scmp.lt.s32.totalorder %s243, 1
      %s247 = scalar_select %p246, %s243, 1
      %s248 = smul.addr %s245, 2
      %s249 = sadd.s32 %s247, %s248
      %s250 = smul.addr %s249, 8
      %s251 = scalar_lea.vmem %s0, %s250
      %s252 = smul.u32 2, %s20
      %s253 = smul.u32 2, %s20
      %p254 = scmp.lt.s32.totalorder %s19, 1
      %s255 = scalar_select %p254, %s19, 1
      %p256 = scmp.lt.s32.totalorder %s253, 1
      %s257 = scalar_select %p256, %s253, 1
      %s258 = smul.addr %s255, 2
      %s259 = sadd.s32 %s257, %s258
      %s260 = smul.addr %s259, 8
      %s261 = scalar_lea.vmem %s1, %s260
      %s262 = smul.u32 2, %s20
      %s263 = smul.u32 2, %s20
      %p264 = scmp.lt.s32.totalorder %s19, 1
      %s265 = scalar_select %p264, %s19, 1
      %p266 = scmp.lt.s32.totalorder %s263, 1
      %s267 = scalar_select %p266, %s263, 1
      %s268 = smul.addr %s265, 2
      %s269 = sadd.s32 %s267, %s268
      %s270 = smul.addr %s269, 8
      %s271 = scalar_lea.vmem %s4, %s270
      %s272 = smul.u32 2, %s20
      %v273 = vld [vmem:[%s2] sm:$0x1]
      %v274 = vld [vmem:[%s3] sm:$0x1]
      %v275 = vld [vmem:[%s251] sm:$0xff]
      %v276 = vld [vmem:[%s251 + $0x8] sm:$0xff]
      %v277 = vld [vmem:[%s261] sm:$0xff]
      %v278 = vld [vmem:[%s261 + $0x8] sm:$0xff]
      %v279 = vadd.f32 %v275, %v277
      %v280 = vadd.f32 %v276, %v278
      %v282 = vlaneseq
      %v283 = vshrl.u32 %v282, 7
      %v284 = vsub.s32 0, %v283
      %v285 = vrot.slane %v273, %v284
      %v287 = vmul.f32 %v285, %v279
      %v288 = vmul.f32 %v285, %v280
      %v290 = vlaneseq
      %v291 = vshrl.u32 %v290, 7
      %v292 = vsub.s32 0, %v291
      %v293 = vrot.slane %v274, %v292
      %v295 = vadd.f32 %v287, %v293
      %v296 = vadd.f32 %v288, %v293
      %vm297 = vcmp.ge.f32.partialorder %v295, 0.0
      %vm298 = vcmp.ge.f32.partialorder %v296, 0.0
      %v299 = vmul.f32 %v295, 0.2
      %v300 = vmul.f32 %v296, 0.2
      %v301 = vsel %vm297, %v295, %v299
      %v302 = vsel %vm298, %v296, %v300
      %vm303 = vcmask 130048
      %304 = vst.msk [vmem:[%s271] sm:$0xff] %vm303, %v301
      %305 = vst.msk [vmem:[%s271 + $0x8] sm:$0xff] %vm303, %v302
      %s306 = smul.u32 2, %s20
      %p307 = scmp.lt.s32.totalorder %s19, 1
      %s308 = scalar_select %p307, %s19, 1
      %p309 = scmp.lt.s32.totalorder %s306, 1
      %s310 = scalar_select %p309, %s306, 1
      %s311 = smul.addr %s308, 2
      %s312 = sadd.s32 %s310, %s311
      %s313 = smul.addr %s312, 8
      %s314 = scalar_lea.vmem %s4, %s313
      // Predicated region
      $region37: #{dgcnn_origin_forward.14} parent=35 // pred_check
        %p315 = pneg %p145
      $region38: #{dgcnn_origin_forward.14} parent=35 // pred_check_branch
        %317 = sbr.rel (%p315) target = $region40
      $region39: #{dgcnn_origin_forward.14} parent=35 // pred_region
        %s318 = smul.u32 2, %s20
      $region40: #{dgcnn_origin_forward.14} parent=35 // pred_fallthru
        _
    $region36: #{dgcnn_origin_forward.14} parent=5 // pred_fallthru
      _
    %p319 = scmp.le.s32.totalorder 2, %s10
    // Predicated region
    $region41: #{dgcnn_origin_forward.14} parent=5 // pred_check
      %p320 = pneg %p319
    $region42: #{dgcnn_origin_forward.14} parent=5 // pred_check_branch
      %322 = sbr.rel (%p320) target = $region44
    $region43: #{dgcnn_origin_forward.14} parent=5 // pred_region
      %s323 = ssub.s32 %s10, 2
      // Predicated region
      $region45: #{dgcnn_origin_forward.14} parent=43 // pred_check
        %p324 = pneg %p151
      $region46: #{dgcnn_origin_forward.14} parent=43 // pred_check_branch
        %326 = sbr.rel (%p324) target = $region48
      $region47: #{dgcnn_origin_forward.14} parent=43 // pred_region
        %s327 = smul.u32 2, %s22
        %p328 = scmp.lt.s32.totalorder %s21, 1
        %s329 = scalar_select %p328, %s21, 1
        %p330 = scmp.lt.s32.totalorder %s327, 1
        %s331 = scalar_select %p330, %s327, 1
        %s332 = smul.addr %s329, 2
        %s333 = sadd.s32 %s331, %s332
        %s334 = smul.addr %s333, 8
        %s335 = scalar_lea.vmem %s4, %s334
      $region48: #{dgcnn_origin_forward.14} parent=43 // pred_fallthru
        _
    $region44: #{dgcnn_origin_forward.14} parent=5 // pred_fallthru
      _
  $region6: #{dgcnn_origin_forward.14} parent=0 // loop_footer
    %s14 = sadd.s32 1, %s10
  $region7: #{dgcnn_origin_forward.14} parent=0 // loop_footer_branch
    %9 = sbr.rel target = $region3
  $region8: #{dgcnn_origin_forward.14} parent=0 // loop_exit
    _

// kernel: dgcnn_origin_forward.13
$region0: #{dgcnn_origin_forward.13}
  #allocation0 [shape = 'u32[]', space=smem, size = 0x4, offset = 0x4, fixed_abs, tag = 'smem constant byte address 0x4 - core index']
  #allocation1 [shape = 'u32[144,128]{1,0:T(1,128)}', space=vmem, size = 0x12000, scoped, tag = 'internal scratch']
  %s0 = inlined_call_operand.vmem [shape: f32[2,16,8], index: 0, kind: input, shape index: {}]
  %s1 = inlined_call_operand.vmem [shape: f32[2,8,16], index: 1, kind: input, shape index: {}]
  %s2 = inlined_call_operand.vmem [shape: f32[2,1,16], index: 2, kind: input, shape index: {}]
  %s3 = inlined_call_operand.vmem [shape: f32[2,16,16], index: 3, kind: input, shape index: {}]
  %s4 = inlined_call_operand.vmem [shape: f32[2,16,16], index: 4, kind: input, shape index: {}]
  %s5 = inlined_call_operand.vmem [shape: f32[2,16,16], index: 5, kind: output, shape index: {0}]
  %s6 = inlined_call_operand.vmem [shape: f32[2,1,32], index: 6, kind: output, shape index: {1}]
  %7 = xla_tuple %s5, %s6
  %s8 = sld [smem:[#allocation0]]
  $region65: #{dgcnn_origin_forward.13} parent=0
    _
  %s10 = ssub.s32 1, %s8
  %s11 = scalar_select 0, %s10, %s8
  loop: start=0, step=1, limit=4
  $region2: #{dgcnn_origin_forward.13} parent=0 // loop_pre_header
    _
  $region3: #{dgcnn_origin_forward.13} parent=0 // loop_header
    %s13 = sphi 0, %s17
    %p14 = scmp.ge.s32.totalorder %s13, 4
    %s20 = sphi 0, %s32
    %s21 = sphi 0, %s28
    %s22 = sphi 0, %s20
    %s23 = sphi 0, %s21
    %s24 = sphi 0, %s22
    %s25 = sphi 0, %s23
    %s37 = sphi 0, %s39
    %s40 = sphi 0, %s37
    %s41 = sphi 0, %s40
    %s57 = sphi 0, %s41
    %s63 = sphi 0, %s65
    %s66 = sphi 0, %s63
    %s67 = sphi 0, %s66
    %s83 = sphi 0, %s67
    %s89 = sphi 0, %s91
    %s92 = sphi 0, %s89
    %s93 = sphi 0, %s92
    %s109 = sphi 0, %s93
    %s115 = sphi 0, %s117
    %s118 = sphi 0, %s115
    %s119 = sphi 0, %s118
    %s135 = sphi 0, %s119
    %s143 = sphi 0, %s145
    %s146 = sphi 0, %s143
    %s147 = sphi 0, %s146
    %s163 = sphi 0, %s147
    %s171 = sphi 0, %s173
    %s174 = sphi 0, %s171
    %s175 = sphi 0, %s174
    %s191 = sphi 0, %s175
    %s197 = sphi 0, %s199
    %s200 = sphi 0, %s197
    %s201 = sphi 0, %s200
    %s217 = sphi 0, %s201
  $region4: #{dgcnn_origin_forward.13} parent=0 // loop_header_branch
    %16 = sbr.rel (%p14) target = $region8
  $region5: #{dgcnn_origin_forward.13} parent=0 // loop_body
    %s18 = ssub.s32 %s13, 1
    %s19 = ssub.s32 %s13, 2
    %s26 = sadd.s32 1, %s21
    %p27 = scmp.ge.s32.totalorder %s26, 1
    %s28 = scalar_select %p27, 0, %s26
    %s29 = sadd.s32 1, %s20
    %s30 = scalar_select %p27, %s29, %s20
    %p31 = scmp.ge.s32.totalorder %s30, 2
    %s32 = scalar_select %p31, 0, %s30
    %s33 = ssub.s32 %s20, %s32
    %s34 = ssub.s32 %s21, %s28
    %s35 = sor.u32 %s33, %s34
    %p36 = scmp.eq.s32.totalorder %s35, 0
    %s38 = sadd.s32 %s37, 1
    %s39 = scalar_select %p36, %s37, %s38
    %p42 = pneg %p36
    %p43 = scmp.eq.s32.totalorder %s13, 1
    %p44 = por %p42, %p43
    %p45 = scmp.ne.s32.totalorder %s37, %s40
    %p46 = scmp.eq.s32.totalorder %s13, 0
    %p47 = por %p45, %p46
    %p48 = scmp.ne.s32.totalorder %s37, %s40
    %p49 = scmp.eq.s32.totalorder %s18, 1
    %p50 = por %p48, %p49
    %p51 = scmp.ne.s32.totalorder %s40, %s41
    %p52 = scmp.eq.s32.totalorder %s18, 0
    %p53 = por %p51, %p52
    %p54 = scmp.ne.s32.totalorder %s40, %s41
    %p55 = scmp.eq.s32.totalorder %s19, 1
    %p56 = por %p54, %p55
    %p58 = scmp.ne.s32.totalorder %s41, %s57
    %p59 = scmp.eq.s32.totalorder %s19, 0
    %p60 = por %p58, %p59
    %s61 = ssub.s32 %s20, %s32
    %p62 = scmp.eq.s32.totalorder %s61, 0
    %s64 = sadd.s32 %s63, 1
    %s65 = scalar_select %p62, %s63, %s64
    %p68 = pneg %p62
    %p69 = scmp.eq.s32.totalorder %s13, 1
    %p70 = por %p68, %p69
    %p71 = scmp.ne.s32.totalorder %s63, %s66
    %p72 = scmp.eq.s32.totalorder %s13, 0
    %p73 = por %p71, %p72
    %p74 = scmp.ne.s32.totalorder %s63, %s66
    %p75 = scmp.eq.s32.totalorder %s18, 1
    %p76 = por %p74, %p75
    %p77 = scmp.ne.s32.totalorder %s66, %s67
    %p78 = scmp.eq.s32.totalorder %s18, 0
    %p79 = por %p77, %p78
    %p80 = scmp.ne.s32.totalorder %s66, %s67
    %p81 = scmp.eq.s32.totalorder %s19, 1
    %p82 = por %p80, %p81
    %p84 = scmp.ne.s32.totalorder %s67, %s83
    %p85 = scmp.eq.s32.totalorder %s19, 0
    %p86 = por %p84, %p85
    %s87 = ssub.s32 %s20, %s32
    %p88 = scmp.eq.s32.totalorder %s87, 0
    %s90 = sadd.s32 %s89, 1
    %s91 = scalar_select %p88, %s89, %s90
    %p94 = pneg %p88
    %p95 = scmp.eq.s32.totalorder %s13, 1
    %p96 = por %p94, %p95
    %p97 = scmp.ne.s32.totalorder %s89, %s92
    %p98 = scmp.eq.s32.totalorder %s13, 0
    %p99 = por %p97, %p98
    %p100 = scmp.ne.s32.totalorder %s89, %s92
    %p101 = scmp.eq.s32.totalorder %s18, 1
    %p102 = por %p100, %p101
    %p103 = scmp.ne.s32.totalorder %s92, %s93
    %p104 = scmp.eq.s32.totalorder %s18, 0
    %p105 = por %p103, %p104
    %p106 = scmp.ne.s32.totalorder %s92, %s93
    %p107 = scmp.eq.s32.totalorder %s19, 1
    %p108 = por %p106, %p107
    %p110 = scmp.ne.s32.totalorder %s93, %s109
    %p111 = scmp.eq.s32.totalorder %s19, 0
    %p112 = por %p110, %p111
    %s113 = ssub.s32 %s20, %s32
    %p114 = scmp.eq.s32.totalorder %s113, 0
    %s116 = sadd.s32 %s115, 1
    %s117 = scalar_select %p114, %s115, %s116
    %p120 = pneg %p114
    %p121 = scmp.eq.s32.totalorder %s13, 1
    %p122 = por %p120, %p121
    %p123 = scmp.ne.s32.totalorder %s115, %s118
    %p124 = scmp.eq.s32.totalorder %s13, 0
    %p125 = por %p123, %p124
    %p126 = scmp.ne.s32.totalorder %s115, %s118
    %p127 = scmp.eq.s32.totalorder %s18, 1
    %p128 = por %p126, %p127
    %p129 = scmp.ne.s32.totalorder %s118, %s119
    %p130 = scmp.eq.s32.totalorder %s18, 0
    %p131 = por %p129, %p130
    %p132 = scmp.ne.s32.totalorder %s118, %s119
    %p133 = scmp.eq.s32.totalorder %s19, 1
    %p134 = por %p132, %p133
    %p136 = scmp.ne.s32.totalorder %s119, %s135
    %p137 = scmp.eq.s32.totalorder %s19, 0
    %p138 = por %p136, %p137
    %s139 = ssub.s32 %s20, %s32
    %s140 = ssub.s32 %s21, %s28
    %s141 = sor.u32 %s139, %s140
    %p142 = scmp.eq.s32.totalorder %s141, 0
    %s144 = sadd.s32 %s143, 1
    %s145 = scalar_select %p142, %s143, %s144
    %p148 = pneg %p142
    %p149 = scmp.eq.s32.totalorder %s13, 1
    %p150 = por %p148, %p149
    %p151 = scmp.ne.s32.totalorder %s143, %s146
    %p152 = scmp.eq.s32.totalorder %s13, 0
    %p153 = por %p151, %p152
    %p154 = scmp.ne.s32.totalorder %s143, %s146
    %p155 = scmp.eq.s32.totalorder %s18, 1
    %p156 = por %p154, %p155
    %p157 = scmp.ne.s32.totalorder %s146, %s147
    %p158 = scmp.eq.s32.totalorder %s18, 0
    %p159 = por %p157, %p158
    %p160 = scmp.ne.s32.totalorder %s146, %s147
    %p161 = scmp.eq.s32.totalorder %s19, 1
    %p162 = por %p160, %p161
    %p164 = scmp.ne.s32.totalorder %s147, %s163
    %p165 = scmp.eq.s32.totalorder %s19, 0
    %p166 = por %p164, %p165
    %s167 = ssub.s32 %s20, %s32
    %s168 = ssub.s32 %s21, %s28
    %s169 = sor.u32 %s167, %s168
    %p170 = scmp.eq.s32.totalorder %s169, 0
    %s172 = sadd.s32 %s171, 1
    %s173 = scalar_select %p170, %s171, %s172
    %p176 = pneg %p170
    %p177 = scmp.eq.s32.totalorder %s13, 1
    %p178 = por %p176, %p177
    %p179 = scmp.ne.s32.totalorder %s171, %s174
    %p180 = scmp.eq.s32.totalorder %s13, 0
    %p181 = por %p179, %p180
    %p182 = scmp.ne.s32.totalorder %s171, %s174
    %p183 = scmp.eq.s32.totalorder %s18, 1
    %p184 = por %p182, %p183
    %p185 = scmp.ne.s32.totalorder %s174, %s175
    %p186 = scmp.eq.s32.totalorder %s18, 0
    %p187 = por %p185, %p186
    %p188 = scmp.ne.s32.totalorder %s174, %s175
    %p189 = scmp.eq.s32.totalorder %s19, 1
    %p190 = por %p188, %p189
    %p192 = scmp.ne.s32.totalorder %s175, %s191
    %p193 = scmp.eq.s32.totalorder %s19, 0
    %p194 = por %p192, %p193
    %s195 = ssub.s32 %s20, %s32
    %p196 = scmp.eq.s32.totalorder %s195, 0
    %s198 = sadd.s32 %s197, 1
    %s199 = scalar_select %p196, %s197, %s198
    %p202 = pneg %p196
    %p203 = scmp.eq.s32.totalorder %s13, 1
    %p204 = por %p202, %p203
    %p205 = scmp.ne.s32.totalorder %s197, %s200
    %p206 = scmp.eq.s32.totalorder %s13, 0
    %p207 = por %p205, %p206
    %p208 = scmp.ne.s32.totalorder %s197, %s200
    %p209 = scmp.eq.s32.totalorder %s18, 1
    %p210 = por %p208, %p209
    %p211 = scmp.ne.s32.totalorder %s200, %s201
    %p212 = scmp.eq.s32.totalorder %s18, 0
    %p213 = por %p211, %p212
    %p214 = scmp.ne.s32.totalorder %s200, %s201
    %p215 = scmp.eq.s32.totalorder %s19, 1
    %p216 = por %p214, %p215
    %p218 = scmp.ne.s32.totalorder %s201, %s217
    %p219 = scmp.eq.s32.totalorder %s19, 0
    %p220 = por %p218, %p219
    %p221 = scmp.le.s32.totalorder 1, %s13
    %p222 = scmp.lt.s32.totalorder %s13, 3
    %p223 = pnand %p221, %p222
    %p224 = pneg %p223
    // Predicated region
    $region9: #{dgcnn_origin_forward.13} parent=5 // pred_check
      _
    $region10: #{dgcnn_origin_forward.13} parent=5 // pred_check_branch
      %226 = sbr.rel (%p223) target = $region12
    $region11: #{dgcnn_origin_forward.13} parent=5 // pred_region
      %s227 = ssub.s32 %s13, 1
    $region12: #{dgcnn_origin_forward.13} parent=5 // pred_fallthru
      _
    %p228 = scmp.lt.s32.totalorder %s13, 2
    // Predicated region
    $region13: #{dgcnn_origin_forward.13} parent=5 // pred_check
      %p229 = pneg %p228
    $region14: #{dgcnn_origin_forward.13} parent=5 // pred_check_branch
      %231 = sbr.rel (%p229) target = $region16
    $region15: #{dgcnn_origin_forward.13} parent=5 // pred_region
      // Predicated region
      $region17: #{dgcnn_origin_forward.13} parent=15 // pred_check
        %p232 = pneg %p47
      $region18: #{dgcnn_origin_forward.13} parent=15 // pred_check_branch
        %234 = sbr.rel (%p232) target = $region20
      $region19: #{dgcnn_origin_forward.13} parent=15 // pred_region
        %s235 = smul.u32 2, %s21
        %p236 = scmp.lt.s32.totalorder %s20, 1
        %s237 = scalar_select %p236, %s20, 1
        %p238 = scmp.lt.s32.totalorder %s235, 1
        %s239 = scalar_select %p238, %s235, 1
        %s240 = smul.addr %s237, 2
        %s241 = sadd.s32 %s239, %s240
        %s242 = smul.addr %s241, 8
        %s243 = scalar_lea.vmem %s0, %s242
        %s244 = smul.u32 2, %s21
      $region20: #{dgcnn_origin_forward.13} parent=15 // pred_fallthru
        _
      // Predicated region
      $region21: #{dgcnn_origin_forward.13} parent=15 // pred_check
        %p245 = pneg %p73
      $region22: #{dgcnn_origin_forward.13} parent=15 // pred_check_branch
        %247 = sbr.rel (%p245) target = $region24
      $region23: #{dgcnn_origin_forward.13} parent=15 // pred_region
        %p248 = scmp.lt.s32.totalorder %s20, 1
        %s249 = scalar_select %p248, %s20, 1
        %s250 = smul.addr %s249, 8
        %s251 = scalar_lea.vmem %s1, %s250
      $region24: #{dgcnn_origin_forward.13} parent=15 // pred_fallthru
        _
      // Predicated region
      $region25: #{dgcnn_origin_forward.13} parent=15 // pred_check
        %p252 = pneg %p99
      $region26: #{dgcnn_origin_forward.13} parent=15 // pred_check_branch
        %254 = sbr.rel (%p252) target = $region28
      $region27: #{dgcnn_origin_forward.13} parent=15 // pred_region
        %p255 = scmp.lt.s32.totalorder %s20, 1
        %s256 = scalar_select %p255, %s20, 1
        %s257 = scalar_lea.vmem %s2, %s256
      $region28: #{dgcnn_origin_forward.13} parent=15 // pred_fallthru
        _
      // Predicated region
      $region29: #{dgcnn_origin_forward.13} parent=15 // pred_check
        %p258 = pneg %p125
      $region30: #{dgcnn_origin_forward.13} parent=15 // pred_check_branch
        %260 = sbr.rel (%p258) target = $region32
      $region31: #{dgcnn_origin_forward.13} parent=15 // pred_region
        %p261 = scmp.lt.s32.totalorder %s20, 1
        %s262 = scalar_select %p261, %s20, 1
        %s263 = smul.addr %s262, 2
        %s264 = smul.addr %s263, 8
        %s265 = scalar_lea.vmem %s3, %s264
      $region32: #{dgcnn_origin_forward.13} parent=15 // pred_fallthru
        _
      // Predicated region
      $region33: #{dgcnn_origin_forward.13} parent=15 // pred_check
        %p266 = pneg %p153
      $region34: #{dgcnn_origin_forward.13} parent=15 // pred_check_branch
        %268 = sbr.rel (%p266) target = $region36
      $region35: #{dgcnn_origin_forward.13} parent=15 // pred_region
        %s269 = smul.u32 2, %s21
        %p270 = scmp.lt.s32.totalorder %s20, 1
        %s271 = scalar_select %p270, %s20, 1
        %p272 = scmp.lt.s32.totalorder %s269, 1
        %s273 = scalar_select %p272, %s269, 1
        %s274 = smul.addr %s271, 2
        %s275 = sadd.s32 %s273, %s274
        %s276 = smul.addr %s275, 8
        %s277 = scalar_lea.vmem %s4, %s276
        %s278 = smul.u32 2, %s21
      $region36: #{dgcnn_origin_forward.13} parent=15 // pred_fallthru
        _
    $region16: #{dgcnn_origin_forward.13} parent=5 // pred_fallthru
      _
    %p279 = scmp.le.s32.totalorder 1, %s13
    %p280 = scmp.lt.s32.totalorder %s13, 3
    %p281 = pnand %p279, %p280
    %p282 = pneg %p281
    // Predicated region
    $region37: #{dgcnn_origin_forward.13} parent=5 // pred_check
      _
    $region38: #{dgcnn_origin_forward.13} parent=5 // pred_check_branch
      %284 = sbr.rel (%p281) target = $region40
    $region39: #{dgcnn_origin_forward.13} parent=5 // pred_region
      %s285 = ssub.s32 %s13, 1
      %s286 = smul.u32 2, %s23
      %p287 = scmp.lt.s32.totalorder %s22, 1
      %s288 = scalar_select %p287, %s22, 1
      %p289 = scmp.lt.s32.totalorder %s286, 1
      %s290 = scalar_select %p289, %s286, 1
      %s291 = smul.addr %s288, 2
      %s292 = sadd.s32 %s290, %s291
      %s293 = smul.addr %s292, 8
      %s294 = scalar_lea.vmem %s0, %s293
      %p295 = pneg %p53
      %p296 = pneg %p50
      %p297 = scmp.lt.s32.totalorder %s22, 1
      %s298 = scalar_select %p297, %s22, 1
      %s299 = smul.addr %s298, 8
      %s300 = scalar_lea.vmem %s1, %s299
      %p301 = pneg %p79
      %p302 = pneg %p76
      %p303 = scmp.lt.s32.totalorder %s22, 1
      %s304 = scalar_select %p303, %s22, 1
      %s305 = scalar_lea.vmem %s2, %s304
      %p306 = pneg %p105
      %p307 = pneg %p102
      %p308 = scmp.lt.s32.totalorder %s22, 1
      %s309 = scalar_select %p308, %s22, 1
      %s310 = smul.addr %s309, 2
      %s311 = smul.addr %s310, 8
      %s312 = scalar_lea.vmem %s3, %s311
      %p313 = pneg %p131
      %p314 = pneg %p128
      %s315 = smul.u32 2, %s23
      %p316 = scmp.lt.s32.totalorder %s22, 1
      %s317 = scalar_select %p316, %s22, 1
      %p318 = scmp.lt.s32.totalorder %s315, 1
      %s319 = scalar_select %p318, %s315, 1
      %s320 = smul.addr %s317, 2
      %s321 = sadd.s32 %s319, %s320
      %s322 = smul.addr %s321, 8
      %s323 = scalar_lea.vmem %s4, %s322
      %p324 = pneg %p159
      %p325 = pneg %p156
      %p326 = pneg %p187
      %p327 = pneg %p184
      %s328 = smul.u32 2, %s23
      %p329 = scmp.lt.s32.totalorder %s22, 1
      %s330 = scalar_select %p329, %s22, 1
      %p331 = scmp.lt.s32.totalorder %s328, 1
      %s332 = scalar_select %p331, %s328, 1
      %s333 = smul.addr %s330, 2
      %s334 = sadd.s32 %s332, %s333
      %s335 = smul.addr %s334, 8
      %s336 = scalar_lea.vmem %s5, %s335
      %p337 = pneg %p213
      %p338 = pneg %p210
      %p339 = scmp.lt.s32.totalorder %s22, 1
      %s340 = scalar_select %p339, %s22, 1
      %s341 = scalar_lea.vmem %s6, %s340
      %s342 = smul.u32 2, %s23
      %p343 = scmp.lt.s32.totalorder %s22, 1
      %s344 = scalar_select %p343, %s22, 1
      %p345 = scmp.lt.s32.totalorder %s342, 1
      %s346 = scalar_select %p345, %s342, 1
      %s347 = smul.addr %s344, 2
      %s348 = sadd.s32 %s346, %s347
      %s349 = smul.addr %s348, 8
      %s350 = scalar_lea.vmem %s0, %s349
      %s351 = smul.u32 2, %s23
      %p352 = scmp.lt.s32.totalorder %s22, 1
      %s353 = scalar_select %p352, %s22, 1
      %s354 = smul.addr %s353, 8
      %s355 = scalar_lea.vmem %s1, %s354
      %p356 = scmp.lt.s32.totalorder %s22, 1
      %s357 = scalar_select %p356, %s22, 1
      %s358 = scalar_lea.vmem %s2, %s357
      %p359 = scmp.lt.s32.totalorder %s22, 1
      %s360 = scalar_select %p359, %s22, 1
      %s361 = smul.addr %s360, 2
      %s362 = smul.addr %s361, 8
      %s363 = scalar_lea.vmem %s3, %s362
      %s364 = smul.u32 2, %s23
      %p365 = scmp.lt.s32.totalorder %s22, 1
      %s366 = scalar_select %p365, %s22, 1
      %p367 = scmp.lt.s32.totalorder %s364, 1
      %s368 = scalar_select %p367, %s364, 1
      %s369 = smul.addr %s366, 2
      %s370 = sadd.s32 %s368, %s369
      %s371 = smul.addr %s370, 8
      %s372 = scalar_lea.vmem %s4, %s371
      %s373 = smul.u32 2, %s23
      %s374 = smul.u32 2, %s23
      %p375 = scmp.lt.s32.totalorder %s22, 1
      %s376 = scalar_select %p375, %s22, 1
      %p377 = scmp.lt.s32.totalorder %s374, 1
      %s378 = scalar_select %p377, %s374, 1
      %s379 = smul.addr %s376, 2
      %s380 = sadd.s32 %s378, %s379
      %s381 = smul.addr %s380, 8
      %s382 = scalar_lea.vmem %s5, %s381
      %s383 = smul.u32 2, %s23
      %p384 = scmp.lt.s32.totalorder %s22, 1
      %s385 = scalar_select %p384, %s22, 1
      %s386 = scalar_lea.vmem %s6, %s385
      %p387 = scmp.eq.s32.totalorder %s23, 0
      // Predicated region
      $region41: #{dgcnn_origin_forward.13} parent=39 // pred_check
        %p388 = pneg %p387
      $region42: #{dgcnn_origin_forward.13} parent=39 // pred_check_branch
        %390 = sbr.rel (%p388) target = $region44
      $region43: #{dgcnn_origin_forward.13} parent=39 // pred_region
        %vm391 = vcmask 253952
        %392 = vst.msk [vmem:[%s386] sm:$0x1] %vm391, 0.0
      $region44: #{dgcnn_origin_forward.13} parent=39 // pred_fallthru
        _
      %v393 = vld [vmem:[%s350] sm:$0xff]
      %v394 = vld [vmem:[%s350 + $0x8] sm:$0xff]
      %v395 = vmul.f32 %v393, 2.0
      %v396 = vmul.f32 %v394, 2.0
      %v397 = vld [vmem:[%s355] sm:$0xff]
      %v398 = vld [vmem:[%s358] sm:$0x1]
      %v399 = vld [vmem:[%s363] sm:$0xff]
      %v400 = vld [vmem:[%s363 + $0x8] sm:$0xff]
      %v401 = vld [vmem:[%s372] sm:$0xff]
      %v402 = vld [vmem:[%s372 + $0x8] sm:$0xff]
      %vm403 = vcmask 64512
      %v405 = vsel %vm403, %v395, 0
      %v408 = vsel %vm403, %v396, 0
      %410 = vmatprep.subr.mxu0 0.0
      %411 = vmatpush1.msra.mxu0 0.0
      %412 = vmatprep.subr.mxu0 0.0
      %413 = vmatpush1.msra.mxu0 0.0
      %414 = vmatprep.subr.mxu0 0.0
      %415 = vmatpush1.msra.mxu0 0.0
      %416 = vmatprep.subr.mxu0 0.0
      %417 = vmatpush1.msra.mxu0 0.0
      %418 = vmatprep.subr.mxu0 0.0
      %419 = vmatpush1.msra.mxu0 0.0
      %420 = vmatprep.subr.mxu0 0.0
      %421 = vmatpush1.msra.mxu0 0.0
      %422 = vmatprep.subr.mxu0 0.0
      %423 = vmatpush1.msra.mxu0 0.0
      %424 = vmatprep.subr.mxu0 0.0
      %425 = vmatpush1.msra.mxu0 0.0
      %426 = vmatprep.subr.mxu0 0.0
      %427 = vmatpush1.msra.mxu0 0.0
      %428 = vmatprep.subr.mxu0 0.0
      %429 = vmatpush1.msra.mxu0 0.0
      %430 = vmatprep.subr.mxu0 0.0
      %431 = vmatpush1.msra.mxu0 0.0
      %432 = vmatprep.subr.mxu0 0.0
      %433 = vmatpush1.msra.mxu0 0.0
      %434 = vmatprep.subr.mxu0 0.0
      %435 = vmatpush1.msra.mxu0 0.0
      %436 = vmatprep.subr.mxu0 0.0
      %437 = vmatpush1.msra.mxu0 0.0
      %438 = vmatprep.subr.mxu0 0.0
      %439 = vmatpush1.msra.mxu0 0.0
      %440 = vmatprep.subr.mxu0 0.0
      %441 = vmatpush1.msra.mxu0 %v397
      %442 = vmatprep.subr.mxu0 0.0
      %443 = vmatpush2.msra.mxu0 0.0
      %444 = vmatprep.subr.mxu0 0.0
      %445 = vmatpush2.msra.mxu0 0.0
      %446 = vmatprep.subr.mxu0 0.0
      %447 = vmatpush2.msra.mxu0 0.0
      %448 = vmatprep.subr.mxu0 0.0
      %449 = vmatpush2.msra.mxu0 0.0
      %450 = vmatprep.subr.mxu0 0.0
      %451 = vmatpush2.msra.mxu0 0.0
      %452 = vmatprep.subr.mxu0 0.0
      %453 = vmatpush2.msra.mxu0 0.0
      %454 = vmatprep.subr.mxu0 0.0
      %455 = vmatpush2.msra.mxu0 0.0
      %456 = vmatprep.subr.mxu0 0.0
      %457 = vmatpush2.msra.mxu0 0.0
      %458 = vmatprep.subr.mxu0 0.0
      %459 = vmatpush2.msra.mxu0 0.0
      %460 = vmatprep.subr.mxu0 0.0
      %461 = vmatpush2.msra.mxu0 0.0
      %462 = vmatprep.subr.mxu0 0.0
      %463 = vmatpush2.msra.mxu0 0.0
      %464 = vmatprep.subr.mxu0 0.0
      %465 = vmatpush2.msra.mxu0 0.0
      %466 = vmatprep.subr.mxu0 0.0
      %467 = vmatpush2.msra.mxu0 0.0
      %468 = vmatprep.subr.mxu0 0.0
      %469 = vmatpush2.msra.mxu0 0.0
      %470 = vmatprep.subr.mxu0 0.0
      %471 = vmatpush2.msra.mxu0 0.0
      %472 = vmatprep.subr.mxu0 0.0
      %473 = vmatpush2.msra.mxu0 0.0
      %474 = vmatprep.mubr.f32.mxu0 0.0
      %475 = vmatmul.mubr.f32.gmra.mxu0 %v405
      %v476 = vpop.f32.mrf.mxu0
      %v477 = vadd.f32 0.0, %v476
      %v478 = vpop.f32.mrf.mxu0
      %479 = vmatprep.mubr.f32.mxu0 0.0
      %480 = vmatmul.mubr.f32.gmra.mxu0 %v408
      %v481 = vpop.f32.mrf.mxu0
      %v482 = vadd.f32 0.0, %v481
      %v483 = vpop.f32.mrf.mxu0
      %484 = vdwg.mxu0
      %v486 = vlaneseq
      %v487 = vshrl.u32 %v486, 7
      %v488 = vsub.s32 0, %v487
      %v489 = vrot.slane %v398, %v488
      %v491 = vsub.f32 %v477, %v489
      %v492 = vsub.f32 %v482, %v489
      %v493 = vlaneseq
      %v494 = vand.u32 %v493, 127
      %v495 = vcvt.s32.f32 %v494
      %vm496 = vcmask 130048
      %v497 = vsel %vm496, %v491, -inf
      %498 = vmax.xlane.f32.xlu0 %v497
      %v499 = vpop.xlane.xlu0 %498
      %v500 = vsel %vm496, %v492, -inf
      %501 = vmax.xlane.f32.xlu0 %v500
      %v502 = vpop.xlane.xlu0 %501
      %vm503 = vcmp.eq.f32.partialorder %v491, %v499
      %vm504 = vcmp.eq.f32.partialorder %v492, %v502
      %v505 = vsel %vm503, %v495, 16.0
      %v506 = vsel %vm504, %v495, 16.0
      %v507 = vsel %vm496, %v505, inf
      %508 = vmin.xlane.f32.xlu0 %v507
      %v509 = vpop.xlane.xlu0 %508
      %v510 = vsel %vm496, %v506, inf
      %511 = vmin.xlane.f32.xlu0 %v510
      %v512 = vpop.xlane.xlu0 %511
      %vm513 = vcmp.eq.f32.partialorder %v495, %v509
      %vm514 = vcmp.eq.f32.partialorder %v495, %v512
      %v515 = vsel %vm513, -inf, %v491
      %v516 = vsel %vm514, -inf, %v492
      %v517 = vsel %vm513, 1, 0
      %v518 = vsel %vm514, 1, 0
      %v519 = vcvt.s32.f32 %v517
      %v520 = vcvt.s32.f32 %v518
      %v522 = vsel %vm496, %v519, 0
      %v525 = vsel %vm496, %v520, 0
      %527 = vmatprep.subr.mxu0 0.0
      %528 = vmatpush1.msra.mxu0 0.0
      %529 = vmatprep.subr.mxu0 0.0
      %530 = vmatpush1.msra.mxu0 0.0
      %531 = vmatprep.subr.mxu0 0.0
      %532 = vmatpush1.msra.mxu0 0.0
      %533 = vmatprep.subr.mxu0 0.0
      %534 = vmatpush1.msra.mxu0 0.0
      %535 = vmatprep.subr.mxu0 0.0
      %536 = vmatpush1.msra.mxu0 0.0
      %537 = vmatprep.subr.mxu0 0.0
      %538 = vmatpush1.msra.mxu0 0.0
      %539 = vmatprep.subr.mxu0 0.0
      %540 = vmatpush1.msra.mxu0 0.0
      %541 = vmatprep.subr.mxu0 0.0
      %542 = vmatpush1.msra.mxu0 0.0
      %543 = vmatprep.subr.mxu0 0.0
      %544 = vmatpush1.msra.mxu0 0.0
      %545 = vmatprep.subr.mxu0 0.0
      %546 = vmatpush1.msra.mxu0 0.0
      %547 = vmatprep.subr.mxu0 0.0
      %548 = vmatpush1.msra.mxu0 0.0
      %549 = vmatprep.subr.mxu0 0.0
      %550 = vmatpush1.msra.mxu0 0.0
      %551 = vmatprep.subr.mxu0 0.0
      %552 = vmatpush1.msra.mxu0 0.0
      %553 = vmatprep.subr.mxu0 0.0
      %554 = vmatpush1.msra.mxu0 0.0
      %555 = vmatprep.subr.mxu0 0.0
      %556 = vmatpush1.msra.mxu0 %v400
      %557 = vmatprep.subr.mxu0 0.0
      %558 = vmatpush1.msra.mxu0 %v399
      %559 = vmatprep.subr.mxu0 0.0
      %560 = vmatpush2.msra.mxu0 0.0
      %561 = vmatprep.subr.mxu0 0.0
      %562 = vmatpush2.msra.mxu0 0.0
      %563 = vmatprep.subr.mxu0 0.0
      %564 = vmatpush2.msra.mxu0 0.0
      %565 = vmatprep.subr.mxu0 0.0
      %566 = vmatpush2.msra.mxu0 0.0
      %567 = vmatprep.subr.mxu0 0.0
      %568 = vmatpush2.msra.mxu0 0.0
      %569 = vmatprep.subr.mxu0 0.0
      %570 = vmatpush2.msra.mxu0 0.0
      %571 = vmatprep.subr.mxu0 0.0
      %572 = vmatpush2.msra.mxu0 0.0
      %573 = vmatprep.subr.mxu0 0.0
      %574 = vmatpush2.msra.mxu0 0.0
      %575 = vmatprep.subr.mxu0 0.0
      %576 = vmatpush2.msra.mxu0 0.0
      %577 = vmatprep.subr.mxu0 0.0
      %578 = vmatpush2.msra.mxu0 0.0
      %579 = vmatprep.subr.mxu0 0.0
      %580 = vmatpush2.msra.mxu0 0.0
      %581 = vmatprep.subr.mxu0 0.0
      %582 = vmatpush2.msra.mxu0 0.0
      %583 = vmatprep.subr.mxu0 0.0
      %584 = vmatpush2.msra.mxu0 0.0
      %585 = vmatprep.subr.mxu0 0.0
      %586 = vmatpush2.msra.mxu0 0.0
      %587 = vmatprep.subr.mxu0 0.0
      %588 = vmatpush2.msra.mxu0 0.0
      %589 = vmatprep.subr.mxu0 0.0
      %590 = vmatpush2.msra.mxu0 0.0
      %591 = vmatprep.mubr.f32.mxu0 0.0
      %592 = vmatmul.mubr.f32.gmra.mxu0 %v522
      %v593 = vpop.f32.mrf.mxu0
      %v594 = vadd.f32 0.0, %v593
      %v595 = vpop.f32.mrf.mxu0
      %596 = vmatprep.mubr.f32.mxu0 0.0
      %597 = vmatmul.mubr.f32.gmra.mxu0 %v525
      %v598 = vpop.f32.mrf.mxu0
      %v599 = vadd.f32 0.0, %v598
      %v600 = vpop.f32.mrf.mxu0
      %601 = vdwg.mxu0
      %v602 = vmul.f32 %v594, %v594
      %v603 = vmul.f32 %v599, %v599
      %v604 = vsel %vm496, %v515, -inf
      %605 = vmax.xlane.f32.xlu0 %v604
      %v606 = vpop.xlane.xlu0 %605
      %v607 = vsel %vm496, %v516, -inf
      %608 = vmax.xlane.f32.xlu0 %v607
      %v609 = vpop.xlane.xlu0 %608
      %vm610 = vcmp.eq.f32.partialorder %v515, %v606
      %vm611 = vcmp.eq.f32.partialorder %v516, %v609
      %v612 = vsel %vm610, %v495, 16.0
      %v613 = vsel %vm611, %v495, 16.0
      %v614 = vsel %vm496, %v612, inf
      %615 = vmin.xlane.f32.xlu0 %v614
      %v616 = vpop.xlane.xlu0 %615
      %v617 = vsel %vm496, %v613, inf
      %618 = vmin.xlane.f32.xlu0 %v617
      %v619 = vpop.xlane.xlu0 %618
      %vm620 = vcmp.eq.f32.partialorder %v495, %v616
      %vm621 = vcmp.eq.f32.partialorder %v495, %v619
      %v622 = vsel %vm620, -inf, %v515
      %v623 = vsel %vm621, -inf, %v516
      %v624 = vsel %vm620, 1, 0
      %v625 = vsel %vm621, 1, 0
      %v626 = vcvt.s32.f32 %v624
      %v627 = vcvt.s32.f32 %v625
      %v629 = vsel %vm496, %v626, 0
      %v632 = vsel %vm496, %v627, 0
      %634 = vmatprep.subr.mxu0 0.0
      %635 = vmatpush1.msra.mxu0 0.0
      %636 = vmatprep.subr.mxu0 0.0
      %637 = vmatpush1.msra.mxu0 0.0
      %638 = vmatprep.subr.mxu0 0.0
      %639 = vmatpush1.msra.mxu0 0.0
      %640 = vmatprep.subr.mxu0 0.0
      %641 = vmatpush1.msra.mxu0 0.0
      %642 = vmatprep.subr.mxu0 0.0
      %643 = vmatpush1.msra.mxu0 0.0
      %644 = vmatprep.subr.mxu0 0.0
      %645 = vmatpush1.msra.mxu0 0.0
      %646 = vmatprep.subr.mxu0 0.0
      %647 = vmatpush1.msra.mxu0 0.0
      %648 = vmatprep.subr.mxu0 0.0
      %649 = vmatpush1.msra.mxu0 0.0
      %650 = vmatprep.subr.mxu0 0.0
      %651 = vmatpush1.msra.mxu0 0.0
      %652 = vmatprep.subr.mxu0 0.0
      %653 = vmatpush1.msra.mxu0 0.0
      %654 = vmatprep.subr.mxu0 0.0
      %655 = vmatpush1.msra.mxu0 0.0
      %656 = vmatprep.subr.mxu0 0.0
      %657 = vmatpush1.msra.mxu0 0.0
      %658 = vmatprep.subr.mxu0 0.0
      %659 = vmatpush1.msra.mxu0 0.0
      %660 = vmatprep.subr.mxu0 0.0
      %661 = vmatpush1.msra.mxu0 0.0
      %662 = vmatprep.subr.mxu0 0.0
      %663 = vmatpush1.msra.mxu0 %v400
      %664 = vmatprep.subr.mxu0 0.0
      %665 = vmatpush1.msra.mxu0 %v399
      %666 = vmatprep.subr.mxu0 0.0
      %667 = vmatpush2.msra.mxu0 0.0
      %668 = vmatprep.subr.mxu0 0.0
      %669 = vmatpush2.msra.mxu0 0.0
      %670 = vmatprep.subr.mxu0 0.0
      %671 = vmatpush2.msra.mxu0 0.0
      %672 = vmatprep.subr.mxu0 0.0
      %673 = vmatpush2.msra.mxu0 0.0
      %674 = vmatprep.subr.mxu0 0.0
      %675 = vmatpush2.msra.mxu0 0.0
      %676 = vmatprep.subr.mxu0 0.0
      %677 = vmatpush2.msra.mxu0 0.0
      %678 = vmatprep.subr.mxu0 0.0
      %679 = vmatpush2.msra.mxu0 0.0
      %680 = vmatprep.subr.mxu0 0.0
      %681 = vmatpush2.msra.mxu0 0.0
      %682 = vmatprep.subr.mxu0 0.0
      %683 = vmatpush2.msra.mxu0 0.0
      %684 = vmatprep.subr.mxu0 0.0
      %685 = vmatpush2.msra.mxu0 0.0
      %686 = vmatprep.subr.mxu0 0.0
      %687 = vmatpush2.msra.mxu0 0.0
      %688 = vmatprep.subr.mxu0 0.0
      %689 = vmatpush2.msra.mxu0 0.0
      %690 = vmatprep.subr.mxu0 0.0
      %691 = vmatpush2.msra.mxu0 0.0
      %692 = vmatprep.subr.mxu0 0.0
      %693 = vmatpush2.msra.mxu0 0.0
      %694 = vmatprep.subr.mxu0 0.0
      %695 = vmatpush2.msra.mxu0 0.0
      %696 = vmatprep.subr.mxu0 0.0
      %697 = vmatpush2.msra.mxu0 0.0
      %698 = vmatprep.mubr.f32.mxu0 0.0
      %699 = vmatmul.mubr.f32.gmra.mxu0 %v629
      %v700 = vpop.f32.mrf.mxu0
      %v701 = vadd.f32 0.0, %v700
      %v702 = vpop.f32.mrf.mxu0
      %703 = vmatprep.mubr.f32.mxu0 0.0
      %704 = vmatmul.mubr.f32.gmra.mxu0 %v632
      %v705 = vpop.f32.mrf.mxu0
      %v706 = vadd.f32 0.0, %v705
      %v707 = vpop.f32.mrf.mxu0
      %708 = vdwg.mxu0
      %v709 = vmax.f32 %v594, %v701
      %v710 = vmax.f32 %v599, %v706
      %v711 = vadd.f32 %v594, %v701
      %v712 = vadd.f32 %v599, %v706
      %v713 = vmul.f32 %v701, %v701
      %v714 = vmul.f32 %v706, %v706
      %v715 = vadd.f32 %v602, %v713
      %v716 = vadd.f32 %v603, %v714
      %v717 = vsel %vm496, %v622, -inf
      %718 = vmax.xlane.f32.xlu0 %v717
      %v719 = vpop.xlane.xlu0 %718
      %v720 = vsel %vm496, %v623, -inf
      %721 = vmax.xlane.f32.xlu0 %v720
      %v722 = vpop.xlane.xlu0 %721
      %vm723 = vcmp.eq.f32.partialorder %v622, %v719
      %vm724 = vcmp.eq.f32.partialorder %v623, %v722
      %v725 = vsel %vm723, %v495, 16.0
      %v726 = vsel %vm724, %v495, 16.0
      %v727 = vsel %vm496, %v725, inf
      %728 = vmin.xlane.f32.xlu0 %v727
      %v729 = vpop.xlane.xlu0 %728
      %v730 = vsel %vm496, %v726, inf
      %731 = vmin.xlane.f32.xlu0 %v730
      %v732 = vpop.xlane.xlu0 %731
      %vm733 = vcmp.eq.f32.partialorder %v495, %v729
      %vm734 = vcmp.eq.f32.partialorder %v495, %v732
      %v735 = vsel %vm733, -inf, %v622
      %v736 = vsel %vm734, -inf, %v623
      %v737 = vsel %vm733, 1, 0
      %v738 = vsel %vm734, 1, 0
      %v739 = vcvt.s32.f32 %v737
      %v740 = vcvt.s32.f32 %v738
      %v742 = vsel %vm496, %v739, 0
      %v745 = vsel %vm496, %v740, 0
      %747 = vmatprep.subr.mxu0 0.0
      %748 = vmatpush1.msra.mxu0 0.0
      %749 = vmatprep.subr.mxu0 0.0
      %750 = vmatpush1.msra.mxu0 0.0
      %751 = vmatprep.subr.mxu0 0.0
      %752 = vmatpush1.msra.mxu0 0.0
      %753 = vmatprep.subr.mxu0 0.0
      %754 = vmatpush1.msra.mxu0 0.0
      %755 = vmatprep.subr.mxu0 0.0
      %756 = vmatpush1.msra.mxu0 0.0
      %757 = vmatprep.subr.mxu0 0.0
      %758 = vmatpush1.msra.mxu0 0.0
      %759 = vmatprep.subr.mxu0 0.0
      %760 = vmatpush1.msra.mxu0 0.0
      %761 = vmatprep.subr.mxu0 0.0
      %762 = vmatpush1.msra.mxu0 0.0
      %763 = vmatprep.subr.mxu0 0.0
      %764 = vmatpush1.msra.mxu0 0.0
      %765 = vmatprep.subr.mxu0 0.0
      %766 = vmatpush1.msra.mxu0 0.0
      %767 = vmatprep.subr.mxu0 0.0
      %768 = vmatpush1.msra.mxu0 0.0
      %769 = vmatprep.subr.mxu0 0.0
      %770 = vmatpush1.msra.mxu0 0.0
      %771 = vmatprep.subr.mxu0 0.0
      %772 = vmatpush1.msra.mxu0 0.0
      %773 = vmatprep.subr.mxu0 0.0
      %774 = vmatpush1.msra.mxu0 0.0
      %775 = vmatprep.subr.mxu0 0.0
      %776 = vmatpush1.msra.mxu0 %v400
      %777 = vmatprep.subr.mxu0 0.0
      %778 = vmatpush1.msra.mxu0 %v399
      %779 = vmatprep.subr.mxu0 0.0
      %780 = vmatpush2.msra.mxu0 0.0
      %781 = vmatprep.subr.mxu0 0.0
      %782 = vmatpush2.msra.mxu0 0.0
      %783 = vmatprep.subr.mxu0 0.0
      %784 = vmatpush2.msra.mxu0 0.0
      %785 = vmatprep.subr.mxu0 0.0
      %786 = vmatpush2.msra.mxu0 0.0
      %787 = vmatprep.subr.mxu0 0.0
      %788 = vmatpush2.msra.mxu0 0.0
      %789 = vmatprep.subr.mxu0 0.0
      %790 = vmatpush2.msra.mxu0 0.0
      %791 = vmatprep.subr.mxu0 0.0
      %792 = vmatpush2.msra.mxu0 0.0
      %793 = vmatprep.subr.mxu0 0.0
      %794 = vmatpush2.msra.mxu0 0.0
      %795 = vmatprep.subr.mxu0 0.0
      %796 = vmatpush2.msra.mxu0 0.0
      %797 = vmatprep.subr.mxu0 0.0
      %798 = vmatpush2.msra.mxu0 0.0
      %799 = vmatprep.subr.mxu0 0.0
      %800 = vmatpush2.msra.mxu0 0.0
      %801 = vmatprep.subr.mxu0 0.0
      %802 = vmatpush2.msra.mxu0 0.0
      %803 = vmatprep.subr.mxu0 0.0
      %804 = vmatpush2.msra.mxu0 0.0
      %805 = vmatprep.subr.mxu0 0.0
      %806 = vmatpush2.msra.mxu0 0.0
      %807 = vmatprep.subr.mxu0 0.0
      %808 = vmatpush2.msra.mxu0 0.0
      %809 = vmatprep.subr.mxu0 0.0
      %810 = vmatpush2.msra.mxu0 0.0
      %811 = vmatprep.mubr.f32.mxu0 0.0
      %812 = vmatmul.mubr.f32.gmra.mxu0 %v742
      %v813 = vpop.f32.mrf.mxu0
      %v814 = vadd.f32 0.0, %v813
      %v815 = vpop.f32.mrf.mxu0
      %816 = vmatprep.mubr.f32.mxu0 0.0
      %817 = vmatmul.mubr.f32.gmra.mxu0 %v745
      %v818 = vpop.f32.mrf.mxu0
      %v819 = vadd.f32 0.0, %v818
      %v820 = vpop.f32.mrf.mxu0
      %821 = vdwg.mxu0
      %v822 = vmax.f32 %v709, %v814
      %v823 = vmax.f32 %v710, %v819
      %v824 = vadd.f32 %v711, %v814
      %v825 = vadd.f32 %v712, %v819
      %v826 = vmul.f32 %v814, %v814
      %v827 = vmul.f32 %v819, %v819
      %v828 = vadd.f32 %v715, %v826
      %v829 = vadd.f32 %v716, %v827
      %v830 = vsel %vm496, %v735, -inf
      %831 = vmax.xlane.f32.xlu0 %v830
      %v832 = vpop.xlane.xlu0 %831
      %v833 = vsel %vm496, %v736, -inf
      %834 = vmax.xlane.f32.xlu0 %v833
      %v835 = vpop.xlane.xlu0 %834
      %vm836 = vcmp.eq.f32.partialorder %v735, %v832
      %vm837 = vcmp.eq.f32.partialorder %v736, %v835
      %v838 = vsel %vm836, %v495, 16.0
      %v839 = vsel %vm837, %v495, 16.0
      %v840 = vsel %vm496, %v838, inf
      %841 = vmin.xlane.f32.xlu0 %v840
      %v842 = vpop.xlane.xlu0 %841
      %v843 = vsel %vm496, %v839, inf
      %844 = vmin.xlane.f32.xlu0 %v843
      %v845 = vpop.xlane.xlu0 %844
      %vm846 = vcmp.eq.f32.partialorder %v495, %v842
      %vm847 = vcmp.eq.f32.partialorder %v495, %v845
      %v848 = vsel %vm846, 1, 0
      %v849 = vsel %vm847, 1, 0
      %v850 = vcvt.s32.f32 %v848
      %v851 = vcvt.s32.f32 %v849
      %v853 = vsel %vm496, %v850, 0
      %v856 = vsel %vm496, %v851, 0
      %858 = vmatprep.subr.mxu0 0.0
      %859 = vmatpush1.msra.mxu0 0.0
      %860 = vmatprep.subr.mxu0 0.0
      %861 = vmatpush1.msra.mxu0 0.0
      %862 = vmatprep.subr.mxu0 0.0
      %863 = vmatpush1.msra.mxu0 0.0
      %864 = vmatprep.subr.mxu0 0.0
      %865 = vmatpush1.msra.mxu0 0.0
      %866 = vmatprep.subr.mxu0 0.0
      %867 = vmatpush1.msra.mxu0 0.0
      %868 = vmatprep.subr.mxu0 0.0
      %869 = vmatpush1.msra.mxu0 0.0
      %870 = vmatprep.subr.mxu0 0.0
      %871 = vmatpush1.msra.mxu0 0.0
      %872 = vmatprep.subr.mxu0 0.0
      %873 = vmatpush1.msra.mxu0 0.0
      %874 = vmatprep.subr.mxu0 0.0
      %875 = vmatpush1.msra.mxu0 0.0
      %876 = vmatprep.subr.mxu0 0.0
      %877 = vmatpush1.msra.mxu0 0.0
      %878 = vmatprep.subr.mxu0 0.0
      %879 = vmatpush1.msra.mxu0 0.0
      %880 = vmatprep.subr.mxu0 0.0
      %881 = vmatpush1.msra.mxu0 0.0
      %882 = vmatprep.subr.mxu0 0.0
      %883 = vmatpush1.msra.mxu0 0.0
      %884 = vmatprep.subr.mxu0 0.0
      %885 = vmatpush1.msra.mxu0 0.0
      %886 = vmatprep.subr.mxu0 0.0
      %887 = vmatpush1.msra.mxu0 %v400
      %888 = vmatprep.subr.mxu0 0.0
      %889 = vmatpush1.msra.mxu0 %v399
      %890 = vmatprep.subr.mxu0 0.0
      %891 = vmatpush2.msra.mxu0 0.0
      %892 = vmatprep.subr.mxu0 0.0
      %893 = vmatpush2.msra.mxu0 0.0
      %894 = vmatprep.subr.mxu0 0.0
      %895 = vmatpush2.msra.mxu0 0.0
      %896 = vmatprep.subr.mxu0 0.0
      %897 = vmatpush2.msra.mxu0 0.0
      %898 = vmatprep.subr.mxu0 0.0
      %899 = vmatpush2.msra.mxu0 0.0
      %900 = vmatprep.subr.mxu0 0.0
      %901 = vmatpush2.msra.mxu0 0.0
      %902 = vmatprep.subr.mxu0 0.0
      %903 = vmatpush2.msra.mxu0 0.0
      %904 = vmatprep.subr.mxu0 0.0
      %905 = vmatpush2.msra.mxu0 0.0
      %906 = vmatprep.subr.mxu0 0.0
      %907 = vmatpush2.msra.mxu0 0.0
      %908 = vmatprep.subr.mxu0 0.0
      %909 = vmatpush2.msra.mxu0 0.0
      %910 = vmatprep.subr.mxu0 0.0
      %911 = vmatpush2.msra.mxu0 0.0
      %912 = vmatprep.subr.mxu0 0.0
      %913 = vmatpush2.msra.mxu0 0.0
      %914 = vmatprep.subr.mxu0 0.0
      %915 = vmatpush2.msra.mxu0 0.0
      %916 = vmatprep.subr.mxu0 0.0
      %917 = vmatpush2.msra.mxu0 0.0
      %918 = vmatprep.subr.mxu0 0.0
      %919 = vmatpush2.msra.mxu0 0.0
      %920 = vmatprep.subr.mxu0 0.0
      %921 = vmatpush2.msra.mxu0 0.0
      %922 = vmatprep.mubr.f32.mxu0 0.0
      %923 = vmatmul.mubr.f32.gmra.mxu0 %v853
      %v924 = vpop.f32.mrf.mxu0
      %v925 = vadd.f32 0.0, %v924
      %v926 = vpop.f32.mrf.mxu0
      %927 = vmatprep.mubr.f32.mxu0 0.0
      %928 = vmatmul.mubr.f32.gmra.mxu0 %v856
      %v929 = vpop.f32.mrf.mxu0
      %v930 = vadd.f32 0.0, %v929
      %v931 = vpop.f32.mrf.mxu0
      %932 = vdwg.mxu0
      %v933 = vmax.f32 %v822, %v925
      %v934 = vmax.f32 %v823, %v930
      %v935 = vadd.f32 %v824, %v925
      %v936 = vadd.f32 %v825, %v930
      %v937 = vmul.f32 %v925, %v925
      %v938 = vmul.f32 %v930, %v930
      %v939 = vadd.f32 %v828, %v937
      %v940 = vadd.f32 %v829, %v938
      %941 = vst.msk [vmem:[%s382] sm:$0xff] %vm496, %v933
      %942 = vst.msk [vmem:[%s382 + $0x8] sm:$0xff] %vm496, %v934
      %v943 = vmul.f32 %v401, 4.0
      %v944 = vmul.f32 %v402, 4.0
      %v945 = vadd.f32 %v935, %v943
      %v946 = vadd.f32 %v936, %v944
      %v947 = vsel %vm496, %v945, 0.0
      %v948 = vsel %vm496, %v946, 0.0
      %v949 = vadd.f32 %v947, %v948
      %v950 = vrot.slane %v949, 4
      %v951 = vadd.f32 %v949, %v950
      %v952 = vrot.slane %v951, 2
      %v953 = vadd.f32 %v951, %v952
      %v954 = vrot.slane %v953, 1
      %v955 = vadd.f32 %v953, %v954
      %v956 = vmul.f32 %v401, 2.0
      %v957 = vmul.f32 %v402, 2.0
      %v958 = vmul.f32 %v956, %v935
      %v959 = vmul.f32 %v957, %v936
      %v960 = vadd.f32 %v939, %v958
      %v961 = vadd.f32 %v940, %v959
      %v962 = vmul.f32 %v943, %v401
      %v963 = vmul.f32 %v944, %v402
      %v964 = vadd.f32 %v960, %v962
      %v965 = vadd.f32 %v961, %v963
      %v966 = vsel %vm496, %v964, 0.0
      %v967 = vsel %vm496, %v965, 0.0
      %v968 = vadd.f32 %v966, %v967
      %v969 = vrot.slane %v968, 4
      %v970 = vadd.f32 %v968, %v969
      %v971 = vrot.slane %v970, 2
      %v972 = vadd.f32 %v970, %v971
      %v973 = vrot.slane %v972, 1
      %v974 = vadd.f32 %v972, %v973
      %v975 = vld [vmem:[%s386] sm:$0x1]
      %977 = vrot.lane.b32.xlu0 %v974, 16
      %v978 = vpop.permute.xlu0 %977
      %v980 = vsel %vm496, %v955, %v978
      %v981 = vadd.f32 %v975, %v980
      %vm982 = vcmask 253952
      %983 = vst.msk [vmem:[%s386] sm:$0x1] %vm982, %v981
      %s984 = smul.u32 2, %s23
      %p985 = scmp.lt.s32.totalorder %s22, 1
      %s986 = scalar_select %p985, %s22, 1
      %p987 = scmp.lt.s32.totalorder %s984, 1
      %s988 = scalar_select %p987, %s984, 1
      %s989 = smul.addr %s986, 2
      %s990 = sadd.s32 %s988, %s989
      %s991 = smul.addr %s990, 8
      %s992 = scalar_lea.vmem %s5, %s991
      %p993 = scmp.lt.s32.totalorder %s22, 1
      %s994 = scalar_select %p993, %s22, 1
      %s995 = scalar_lea.vmem %s6, %s994
      // Predicated region
      $region45: #{dgcnn_origin_forward.13} parent=39 // pred_check
        %p996 = pneg %p184
      $region46: #{dgcnn_origin_forward.13} parent=39 // pred_check_branch
        %998 = sbr.rel (%p996) target = $region48
      $region47: #{dgcnn_origin_forward.13} parent=39 // pred_region
        %s999 = smul.u32 2, %s23
      $region48: #{dgcnn_origin_forward.13} parent=39 // pred_fallthru
        _
      // Predicated region
      $region49: #{dgcnn_origin_forward.13} parent=39 // pred_check
        %p1000 = pneg %p210
      $region50: #{dgcnn_origin_forward.13} parent=39 // pred_check_branch
        %1002 = sbr.rel (%p1000) target = $region52
      $region51: #{dgcnn_origin_forward.13} parent=39 // pred_region
        _
      $region52: #{dgcnn_origin_forward.13} parent=39 // pred_fallthru
        _
    $region40: #{dgcnn_origin_forward.13} parent=5 // pred_fallthru
      _
    %p1003 = scmp.le.s32.totalorder 2, %s13
    // Predicated region
    $region53: #{dgcnn_origin_forward.13} parent=5 // pred_check
      %p1004 = pneg %p1003
    $region54: #{dgcnn_origin_forward.13} parent=5 // pred_check_branch
      %1006 = sbr.rel (%p1004) target = $region56
    $region55: #{dgcnn_origin_forward.13} parent=5 // pred_region
      %s1007 = ssub.s32 %s13, 2
      // Predicated region
      $region57: #{dgcnn_origin_forward.13} parent=55 // pred_check
        %p1008 = pneg %p190
      $region58: #{dgcnn_origin_forward.13} parent=55 // pred_check_branch
        %1010 = sbr.rel (%p1008) target = $region60
      $region59: #{dgcnn_origin_forward.13} parent=55 // pred_region
        %s1011 = smul.u32 2, %s25
        %p1012 = scmp.lt.s32.totalorder %s24, 1
        %s1013 = scalar_select %p1012, %s24, 1
        %p1014 = scmp.lt.s32.totalorder %s1011, 1
        %s1015 = scalar_select %p1014, %s1011, 1
        %s1016 = smul.addr %s1013, 2
        %s1017 = sadd.s32 %s1015, %s1016
        %s1018 = smul.addr %s1017, 8
        %s1019 = scalar_lea.vmem %s5, %s1018
      $region60: #{dgcnn_origin_forward.13} parent=55 // pred_fallthru
        _
      // Predicated region
      $region61: #{dgcnn_origin_forward.13} parent=55 // pred_check
        %p1020 = pneg %p216
      $region62: #{dgcnn_origin_forward.13} parent=55 // pred_check_branch
        %1022 = sbr.rel (%p1020) target = $region64
      $region63: #{dgcnn_origin_forward.13} parent=55 // pred_region
        %p1023 = scmp.lt.s32.totalorder %s24, 1
        %s1024 = scalar_select %p1023, %s24, 1
        %s1025 = scalar_lea.vmem %s6, %s1024
      $region64: #{dgcnn_origin_forward.13} parent=55 // pred_fallthru
        _
    $region56: #{dgcnn_origin_forward.13} parent=5 // pred_fallthru
      _
  $region6: #{dgcnn_origin_forward.13} parent=0 // loop_footer
    %s17 = sadd.s32 1, %s13
  $region7: #{dgcnn_origin_forward.13} parent=0 // loop_footer_branch
    %12 = sbr.rel target = $region3
  $region8: #{dgcnn_origin_forward.13} parent=0 // loop_exit
    _

// kernel: dgcnn_origin_forward.15
$region0: #{dgcnn_origin_forward.15}
  #allocation0 [shape = 'u32[]', space=smem, size = 0x4, offset = 0x4, fixed_abs, tag = 'smem constant byte address 0x4 - core index']
  #allocation1 [shape = 'u32[144,128]{1,0:T(1,128)}', space=vmem, size = 0x12000, scoped, tag = 'internal scratch']
  %s0 = inlined_call_operand.vmem [shape: bf16[2,16,16], index: 0, kind: input, shape index: {}]
  %s1 = inlined_call_operand.vmem [shape: bf16[16,32], index: 1, kind: input, shape index: {}]
  %s2 = inlined_call_operand.vmem [shape: bf16[16,32], index: 2, kind: input, shape index: {}]
  %s3 = inlined_call_operand.vmem [shape: f32[2,16,32], index: 3, kind: output, shape index: {0}]
  %s4 = inlined_call_operand.vmem [shape: f32[2,16,32], index: 4, kind: output, shape index: {1}]
  %5 = xla_tuple %s3, %s4
  %s6 = sld [smem:[#allocation0]]
  $region53: #{dgcnn_origin_forward.15} parent=0
    _
  %s8 = ssub.s32 1, %s6
  %s9 = scalar_select 0, %s8, %s6
  loop: start=0, step=1, limit=4
  $region2: #{dgcnn_origin_forward.15} parent=0 // loop_pre_header
    _
  $region3: #{dgcnn_origin_forward.15} parent=0 // loop_header
    %s11 = sphi 0, %s15
    %p12 = scmp.ge.s32.totalorder %s11, 4
    %s18 = sphi 0, %s30
    %s19 = sphi 0, %s26
    %s20 = sphi 0, %s18
    %s21 = sphi 0, %s19
    %s22 = sphi 0, %s20
    %s23 = sphi 0, %s21
    %s35 = sphi 0, %s37
    %s38 = sphi 0, %s35
    %s39 = sphi 0, %s38
    %s55 = sphi 0, %s39
    %s59 = sphi 0, %s59
    %s61 = sphi 0, %s59
    %s62 = sphi 0, %s61
    %s76 = sphi 0, %s62
    %s80 = sphi 0, %s80
    %s82 = sphi 0, %s80
    %s83 = sphi 0, %s82
    %s97 = sphi 0, %s83
    %s105 = sphi 0, %s107
    %s108 = sphi 0, %s105
    %s109 = sphi 0, %s108
    %s125 = sphi 0, %s109
    %s133 = sphi 0, %s135
    %s136 = sphi 0, %s133
    %s137 = sphi 0, %s136
    %s153 = sphi 0, %s137
  $region4: #{dgcnn_origin_forward.15} parent=0 // loop_header_branch
    %14 = sbr.rel (%p12) target = $region8
  $region5: #{dgcnn_origin_forward.15} parent=0 // loop_body
    %s16 = ssub.s32 %s11, 1
    %s17 = ssub.s32 %s11, 2
    %s24 = sadd.s32 1, %s19
    %p25 = scmp.ge.s32.totalorder %s24, 1
    %s26 = scalar_select %p25, 0, %s24
    %s27 = sadd.s32 1, %s18
    %s28 = scalar_select %p25, %s27, %s18
    %p29 = scmp.ge.s32.totalorder %s28, 2
    %s30 = scalar_select %p29, 0, %s28
    %s31 = ssub.s32 %s18, %s30
    %s32 = ssub.s32 %s19, %s26
    %s33 = sor.u32 %s31, %s32
    %p34 = scmp.eq.s32.totalorder %s33, 0
    %s36 = sadd.s32 %s35, 1
    %s37 = scalar_select %p34, %s35, %s36
    %p40 = pneg %p34
    %p41 = scmp.eq.s32.totalorder %s11, 1
    %p42 = por %p40, %p41
    %p43 = scmp.ne.s32.totalorder %s35, %s38
    %p44 = scmp.eq.s32.totalorder %s11, 0
    %p45 = por %p43, %p44
    %p46 = scmp.ne.s32.totalorder %s35, %s38
    %p47 = scmp.eq.s32.totalorder %s16, 1
    %p48 = por %p46, %p47
    %p49 = scmp.ne.s32.totalorder %s38, %s39
    %p50 = scmp.eq.s32.totalorder %s16, 0
    %p51 = por %p49, %p50
    %p52 = scmp.ne.s32.totalorder %s38, %s39
    %p53 = scmp.eq.s32.totalorder %s17, 1
    %p54 = por %p52, %p53
    %p56 = scmp.ne.s32.totalorder %s39, %s55
    %p57 = scmp.eq.s32.totalorder %s17, 0
    %p58 = por %p56, %p57
    %s60 = sadd.s32 %s59, 1
    %p63 = scmp.eq.s32.totalorder %s11, 1
    %p64 = scmp.ne.s32.totalorder %s59, %s61
    %p65 = scmp.eq.s32.totalorder %s11, 0
    %p66 = por %p64, %p65
    %p67 = scmp.ne.s32.totalorder %s59, %s61
    %p68 = scmp.eq.s32.totalorder %s16, 1
    %p69 = por %p67, %p68
    %p70 = scmp.ne.s32.totalorder %s61, %s62
    %p71 = scmp.eq.s32.totalorder %s16, 0
    %p72 = por %p70, %p71
    %p73 = scmp.ne.s32.totalorder %s61, %s62
    %p74 = scmp.eq.s32.totalorder %s17, 1
    %p75 = por %p73, %p74
    %p77 = scmp.ne.s32.totalorder %s62, %s76
    %p78 = scmp.eq.s32.totalorder %s17, 0
    %p79 = por %p77, %p78
    %s81 = sadd.s32 %s80, 1
    %p84 = scmp.eq.s32.totalorder %s11, 1
    %p85 = scmp.ne.s32.totalorder %s80, %s82
    %p86 = scmp.eq.s32.totalorder %s11, 0
    %p87 = por %p85, %p86
    %p88 = scmp.ne.s32.totalorder %s80, %s82
    %p89 = scmp.eq.s32.totalorder %s16, 1
    %p90 = por %p88, %p89
    %p91 = scmp.ne.s32.totalorder %s82, %s83
    %p92 = scmp.eq.s32.totalorder %s16, 0
    %p93 = por %p91, %p92
    %p94 = scmp.ne.s32.totalorder %s82, %s83
    %p95 = scmp.eq.s32.totalorder %s17, 1
    %p96 = por %p94, %p95
    %p98 = scmp.ne.s32.totalorder %s83, %s97
    %p99 = scmp.eq.s32.totalorder %s17, 0
    %p100 = por %p98, %p99
    %s101 = ssub.s32 %s18, %s30
    %s102 = ssub.s32 %s19, %s26
    %s103 = sor.u32 %s101, %s102
    %p104 = scmp.eq.s32.totalorder %s103, 0
    %s106 = sadd.s32 %s105, 1
    %s107 = scalar_select %p104, %s105, %s106
    %p110 = pneg %p104
    %p111 = scmp.eq.s32.totalorder %s11, 1
    %p112 = por %p110, %p111
    %p113 = scmp.ne.s32.totalorder %s105, %s108
    %p114 = scmp.eq.s32.totalorder %s11, 0
    %p115 = por %p113, %p114
    %p116 = scmp.ne.s32.totalorder %s105, %s108
    %p117 = scmp.eq.s32.totalorder %s16, 1
    %p118 = por %p116, %p117
    %p119 = scmp.ne.s32.totalorder %s108, %s109
    %p120 = scmp.eq.s32.totalorder %s16, 0
    %p121 = por %p119, %p120
    %p122 = scmp.ne.s32.totalorder %s108, %s109
    %p123 = scmp.eq.s32.totalorder %s17, 1
    %p124 = por %p122, %p123
    %p126 = scmp.ne.s32.totalorder %s109, %s125
    %p127 = scmp.eq.s32.totalorder %s17, 0
    %p128 = por %p126, %p127
    %s129 = ssub.s32 %s18, %s30
    %s130 = ssub.s32 %s19, %s26
    %s131 = sor.u32 %s129, %s130
    %p132 = scmp.eq.s32.totalorder %s131, 0
    %s134 = sadd.s32 %s133, 1
    %s135 = scalar_select %p132, %s133, %s134
    %p138 = pneg %p132
    %p139 = scmp.eq.s32.totalorder %s11, 1
    %p140 = por %p138, %p139
    %p141 = scmp.ne.s32.totalorder %s133, %s136
    %p142 = scmp.eq.s32.totalorder %s11, 0
    %p143 = por %p141, %p142
    %p144 = scmp.ne.s32.totalorder %s133, %s136
    %p145 = scmp.eq.s32.totalorder %s16, 1
    %p146 = por %p144, %p145
    %p147 = scmp.ne.s32.totalorder %s136, %s137
    %p148 = scmp.eq.s32.totalorder %s16, 0
    %p149 = por %p147, %p148
    %p150 = scmp.ne.s32.totalorder %s136, %s137
    %p151 = scmp.eq.s32.totalorder %s17, 1
    %p152 = por %p150, %p151
    %p154 = scmp.ne.s32.totalorder %s137, %s153
    %p155 = scmp.eq.s32.totalorder %s17, 0
    %p156 = por %p154, %p155
    %p157 = scmp.le.s32.totalorder 1, %s11
    %p158 = scmp.lt.s32.totalorder %s11, 3
    %p159 = pnand %p157, %p158
    %p160 = pneg %p159
    // Predicated region
    $region9: #{dgcnn_origin_forward.15} parent=5 // pred_check
      _
    $region10: #{dgcnn_origin_forward.15} parent=5 // pred_check_branch
      %162 = sbr.rel (%p159) target = $region12
    $region11: #{dgcnn_origin_forward.15} parent=5 // pred_region
      %s163 = ssub.s32 %s11, 1
      // Predicated region
      $region13: #{dgcnn_origin_forward.15} parent=11 // pred_check
        %p164 = pneg %p72
      $region14: #{dgcnn_origin_forward.15} parent=11 // pred_check_branch
        %166 = sbr.rel (%p164) target = $region16
      $region15: #{dgcnn_origin_forward.15} parent=11 // pred_region
        _
      $region16: #{dgcnn_origin_forward.15} parent=11 // pred_fallthru
        _
      // Predicated region
      $region17: #{dgcnn_origin_forward.15} parent=11 // pred_check
        %p167 = pneg %p93
      $region18: #{dgcnn_origin_forward.15} parent=11 // pred_check_branch
        %169 = sbr.rel (%p167) target = $region20
      $region19: #{dgcnn_origin_forward.15} parent=11 // pred_region
        _
      $region20: #{dgcnn_origin_forward.15} parent=11 // pred_fallthru
        _
    $region12: #{dgcnn_origin_forward.15} parent=5 // pred_fallthru
      _
    %p170 = scmp.lt.s32.totalorder %s11, 2
    // Predicated region
    $region21: #{dgcnn_origin_forward.15} parent=5 // pred_check
      %p171 = pneg %p170
    $region22: #{dgcnn_origin_forward.15} parent=5 // pred_check_branch
      %173 = sbr.rel (%p171) target = $region24
    $region23: #{dgcnn_origin_forward.15} parent=5 // pred_region
      // Predicated region
      $region25: #{dgcnn_origin_forward.15} parent=23 // pred_check
        %p174 = pneg %p45
      $region26: #{dgcnn_origin_forward.15} parent=23 // pred_check_branch
        %176 = sbr.rel (%p174) target = $region28
      $region27: #{dgcnn_origin_forward.15} parent=23 // pred_region
        %s177 = smul.u32 2, %s19
        %p178 = scmp.lt.s32.totalorder %s18, 1
        %s179 = scalar_select %p178, %s18, 1
        %p180 = scmp.lt.s32.totalorder %s177, 1
        %s181 = scalar_select %p180, %s177, 1
        %s182 = smul.addr %s179, 2
        %s183 = sadd.s32 %s181, %s182
        %s184 = smul.addr %s183, 4
        %s185 = scalar_lea.vmem %s0, %s184
        %s186 = smul.u32 2, %s19
      $region28: #{dgcnn_origin_forward.15} parent=23 // pred_fallthru
        _
    $region24: #{dgcnn_origin_forward.15} parent=5 // pred_fallthru
      _
    %p187 = scmp.le.s32.totalorder 1, %s11
    %p188 = scmp.lt.s32.totalorder %s11, 3
    %p189 = pnand %p187, %p188
    %p190 = pneg %p189
    // Predicated region
    $region29: #{dgcnn_origin_forward.15} parent=5 // pred_check
      _
    $region30: #{dgcnn_origin_forward.15} parent=5 // pred_check_branch
      %192 = sbr.rel (%p189) target = $region32
    $region31: #{dgcnn_origin_forward.15} parent=5 // pred_region
      %s193 = ssub.s32 %s11, 1
      %s194 = smul.u32 2, %s21
      %p195 = scmp.lt.s32.totalorder %s20, 1
      %s196 = scalar_select %p195, %s20, 1
      %p197 = scmp.lt.s32.totalorder %s194, 1
      %s198 = scalar_select %p197, %s194, 1
      %s199 = smul.addr %s196, 2
      %s200 = sadd.s32 %s198, %s199
      %s201 = smul.addr %s200, 4
      %s202 = scalar_lea.vmem %s0, %s201
      %p203 = pneg %p51
      %p204 = pneg %p48
      %p205 = pneg %p72
      %p206 = pneg %p69
      %p207 = pneg %p93
      %p208 = pneg %p90
      %p209 = pneg %p121
      %p210 = pneg %p118
      %s211 = smul.u32 2, %s21
      %p212 = scmp.lt.s32.totalorder %s20, 1
      %s213 = scalar_select %p212, %s20, 1
      %p214 = scmp.lt.s32.totalorder %s211, 1
      %s215 = scalar_select %p214, %s211, 1
      %s216 = smul.addr %s213, 2
      %s217 = sadd.s32 %s215, %s216
      %s218 = smul.addr %s217, 8
      %s219 = scalar_lea.vmem %s3, %s218
      %p220 = pneg %p149
      %p221 = pneg %p146
      %s222 = smul.u32 2, %s21
      %p223 = scmp.lt.s32.totalorder %s20, 1
      %s224 = scalar_select %p223, %s20, 1
      %p225 = scmp.lt.s32.totalorder %s222, 1
      %s226 = scalar_select %p225, %s222, 1
      %s227 = smul.addr %s224, 2
      %s228 = sadd.s32 %s226, %s227
      %s229 = smul.addr %s228, 8
      %s230 = scalar_lea.vmem %s4, %s229
      %s231 = smul.u32 2, %s21
      %p232 = scmp.lt.s32.totalorder %s20, 1
      %s233 = scalar_select %p232, %s20, 1
      %p234 = scmp.lt.s32.totalorder %s231, 1
      %s235 = scalar_select %p234, %s231, 1
      %s236 = smul.addr %s233, 2
      %s237 = sadd.s32 %s235, %s236
      %s238 = smul.addr %s237, 4
      %s239 = scalar_lea.vmem %s0, %s238
      %s240 = smul.u32 2, %s21
      %s241 = smul.u32 2, %s21
      %p242 = scmp.lt.s32.totalorder %s20, 1
      %s243 = scalar_select %p242, %s20, 1
      %p244 = scmp.lt.s32.totalorder %s241, 1
      %s245 = scalar_select %p244, %s241, 1
      %s246 = smul.addr %s243, 2
      %s247 = sadd.s32 %s245, %s246
      %s248 = smul.addr %s247, 8
      %s249 = scalar_lea.vmem %s3, %s248
      %s250 = smul.u32 2, %s21
      %s251 = smul.u32 2, %s21
      %p252 = scmp.lt.s32.totalorder %s20, 1
      %s253 = scalar_select %p252, %s20, 1
      %p254 = scmp.lt.s32.totalorder %s251, 1
      %s255 = scalar_select %p254, %s251, 1
      %s256 = smul.addr %s253, 2
      %s257 = sadd.s32 %s255, %s256
      %s258 = smul.addr %s257, 8
      %s259 = scalar_lea.vmem %s4, %s258
      %s260 = smul.u32 2, %s21
      %v262 = vld [vmem:[%s239] sm:$0xf]
      %v263 = vld [vmem:[%s239 + $0x4] sm:$0xf]
      %v264 = vld [vmem:[%s1] sm:$0xf]
      %v265 = vld [vmem:[%s1 + $0x4] sm:$0xf]
      %v268 = vunpack.c.l.b16 %v262
      %v269 = vunpack.c.l.b16 %v263
      %v270 = vpack.c.b16 %v269, %v268
      %v273 = vunpack.c.l.b16 %v264
      %v274 = vunpack.c.l.b16 %v265
      %v275 = vpack.c.b16 %v274, %v273
      %vm277 = vcmask 130048
      %v279 = vsel %vm277, %v270, 0
      %281 = vmatprep.subr.bf16.mxu0 0
      %282 = vmatpush1.bf16.msra.mxu0 0
      %283 = vmatprep.subr.bf16.mxu0 0
      %284 = vmatpush1.bf16.msra.mxu0 0
      %285 = vmatprep.subr.bf16.mxu0 0
      %286 = vmatpush1.bf16.msra.mxu0 0
      %287 = vmatprep.subr.bf16.mxu0 0
      %288 = vmatpush1.bf16.msra.mxu0 0
      %289 = vmatprep.subr.bf16.mxu0 0
      %290 = vmatpush1.bf16.msra.mxu0 0
      %291 = vmatprep.subr.bf16.mxu0 0
      %292 = vmatpush1.bf16.msra.mxu0 0
      %293 = vmatprep.subr.bf16.mxu0 0
      %294 = vmatpush1.bf16.msra.mxu0 0
      %295 = vmatprep.subr.bf16.mxu0 0
      %296 = vmatpush1.bf16.msra.mxu0 %v275
      %297 = vmatprep.subr.bf16.mxu0 0
      %298 = vmatpush2.bf16.msra.mxu0 0
      %299 = vmatprep.subr.bf16.mxu0 0
      %300 = vmatpush2.bf16.msra.mxu0 0
      %301 = vmatprep.subr.bf16.mxu0 0
      %302 = vmatpush2.bf16.msra.mxu0 0
      %303 = vmatprep.subr.bf16.mxu0 0
      %304 = vmatpush2.bf16.msra.mxu0 0
      %305 = vmatprep.subr.bf16.mxu0 0
      %306 = vmatpush2.bf16.msra.mxu0 0
      %307 = vmatprep.subr.bf16.mxu0 0
      %308 = vmatpush2.bf16.msra.mxu0 0
      %309 = vmatprep.subr.bf16.mxu0 0
      %310 = vmatpush2.bf16.msra.mxu0 0
      %311 = vmatprep.subr.bf16.mxu0 0
      %312 = vmatpush2.bf16.msra.mxu0 0
      %313 = vmatprep.mubr.bf16.mxu0 0
      %314 = vmatmul.mubr.bf16.gmra.mxu0 %v279
      %v315 = vpop.f32.mrf.mxu0
      %v316 = vadd.f32 0.0, %v315
      %v317 = vpop.f32.mrf.mxu0
      %v318 = vpop.f32.mrf.mxu0
      %v319 = vadd.f32 0.0, %v318
      %v320 = vpop.f32.mrf.mxu0
      %321 = vdwg.mxu0
      %vm322 = vcmask 261120
      %323 = vst.msk [vmem:[%s249] sm:$0xff] %vm322, %v316
      %324 = vst.msk [vmem:[%s249 + $0x8] sm:$0xff] %vm322, %v319
      %v325 = vld [vmem:[%s2] sm:$0xf]
      %v326 = vld [vmem:[%s2 + $0x4] sm:$0xf]
      %v329 = vunpack.c.l.b16 %v325
      %v330 = vunpack.c.l.b16 %v326
      %v331 = vpack.c.b16 %v330, %v329
      %333 = vmatprep.subr.bf16.mxu0 0
      %334 = vmatpush1.bf16.msra.mxu0 0
      %335 = vmatprep.subr.bf16.mxu0 0
      %336 = vmatpush1.bf16.msra.mxu0 0
      %337 = vmatprep.subr.bf16.mxu0 0
      %338 = vmatpush1.bf16.msra.mxu0 0
      %339 = vmatprep.subr.bf16.mxu0 0
      %340 = vmatpush1.bf16.msra.mxu0 0
      %341 = vmatprep.subr.bf16.mxu0 0
      %342 = vmatpush1.bf16.msra.mxu0 0
      %343 = vmatprep.subr.bf16.mxu0 0
      %344 = vmatpush1.bf16.msra.mxu0 0
      %345 = vmatprep.subr.bf16.mxu0 0
      %346 = vmatpush1.bf16.msra.mxu0 0
      %347 = vmatprep.subr.bf16.mxu0 0
      %348 = vmatpush1.bf16.msra.mxu0 %v331
      %349 = vmatprep.subr.bf16.mxu0 0
      %350 = vmatpush2.bf16.msra.mxu0 0
      %351 = vmatprep.subr.bf16.mxu0 0
      %352 = vmatpush2.bf16.msra.mxu0 0
      %353 = vmatprep.subr.bf16.mxu0 0
      %354 = vmatpush2.bf16.msra.mxu0 0
      %355 = vmatprep.subr.bf16.mxu0 0
      %356 = vmatpush2.bf16.msra.mxu0 0
      %357 = vmatprep.subr.bf16.mxu0 0
      %358 = vmatpush2.bf16.msra.mxu0 0
      %359 = vmatprep.subr.bf16.mxu0 0
      %360 = vmatpush2.bf16.msra.mxu0 0
      %361 = vmatprep.subr.bf16.mxu0 0
      %362 = vmatpush2.bf16.msra.mxu0 0
      %363 = vmatprep.subr.bf16.mxu0 0
      %364 = vmatpush2.bf16.msra.mxu0 0
      %365 = vmatprep.mubr.bf16.mxu0 0
      %366 = vmatmul.mubr.bf16.gmra.mxu0 %v279
      %v367 = vpop.f32.mrf.mxu0
      %v368 = vadd.f32 0.0, %v367
      %v369 = vpop.f32.mrf.mxu0
      %v370 = vpop.f32.mrf.mxu0
      %v371 = vadd.f32 0.0, %v370
      %v372 = vpop.f32.mrf.mxu0
      %373 = vdwg.mxu0
      %374 = vst.msk [vmem:[%s259] sm:$0xff] %vm322, %v368
      %375 = vst.msk [vmem:[%s259 + $0x8] sm:$0xff] %vm322, %v371
      %s376 = smul.u32 2, %s21
      %p377 = scmp.lt.s32.totalorder %s20, 1
      %s378 = scalar_select %p377, %s20, 1
      %p379 = scmp.lt.s32.totalorder %s376, 1
      %s380 = scalar_select %p379, %s376, 1
      %s381 = smul.addr %s378, 2
      %s382 = sadd.s32 %s380, %s381
      %s383 = smul.addr %s382, 8
      %s384 = scalar_lea.vmem %s3, %s383
      %s385 = smul.u32 2, %s21
      %p386 = scmp.lt.s32.totalorder %s20, 1
      %s387 = scalar_select %p386, %s20, 1
      %p388 = scmp.lt.s32.totalorder %s385, 1
      %s389 = scalar_select %p388, %s385, 1
      %s390 = smul.addr %s387, 2
      %s391 = sadd.s32 %s389, %s390
      %s392 = smul.addr %s391, 8
      %s393 = scalar_lea.vmem %s4, %s392
      // Predicated region
      $region33: #{dgcnn_origin_forward.15} parent=31 // pred_check
        %p394 = pneg %p118
      $region34: #{dgcnn_origin_forward.15} parent=31 // pred_check_branch
        %396 = sbr.rel (%p394) target = $region36
      $region35: #{dgcnn_origin_forward.15} parent=31 // pred_region
        %s397 = smul.u32 2, %s21
      $region36: #{dgcnn_origin_forward.15} parent=31 // pred_fallthru
        _
      // Predicated region
      $region37: #{dgcnn_origin_forward.15} parent=31 // pred_check
        %p398 = pneg %p146
      $region38: #{dgcnn_origin_forward.15} parent=31 // pred_check_branch
        %400 = sbr.rel (%p398) target = $region40
      $region39: #{dgcnn_origin_forward.15} parent=31 // pred_region
        %s401 = smul.u32 2, %s21
      $region40: #{dgcnn_origin_forward.15} parent=31 // pred_fallthru
        _
    $region32: #{dgcnn_origin_forward.15} parent=5 // pred_fallthru
      _
    %p402 = scmp.le.s32.totalorder 2, %s11
    // Predicated region
    $region41: #{dgcnn_origin_forward.15} parent=5 // pred_check
      %p403 = pneg %p402
    $region42: #{dgcnn_origin_forward.15} parent=5 // pred_check_branch
      %405 = sbr.rel (%p403) target = $region44
    $region43: #{dgcnn_origin_forward.15} parent=5 // pred_region
      %s406 = ssub.s32 %s11, 2
      // Predicated region
      $region45: #{dgcnn_origin_forward.15} parent=43 // pred_check
        %p407 = pneg %p124
      $region46: #{dgcnn_origin_forward.15} parent=43 // pred_check_branch
        %409 = sbr.rel (%p407) target = $region48
      $region47: #{dgcnn_origin_forward.15} parent=43 // pred_region
        %s410 = smul.u32 2, %s23
        %p411 = scmp.lt.s32.totalorder %s22, 1
        %s412 = scalar_select %p411, %s22, 1
        %p413 = scmp.lt.s32.totalorder %s410, 1
        %s414 = scalar_select %p413, %s410, 1
        %s415 = smul.addr %s412, 2
        %s416 = sadd.s32 %s414, %s415
        %s417 = smul.addr %s416, 8
        %s418 = scalar_lea.vmem %s3, %s417
      $region48: #{dgcnn_origin_forward.15} parent=43 // pred_fallthru
        _
      // Predicated region
      $region49: #{dgcnn_origin_forward.15} parent=43 // pred_check
        %p419 = pneg %p152
      $region50: #{dgcnn_origin_forward.15} parent=43 // pred_check_branch
        %421 = sbr.rel (%p419) target = $region52
      $region51: #{dgcnn_origin_forward.15} parent=43 // pred_region
        %s422 = smul.u32 2, %s23
        %p423 = scmp.lt.s32.totalorder %s22, 1
        %s424 = scalar_select %p423, %s22, 1
        %p425 = scmp.lt.s32.totalorder %s422, 1
        %s426 = scalar_select %p425, %s422, 1
        %s427 = smul.addr %s424, 2
        %s428 = sadd.s32 %s426, %s427
        %s429 = smul.addr %s428, 8
        %s430 = scalar_lea.vmem %s4, %s429
      $region52: #{dgcnn_origin_forward.15} parent=43 // pred_fallthru
        _
    $region44: #{dgcnn_origin_forward.15} parent=5 // pred_fallthru
      _
  $region6: #{dgcnn_origin_forward.15} parent=0 // loop_footer
    %s15 = sadd.s32 1, %s11
  $region7: #{dgcnn_origin_forward.15} parent=0 // loop_footer_branch
    %10 = sbr.rel target = $region3
  $region8: #{dgcnn_origin_forward.15} parent=0 // loop_exit
    _

// kernel: dgcnn_origin_forward.16
$region0: #{dgcnn_origin_forward.16}
  #allocation0 [shape = 'u32[]', space=smem, size = 0x4, offset = 0x4, fixed_abs, tag = 'smem constant byte address 0x4 - core index']
  #allocation1 [shape = 'u32[144,128]{1,0:T(1,128)}', space=vmem, size = 0x12000, scoped, tag = 'internal scratch']
  %s0 = inlined_call_operand.vmem [shape: f32[2,16,16], index: 0, kind: input, shape index: {}]
  %s1 = inlined_call_operand.vmem [shape: f32[2,16,16], index: 1, kind: input, shape index: {}]
  %s2 = inlined_call_operand.vmem [shape: f32[2,1,16], index: 2, kind: input, shape index: {}]
  %s3 = inlined_call_operand.vmem [shape: f32[2,16,32], index: 3, kind: input, shape index: {}]
  %s4 = inlined_call_operand.vmem [shape: f32[2,16,32], index: 4, kind: input, shape index: {}]
  %s5 = inlined_call_operand.vmem [shape: f32[2,16,32], index: 5, kind: output, shape index: {0}]
  %s6 = inlined_call_operand.vmem [shape: f32[2,1,64], index: 6, kind: output, shape index: {1}]
  %7 = xla_tuple %s5, %s6
  %s8 = sld [smem:[#allocation0]]
  $region65: #{dgcnn_origin_forward.16} parent=0
    _
  %s10 = ssub.s32 1, %s8
  %s11 = scalar_select 0, %s10, %s8
  loop: start=0, step=1, limit=4
  $region2: #{dgcnn_origin_forward.16} parent=0 // loop_pre_header
    _
  $region3: #{dgcnn_origin_forward.16} parent=0 // loop_header
    %s13 = sphi 0, %s17
    %p14 = scmp.ge.s32.totalorder %s13, 4
    %s20 = sphi 0, %s32
    %s21 = sphi 0, %s28
    %s22 = sphi 0, %s20
    %s23 = sphi 0, %s21
    %s24 = sphi 0, %s22
    %s25 = sphi 0, %s23
    %s37 = sphi 0, %s39
    %s40 = sphi 0, %s37
    %s41 = sphi 0, %s40
    %s57 = sphi 0, %s41
    %s63 = sphi 0, %s65
    %s66 = sphi 0, %s63
    %s67 = sphi 0, %s66
    %s83 = sphi 0, %s67
    %s89 = sphi 0, %s91
    %s92 = sphi 0, %s89
    %s93 = sphi 0, %s92
    %s109 = sphi 0, %s93
    %s115 = sphi 0, %s117
    %s118 = sphi 0, %s115
    %s119 = sphi 0, %s118
    %s135 = sphi 0, %s119
    %s143 = sphi 0, %s145
    %s146 = sphi 0, %s143
    %s147 = sphi 0, %s146
    %s163 = sphi 0, %s147
    %s171 = sphi 0, %s173
    %s174 = sphi 0, %s171
    %s175 = sphi 0, %s174
    %s191 = sphi 0, %s175
    %s197 = sphi 0, %s199
    %s200 = sphi 0, %s197
    %s201 = sphi 0, %s200
    %s217 = sphi 0, %s201
  $region4: #{dgcnn_origin_forward.16} parent=0 // loop_header_branch
    %16 = sbr.rel (%p14) target = $region8
  $region5: #{dgcnn_origin_forward.16} parent=0 // loop_body
    %s18 = ssub.s32 %s13, 1
    %s19 = ssub.s32 %s13, 2
    %s26 = sadd.s32 1, %s21
    %p27 = scmp.ge.s32.totalorder %s26, 1
    %s28 = scalar_select %p27, 0, %s26
    %s29 = sadd.s32 1, %s20
    %s30 = scalar_select %p27, %s29, %s20
    %p31 = scmp.ge.s32.totalorder %s30, 2
    %s32 = scalar_select %p31, 0, %s30
    %s33 = ssub.s32 %s20, %s32
    %s34 = ssub.s32 %s21, %s28
    %s35 = sor.u32 %s33, %s34
    %p36 = scmp.eq.s32.totalorder %s35, 0
    %s38 = sadd.s32 %s37, 1
    %s39 = scalar_select %p36, %s37, %s38
    %p42 = pneg %p36
    %p43 = scmp.eq.s32.totalorder %s13, 1
    %p44 = por %p42, %p43
    %p45 = scmp.ne.s32.totalorder %s37, %s40
    %p46 = scmp.eq.s32.totalorder %s13, 0
    %p47 = por %p45, %p46
    %p48 = scmp.ne.s32.totalorder %s37, %s40
    %p49 = scmp.eq.s32.totalorder %s18, 1
    %p50 = por %p48, %p49
    %p51 = scmp.ne.s32.totalorder %s40, %s41
    %p52 = scmp.eq.s32.totalorder %s18, 0
    %p53 = por %p51, %p52
    %p54 = scmp.ne.s32.totalorder %s40, %s41
    %p55 = scmp.eq.s32.totalorder %s19, 1
    %p56 = por %p54, %p55
    %p58 = scmp.ne.s32.totalorder %s41, %s57
    %p59 = scmp.eq.s32.totalorder %s19, 0
    %p60 = por %p58, %p59
    %s61 = ssub.s32 %s20, %s32
    %p62 = scmp.eq.s32.totalorder %s61, 0
    %s64 = sadd.s32 %s63, 1
    %s65 = scalar_select %p62, %s63, %s64
    %p68 = pneg %p62
    %p69 = scmp.eq.s32.totalorder %s13, 1
    %p70 = por %p68, %p69
    %p71 = scmp.ne.s32.totalorder %s63, %s66
    %p72 = scmp.eq.s32.totalorder %s13, 0
    %p73 = por %p71, %p72
    %p74 = scmp.ne.s32.totalorder %s63, %s66
    %p75 = scmp.eq.s32.totalorder %s18, 1
    %p76 = por %p74, %p75
    %p77 = scmp.ne.s32.totalorder %s66, %s67
    %p78 = scmp.eq.s32.totalorder %s18, 0
    %p79 = por %p77, %p78
    %p80 = scmp.ne.s32.totalorder %s66, %s67
    %p81 = scmp.eq.s32.totalorder %s19, 1
    %p82 = por %p80, %p81
    %p84 = scmp.ne.s32.totalorder %s67, %s83
    %p85 = scmp.eq.s32.totalorder %s19, 0
    %p86 = por %p84, %p85
    %s87 = ssub.s32 %s20, %s32
    %p88 = scmp.eq.s32.totalorder %s87, 0
    %s90 = sadd.s32 %s89, 1
    %s91 = scalar_select %p88, %s89, %s90
    %p94 = pneg %p88
    %p95 = scmp.eq.s32.totalorder %s13, 1
    %p96 = por %p94, %p95
    %p97 = scmp.ne.s32.totalorder %s89, %s92
    %p98 = scmp.eq.s32.totalorder %s13, 0
    %p99 = por %p97, %p98
    %p100 = scmp.ne.s32.totalorder %s89, %s92
    %p101 = scmp.eq.s32.totalorder %s18, 1
    %p102 = por %p100, %p101
    %p103 = scmp.ne.s32.totalorder %s92, %s93
    %p104 = scmp.eq.s32.totalorder %s18, 0
    %p105 = por %p103, %p104
    %p106 = scmp.ne.s32.totalorder %s92, %s93
    %p107 = scmp.eq.s32.totalorder %s19, 1
    %p108 = por %p106, %p107
    %p110 = scmp.ne.s32.totalorder %s93, %s109
    %p111 = scmp.eq.s32.totalorder %s19, 0
    %p112 = por %p110, %p111
    %s113 = ssub.s32 %s20, %s32
    %p114 = scmp.eq.s32.totalorder %s113, 0
    %s116 = sadd.s32 %s115, 1
    %s117 = scalar_select %p114, %s115, %s116
    %p120 = pneg %p114
    %p121 = scmp.eq.s32.totalorder %s13, 1
    %p122 = por %p120, %p121
    %p123 = scmp.ne.s32.totalorder %s115, %s118
    %p124 = scmp.eq.s32.totalorder %s13, 0
    %p125 = por %p123, %p124
    %p126 = scmp.ne.s32.totalorder %s115, %s118
    %p127 = scmp.eq.s32.totalorder %s18, 1
    %p128 = por %p126, %p127
    %p129 = scmp.ne.s32.totalorder %s118, %s119
    %p130 = scmp.eq.s32.totalorder %s18, 0
    %p131 = por %p129, %p130
    %p132 = scmp.ne.s32.totalorder %s118, %s119
    %p133 = scmp.eq.s32.totalorder %s19, 1
    %p134 = por %p132, %p133
    %p136 = scmp.ne.s32.totalorder %s119, %s135
    %p137 = scmp.eq.s32.totalorder %s19, 0
    %p138 = por %p136, %p137
    %s139 = ssub.s32 %s20, %s32
    %s140 = ssub.s32 %s21, %s28
    %s141 = sor.u32 %s139, %s140
    %p142 = scmp.eq.s32.totalorder %s141, 0
    %s144 = sadd.s32 %s143, 1
    %s145 = scalar_select %p142, %s143, %s144
    %p148 = pneg %p142
    %p149 = scmp.eq.s32.totalorder %s13, 1
    %p150 = por %p148, %p149
    %p151 = scmp.ne.s32.totalorder %s143, %s146
    %p152 = scmp.eq.s32.totalorder %s13, 0
    %p153 = por %p151, %p152
    %p154 = scmp.ne.s32.totalorder %s143, %s146
    %p155 = scmp.eq.s32.totalorder %s18, 1
    %p156 = por %p154, %p155
    %p157 = scmp.ne.s32.totalorder %s146, %s147
    %p158 = scmp.eq.s32.totalorder %s18, 0
    %p159 = por %p157, %p158
    %p160 = scmp.ne.s32.totalorder %s146, %s147
    %p161 = scmp.eq.s32.totalorder %s19, 1
    %p162 = por %p160, %p161
    %p164 = scmp.ne.s32.totalorder %s147, %s163
    %p165 = scmp.eq.s32.totalorder %s19, 0
    %p166 = por %p164, %p165
    %s167 = ssub.s32 %s20, %s32
    %s168 = ssub.s32 %s21, %s28
    %s169 = sor.u32 %s167, %s168
    %p170 = scmp.eq.s32.totalorder %s169, 0
    %s172 = sadd.s32 %s171, 1
    %s173 = scalar_select %p170, %s171, %s172
    %p176 = pneg %p170
    %p177 = scmp.eq.s32.totalorder %s13, 1
    %p178 = por %p176, %p177
    %p179 = scmp.ne.s32.totalorder %s171, %s174
    %p180 = scmp.eq.s32.totalorder %s13, 0
    %p181 = por %p179, %p180
    %p182 = scmp.ne.s32.totalorder %s171, %s174
    %p183 = scmp.eq.s32.totalorder %s18, 1
    %p184 = por %p182, %p183
    %p185 = scmp.ne.s32.totalorder %s174, %s175
    %p186 = scmp.eq.s32.totalorder %s18, 0
    %p187 = por %p185, %p186
    %p188 = scmp.ne.s32.totalorder %s174, %s175
    %p189 = scmp.eq.s32.totalorder %s19, 1
    %p190 = por %p188, %p189
    %p192 = scmp.ne.s32.totalorder %s175, %s191
    %p193 = scmp.eq.s32.totalorder %s19, 0
    %p194 = por %p192, %p193
    %s195 = ssub.s32 %s20, %s32
    %p196 = scmp.eq.s32.totalorder %s195, 0
    %s198 = sadd.s32 %s197, 1
    %s199 = scalar_select %p196, %s197, %s198
    %p202 = pneg %p196
    %p203 = scmp.eq.s32.totalorder %s13, 1
    %p204 = por %p202, %p203
    %p205 = scmp.ne.s32.totalorder %s197, %s200
    %p206 = scmp.eq.s32.totalorder %s13, 0
    %p207 = por %p205, %p206
    %p208 = scmp.ne.s32.totalorder %s197, %s200
    %p209 = scmp.eq.s32.totalorder %s18, 1
    %p210 = por %p208, %p209
    %p211 = scmp.ne.s32.totalorder %s200, %s201
    %p212 = scmp.eq.s32.totalorder %s18, 0
    %p213 = por %p211, %p212
    %p214 = scmp.ne.s32.totalorder %s200, %s201
    %p215 = scmp.eq.s32.totalorder %s19, 1
    %p216 = por %p214, %p215
    %p218 = scmp.ne.s32.totalorder %s201, %s217
    %p219 = scmp.eq.s32.totalorder %s19, 0
    %p220 = por %p218, %p219
    %p221 = scmp.le.s32.totalorder 1, %s13
    %p222 = scmp.lt.s32.totalorder %s13, 3
    %p223 = pnand %p221, %p222
    %p224 = pneg %p223
    // Predicated region
    $region9: #{dgcnn_origin_forward.16} parent=5 // pred_check
      _
    $region10: #{dgcnn_origin_forward.16} parent=5 // pred_check_branch
      %226 = sbr.rel (%p223) target = $region12
    $region11: #{dgcnn_origin_forward.16} parent=5 // pred_region
      %s227 = ssub.s32 %s13, 1
    $region12: #{dgcnn_origin_forward.16} parent=5 // pred_fallthru
      _
    %p228 = scmp.lt.s32.totalorder %s13, 2
    // Predicated region
    $region13: #{dgcnn_origin_forward.16} parent=5 // pred_check
      %p229 = pneg %p228
    $region14: #{dgcnn_origin_forward.16} parent=5 // pred_check_branch
      %231 = sbr.rel (%p229) target = $region16
    $region15: #{dgcnn_origin_forward.16} parent=5 // pred_region
      // Predicated region
      $region17: #{dgcnn_origin_forward.16} parent=15 // pred_check
        %p232 = pneg %p47
      $region18: #{dgcnn_origin_forward.16} parent=15 // pred_check_branch
        %234 = sbr.rel (%p232) target = $region20
      $region19: #{dgcnn_origin_forward.16} parent=15 // pred_region
        %s235 = smul.u32 2, %s21
        %p236 = scmp.lt.s32.totalorder %s20, 1
        %s237 = scalar_select %p236, %s20, 1
        %p238 = scmp.lt.s32.totalorder %s235, 1
        %s239 = scalar_select %p238, %s235, 1
        %s240 = smul.addr %s237, 2
        %s241 = sadd.s32 %s239, %s240
        %s242 = smul.addr %s241, 8
        %s243 = scalar_lea.vmem %s0, %s242
        %s244 = smul.u32 2, %s21
      $region20: #{dgcnn_origin_forward.16} parent=15 // pred_fallthru
        _
      // Predicated region
      $region21: #{dgcnn_origin_forward.16} parent=15 // pred_check
        %p245 = pneg %p73
      $region22: #{dgcnn_origin_forward.16} parent=15 // pred_check_branch
        %247 = sbr.rel (%p245) target = $region24
      $region23: #{dgcnn_origin_forward.16} parent=15 // pred_region
        %p248 = scmp.lt.s32.totalorder %s20, 1
        %s249 = scalar_select %p248, %s20, 1
        %s250 = smul.addr %s249, 2
        %s251 = smul.addr %s250, 8
        %s252 = scalar_lea.vmem %s1, %s251
      $region24: #{dgcnn_origin_forward.16} parent=15 // pred_fallthru
        _
      // Predicated region
      $region25: #{dgcnn_origin_forward.16} parent=15 // pred_check
        %p253 = pneg %p99
      $region26: #{dgcnn_origin_forward.16} parent=15 // pred_check_branch
        %255 = sbr.rel (%p253) target = $region28
      $region27: #{dgcnn_origin_forward.16} parent=15 // pred_region
        %p256 = scmp.lt.s32.totalorder %s20, 1
        %s257 = scalar_select %p256, %s20, 1
        %s258 = scalar_lea.vmem %s2, %s257
      $region28: #{dgcnn_origin_forward.16} parent=15 // pred_fallthru
        _
      // Predicated region
      $region29: #{dgcnn_origin_forward.16} parent=15 // pred_check
        %p259 = pneg %p125
      $region30: #{dgcnn_origin_forward.16} parent=15 // pred_check_branch
        %261 = sbr.rel (%p259) target = $region32
      $region31: #{dgcnn_origin_forward.16} parent=15 // pred_region
        %p262 = scmp.lt.s32.totalorder %s20, 1
        %s263 = scalar_select %p262, %s20, 1
        %s264 = smul.addr %s263, 2
        %s265 = smul.addr %s264, 8
        %s266 = scalar_lea.vmem %s3, %s265
      $region32: #{dgcnn_origin_forward.16} parent=15 // pred_fallthru
        _
      // Predicated region
      $region33: #{dgcnn_origin_forward.16} parent=15 // pred_check
        %p267 = pneg %p153
      $region34: #{dgcnn_origin_forward.16} parent=15 // pred_check_branch
        %269 = sbr.rel (%p267) target = $region36
      $region35: #{dgcnn_origin_forward.16} parent=15 // pred_region
        %s270 = smul.u32 2, %s21
        %p271 = scmp.lt.s32.totalorder %s20, 1
        %s272 = scalar_select %p271, %s20, 1
        %p273 = scmp.lt.s32.totalorder %s270, 1
        %s274 = scalar_select %p273, %s270, 1
        %s275 = smul.addr %s272, 2
        %s276 = sadd.s32 %s274, %s275
        %s277 = smul.addr %s276, 8
        %s278 = scalar_lea.vmem %s4, %s277
        %s279 = smul.u32 2, %s21
      $region36: #{dgcnn_origin_forward.16} parent=15 // pred_fallthru
        _
    $region16: #{dgcnn_origin_forward.16} parent=5 // pred_fallthru
      _
    %p280 = scmp.le.s32.totalorder 1, %s13
    %p281 = scmp.lt.s32.totalorder %s13, 3
    %p282 = pnand %p280, %p281
    %p283 = pneg %p282
    // Predicated region
    $region37: #{dgcnn_origin_forward.16} parent=5 // pred_check
      _
    $region38: #{dgcnn_origin_forward.16} parent=5 // pred_check_branch
      %285 = sbr.rel (%p282) target = $region40
    $region39: #{dgcnn_origin_forward.16} parent=5 // pred_region
      %s286 = ssub.s32 %s13, 1
      %s287 = smul.u32 2, %s23
      %p288 = scmp.lt.s32.totalorder %s22, 1
      %s289 = scalar_select %p288, %s22, 1
      %p290 = scmp.lt.s32.totalorder %s287, 1
      %s291 = scalar_select %p290, %s287, 1
      %s292 = smul.addr %s289, 2
      %s293 = sadd.s32 %s291, %s292
      %s294 = smul.addr %s293, 8
      %s295 = scalar_lea.vmem %s0, %s294
      %p296 = pneg %p53
      %p297 = pneg %p50
      %p298 = scmp.lt.s32.totalorder %s22, 1
      %s299 = scalar_select %p298, %s22, 1
      %s300 = smul.addr %s299, 2
      %s301 = smul.addr %s300, 8
      %s302 = scalar_lea.vmem %s1, %s301
      %p303 = pneg %p79
      %p304 = pneg %p76
      %p305 = scmp.lt.s32.totalorder %s22, 1
      %s306 = scalar_select %p305, %s22, 1
      %s307 = scalar_lea.vmem %s2, %s306
      %p308 = pneg %p105
      %p309 = pneg %p102
      %p310 = scmp.lt.s32.totalorder %s22, 1
      %s311 = scalar_select %p310, %s22, 1
      %s312 = smul.addr %s311, 2
      %s313 = smul.addr %s312, 8
      %s314 = scalar_lea.vmem %s3, %s313
      %p315 = pneg %p131
      %p316 = pneg %p128
      %s317 = smul.u32 2, %s23
      %p318 = scmp.lt.s32.totalorder %s22, 1
      %s319 = scalar_select %p318, %s22, 1
      %p320 = scmp.lt.s32.totalorder %s317, 1
      %s321 = scalar_select %p320, %s317, 1
      %s322 = smul.addr %s319, 2
      %s323 = sadd.s32 %s321, %s322
      %s324 = smul.addr %s323, 8
      %s325 = scalar_lea.vmem %s4, %s324
      %p326 = pneg %p159
      %p327 = pneg %p156
      %p328 = pneg %p187
      %p329 = pneg %p184
      %s330 = smul.u32 2, %s23
      %p331 = scmp.lt.s32.totalorder %s22, 1
      %s332 = scalar_select %p331, %s22, 1
      %p333 = scmp.lt.s32.totalorder %s330, 1
      %s334 = scalar_select %p333, %s330, 1
      %s335 = smul.addr %s332, 2
      %s336 = sadd.s32 %s334, %s335
      %s337 = smul.addr %s336, 8
      %s338 = scalar_lea.vmem %s5, %s337
      %p339 = pneg %p213
      %p340 = pneg %p210
      %p341 = scmp.lt.s32.totalorder %s22, 1
      %s342 = scalar_select %p341, %s22, 1
      %s343 = scalar_lea.vmem %s6, %s342
      %s344 = smul.u32 2, %s23
      %p345 = scmp.lt.s32.totalorder %s22, 1
      %s346 = scalar_select %p345, %s22, 1
      %p347 = scmp.lt.s32.totalorder %s344, 1
      %s348 = scalar_select %p347, %s344, 1
      %s349 = smul.addr %s346, 2
      %s350 = sadd.s32 %s348, %s349
      %s351 = smul.addr %s350, 8
      %s352 = scalar_lea.vmem %s0, %s351
      %s353 = smul.u32 2, %s23
      %p354 = scmp.lt.s32.totalorder %s22, 1
      %s355 = scalar_select %p354, %s22, 1
      %s356 = smul.addr %s355, 2
      %s357 = smul.addr %s356, 8
      %s358 = scalar_lea.vmem %s1, %s357
      %p359 = scmp.lt.s32.totalorder %s22, 1
      %s360 = scalar_select %p359, %s22, 1
      %s361 = scalar_lea.vmem %s2, %s360
      %p362 = scmp.lt.s32.totalorder %s22, 1
      %s363 = scalar_select %p362, %s22, 1
      %s364 = smul.addr %s363, 2
      %s365 = smul.addr %s364, 8
      %s366 = scalar_lea.vmem %s3, %s365
      %s367 = smul.u32 2, %s23
      %p368 = scmp.lt.s32.totalorder %s22, 1
      %s369 = scalar_select %p368, %s22, 1
      %p370 = scmp.lt.s32.totalorder %s367, 1
      %s371 = scalar_select %p370, %s367, 1
      %s372 = smul.addr %s369, 2
      %s373 = sadd.s32 %s371, %s372
      %s374 = smul.addr %s373, 8
      %s375 = scalar_lea.vmem %s4, %s374
      %s376 = smul.u32 2, %s23
      %s377 = smul.u32 2, %s23
      %p378 = scmp.lt.s32.totalorder %s22, 1
      %s379 = scalar_select %p378, %s22, 1
      %p380 = scmp.lt.s32.totalorder %s377, 1
      %s381 = scalar_select %p380, %s377, 1
      %s382 = smul.addr %s379, 2
      %s383 = sadd.s32 %s381, %s382
      %s384 = smul.addr %s383, 8
      %s385 = scalar_lea.vmem %s5, %s384
      %s386 = smul.u32 2, %s23
      %p387 = scmp.lt.s32.totalorder %s22, 1
      %s388 = scalar_select %p387, %s22, 1
      %s389 = scalar_lea.vmem %s6, %s388
      %p390 = scmp.eq.s32.totalorder %s23, 0
      // Predicated region
      $region41: #{dgcnn_origin_forward.16} parent=39 // pred_check
        %p391 = pneg %p390
      $region42: #{dgcnn_origin_forward.16} parent=39 // pred_check_branch
        %393 = sbr.rel (%p391) target = $region44
      $region43: #{dgcnn_origin_forward.16} parent=39 // pred_region
        %vm394 = vcmask 516096
        %395 = vst.msk [vmem:[%s389] sm:$0x1] %vm394, 0.0
      $region44: #{dgcnn_origin_forward.16} parent=39 // pred_fallthru
        _
      %v396 = vld [vmem:[%s352] sm:$0xff]
      %v397 = vld [vmem:[%s352 + $0x8] sm:$0xff]
      %v398 = vmul.f32 %v396, 2.0
      %v399 = vmul.f32 %v397, 2.0
      %v400 = vld [vmem:[%s358] sm:$0xff]
      %v401 = vld [vmem:[%s358 + $0x8] sm:$0xff]
      %v402 = vld [vmem:[%s361] sm:$0x1]
      %v403 = vld [vmem:[%s366] sm:$0xff]
      %v404 = vld [vmem:[%s366 + $0x8] sm:$0xff]
      %v405 = vld [vmem:[%s375] sm:$0xff]
      %v406 = vld [vmem:[%s375 + $0x8] sm:$0xff]
      %vm407 = vcmask 130048
      %v409 = vsel %vm407, %v398, 0
      %v412 = vsel %vm407, %v399, 0
      %414 = vmatprep.subr.mxu0 0.0
      %415 = vmatpush1.msra.mxu0 0.0
      %416 = vmatprep.subr.mxu0 0.0
      %417 = vmatpush1.msra.mxu0 0.0
      %418 = vmatprep.subr.mxu0 0.0
      %419 = vmatpush1.msra.mxu0 0.0
      %420 = vmatprep.subr.mxu0 0.0
      %421 = vmatpush1.msra.mxu0 0.0
      %422 = vmatprep.subr.mxu0 0.0
      %423 = vmatpush1.msra.mxu0 0.0
      %424 = vmatprep.subr.mxu0 0.0
      %425 = vmatpush1.msra.mxu0 0.0
      %426 = vmatprep.subr.mxu0 0.0
      %427 = vmatpush1.msra.mxu0 0.0
      %428 = vmatprep.subr.mxu0 0.0
      %429 = vmatpush1.msra.mxu0 0.0
      %430 = vmatprep.subr.mxu0 0.0
      %431 = vmatpush1.msra.mxu0 0.0
      %432 = vmatprep.subr.mxu0 0.0
      %433 = vmatpush1.msra.mxu0 0.0
      %434 = vmatprep.subr.mxu0 0.0
      %435 = vmatpush1.msra.mxu0 0.0
      %436 = vmatprep.subr.mxu0 0.0
      %437 = vmatpush1.msra.mxu0 0.0
      %438 = vmatprep.subr.mxu0 0.0
      %439 = vmatpush1.msra.mxu0 0.0
      %440 = vmatprep.subr.mxu0 0.0
      %441 = vmatpush1.msra.mxu0 0.0
      %442 = vmatprep.subr.mxu0 0.0
      %443 = vmatpush1.msra.mxu0 %v401
      %444 = vmatprep.subr.mxu0 0.0
      %445 = vmatpush1.msra.mxu0 %v400
      %446 = vmatprep.subr.mxu0 0.0
      %447 = vmatpush2.msra.mxu0 0.0
      %448 = vmatprep.subr.mxu0 0.0
      %449 = vmatpush2.msra.mxu0 0.0
      %450 = vmatprep.subr.mxu0 0.0
      %451 = vmatpush2.msra.mxu0 0.0
      %452 = vmatprep.subr.mxu0 0.0
      %453 = vmatpush2.msra.mxu0 0.0
      %454 = vmatprep.subr.mxu0 0.0
      %455 = vmatpush2.msra.mxu0 0.0
      %456 = vmatprep.subr.mxu0 0.0
      %457 = vmatpush2.msra.mxu0 0.0
      %458 = vmatprep.subr.mxu0 0.0
      %459 = vmatpush2.msra.mxu0 0.0
      %460 = vmatprep.subr.mxu0 0.0
      %461 = vmatpush2.msra.mxu0 0.0
      %462 = vmatprep.subr.mxu0 0.0
      %463 = vmatpush2.msra.mxu0 0.0
      %464 = vmatprep.subr.mxu0 0.0
      %465 = vmatpush2.msra.mxu0 0.0
      %466 = vmatprep.subr.mxu0 0.0
      %467 = vmatpush2.msra.mxu0 0.0
      %468 = vmatprep.subr.mxu0 0.0
      %469 = vmatpush2.msra.mxu0 0.0
      %470 = vmatprep.subr.mxu0 0.0
      %471 = vmatpush2.msra.mxu0 0.0
      %472 = vmatprep.subr.mxu0 0.0
      %473 = vmatpush2.msra.mxu0 0.0
      %474 = vmatprep.subr.mxu0 0.0
      %475 = vmatpush2.msra.mxu0 0.0
      %476 = vmatprep.subr.mxu0 0.0
      %477 = vmatpush2.msra.mxu0 0.0
      %478 = vmatprep.mubr.f32.mxu0 0.0
      %479 = vmatmul.mubr.f32.gmra.mxu0 %v409
      %v480 = vpop.f32.mrf.mxu0
      %v481 = vadd.f32 0.0, %v480
      %v482 = vpop.f32.mrf.mxu0
      %483 = vmatprep.mubr.f32.mxu0 0.0
      %484 = vmatmul.mubr.f32.gmra.mxu0 %v412
      %v485 = vpop.f32.mrf.mxu0
      %v486 = vadd.f32 0.0, %v485
      %v487 = vpop.f32.mrf.mxu0
      %488 = vdwg.mxu0
      %v490 = vlaneseq
      %v491 = vshrl.u32 %v490, 7
      %v492 = vsub.s32 0, %v491
      %v493 = vrot.slane %v402, %v492
      %v495 = vsub.f32 %v481, %v493
      %v496 = vsub.f32 %v486, %v493
      %v497 = vlaneseq
      %v498 = vand.u32 %v497, 127
      %v499 = vcvt.s32.f32 %v498
      %v500 = vsel %vm407, %v495, -inf
      %501 = vmax.xlane.f32.xlu0 %v500
      %v502 = vpop.xlane.xlu0 %501
      %v503 = vsel %vm407, %v496, -inf
      %504 = vmax.xlane.f32.xlu0 %v503
      %v505 = vpop.xlane.xlu0 %504
      %vm506 = vcmp.eq.f32.partialorder %v495, %v502
      %vm507 = vcmp.eq.f32.partialorder %v496, %v505
      %v508 = vsel %vm506, %v499, 16.0
      %v509 = vsel %vm507, %v499, 16.0
      %v510 = vsel %vm407, %v508, inf
      %511 = vmin.xlane.f32.xlu0 %v510
      %v512 = vpop.xlane.xlu0 %511
      %v513 = vsel %vm407, %v509, inf
      %514 = vmin.xlane.f32.xlu0 %v513
      %v515 = vpop.xlane.xlu0 %514
      %vm516 = vcmp.eq.f32.partialorder %v499, %v512
      %vm517 = vcmp.eq.f32.partialorder %v499, %v515
      %v518 = vsel %vm516, -inf, %v495
      %v519 = vsel %vm517, -inf, %v496
      %v520 = vsel %vm516, 1, 0
      %v521 = vsel %vm517, 1, 0
      %v522 = vcvt.s32.f32 %v520
      %v523 = vcvt.s32.f32 %v521
      %v525 = vsel %vm407, %v522, 0
      %v528 = vsel %vm407, %v523, 0
      %530 = vmatprep.subr.mxu0 0.0
      %531 = vmatpush1.msra.mxu0 0.0
      %532 = vmatprep.subr.mxu0 0.0
      %533 = vmatpush1.msra.mxu0 0.0
      %534 = vmatprep.subr.mxu0 0.0
      %535 = vmatpush1.msra.mxu0 0.0
      %536 = vmatprep.subr.mxu0 0.0
      %537 = vmatpush1.msra.mxu0 0.0
      %538 = vmatprep.subr.mxu0 0.0
      %539 = vmatpush1.msra.mxu0 0.0
      %540 = vmatprep.subr.mxu0 0.0
      %541 = vmatpush1.msra.mxu0 0.0
      %542 = vmatprep.subr.mxu0 0.0
      %543 = vmatpush1.msra.mxu0 0.0
      %544 = vmatprep.subr.mxu0 0.0
      %545 = vmatpush1.msra.mxu0 0.0
      %546 = vmatprep.subr.mxu0 0.0
      %547 = vmatpush1.msra.mxu0 0.0
      %548 = vmatprep.subr.mxu0 0.0
      %549 = vmatpush1.msra.mxu0 0.0
      %550 = vmatprep.subr.mxu0 0.0
      %551 = vmatpush1.msra.mxu0 0.0
      %552 = vmatprep.subr.mxu0 0.0
      %553 = vmatpush1.msra.mxu0 0.0
      %554 = vmatprep.subr.mxu0 0.0
      %555 = vmatpush1.msra.mxu0 0.0
      %556 = vmatprep.subr.mxu0 0.0
      %557 = vmatpush1.msra.mxu0 0.0
      %558 = vmatprep.subr.mxu0 0.0
      %559 = vmatpush1.msra.mxu0 %v404
      %560 = vmatprep.subr.mxu0 0.0
      %561 = vmatpush1.msra.mxu0 %v403
      %562 = vmatprep.subr.mxu0 0.0
      %563 = vmatpush2.msra.mxu0 0.0
      %564 = vmatprep.subr.mxu0 0.0
      %565 = vmatpush2.msra.mxu0 0.0
      %566 = vmatprep.subr.mxu0 0.0
      %567 = vmatpush2.msra.mxu0 0.0
      %568 = vmatprep.subr.mxu0 0.0
      %569 = vmatpush2.msra.mxu0 0.0
      %570 = vmatprep.subr.mxu0 0.0
      %571 = vmatpush2.msra.mxu0 0.0
      %572 = vmatprep.subr.mxu0 0.0
      %573 = vmatpush2.msra.mxu0 0.0
      %574 = vmatprep.subr.mxu0 0.0
      %575 = vmatpush2.msra.mxu0 0.0
      %576 = vmatprep.subr.mxu0 0.0
      %577 = vmatpush2.msra.mxu0 0.0
      %578 = vmatprep.subr.mxu0 0.0
      %579 = vmatpush2.msra.mxu0 0.0
      %580 = vmatprep.subr.mxu0 0.0
      %581 = vmatpush2.msra.mxu0 0.0
      %582 = vmatprep.subr.mxu0 0.0
      %583 = vmatpush2.msra.mxu0 0.0
      %584 = vmatprep.subr.mxu0 0.0
      %585 = vmatpush2.msra.mxu0 0.0
      %586 = vmatprep.subr.mxu0 0.0
      %587 = vmatpush2.msra.mxu0 0.0
      %588 = vmatprep.subr.mxu0 0.0
      %589 = vmatpush2.msra.mxu0 0.0
      %590 = vmatprep.subr.mxu0 0.0
      %591 = vmatpush2.msra.mxu0 0.0
      %592 = vmatprep.subr.mxu0 0.0
      %593 = vmatpush2.msra.mxu0 0.0
      %594 = vmatprep.mubr.f32.mxu0 0.0
      %595 = vmatmul.mubr.f32.gmra.mxu0 %v525
      %v596 = vpop.f32.mrf.mxu0
      %v597 = vadd.f32 0.0, %v596
      %v598 = vpop.f32.mrf.mxu0
      %599 = vmatprep.mubr.f32.mxu0 0.0
      %600 = vmatmul.mubr.f32.gmra.mxu0 %v528
      %v601 = vpop.f32.mrf.mxu0
      %v602 = vadd.f32 0.0, %v601
      %v603 = vpop.f32.mrf.mxu0
      %604 = vdwg.mxu0
      %v605 = vmul.f32 %v597, %v597
      %v606 = vmul.f32 %v602, %v602
      %v607 = vsel %vm407, %v518, -inf
      %608 = vmax.xlane.f32.xlu0 %v607
      %v609 = vpop.xlane.xlu0 %608
      %v610 = vsel %vm407, %v519, -inf
      %611 = vmax.xlane.f32.xlu0 %v610
      %v612 = vpop.xlane.xlu0 %611
      %vm613 = vcmp.eq.f32.partialorder %v518, %v609
      %vm614 = vcmp.eq.f32.partialorder %v519, %v612
      %v615 = vsel %vm613, %v499, 16.0
      %v616 = vsel %vm614, %v499, 16.0
      %v617 = vsel %vm407, %v615, inf
      %618 = vmin.xlane.f32.xlu0 %v617
      %v619 = vpop.xlane.xlu0 %618
      %v620 = vsel %vm407, %v616, inf
      %621 = vmin.xlane.f32.xlu0 %v620
      %v622 = vpop.xlane.xlu0 %621
      %vm623 = vcmp.eq.f32.partialorder %v499, %v619
      %vm624 = vcmp.eq.f32.partialorder %v499, %v622
      %v625 = vsel %vm623, -inf, %v518
      %v626 = vsel %vm624, -inf, %v519
      %v627 = vsel %vm623, 1, 0
      %v628 = vsel %vm624, 1, 0
      %v629 = vcvt.s32.f32 %v627
      %v630 = vcvt.s32.f32 %v628
      %v632 = vsel %vm407, %v629, 0
      %v635 = vsel %vm407, %v630, 0
      %637 = vmatprep.subr.mxu0 0.0
      %638 = vmatpush1.msra.mxu0 0.0
      %639 = vmatprep.subr.mxu0 0.0
      %640 = vmatpush1.msra.mxu0 0.0
      %641 = vmatprep.subr.mxu0 0.0
      %642 = vmatpush1.msra.mxu0 0.0
      %643 = vmatprep.subr.mxu0 0.0
      %644 = vmatpush1.msra.mxu0 0.0
      %645 = vmatprep.subr.mxu0 0.0
      %646 = vmatpush1.msra.mxu0 0.0
      %647 = vmatprep.subr.mxu0 0.0
      %648 = vmatpush1.msra.mxu0 0.0
      %649 = vmatprep.subr.mxu0 0.0
      %650 = vmatpush1.msra.mxu0 0.0
      %651 = vmatprep.subr.mxu0 0.0
      %652 = vmatpush1.msra.mxu0 0.0
      %653 = vmatprep.subr.mxu0 0.0
      %654 = vmatpush1.msra.mxu0 0.0
      %655 = vmatprep.subr.mxu0 0.0
      %656 = vmatpush1.msra.mxu0 0.0
      %657 = vmatprep.subr.mxu0 0.0
      %658 = vmatpush1.msra.mxu0 0.0
      %659 = vmatprep.subr.mxu0 0.0
      %660 = vmatpush1.msra.mxu0 0.0
      %661 = vmatprep.subr.mxu0 0.0
      %662 = vmatpush1.msra.mxu0 0.0
      %663 = vmatprep.subr.mxu0 0.0
      %664 = vmatpush1.msra.mxu0 0.0
      %665 = vmatprep.subr.mxu0 0.0
      %666 = vmatpush1.msra.mxu0 %v404
      %667 = vmatprep.subr.mxu0 0.0
      %668 = vmatpush1.msra.mxu0 %v403
      %669 = vmatprep.subr.mxu0 0.0
      %670 = vmatpush2.msra.mxu0 0.0
      %671 = vmatprep.subr.mxu0 0.0
      %672 = vmatpush2.msra.mxu0 0.0
      %673 = vmatprep.subr.mxu0 0.0
      %674 = vmatpush2.msra.mxu0 0.0
      %675 = vmatprep.subr.mxu0 0.0
      %676 = vmatpush2.msra.mxu0 0.0
      %677 = vmatprep.subr.mxu0 0.0
      %678 = vmatpush2.msra.mxu0 0.0
      %679 = vmatprep.subr.mxu0 0.0
      %680 = vmatpush2.msra.mxu0 0.0
      %681 = vmatprep.subr.mxu0 0.0
      %682 = vmatpush2.msra.mxu0 0.0
      %683 = vmatprep.subr.mxu0 0.0
      %684 = vmatpush2.msra.mxu0 0.0
      %685 = vmatprep.subr.mxu0 0.0
      %686 = vmatpush2.msra.mxu0 0.0
      %687 = vmatprep.subr.mxu0 0.0
      %688 = vmatpush2.msra.mxu0 0.0
      %689 = vmatprep.subr.mxu0 0.0
      %690 = vmatpush2.msra.mxu0 0.0
      %691 = vmatprep.subr.mxu0 0.0
      %692 = vmatpush2.msra.mxu0 0.0
      %693 = vmatprep.subr.mxu0 0.0
      %694 = vmatpush2.msra.mxu0 0.0
      %695 = vmatprep.subr.mxu0 0.0
      %696 = vmatpush2.msra.mxu0 0.0
      %697 = vmatprep.subr.mxu0 0.0
      %698 = vmatpush2.msra.mxu0 0.0
      %699 = vmatprep.subr.mxu0 0.0
      %700 = vmatpush2.msra.mxu0 0.0
      %701 = vmatprep.mubr.f32.mxu0 0.0
      %702 = vmatmul.mubr.f32.gmra.mxu0 %v632
      %v703 = vpop.f32.mrf.mxu0
      %v704 = vadd.f32 0.0, %v703
      %v705 = vpop.f32.mrf.mxu0
      %706 = vmatprep.mubr.f32.mxu0 0.0
      %707 = vmatmul.mubr.f32.gmra.mxu0 %v635
      %v708 = vpop.f32.mrf.mxu0
      %v709 = vadd.f32 0.0, %v708
      %v710 = vpop.f32.mrf.mxu0
      %711 = vdwg.mxu0
      %v712 = vmax.f32 %v597, %v704
      %v713 = vmax.f32 %v602, %v709
      %v714 = vadd.f32 %v597, %v704
      %v715 = vadd.f32 %v602, %v709
      %v716 = vmul.f32 %v704, %v704
      %v717 = vmul.f32 %v709, %v709
      %v718 = vadd.f32 %v605, %v716
      %v719 = vadd.f32 %v606, %v717
      %v720 = vsel %vm407, %v625, -inf
      %721 = vmax.xlane.f32.xlu0 %v720
      %v722 = vpop.xlane.xlu0 %721
      %v723 = vsel %vm407, %v626, -inf
      %724 = vmax.xlane.f32.xlu0 %v723
      %v725 = vpop.xlane.xlu0 %724
      %vm726 = vcmp.eq.f32.partialorder %v625, %v722
      %vm727 = vcmp.eq.f32.partialorder %v626, %v725
      %v728 = vsel %vm726, %v499, 16.0
      %v729 = vsel %vm727, %v499, 16.0
      %v730 = vsel %vm407, %v728, inf
      %731 = vmin.xlane.f32.xlu0 %v730
      %v732 = vpop.xlane.xlu0 %731
      %v733 = vsel %vm407, %v729, inf
      %734 = vmin.xlane.f32.xlu0 %v733
      %v735 = vpop.xlane.xlu0 %734
      %vm736 = vcmp.eq.f32.partialorder %v499, %v732
      %vm737 = vcmp.eq.f32.partialorder %v499, %v735
      %v738 = vsel %vm736, -inf, %v625
      %v739 = vsel %vm737, -inf, %v626
      %v740 = vsel %vm736, 1, 0
      %v741 = vsel %vm737, 1, 0
      %v742 = vcvt.s32.f32 %v740
      %v743 = vcvt.s32.f32 %v741
      %v745 = vsel %vm407, %v742, 0
      %v748 = vsel %vm407, %v743, 0
      %750 = vmatprep.subr.mxu0 0.0
      %751 = vmatpush1.msra.mxu0 0.0
      %752 = vmatprep.subr.mxu0 0.0
      %753 = vmatpush1.msra.mxu0 0.0
      %754 = vmatprep.subr.mxu0 0.0
      %755 = vmatpush1.msra.mxu0 0.0
      %756 = vmatprep.subr.mxu0 0.0
      %757 = vmatpush1.msra.mxu0 0.0
      %758 = vmatprep.subr.mxu0 0.0
      %759 = vmatpush1.msra.mxu0 0.0
      %760 = vmatprep.subr.mxu0 0.0
      %761 = vmatpush1.msra.mxu0 0.0
      %762 = vmatprep.subr.mxu0 0.0
      %763 = vmatpush1.msra.mxu0 0.0
      %764 = vmatprep.subr.mxu0 0.0
      %765 = vmatpush1.msra.mxu0 0.0
      %766 = vmatprep.subr.mxu0 0.0
      %767 = vmatpush1.msra.mxu0 0.0
      %768 = vmatprep.subr.mxu0 0.0
      %769 = vmatpush1.msra.mxu0 0.0
      %770 = vmatprep.subr.mxu0 0.0
      %771 = vmatpush1.msra.mxu0 0.0
      %772 = vmatprep.subr.mxu0 0.0
      %773 = vmatpush1.msra.mxu0 0.0
      %774 = vmatprep.subr.mxu0 0.0
      %775 = vmatpush1.msra.mxu0 0.0
      %776 = vmatprep.subr.mxu0 0.0
      %777 = vmatpush1.msra.mxu0 0.0
      %778 = vmatprep.subr.mxu0 0.0
      %779 = vmatpush1.msra.mxu0 %v404
      %780 = vmatprep.subr.mxu0 0.0
      %781 = vmatpush1.msra.mxu0 %v403
      %782 = vmatprep.subr.mxu0 0.0
      %783 = vmatpush2.msra.mxu0 0.0
      %784 = vmatprep.subr.mxu0 0.0
      %785 = vmatpush2.msra.mxu0 0.0
      %786 = vmatprep.subr.mxu0 0.0
      %787 = vmatpush2.msra.mxu0 0.0
      %788 = vmatprep.subr.mxu0 0.0
      %789 = vmatpush2.msra.mxu0 0.0
      %790 = vmatprep.subr.mxu0 0.0
      %791 = vmatpush2.msra.mxu0 0.0
      %792 = vmatprep.subr.mxu0 0.0
      %793 = vmatpush2.msra.mxu0 0.0
      %794 = vmatprep.subr.mxu0 0.0
      %795 = vmatpush2.msra.mxu0 0.0
      %796 = vmatprep.subr.mxu0 0.0
      %797 = vmatpush2.msra.mxu0 0.0
      %798 = vmatprep.subr.mxu0 0.0
      %799 = vmatpush2.msra.mxu0 0.0
      %800 = vmatprep.subr.mxu0 0.0
      %801 = vmatpush2.msra.mxu0 0.0
      %802 = vmatprep.subr.mxu0 0.0
      %803 = vmatpush2.msra.mxu0 0.0
      %804 = vmatprep.subr.mxu0 0.0
      %805 = vmatpush2.msra.mxu0 0.0
      %806 = vmatprep.subr.mxu0 0.0
      %807 = vmatpush2.msra.mxu0 0.0
      %808 = vmatprep.subr.mxu0 0.0
      %809 = vmatpush2.msra.mxu0 0.0
      %810 = vmatprep.subr.mxu0 0.0
      %811 = vmatpush2.msra.mxu0 0.0
      %812 = vmatprep.subr.mxu0 0.0
      %813 = vmatpush2.msra.mxu0 0.0
      %814 = vmatprep.mubr.f32.mxu0 0.0
      %815 = vmatmul.mubr.f32.gmra.mxu0 %v745
      %v816 = vpop.f32.mrf.mxu0
      %v817 = vadd.f32 0.0, %v816
      %v818 = vpop.f32.mrf.mxu0
      %819 = vmatprep.mubr.f32.mxu0 0.0
      %820 = vmatmul.mubr.f32.gmra.mxu0 %v748
      %v821 = vpop.f32.mrf.mxu0
      %v822 = vadd.f32 0.0, %v821
      %v823 = vpop.f32.mrf.mxu0
      %824 = vdwg.mxu0
      %v825 = vmax.f32 %v712, %v817
      %v826 = vmax.f32 %v713, %v822
      %v827 = vadd.f32 %v714, %v817
      %v828 = vadd.f32 %v715, %v822
      %v829 = vmul.f32 %v817, %v817
      %v830 = vmul.f32 %v822, %v822
      %v831 = vadd.f32 %v718, %v829
      %v832 = vadd.f32 %v719, %v830
      %v833 = vsel %vm407, %v738, -inf
      %834 = vmax.xlane.f32.xlu0 %v833
      %v835 = vpop.xlane.xlu0 %834
      %v836 = vsel %vm407, %v739, -inf
      %837 = vmax.xlane.f32.xlu0 %v836
      %v838 = vpop.xlane.xlu0 %837
      %vm839 = vcmp.eq.f32.partialorder %v738, %v835
      %vm840 = vcmp.eq.f32.partialorder %v739, %v838
      %v841 = vsel %vm839, %v499, 16.0
      %v842 = vsel %vm840, %v499, 16.0
      %v843 = vsel %vm407, %v841, inf
      %844 = vmin.xlane.f32.xlu0 %v843
      %v845 = vpop.xlane.xlu0 %844
      %v846 = vsel %vm407, %v842, inf
      %847 = vmin.xlane.f32.xlu0 %v846
      %v848 = vpop.xlane.xlu0 %847
      %vm849 = vcmp.eq.f32.partialorder %v499, %v845
      %vm850 = vcmp.eq.f32.partialorder %v499, %v848
      %v851 = vsel %vm849, 1, 0
      %v852 = vsel %vm850, 1, 0
      %v853 = vcvt.s32.f32 %v851
      %v854 = vcvt.s32.f32 %v852
      %v856 = vsel %vm407, %v853, 0
      %v859 = vsel %vm407, %v854, 0
      %861 = vmatprep.subr.mxu0 0.0
      %862 = vmatpush1.msra.mxu0 0.0
      %863 = vmatprep.subr.mxu0 0.0
      %864 = vmatpush1.msra.mxu0 0.0
      %865 = vmatprep.subr.mxu0 0.0
      %866 = vmatpush1.msra.mxu0 0.0
      %867 = vmatprep.subr.mxu0 0.0
      %868 = vmatpush1.msra.mxu0 0.0
      %869 = vmatprep.subr.mxu0 0.0
      %870 = vmatpush1.msra.mxu0 0.0
      %871 = vmatprep.subr.mxu0 0.0
      %872 = vmatpush1.msra.mxu0 0.0
      %873 = vmatprep.subr.mxu0 0.0
      %874 = vmatpush1.msra.mxu0 0.0
      %875 = vmatprep.subr.mxu0 0.0
      %876 = vmatpush1.msra.mxu0 0.0
      %877 = vmatprep.subr.mxu0 0.0
      %878 = vmatpush1.msra.mxu0 0.0
      %879 = vmatprep.subr.mxu0 0.0
      %880 = vmatpush1.msra.mxu0 0.0
      %881 = vmatprep.subr.mxu0 0.0
      %882 = vmatpush1.msra.mxu0 0.0
      %883 = vmatprep.subr.mxu0 0.0
      %884 = vmatpush1.msra.mxu0 0.0
      %885 = vmatprep.subr.mxu0 0.0
      %886 = vmatpush1.msra.mxu0 0.0
      %887 = vmatprep.subr.mxu0 0.0
      %888 = vmatpush1.msra.mxu0 0.0
      %889 = vmatprep.subr.mxu0 0.0
      %890 = vmatpush1.msra.mxu0 %v404
      %891 = vmatprep.subr.mxu0 0.0
      %892 = vmatpush1.msra.mxu0 %v403
      %893 = vmatprep.subr.mxu0 0.0
      %894 = vmatpush2.msra.mxu0 0.0
      %895 = vmatprep.subr.mxu0 0.0
      %896 = vmatpush2.msra.mxu0 0.0
      %897 = vmatprep.subr.mxu0 0.0
      %898 = vmatpush2.msra.mxu0 0.0
      %899 = vmatprep.subr.mxu0 0.0
      %900 = vmatpush2.msra.mxu0 0.0
      %901 = vmatprep.subr.mxu0 0.0
      %902 = vmatpush2.msra.mxu0 0.0
      %903 = vmatprep.subr.mxu0 0.0
      %904 = vmatpush2.msra.mxu0 0.0
      %905 = vmatprep.subr.mxu0 0.0
      %906 = vmatpush2.msra.mxu0 0.0
      %907 = vmatprep.subr.mxu0 0.0
      %908 = vmatpush2.msra.mxu0 0.0
      %909 = vmatprep.subr.mxu0 0.0
      %910 = vmatpush2.msra.mxu0 0.0
      %911 = vmatprep.subr.mxu0 0.0
      %912 = vmatpush2.msra.mxu0 0.0
      %913 = vmatprep.subr.mxu0 0.0
      %914 = vmatpush2.msra.mxu0 0.0
      %915 = vmatprep.subr.mxu0 0.0
      %916 = vmatpush2.msra.mxu0 0.0
      %917 = vmatprep.subr.mxu0 0.0
      %918 = vmatpush2.msra.mxu0 0.0
      %919 = vmatprep.subr.mxu0 0.0
      %920 = vmatpush2.msra.mxu0 0.0
      %921 = vmatprep.subr.mxu0 0.0
      %922 = vmatpush2.msra.mxu0 0.0
      %923 = vmatprep.subr.mxu0 0.0
      %924 = vmatpush2.msra.mxu0 0.0
      %925 = vmatprep.mubr.f32.mxu0 0.0
      %926 = vmatmul.mubr.f32.gmra.mxu0 %v856
      %v927 = vpop.f32.mrf.mxu0
      %v928 = vadd.f32 0.0, %v927
      %v929 = vpop.f32.mrf.mxu0
      %930 = vmatprep.mubr.f32.mxu0 0.0
      %931 = vmatmul.mubr.f32.gmra.mxu0 %v859
      %v932 = vpop.f32.mrf.mxu0
      %v933 = vadd.f32 0.0, %v932
      %v934 = vpop.f32.mrf.mxu0
      %935 = vdwg.mxu0
      %v936 = vmax.f32 %v825, %v928
      %v937 = vmax.f32 %v826, %v933
      %v938 = vadd.f32 %v827, %v928
      %v939 = vadd.f32 %v828, %v933
      %v940 = vmul.f32 %v928, %v928
      %v941 = vmul.f32 %v933, %v933
      %v942 = vadd.f32 %v831, %v940
      %v943 = vadd.f32 %v832, %v941
      %vm944 = vcmask 261120
      %945 = vst.msk [vmem:[%s385] sm:$0xff] %vm944, %v936
      %946 = vst.msk [vmem:[%s385 + $0x8] sm:$0xff] %vm944, %v937
      %v947 = vmul.f32 %v405, 4.0
      %v948 = vmul.f32 %v406, 4.0
      %v949 = vadd.f32 %v938, %v947
      %v950 = vadd.f32 %v939, %v948
      %v951 = vsel %vm944, %v949, 0.0
      %v952 = vsel %vm944, %v950, 0.0
      %v953 = vadd.f32 %v951, %v952
      %v954 = vrot.slane %v953, 4
      %v955 = vadd.f32 %v953, %v954
      %v956 = vrot.slane %v955, 2
      %v957 = vadd.f32 %v955, %v956
      %v958 = vrot.slane %v957, 1
      %v959 = vadd.f32 %v957, %v958
      %v960 = vmul.f32 %v405, 2.0
      %v961 = vmul.f32 %v406, 2.0
      %v962 = vmul.f32 %v960, %v938
      %v963 = vmul.f32 %v961, %v939
      %v964 = vadd.f32 %v942, %v962
      %v965 = vadd.f32 %v943, %v963
      %v966 = vmul.f32 %v947, %v405
      %v967 = vmul.f32 %v948, %v406
      %v968 = vadd.f32 %v964, %v966
      %v969 = vadd.f32 %v965, %v967
      %v970 = vsel %vm944, %v968, 0.0
      %v971 = vsel %vm944, %v969, 0.0
      %v972 = vadd.f32 %v970, %v971
      %v973 = vrot.slane %v972, 4
      %v974 = vadd.f32 %v972, %v973
      %v975 = vrot.slane %v974, 2
      %v976 = vadd.f32 %v974, %v975
      %v977 = vrot.slane %v976, 1
      %v978 = vadd.f32 %v976, %v977
      %v979 = vld [vmem:[%s389] sm:$0x1]
      %981 = vrot.lane.b32.xlu0 %v978, 32
      %v982 = vpop.permute.xlu0 %981
      %v984 = vsel %vm944, %v959, %v982
      %v985 = vadd.f32 %v979, %v984
      %vm986 = vcmask 516096
      %987 = vst.msk [vmem:[%s389] sm:$0x1] %vm986, %v985
      %s988 = smul.u32 2, %s23
      %p989 = scmp.lt.s32.totalorder %s22, 1
      %s990 = scalar_select %p989, %s22, 1
      %p991 = scmp.lt.s32.totalorder %s988, 1
      %s992 = scalar_select %p991, %s988, 1
      %s993 = smul.addr %s990, 2
      %s994 = sadd.s32 %s992, %s993
      %s995 = smul.addr %s994, 8
      %s996 = scalar_lea.vmem %s5, %s995
      %p997 = scmp.lt.s32.totalorder %s22, 1
      %s998 = scalar_select %p997, %s22, 1
      %s999 = scalar_lea.vmem %s6, %s998
      // Predicated region
      $region45: #{dgcnn_origin_forward.16} parent=39 // pred_check
        %p1000 = pneg %p184
      $region46: #{dgcnn_origin_forward.16} parent=39 // pred_check_branch
        %1002 = sbr.rel (%p1000) target = $region48
      $region47: #{dgcnn_origin_forward.16} parent=39 // pred_region
        %s1003 = smul.u32 2, %s23
      $region48: #{dgcnn_origin_forward.16} parent=39 // pred_fallthru
        _
      // Predicated region
      $region49: #{dgcnn_origin_forward.16} parent=39 // pred_check
        %p1004 = pneg %p210
      $region50: #{dgcnn_origin_forward.16} parent=39 // pred_check_branch
        %1006 = sbr.rel (%p1004) target = $region52
      $region51: #{dgcnn_origin_forward.16} parent=39 // pred_region
        _
      $region52: #{dgcnn_origin_forward.16} parent=39 // pred_fallthru
        _
    $region40: #{dgcnn_origin_forward.16} parent=5 // pred_fallthru
      _
    %p1007 = scmp.le.s32.totalorder 2, %s13
    // Predicated region
    $region53: #{dgcnn_origin_forward.16} parent=5 // pred_check
      %p1008 = pneg %p1007
    $region54: #{dgcnn_origin_forward.16} parent=5 // pred_check_branch
      %1010 = sbr.rel (%p1008) target = $region56
    $region55: #{dgcnn_origin_forward.16} parent=5 // pred_region
      %s1011 = ssub.s32 %s13, 2
      // Predicated region
      $region57: #{dgcnn_origin_forward.16} parent=55 // pred_check
        %p1012 = pneg %p190
      $region58: #{dgcnn_origin_forward.16} parent=55 // pred_check_branch
        %1014 = sbr.rel (%p1012) target = $region60
      $region59: #{dgcnn_origin_forward.16} parent=55 // pred_region
        %s1015 = smul.u32 2, %s25
        %p1016 = scmp.lt.s32.totalorder %s24, 1
        %s1017 = scalar_select %p1016, %s24, 1
        %p1018 = scmp.lt.s32.totalorder %s1015, 1
        %s1019 = scalar_select %p1018, %s1015, 1
        %s1020 = smul.addr %s1017, 2
        %s1021 = sadd.s32 %s1019, %s1020
        %s1022 = smul.addr %s1021, 8
        %s1023 = scalar_lea.vmem %s5, %s1022
      $region60: #{dgcnn_origin_forward.16} parent=55 // pred_fallthru
        _
      // Predicated region
      $region61: #{dgcnn_origin_forward.16} parent=55 // pred_check
        %p1024 = pneg %p216
      $region62: #{dgcnn_origin_forward.16} parent=55 // pred_check_branch
        %1026 = sbr.rel (%p1024) target = $region64
      $region63: #{dgcnn_origin_forward.16} parent=55 // pred_region
        %p1027 = scmp.lt.s32.totalorder %s24, 1
        %s1028 = scalar_select %p1027, %s24, 1
        %s1029 = scalar_lea.vmem %s6, %s1028
      $region64: #{dgcnn_origin_forward.16} parent=55 // pred_fallthru
        _
    $region56: #{dgcnn_origin_forward.16} parent=5 // pred_fallthru
      _
  $region6: #{dgcnn_origin_forward.16} parent=0 // loop_footer
    %s17 = sadd.s32 1, %s13
  $region7: #{dgcnn_origin_forward.16} parent=0 // loop_footer_branch
    %12 = sbr.rel target = $region3
  $region8: #{dgcnn_origin_forward.16} parent=0 // loop_exit
    _

// kernel: dgcnn_origin_forward.17
$region0: #{dgcnn_origin_forward.17}
  #allocation0 [shape = 'u32[]', space=smem, size = 0x4, offset = 0x4, fixed_abs, tag = 'smem constant byte address 0x4 - core index']
  #allocation1 [shape = 'u32[144,128]{1,0:T(1,128)}', space=vmem, size = 0x12000, scoped, tag = 'internal scratch']
  %s0 = inlined_call_operand.vmem [shape: f32[2,16,32], index: 0, kind: input, shape index: {}]
  %s1 = inlined_call_operand.vmem [shape: f32[2,16,32], index: 1, kind: input, shape index: {}]
  %s2 = inlined_call_operand.vmem [shape: f32[1,32], index: 2, kind: input, shape index: {}]
  %s3 = inlined_call_operand.vmem [shape: f32[1,32], index: 3, kind: input, shape index: {}]
  %s4 = inlined_call_operand.vmem [shape: f32[2,16,32], index: 4, kind: output, shape index: {}]
  %s5 = sld [smem:[#allocation0]]
  $region49: #{dgcnn_origin_forward.17} parent=0
    _
  %s7 = ssub.s32 1, %s5
  %s8 = scalar_select 0, %s7, %s5
  loop: start=0, step=1, limit=4
  $region2: #{dgcnn_origin_forward.17} parent=0 // loop_pre_header
    _
  $region3: #{dgcnn_origin_forward.17} parent=0 // loop_header
    %s10 = sphi 0, %s14
    %p11 = scmp.ge.s32.totalorder %s10, 4
    %s17 = sphi 0, %s29
    %s18 = sphi 0, %s25
    %s19 = sphi 0, %s17
    %s20 = sphi 0, %s18
    %s21 = sphi 0, %s19
    %s22 = sphi 0, %s20
    %s34 = sphi 0, %s36
    %s37 = sphi 0, %s34
    %s38 = sphi 0, %s37
    %s54 = sphi 0, %s38
    %s62 = sphi 0, %s64
    %s65 = sphi 0, %s62
    %s66 = sphi 0, %s65
    %s82 = sphi 0, %s66
    %s86 = sphi 0, %s86
    %s88 = sphi 0, %s86
    %s89 = sphi 0, %s88
    %s103 = sphi 0, %s89
    %s107 = sphi 0, %s107
    %s109 = sphi 0, %s107
    %s110 = sphi 0, %s109
    %s124 = sphi 0, %s110
    %s132 = sphi 0, %s134
    %s135 = sphi 0, %s132
    %s136 = sphi 0, %s135
    %s152 = sphi 0, %s136
  $region4: #{dgcnn_origin_forward.17} parent=0 // loop_header_branch
    %13 = sbr.rel (%p11) target = $region8
  $region5: #{dgcnn_origin_forward.17} parent=0 // loop_body
    %s15 = ssub.s32 %s10, 1
    %s16 = ssub.s32 %s10, 2
    %s23 = sadd.s32 1, %s18
    %p24 = scmp.ge.s32.totalorder %s23, 1
    %s25 = scalar_select %p24, 0, %s23
    %s26 = sadd.s32 1, %s17
    %s27 = scalar_select %p24, %s26, %s17
    %p28 = scmp.ge.s32.totalorder %s27, 2
    %s29 = scalar_select %p28, 0, %s27
    %s30 = ssub.s32 %s17, %s29
    %s31 = ssub.s32 %s18, %s25
    %s32 = sor.u32 %s30, %s31
    %p33 = scmp.eq.s32.totalorder %s32, 0
    %s35 = sadd.s32 %s34, 1
    %s36 = scalar_select %p33, %s34, %s35
    %p39 = pneg %p33
    %p40 = scmp.eq.s32.totalorder %s10, 1
    %p41 = por %p39, %p40
    %p42 = scmp.ne.s32.totalorder %s34, %s37
    %p43 = scmp.eq.s32.totalorder %s10, 0
    %p44 = por %p42, %p43
    %p45 = scmp.ne.s32.totalorder %s34, %s37
    %p46 = scmp.eq.s32.totalorder %s15, 1
    %p47 = por %p45, %p46
    %p48 = scmp.ne.s32.totalorder %s37, %s38
    %p49 = scmp.eq.s32.totalorder %s15, 0
    %p50 = por %p48, %p49
    %p51 = scmp.ne.s32.totalorder %s37, %s38
    %p52 = scmp.eq.s32.totalorder %s16, 1
    %p53 = por %p51, %p52
    %p55 = scmp.ne.s32.totalorder %s38, %s54
    %p56 = scmp.eq.s32.totalorder %s16, 0
    %p57 = por %p55, %p56
    %s58 = ssub.s32 %s17, %s29
    %s59 = ssub.s32 %s18, %s25
    %s60 = sor.u32 %s58, %s59
    %p61 = scmp.eq.s32.totalorder %s60, 0
    %s63 = sadd.s32 %s62, 1
    %s64 = scalar_select %p61, %s62, %s63
    %p67 = pneg %p61
    %p68 = scmp.eq.s32.totalorder %s10, 1
    %p69 = por %p67, %p68
    %p70 = scmp.ne.s32.totalorder %s62, %s65
    %p71 = scmp.eq.s32.totalorder %s10, 0
    %p72 = por %p70, %p71
    %p73 = scmp.ne.s32.totalorder %s62, %s65
    %p74 = scmp.eq.s32.totalorder %s15, 1
    %p75 = por %p73, %p74
    %p76 = scmp.ne.s32.totalorder %s65, %s66
    %p77 = scmp.eq.s32.totalorder %s15, 0
    %p78 = por %p76, %p77
    %p79 = scmp.ne.s32.totalorder %s65, %s66
    %p80 = scmp.eq.s32.totalorder %s16, 1
    %p81 = por %p79, %p80
    %p83 = scmp.ne.s32.totalorder %s66, %s82
    %p84 = scmp.eq.s32.totalorder %s16, 0
    %p85 = por %p83, %p84
    %s87 = sadd.s32 %s86, 1
    %p90 = scmp.eq.s32.totalorder %s10, 1
    %p91 = scmp.ne.s32.totalorder %s86, %s88
    %p92 = scmp.eq.s32.totalorder %s10, 0
    %p93 = por %p91, %p92
    %p94 = scmp.ne.s32.totalorder %s86, %s88
    %p95 = scmp.eq.s32.totalorder %s15, 1
    %p96 = por %p94, %p95
    %p97 = scmp.ne.s32.totalorder %s88, %s89
    %p98 = scmp.eq.s32.totalorder %s15, 0
    %p99 = por %p97, %p98
    %p100 = scmp.ne.s32.totalorder %s88, %s89
    %p101 = scmp.eq.s32.totalorder %s16, 1
    %p102 = por %p100, %p101
    %p104 = scmp.ne.s32.totalorder %s89, %s103
    %p105 = scmp.eq.s32.totalorder %s16, 0
    %p106 = por %p104, %p105
    %s108 = sadd.s32 %s107, 1
    %p111 = scmp.eq.s32.totalorder %s10, 1
    %p112 = scmp.ne.s32.totalorder %s107, %s109
    %p113 = scmp.eq.s32.totalorder %s10, 0
    %p114 = por %p112, %p113
    %p115 = scmp.ne.s32.totalorder %s107, %s109
    %p116 = scmp.eq.s32.totalorder %s15, 1
    %p117 = por %p115, %p116
    %p118 = scmp.ne.s32.totalorder %s109, %s110
    %p119 = scmp.eq.s32.totalorder %s15, 0
    %p120 = por %p118, %p119
    %p121 = scmp.ne.s32.totalorder %s109, %s110
    %p122 = scmp.eq.s32.totalorder %s16, 1
    %p123 = por %p121, %p122
    %p125 = scmp.ne.s32.totalorder %s110, %s124
    %p126 = scmp.eq.s32.totalorder %s16, 0
    %p127 = por %p125, %p126
    %s128 = ssub.s32 %s17, %s29
    %s129 = ssub.s32 %s18, %s25
    %s130 = sor.u32 %s128, %s129
    %p131 = scmp.eq.s32.totalorder %s130, 0
    %s133 = sadd.s32 %s132, 1
    %s134 = scalar_select %p131, %s132, %s133
    %p137 = pneg %p131
    %p138 = scmp.eq.s32.totalorder %s10, 1
    %p139 = por %p137, %p138
    %p140 = scmp.ne.s32.totalorder %s132, %s135
    %p141 = scmp.eq.s32.totalorder %s10, 0
    %p142 = por %p140, %p141
    %p143 = scmp.ne.s32.totalorder %s132, %s135
    %p144 = scmp.eq.s32.totalorder %s15, 1
    %p145 = por %p143, %p144
    %p146 = scmp.ne.s32.totalorder %s135, %s136
    %p147 = scmp.eq.s32.totalorder %s15, 0
    %p148 = por %p146, %p147
    %p149 = scmp.ne.s32.totalorder %s135, %s136
    %p150 = scmp.eq.s32.totalorder %s16, 1
    %p151 = por %p149, %p150
    %p153 = scmp.ne.s32.totalorder %s136, %s152
    %p154 = scmp.eq.s32.totalorder %s16, 0
    %p155 = por %p153, %p154
    %p156 = scmp.le.s32.totalorder 1, %s10
    %p157 = scmp.lt.s32.totalorder %s10, 3
    %p158 = pnand %p156, %p157
    %p159 = pneg %p158
    // Predicated region
    $region9: #{dgcnn_origin_forward.17} parent=5 // pred_check
      _
    $region10: #{dgcnn_origin_forward.17} parent=5 // pred_check_branch
      %161 = sbr.rel (%p158) target = $region12
    $region11: #{dgcnn_origin_forward.17} parent=5 // pred_region
      %s162 = ssub.s32 %s10, 1
      // Predicated region
      $region13: #{dgcnn_origin_forward.17} parent=11 // pred_check
        %p163 = pneg %p99
      $region14: #{dgcnn_origin_forward.17} parent=11 // pred_check_branch
        %165 = sbr.rel (%p163) target = $region16
      $region15: #{dgcnn_origin_forward.17} parent=11 // pred_region
        _
      $region16: #{dgcnn_origin_forward.17} parent=11 // pred_fallthru
        _
      // Predicated region
      $region17: #{dgcnn_origin_forward.17} parent=11 // pred_check
        %p166 = pneg %p120
      $region18: #{dgcnn_origin_forward.17} parent=11 // pred_check_branch
        %168 = sbr.rel (%p166) target = $region20
      $region19: #{dgcnn_origin_forward.17} parent=11 // pred_region
        _
      $region20: #{dgcnn_origin_forward.17} parent=11 // pred_fallthru
        _
    $region12: #{dgcnn_origin_forward.17} parent=5 // pred_fallthru
      _
    %p169 = scmp.lt.s32.totalorder %s10, 2
    // Predicated region
    $region21: #{dgcnn_origin_forward.17} parent=5 // pred_check
      %p170 = pneg %p169
    $region22: #{dgcnn_origin_forward.17} parent=5 // pred_check_branch
      %172 = sbr.rel (%p170) target = $region24
    $region23: #{dgcnn_origin_forward.17} parent=5 // pred_region
      // Predicated region
      $region25: #{dgcnn_origin_forward.17} parent=23 // pred_check
        %p173 = pneg %p44
      $region26: #{dgcnn_origin_forward.17} parent=23 // pred_check_branch
        %175 = sbr.rel (%p173) target = $region28
      $region27: #{dgcnn_origin_forward.17} parent=23 // pred_region
        %s176 = smul.u32 2, %s18
        %p177 = scmp.lt.s32.totalorder %s17, 1
        %s178 = scalar_select %p177, %s17, 1
        %p179 = scmp.lt.s32.totalorder %s176, 1
        %s180 = scalar_select %p179, %s176, 1
        %s181 = smul.addr %s178, 2
        %s182 = sadd.s32 %s180, %s181
        %s183 = smul.addr %s182, 8
        %s184 = scalar_lea.vmem %s0, %s183
        %s185 = smul.u32 2, %s18
      $region28: #{dgcnn_origin_forward.17} parent=23 // pred_fallthru
        _
      // Predicated region
      $region29: #{dgcnn_origin_forward.17} parent=23 // pred_check
        %p186 = pneg %p72
      $region30: #{dgcnn_origin_forward.17} parent=23 // pred_check_branch
        %188 = sbr.rel (%p186) target = $region32
      $region31: #{dgcnn_origin_forward.17} parent=23 // pred_region
        %s189 = smul.u32 2, %s18
        %p190 = scmp.lt.s32.totalorder %s17, 1
        %s191 = scalar_select %p190, %s17, 1
        %p192 = scmp.lt.s32.totalorder %s189, 1
        %s193 = scalar_select %p192, %s189, 1
        %s194 = smul.addr %s191, 2
        %s195 = sadd.s32 %s193, %s194
        %s196 = smul.addr %s195, 8
        %s197 = scalar_lea.vmem %s1, %s196
        %s198 = smul.u32 2, %s18
      $region32: #{dgcnn_origin_forward.17} parent=23 // pred_fallthru
        _
    $region24: #{dgcnn_origin_forward.17} parent=5 // pred_fallthru
      _
    %p199 = scmp.le.s32.totalorder 1, %s10
    %p200 = scmp.lt.s32.totalorder %s10, 3
    %p201 = pnand %p199, %p200
    %p202 = pneg %p201
    // Predicated region
    $region33: #{dgcnn_origin_forward.17} parent=5 // pred_check
      _
    $region34: #{dgcnn_origin_forward.17} parent=5 // pred_check_branch
      %204 = sbr.rel (%p201) target = $region36
    $region35: #{dgcnn_origin_forward.17} parent=5 // pred_region
      %s205 = ssub.s32 %s10, 1
      %s206 = smul.u32 2, %s20
      %p207 = scmp.lt.s32.totalorder %s19, 1
      %s208 = scalar_select %p207, %s19, 1
      %p209 = scmp.lt.s32.totalorder %s206, 1
      %s210 = scalar_select %p209, %s206, 1
      %s211 = smul.addr %s208, 2
      %s212 = sadd.s32 %s210, %s211
      %s213 = smul.addr %s212, 8
      %s214 = scalar_lea.vmem %s0, %s213
      %p215 = pneg %p50
      %p216 = pneg %p47
      %s217 = smul.u32 2, %s20
      %p218 = scmp.lt.s32.totalorder %s19, 1
      %s219 = scalar_select %p218, %s19, 1
      %p220 = scmp.lt.s32.totalorder %s217, 1
      %s221 = scalar_select %p220, %s217, 1
      %s222 = smul.addr %s219, 2
      %s223 = sadd.s32 %s221, %s222
      %s224 = smul.addr %s223, 8
      %s225 = scalar_lea.vmem %s1, %s224
      %p226 = pneg %p78
      %p227 = pneg %p75
      %p228 = pneg %p99
      %p229 = pneg %p96
      %p230 = pneg %p120
      %p231 = pneg %p117
      %p232 = pneg %p148
      %p233 = pneg %p145
      %s234 = smul.u32 2, %s20
      %p235 = scmp.lt.s32.totalorder %s19, 1
      %s236 = scalar_select %p235, %s19, 1
      %p237 = scmp.lt.s32.totalorder %s234, 1
      %s238 = scalar_select %p237, %s234, 1
      %s239 = smul.addr %s236, 2
      %s240 = sadd.s32 %s238, %s239
      %s241 = smul.addr %s240, 8
      %s242 = scalar_lea.vmem %s4, %s241
      %s243 = smul.u32 2, %s20
      %p244 = scmp.lt.s32.totalorder %s19, 1
      %s245 = scalar_select %p244, %s19, 1
      %p246 = scmp.lt.s32.totalorder %s243, 1
      %s247 = scalar_select %p246, %s243, 1
      %s248 = smul.addr %s245, 2
      %s249 = sadd.s32 %s247, %s248
      %s250 = smul.addr %s249, 8
      %s251 = scalar_lea.vmem %s0, %s250
      %s252 = smul.u32 2, %s20
      %s253 = smul.u32 2, %s20
      %p254 = scmp.lt.s32.totalorder %s19, 1
      %s255 = scalar_select %p254, %s19, 1
      %p256 = scmp.lt.s32.totalorder %s253, 1
      %s257 = scalar_select %p256, %s253, 1
      %s258 = smul.addr %s255, 2
      %s259 = sadd.s32 %s257, %s258
      %s260 = smul.addr %s259, 8
      %s261 = scalar_lea.vmem %s1, %s260
      %s262 = smul.u32 2, %s20
      %s263 = smul.u32 2, %s20
      %p264 = scmp.lt.s32.totalorder %s19, 1
      %s265 = scalar_select %p264, %s19, 1
      %p266 = scmp.lt.s32.totalorder %s263, 1
      %s267 = scalar_select %p266, %s263, 1
      %s268 = smul.addr %s265, 2
      %s269 = sadd.s32 %s267, %s268
      %s270 = smul.addr %s269, 8
      %s271 = scalar_lea.vmem %s4, %s270
      %s272 = smul.u32 2, %s20
      %v273 = vld [vmem:[%s2] sm:$0x1]
      %v274 = vld [vmem:[%s3] sm:$0x1]
      %v275 = vld [vmem:[%s251] sm:$0xff]
      %v276 = vld [vmem:[%s251 + $0x8] sm:$0xff]
      %v277 = vld [vmem:[%s261] sm:$0xff]
      %v278 = vld [vmem:[%s261 + $0x8] sm:$0xff]
      %v279 = vadd.f32 %v275, %v277
      %v280 = vadd.f32 %v276, %v278
      %v282 = vlaneseq
      %v283 = vshrl.u32 %v282, 7
      %v284 = vsub.s32 0, %v283
      %v285 = vrot.slane %v273, %v284
      %v287 = vmul.f32 %v285, %v279
      %v288 = vmul.f32 %v285, %v280
      %v290 = vlaneseq
      %v291 = vshrl.u32 %v290, 7
      %v292 = vsub.s32 0, %v291
      %v293 = vrot.slane %v274, %v292
      %v295 = vadd.f32 %v287, %v293
      %v296 = vadd.f32 %v288, %v293
      %vm297 = vcmp.ge.f32.partialorder %v295, 0.0
      %vm298 = vcmp.ge.f32.partialorder %v296, 0.0
      %v299 = vmul.f32 %v295, 0.2
      %v300 = vmul.f32 %v296, 0.2
      %v301 = vsel %vm297, %v295, %v299
      %v302 = vsel %vm298, %v296, %v300
      %vm303 = vcmask 261120
      %304 = vst.msk [vmem:[%s271] sm:$0xff] %vm303, %v301
      %305 = vst.msk [vmem:[%s271 + $0x8] sm:$0xff] %vm303, %v302
      %s306 = smul.u32 2, %s20
      %p307 = scmp.lt.s32.totalorder %s19, 1
      %s308 = scalar_select %p307, %s19, 1
      %p309 = scmp.lt.s32.totalorder %s306, 1
      %s310 = scalar_select %p309, %s306, 1
      %s311 = smul.addr %s308, 2
      %s312 = sadd.s32 %s310, %s311
      %s313 = smul.addr %s312, 8
      %s314 = scalar_lea.vmem %s4, %s313
      // Predicated region
      $region37: #{dgcnn_origin_forward.17} parent=35 // pred_check
        %p315 = pneg %p145
      $region38: #{dgcnn_origin_forward.17} parent=35 // pred_check_branch
        %317 = sbr.rel (%p315) target = $region40
      $region39: #{dgcnn_origin_forward.17} parent=35 // pred_region
        %s318 = smul.u32 2, %s20
      $region40: #{dgcnn_origin_forward.17} parent=35 // pred_fallthru
        _
    $region36: #{dgcnn_origin_forward.17} parent=5 // pred_fallthru
      _
    %p319 = scmp.le.s32.totalorder 2, %s10
    // Predicated region
    $region41: #{dgcnn_origin_forward.17} parent=5 // pred_check
      %p320 = pneg %p319
    $region42: #{dgcnn_origin_forward.17} parent=5 // pred_check_branch
      %322 = sbr.rel (%p320) target = $region44
    $region43: #{dgcnn_origin_forward.17} parent=5 // pred_region
      %s323 = ssub.s32 %s10, 2
      // Predicated region
      $region45: #{dgcnn_origin_forward.17} parent=43 // pred_check
        %p324 = pneg %p151
      $region46: #{dgcnn_origin_forward.17} parent=43 // pred_check_branch
        %326 = sbr.rel (%p324) target = $region48
      $region47: #{dgcnn_origin_forward.17} parent=43 // pred_region
        %s327 = smul.u32 2, %s22
        %p328 = scmp.lt.s32.totalorder %s21, 1
        %s329 = scalar_select %p328, %s21, 1
        %p330 = scmp.lt.s32.totalorder %s327, 1
        %s331 = scalar_select %p330, %s327, 1
        %s332 = smul.addr %s329, 2
        %s333 = sadd.s32 %s331, %s332
        %s334 = smul.addr %s333, 8
        %s335 = scalar_lea.vmem %s4, %s334
      $region48: #{dgcnn_origin_forward.17} parent=43 // pred_fallthru
        _
    $region44: #{dgcnn_origin_forward.17} parent=5 // pred_fallthru
      _
  $region6: #{dgcnn_origin_forward.17} parent=0 // loop_footer
    %s14 = sadd.s32 1, %s10
  $region7: #{dgcnn_origin_forward.17} parent=0 // loop_footer_branch
    %9 = sbr.rel target = $region3
  $region8: #{dgcnn_origin_forward.17} parent=0 // loop_exit
    _

</llo_original>
